<compile_context>
chip_gen: v6e
topology: v6e:2x2x1
jax: 0.10.0
libtpu: 0.0.40
codegen_flags: <defaults>
</compile_context>

<pallas_src>
import math

import jax
import jax.numpy as jnp
from jax.experimental import pallas as pl
from jax.experimental.pallas import tpu as pltpu

# ----------------------------- config -------------------------------------
IMAGE_SIZE = 16
PATCH_SIZE = 8
CHANNELS = 3
HIDDEN = 64
HEADS = 4
HEAD_DIM = HIDDEN // HEADS
MLP_DIM = 4 * HIDDEN
NUM_LAYERS = 3
SELECT_LAYER = -2          # args.mm_vision_select_layer
SELECT_FEATURE = "patch"   # args.mm_vision_select_feature
EPS = 1e-5

GRID_SIDE = IMAGE_SIZE // PATCH_SIZE
NUM_PATCHES = GRID_SIDE * GRID_SIDE
SEQ = NUM_PATCHES + 1      # CLS token + patches (= 5)
SEQ_PAD = 8                # padded to one sublane tile per image
PATCH_DIM = CHANNELS * PATCH_SIZE * PATCH_SIZE

# hidden_states = [embeddings] + [layer_i output]; hidden_states[SELECT_LAYER]
# only needs the first NUM_RUN_LAYERS layers.
NUM_RUN_LAYERS = (NUM_LAYERS + 1 + SELECT_LAYER) if SELECT_LAYER < 0 else SELECT_LAYER
assert 1 <= NUM_RUN_LAYERS <= NUM_LAYERS

ROW_START = 1 if SELECT_FEATURE == "patch" else 0   # 'patch' drops CLS row
OUT_ROWS = SEQ - ROW_START

# Matmul operand dtype (bf16: 2x MXU rate on v6e/v7x, half the weight DMA;
# accumulation stays f32 via preferred_element_type; LN/softmax/gelu stay f32).
MATMUL_DTYPE = jnp.bfloat16


# --------------------------- shared math -----------------------------------
def _layer_norm(x, w, b):
    mu = jnp.mean(x, axis=-1, keepdims=True)
    var = jnp.mean((x - mu) ** 2, axis=-1, keepdims=True)
    return (x - mu) * jax.lax.rsqrt(var + EPS) * w + b


def _quick_gelu(x):
    # CLIP's hidden_act = "quick_gelu"
    return x * jax.nn.sigmoid(1.702 * x)


def _mm(a, b):
    return jnp.dot(a.astype(MATMUL_DTYPE), b.astype(MATMUL_DTYPE),
                   preferred_element_type=jnp.float32)


def _bmm(eq, a, b):
    return jnp.einsum(eq, a.astype(MATMUL_DTYPE), b.astype(MATMUL_DTYPE),
                      preferred_element_type=jnp.float32)


# ----------------------------- fused kernel ---------------------------------
def _clip_fused_kernel(patches_ref, w_patch_ref, cls_pos_ref, plnw_ref, plnb_ref,
                       hmask_ref, kbias_ref,
                       ln1w_ref, ln1b_ref, wqkv_ref, bqkv_ref, wo_ref, bo_ref,
                       ln2w_ref, ln2b_ref, w1_ref, b1_ref, w2_ref, b2_ref,
                       o_ref):
    """TILE_B images per grid step; M = TILE_B*SEQ_PAD rows, all VMEM-resident."""
    tile_b = o_ref.shape[0]
    m_rows = tile_b * SEQ_PAD

    # Patch embedding (Conv2d(3, D, k=patch, s=patch, bias=False) as matmul) for
    # all TILE_B images at once.  The host laid the rows out as
    # [CLS slot(zeros), patch0..patch3, pad zeros*3] per image, so adding the
    # host-precomputed (CLS+pos0 | pos1..4 | 0) slab builds h directly in vregs.
    pe = _mm(patches_ref[...], w_patch_ref[...])            # (M, D) f32
    h = pe + cls_pos_ref[...]

    # pre_layrnorm
    h = _layer_norm(h, plnw_ref[...], plnb_ref[...])

    kbias = kbias_ref[...]                                  # (1, SEQ_PAD): 0 / -1e30

    # Encoder layers (only the ones feeding hidden_states[SELECT_LAYER]).
    for l in range(wqkv_ref.shape[0]):
        # ---------------- self-attention (pre-LN) ----------------
        x = _layer_norm(h, ln1w_ref[l], ln1b_ref[l])
        # ONE lane-dense QKV matmul; 1/sqrt(head_dim) already folded into the
        # Q weight/bias columns (exact: 0.25 is a power of two).
        qkv = _mm(x, wqkv_ref[l]) + bqkv_ref[l]             # (M, 3D)
        qkv3 = qkv.reshape(tile_b, SEQ_PAD, 3 * HIDDEN)     # trivial 8-row regroup
        q3 = qkv3[:, :, :HIDDEN]
        k3 = qkv3[:, :, HIDDEN:2 * HIDDEN]
        v3 = qkv3[:, :, 2 * HIDDEN:]

        # Per-head attention via VPU column masks: the head split never touches
        # the lane axis; the MXU later reduces over heads in its K dimension.
        ctx = jnp.zeros((tile_b, SEQ_PAD, HIDDEN), jnp.float32)
        for hh in range(HEADS):
            m = hmask_ref[hh]                               # (1, D) 0/1 head columns
            s = _bmm('bqd,bkd->bqk', q3 * m, k3)            # (TB, S, S)
            s = s + kbias                                   # mask padded key rows
            s = s - jnp.max(s, axis=-1, keepdims=True)
            p = jnp.exp(s)
            p = p / jnp.sum(p, axis=-1, keepdims=True)      # exact (review item)
            ctx = ctx + _bmm('bqk,bkd->bqd', p, v3) * m

        # ONE output projection contracting over the full HIDDEN.
        attn = _mm(ctx.reshape(m_rows, HIDDEN), wo_ref[l]) + bo_ref[l]
        h = h + attn

        # ---------------- MLP block (pre-LN) ----------------
        y = _layer_norm(h, ln2w_ref[l], ln2b_ref[l])
        z = _quick_gelu(_mm(y, w1_ref[l]) + b1_ref[l])
        h = h + _mm(z, w2_ref[l]) + b2_ref[l]

    # feature_select('patch'): rows 1..NUM_PATCHES of every image, emitted as a
    # lane-dense (TILE_B, OUT_ROWS*HIDDEN) slab (unmasked vector stores).
    h3 = h.reshape(tile_b, SEQ_PAD, HIDDEN)
    feats = jnp.concatenate(
        [h3[:, ROW_START + r, :] for r in range(OUT_ROWS)], axis=-1)
    o_ref[...] = feats.astype(o_ref.dtype)


# ----------------------------- wrapper glue ---------------------------------
def _const_spec(shape):
    # Weights: full-array block, same block every grid step -> fetched once.
    nd = len(shape)
    return pl.BlockSpec(shape, lambda b, _nd=nd: (0,) * _nd)


def _pick_tile_b(batch):
    """Largest divisor of `batch` <= 8 that still leaves >= 2 grid steps (keeps
    both v7x TensorCores busy); degenerates gracefully for batch == 1."""
    best = 1
    for t in range(1, batch + 1):
        if t > 8 or batch % t:
            continue
        if batch // t >= 2 or batch == 1:
            best = t
    return best


def _im2col(images):
    # NCHW -> (B, P, C*ph*pw), patches row-major over the HxW grid, each patch
    # flattened (c, ph, pw) to match Conv2d weight.reshape(D, -1).
    B, C, H, W = images.shape
    gh, gw = H // PATCH_SIZE, W // PATCH_SIZE
    x = images.reshape(B, C, gh, PATCH_SIZE, gw, PATCH_SIZE)
    x = x.transpose(0, 2, 4, 1, 3, 5)
    return x.reshape(B, gh * gw, C * PATCH_SIZE * PATCH_SIZE)


def _extract_patch_rows(images):
    # (B, P, PATCH_DIM) -> (B*SEQ_PAD, PATCH_DIM) with per-image row layout
    # [CLS slot = 0, patch rows, padding rows = 0].
    B = images.shape[0]
    x = _im2col(images)
    rows = jnp.concatenate(
        [jnp.zeros((B, 1, PATCH_DIM), x.dtype), x,
         jnp.zeros((B, SEQ_PAD - SEQ, PATCH_DIM), x.dtype)], axis=1)
    return rows.reshape(B * SEQ_PAD, PATCH_DIM)


def _pack_layer_params(layers):
    """Stack the executed layers' weights into a few (L, ...) arrays.  The
    attention scale is folded into the Q columns (exact: power-of-two scale)."""
    scale = 1.0 / math.sqrt(HEAD_DIM)
    (ln1w, ln1b, wq, bq, wk, bk, wv, bv, wo, bo,
     ln2w, ln2b, w1, b1, w2, b2) = [jnp.stack([p[i] for p in layers])
                                    for i in range(16)]
    wqkv = jnp.concatenate([wq * scale, wk, wv], axis=-1)     # (L, D, 3D)
    bqkv = jnp.concatenate([bq * scale, bk, bv], axis=-1)     # (L, 1, 3D)
    mm = lambda w: w.astype(MATMUL_DTYPE)
    return [ln1w, ln1b, mm(wqkv), bqkv, mm(wo), bo,
            ln2w, ln2b, mm(w1), b1, mm(w2), b2]


@jax.jit
def clip_vision_tower_forward(images, params):
    """Equivalent of CLIPVisionTower.forward(images) with texts=None."""
    in_dtype = images.dtype
    images = images.astype(jnp.float32)            # .to(self.dtype)
    B = images.shape[0]
    tile_b = _pick_tile_b(B)
    nb = B // tile_b
    L = NUM_RUN_LAYERS

    patch_rows = _extract_patch_rows(images).astype(MATMUL_DTYPE)   # (B*8, 192)

    pos = params["pos"].reshape(SEQ, HIDDEN)
    cls_row = params["cls"].reshape(1, HIDDEN) + pos[0:1]
    cls_pos = jnp.concatenate(
        [cls_row, pos[1:SEQ],
         jnp.zeros((SEQ_PAD - SEQ, HIDDEN), jnp.float32)], axis=0)  # (8, 64)
    cls_pos_tiled = jnp.tile(cls_pos, (tile_b, 1))                  # (TB*8, 64)

    col = jnp.arange(HIDDEN)
    head_masks = jnp.stack(
        [((col >= h * HEAD_DIM) & (col < (h + 1) * HEAD_DIM)).astype(jnp.float32)
         for h in range(HEADS)])[:, None, :]                        # (HEADS,1,64)
    key_bias = jnp.where(jnp.arange(SEQ_PAD) < SEQ, 0.0,
                         -1e30).astype(jnp.float32)[None, :]        # (1, 8)

    layer_ops = _pack_layer_params(params["layers"][:L])
    operands = [patch_rows, params["w_patch"].astype(MATMUL_DTYPE),
                cls_pos_tiled, params["pre_ln_w"], params["pre_ln_b"],
                head_masks, key_bias] + layer_ops

    in_specs = [
        pl.BlockSpec((tile_b * SEQ_PAD, PATCH_DIM), lambda b: (b, 0)),
        _const_spec((PATCH_DIM, HIDDEN)),                # patch-embed weight
        _const_spec((tile_b * SEQ_PAD, HIDDEN)),         # CLS+pos row slab
        _const_spec((1, HIDDEN)),                        # pre-LN w
        _const_spec((1, HIDDEN)),                        # pre-LN b
        _const_spec((HEADS, 1, HIDDEN)),                 # head column masks
        _const_spec((1, SEQ_PAD)),                       # padded-key bias
        _const_spec((L, 1, HIDDEN)),                     # ln1 w
        _const_spec((L, 1, HIDDEN)),                     # ln1 b
        _const_spec((L, HIDDEN, 3 * HIDDEN)),            # fused qkv weight
        _const_spec((L, 1, 3 * HIDDEN)),                 # fused qkv bias
        _const_spec((L, HIDDEN, HIDDEN)),                # out-proj weight
        _const_spec((L, 1, HIDDEN)),                     # out-proj bias
        _const_spec((L, 1, HIDDEN)),                     # ln2 w
        _const_spec((L, 1, HIDDEN)),                     # ln2 b
        _const_spec((L, HIDDEN, MLP_DIM)),               # fc1 weight
        _const_spec((L, 1, MLP_DIM)),                    # fc1 bias
        _const_spec((L, MLP_DIM, HIDDEN)),               # fc2 weight
        _const_spec((L, 1, HIDDEN)),                     # fc2 bias
    ]

    # Advisory cost hint so XLA schedules the single fused call sensibly.
    tokens = B * SEQ_PAD
    per_tok = (PATCH_DIM * HIDDEN
               + L * (3 * HIDDEN * HIDDEN
                      + HEADS * 2 * SEQ_PAD * HIDDEN
                      + HIDDEN * HIDDEN
                      + 2 * HIDDEN * MLP_DIM))
    bytes_accessed = int(sum(int(x.size) * x.dtype.itemsize for x in operands)
                         + nb * tile_b * OUT_ROWS * HIDDEN * 4)
    cost = pl.CostEstimate(flops=int(2 * tokens * per_tok),
                           transcendentals=int(tokens * L * (HEADS * SEQ_PAD + MLP_DIM)),
                           bytes_accessed=bytes_accessed)

    feats = pl.pallas_call(
        _clip_fused_kernel,
        out_shape=jax.ShapeDtypeStruct((nb, tile_b, OUT_ROWS * HIDDEN), jnp.float32),
        grid=(nb,),
        in_specs=in_specs,
        out_specs=pl.BlockSpec((None, tile_b, OUT_ROWS * HIDDEN),
                               lambda b: (b, 0, 0)),
        compiler_params=pltpu.CompilerParams(
            dimension_semantics=("parallel",)),          # feeds both TCs on v7x
        cost_estimate=cost,
    )(*operands)

    feats = feats.reshape(B, OUT_ROWS, HIDDEN)
    return feats.astype(in_dtype)                        # .to(images.dtype)


# ----------------------------- init -----------------------------------------
def init_params(key):
    def nrm(k, shape, scale=0.02):
        return (scale * jax.random.normal(k, shape)).astype(jnp.float32)

    keys = iter(jax.random.split(key, 8 + NUM_LAYERS * 16))
    params = {
        "w_patch": nrm(next(keys), (PATCH_DIM, HIDDEN)),
        "cls": nrm(next(keys), (1, 1, HIDDEN)),
        "pos": nrm(next(keys), (1, SEQ, HIDDEN)),
        "pre_ln_w": jnp.ones((1, HIDDEN), jnp.float32),
        "pre_ln_b": jnp.zeros((1, HIDDEN), jnp.float32),
    }
    layers = []
    for _ in range(NUM_LAYERS):
        layers.append((
            jnp.ones((1, HIDDEN), jnp.float32),   # ln1 w
            jnp.zeros((1, HIDDEN), jnp.float32),  # ln1 b
            nrm(next(keys), (HIDDEN, HIDDEN)),    # wq
            nrm(next(keys), (1, HIDDEN)),         # bq
            nrm(next(keys), (HIDDEN, HIDDEN)),    # wk
            nrm(next(keys), (1, HIDDEN)),         # bk
            nrm(next(keys), (HIDDEN, HIDDEN)),    # wv
            nrm(next(keys), (1, HIDDEN)),         # bv
            nrm(next(keys), (HIDDEN, HIDDEN)),    # wo
            nrm(next(keys), (1, HIDDEN)),         # bo
            jnp.ones((1, HIDDEN), jnp.float32),   # ln2 w
            jnp.zeros((1, HIDDEN), jnp.float32),  # ln2 b
            nrm(next(keys), (HIDDEN, MLP_DIM)),   # fc1 w
            nrm(next(keys), (1, MLP_DIM)),        # fc1 b
            nrm(next(keys), (MLP_DIM, HIDDEN)),   # fc2 w
            nrm(next(keys), (1, HIDDEN)),         # fc2 b
        ))
    params["layers"] = layers
    return params


# --------------------------- pure-JAX reference ------------------------------
# Literal translation (no padding, no fusion, scale applied after q-projection,
# per-head lane slices, all NUM_LAYERS run).  Matmul operands use the same
# MATMUL_DTYPE so the comparison isolates kernel-structure differences.
def _reference_encoder_layer(h, p):
    (ln1w, ln1b, wq, bq, wk, bk, wv, bv, wo, bo,
     ln2w, ln2b, w1, b1, w2, b2) = p
    Bb, S, D = h.shape
    x = _layer_norm(h, ln1w, ln1b).reshape(Bb * S, D)
    q = (_mm(x, wq) + bq).reshape(Bb, S, D)
    k = (_mm(x, wk) + bk).reshape(Bb, S, D)
    v = (_mm(x, wv) + bv).reshape(Bb, S, D)
    scale = 1.0 / math.sqrt(HEAD_DIM)
    heads = []
    for hh in range(HEADS):
        sl = slice(hh * HEAD_DIM, (hh + 1) * HEAD_DIM)
        s = _bmm('bqd,bkd->bqk', q[:, :, sl] * scale, k[:, :, sl])
        s = s - jnp.max(s, axis=-1, keepdims=True)
        pr = jnp.exp(s)
        pr = pr / jnp.sum(pr, axis=-1, keepdims=True)
        heads.append(_bmm('bqk,bkd->bqd', pr, v[:, :, sl]))
    attn = jnp.concatenate(heads, axis=-1).reshape(Bb * S, D)
    attn = _mm(attn, wo) + bo
    h = h + attn.reshape(Bb, S, D)
    y = _layer_norm(h, ln2w, ln2b).reshape(Bb * S, D)
    z = _quick_gelu(_mm(y, w1) + b1)
    z = _mm(z, w2) + b2
    return h + z.reshape(Bb, S, D)


def reference_forward(images, params):
    """Runs ALL layers, then selects hidden_states[SELECT_LAYER], drops CLS."""
    in_dtype = images.dtype
    images = images.astype(jnp.float32)
    Bb = images.shape[0]
    patches = _im2col(images).reshape(Bb * NUM_PATCHES, PATCH_DIM)
    pe = _mm(patches, params["w_patch"]).reshape(Bb, NUM_PATCHES, HIDDEN)
    cls = jnp.broadcast_to(params["cls"].reshape(1, 1, HIDDEN), (Bb, 1, HIDDEN))
    h = jnp.concatenate([cls, pe], axis=1) + params["pos"].reshape(1, SEQ, HIDDEN)
    h = _layer_norm(h, params["pre_ln_w"], params["pre_ln_b"])
    hidden_states = [h]
    for layer_params in params["layers"]:
        h = _reference_encoder_layer(h, layer_params)
        hidden_states.append(h)
    feats = hidden_states[SELECT_LAYER]
    if SELECT_FEATURE == "patch":
        feats = feats[:, 1:]
    return feats.astype(in_dtype)


# ------------------------------- main ---------------------------------------
if __name__ == "__main__":
    key = jax.random.PRNGKey(0)
    k_img, k_par = jax.random.split(key)
    B = 8                                              # -> TILE_B=4, grid=(2,)
    images = jax.random.normal(k_img, (B, CHANNELS, IMAGE_SIZE, IMAGE_SIZE),
                               dtype=jnp.float32)      # NCHW, like PyTorch
    params = init_params(k_par)

    out = clip_vision_tower_forward(images, params)
    out = jax.block_until_ready(out)

    ref = reference_forward(images, params)
    assert out.shape == (B, OUT_ROWS, HIDDEN), out.shape
    assert out.dtype == images.dtype
    assert bool(jnp.all(jnp.isfinite(out)))
    max_err = float(jnp.max(jnp.abs(out - ref)))
    # bf16 matmul operands (matched in the reference) -> loosened tolerance.
    tol = 1e-2 if MATMUL_DTYPE == jnp.bfloat16 else 1e-4
    assert jnp.allclose(out, ref, rtol=tol, atol=tol), max_err

    # TODO(synk): texts!=None branch (CLIPTokenizerFast, CLIPTextModelWithProjection,
    # visual_projection) and the list-of-images branch need pretrained assets /
    # tokenization; not reproduced here.  CUDA streams are a no-op on TPU.
    print("KERNEL_OK")
</pallas_src>

<mosaic_0001>
module attributes {stable_mosaic.version = 11 : i64} {
  func.func @_clip_fused_kernel(%arg0: i32, %arg1: memref<32x192xbf16, #tpu.memory_space<vmem>>, %arg2: memref<192x64xbf16, #tpu.memory_space<vmem>>, %arg3: memref<32x64xf32, #tpu.memory_space<vmem>>, %arg4: memref<1x64xf32, #tpu.memory_space<vmem>>, %arg5: memref<1x64xf32, #tpu.memory_space<vmem>>, %arg6: memref<4x1x64xf32, #tpu.memory_space<vmem>>, %arg7: memref<1x8xf32, #tpu.memory_space<vmem>>, %arg8: memref<2x1x64xf32, #tpu.memory_space<vmem>>, %arg9: memref<2x1x64xf32, #tpu.memory_space<vmem>>, %arg10: memref<2x64x192xbf16, #tpu.memory_space<vmem>>, %arg11: memref<2x1x192xf32, #tpu.memory_space<vmem>>, %arg12: memref<2x64x64xbf16, #tpu.memory_space<vmem>>, %arg13: memref<2x1x64xf32, #tpu.memory_space<vmem>>, %arg14: memref<2x1x64xf32, #tpu.memory_space<vmem>>, %arg15: memref<2x1x64xf32, #tpu.memory_space<vmem>>, %arg16: memref<2x64x256xbf16, #tpu.memory_space<vmem>>, %arg17: memref<2x1x256xf32, #tpu.memory_space<vmem>>, %arg18: memref<2x256x64xbf16, #tpu.memory_space<vmem>>, %arg19: memref<2x1x64xf32, #tpu.memory_space<vmem>>, %arg20: memref<1x4x256xf32, #tpu.memory_space<vmem>>) attributes {dimension_semantics = [#tpu.dimension_semantics<parallel>], iteration_bounds = array<i64: 2>, scalar_prefetch = 0 : i64, scratch_operands = 0 : i64, tpu.core_type = #tpu.core_type<tc>, window_params = [{transform_indices = @transform_0, window_bounds = array<i64: 32, 192>}, {pipeline_mode = #tpu.pipeline_mode<synchronous>, transform_indices = @transform_1, window_bounds = array<i64: 192, 64>}, {pipeline_mode = #tpu.pipeline_mode<synchronous>, transform_indices = @transform_2, window_bounds = array<i64: 32, 64>}, {pipeline_mode = #tpu.pipeline_mode<synchronous>, transform_indices = @transform_3, window_bounds = array<i64: 1, 64>}, {pipeline_mode = #tpu.pipeline_mode<synchronous>, transform_indices = @transform_4, window_bounds = array<i64: 1, 64>}, {pipeline_mode = #tpu.pipeline_mode<synchronous>, transform_indices = @transform_5, window_bounds = array<i64: 4, 1, 64>}, {pipeline_mode = #tpu.pipeline_mode<synchronous>, transform_indices = @transform_6, window_bounds = array<i64: 1, 8>}, {pipeline_mode = #tpu.pipeline_mode<synchronous>, transform_indices = @transform_7, window_bounds = array<i64: 2, 1, 64>}, {pipeline_mode = #tpu.pipeline_mode<synchronous>, transform_indices = @transform_8, window_bounds = array<i64: 2, 1, 64>}, {pipeline_mode = #tpu.pipeline_mode<synchronous>, transform_indices = @transform_9, window_bounds = array<i64: 2, 64, 192>}, {pipeline_mode = #tpu.pipeline_mode<synchronous>, transform_indices = @transform_10, window_bounds = array<i64: 2, 1, 192>}, {pipeline_mode = #tpu.pipeline_mode<synchronous>, transform_indices = @transform_11, window_bounds = array<i64: 2, 64, 64>}, {pipeline_mode = #tpu.pipeline_mode<synchronous>, transform_indices = @transform_12, window_bounds = array<i64: 2, 1, 64>}, {pipeline_mode = #tpu.pipeline_mode<synchronous>, transform_indices = @transform_13, window_bounds = array<i64: 2, 1, 64>}, {pipeline_mode = #tpu.pipeline_mode<synchronous>, transform_indices = @transform_14, window_bounds = array<i64: 2, 1, 64>}, {pipeline_mode = #tpu.pipeline_mode<synchronous>, transform_indices = @transform_15, window_bounds = array<i64: 2, 64, 256>}, {pipeline_mode = #tpu.pipeline_mode<synchronous>, transform_indices = @transform_16, window_bounds = array<i64: 2, 1, 256>}, {pipeline_mode = #tpu.pipeline_mode<synchronous>, transform_indices = @transform_17, window_bounds = array<i64: 2, 256, 64>}, {pipeline_mode = #tpu.pipeline_mode<synchronous>, transform_indices = @transform_18, window_bounds = array<i64: 2, 1, 64>}, {transform_indices = @transform_19, window_bounds = array<i64: 1, 4, 256>}]} {
    %c0 = arith.constant 0 : index
    %c0_0 = arith.constant 0 : index
    %0 = vector.load %arg1[%c0, %c0_0] : memref<32x192xbf16, #tpu.memory_space<vmem>>, vector<32x192xbf16>
    %c0_1 = arith.constant 0 : index
    %c0_2 = arith.constant 0 : index
    %1 = vector.load %arg2[%c0_1, %c0_2] : memref<192x64xbf16, #tpu.memory_space<vmem>>, vector<192x64xbf16>
    %cst = arith.constant dense<0.000000e+00> : vector<32x64xf32>
    %2 = tpu.matmul %0, %1, %cst {dimension_numbers = #tpu.dot_dimension_numbers<[1], [0], [0], [1], [0, 0, 1, 1], [], []>} : vector<32x192xbf16>, vector<192x64xbf16>, vector<32x64xf32> -> vector<32x64xf32>
    %c0_3 = arith.constant 0 : index
    %c0_4 = arith.constant 0 : index
    %3 = vector.load %arg3[%c0_3, %c0_4] : memref<32x64xf32, #tpu.memory_space<vmem>>, vector<32x64xf32>
    %4 = arith.addf %2, %3 : vector<32x64xf32>
    %c0_5 = arith.constant 0 : index
    %c0_6 = arith.constant 0 : index
    %5 = vector.load %arg4[%c0_5, %c0_6] : memref<1x64xf32, #tpu.memory_space<vmem>>, vector<1x64xf32>
    %c0_7 = arith.constant 0 : index
    %c0_8 = arith.constant 0 : index
    %6 = vector.load %arg5[%c0_7, %c0_8] : memref<1x64xf32, #tpu.memory_space<vmem>>, vector<1x64xf32>
    %cst_9 = arith.constant dense<0.000000e+00> : vector<32xf32>
    %7 = vector.multi_reduction <add>, %4, %cst_9 [1] : vector<32x64xf32> to vector<32xf32>
    %8 = vector.shape_cast %7 : vector<32xf32> to vector<32x1xf32>
    %cst_10 = arith.constant 6.400000e+01 : f32
    %9 = vector.broadcast %cst_10 : f32 to vector<32x1xf32>
    %10 = arith.divf %8, %9 : vector<32x1xf32>
    %11 = vector.broadcast %10 : vector<32x1xf32> to vector<32x64xf32>
    %12 = arith.subf %4, %11 : vector<32x64xf32>
    %13 = arith.mulf %12, %12 : vector<32x64xf32>
    %cst_11 = arith.constant dense<0.000000e+00> : vector<32xf32>
    %14 = vector.multi_reduction <add>, %13, %cst_11 [1] : vector<32x64xf32> to vector<32xf32>
    %15 = vector.shape_cast %14 : vector<32xf32> to vector<32x1xf32>
    %cst_12 = arith.constant 6.400000e+01 : f32
    %16 = vector.broadcast %cst_12 : f32 to vector<32x1xf32>
    %17 = arith.divf %15, %16 : vector<32x1xf32>
    %18 = vector.broadcast %10 : vector<32x1xf32> to vector<32x64xf32>
    %19 = arith.subf %4, %18 : vector<32x64xf32>
    %cst_13 = arith.constant 9.99999974E-6 : f32
    %20 = vector.broadcast %cst_13 : f32 to vector<32x1xf32>
    %21 = arith.addf %17, %20 : vector<32x1xf32>
    %22 = math.rsqrt %21 : vector<32x1xf32>
    %23 = vector.broadcast %22 : vector<32x1xf32> to vector<32x64xf32>
    %24 = arith.mulf %19, %23 : vector<32x64xf32>
    %25 = vector.broadcast %5 : vector<1x64xf32> to vector<32x64xf32>
    %26 = arith.mulf %24, %25 : vector<32x64xf32>
    %27 = vector.broadcast %6 : vector<1x64xf32> to vector<32x64xf32>
    %28 = arith.addf %26, %27 : vector<32x64xf32>
    %c0_14 = arith.constant 0 : index
    %c0_15 = arith.constant 0 : index
    %29 = vector.load %arg7[%c0_14, %c0_15] : memref<1x8xf32, #tpu.memory_space<vmem>>, vector<1x8xf32>
    %c0_16 = arith.constant 0 : index
    %c0_17 = arith.constant 0 : index
    %c0_18 = arith.constant 0 : index
    %30 = vector.load %arg8[%c0_16, %c0_17, %c0_18] : memref<2x1x64xf32, #tpu.memory_space<vmem>>, vector<1x1x64xf32>
    %31 = vector.shape_cast %30 : vector<1x1x64xf32> to vector<1x64xf32>
    %c0_19 = arith.constant 0 : index
    %c0_20 = arith.constant 0 : index
    %c0_21 = arith.constant 0 : index
    %32 = vector.load %arg9[%c0_19, %c0_20, %c0_21] : memref<2x1x64xf32, #tpu.memory_space<vmem>>, vector<1x1x64xf32>
    %33 = vector.shape_cast %32 : vector<1x1x64xf32> to vector<1x64xf32>
    %cst_22 = arith.constant dense<0.000000e+00> : vector<32xf32>
    %34 = vector.multi_reduction <add>, %28, %cst_22 [1] : vector<32x64xf32> to vector<32xf32>
    %35 = vector.shape_cast %34 : vector<32xf32> to vector<32x1xf32>
    %cst_23 = arith.constant 6.400000e+01 : f32
    %36 = vector.broadcast %cst_23 : f32 to vector<32x1xf32>
    %37 = arith.divf %35, %36 : vector<32x1xf32>
    %38 = vector.broadcast %37 : vector<32x1xf32> to vector<32x64xf32>
    %39 = arith.subf %28, %38 : vector<32x64xf32>
    %40 = arith.mulf %39, %39 : vector<32x64xf32>
    %cst_24 = arith.constant dense<0.000000e+00> : vector<32xf32>
    %41 = vector.multi_reduction <add>, %40, %cst_24 [1] : vector<32x64xf32> to vector<32xf32>
    %42 = vector.shape_cast %41 : vector<32xf32> to vector<32x1xf32>
    %cst_25 = arith.constant 6.400000e+01 : f32
    %43 = vector.broadcast %cst_25 : f32 to vector<32x1xf32>
    %44 = arith.divf %42, %43 : vector<32x1xf32>
    %45 = vector.broadcast %37 : vector<32x1xf32> to vector<32x64xf32>
    %46 = arith.subf %28, %45 : vector<32x64xf32>
    %cst_26 = arith.constant 9.99999974E-6 : f32
    %47 = vector.broadcast %cst_26 : f32 to vector<32x1xf32>
    %48 = arith.addf %44, %47 : vector<32x1xf32>
    %49 = math.rsqrt %48 : vector<32x1xf32>
    %50 = vector.broadcast %49 : vector<32x1xf32> to vector<32x64xf32>
    %51 = arith.mulf %46, %50 : vector<32x64xf32>
    %52 = vector.broadcast %31 : vector<1x64xf32> to vector<32x64xf32>
    %53 = arith.mulf %51, %52 : vector<32x64xf32>
    %54 = vector.broadcast %33 : vector<1x64xf32> to vector<32x64xf32>
    %55 = arith.addf %53, %54 : vector<32x64xf32>
    %c0_27 = arith.constant 0 : index
    %c0_28 = arith.constant 0 : index
    %c0_29 = arith.constant 0 : index
    %56 = vector.load %arg10[%c0_27, %c0_28, %c0_29] : memref<2x64x192xbf16, #tpu.memory_space<vmem>>, vector<1x64x192xbf16>
    %57 = vector.shape_cast %56 : vector<1x64x192xbf16> to vector<64x192xbf16>
    %58 = arith.truncf %55 : vector<32x64xf32> to vector<32x64xbf16>
    %cst_30 = arith.constant dense<0.000000e+00> : vector<32x192xf32>
    %59 = tpu.matmul %58, %57, %cst_30 {dimension_numbers = #tpu.dot_dimension_numbers<[1], [0], [0], [1], [0, 0, 1, 1], [], []>} : vector<32x64xbf16>, vector<64x192xbf16>, vector<32x192xf32> -> vector<32x192xf32>
    %c0_31 = arith.constant 0 : index
    %c0_32 = arith.constant 0 : index
    %c0_33 = arith.constant 0 : index
    %60 = vector.load %arg11[%c0_31, %c0_32, %c0_33] : memref<2x1x192xf32, #tpu.memory_space<vmem>>, vector<1x1x192xf32>
    %61 = vector.shape_cast %60 : vector<1x1x192xf32> to vector<1x192xf32>
    %62 = vector.broadcast %61 : vector<1x192xf32> to vector<32x192xf32>
    %63 = arith.addf %59, %62 : vector<32x192xf32>
    %64 = vector.shape_cast %63 : vector<32x192xf32> to vector<4x8x192xf32>
    %65 = vector.extract_strided_slice %64 {offsets = [0, 0, 0], sizes = [4, 8, 64], strides = [1, 1, 1]} : vector<4x8x192xf32> to vector<4x8x64xf32>
    %66 = vector.extract_strided_slice %64 {offsets = [0, 0, 64], sizes = [4, 8, 64], strides = [1, 1, 1]} : vector<4x8x192xf32> to vector<4x8x64xf32>
    %67 = vector.extract_strided_slice %64 {offsets = [0, 0, 128], sizes = [4, 8, 64], strides = [1, 1, 1]} : vector<4x8x192xf32> to vector<4x8x64xf32>
    %cst_34 = arith.constant 0.000000e+00 : f32
    %68 = vector.broadcast %cst_34 : f32 to vector<4x8x64xf32>
    %c0_35 = arith.constant 0 : index
    %c0_36 = arith.constant 0 : index
    %c0_37 = arith.constant 0 : index
    %69 = vector.load %arg6[%c0_35, %c0_36, %c0_37] : memref<4x1x64xf32, #tpu.memory_space<vmem>>, vector<1x1x64xf32>
    %70 = vector.shape_cast %69 : vector<1x1x64xf32> to vector<1x64xf32>
    %71 = vector.shape_cast %70 : vector<1x64xf32> to vector<1x1x64xf32>
    %72 = vector.broadcast %71 : vector<1x1x64xf32> to vector<4x8x64xf32>
    %73 = arith.mulf %65, %72 : vector<4x8x64xf32>
    %74 = arith.truncf %73 : vector<4x8x64xf32> to vector<4x8x64xbf16>
    %75 = arith.truncf %66 : vector<4x8x64xf32> to vector<4x8x64xbf16>
    "tpu.trace_start"() <{level = 10 : i32, message = "bqd,bkd->bqk"}> : () -> ()
    %cst_38 = arith.constant dense<0.000000e+00> : vector<4x8x8xf32>
    %76 = tpu.matmul %74, %75, %cst_38 {dimension_numbers = #tpu.dot_dimension_numbers<[2], [2], [1], [1], [0, 0, 0, 1, 1, 1], [0], [0]>} : vector<4x8x64xbf16>, vector<4x8x64xbf16>, vector<4x8x8xf32> -> vector<4x8x8xf32>
    "tpu.trace_stop"() : () -> ()
    %77 = vector.shape_cast %29 : vector<1x8xf32> to vector<1x1x8xf32>
    %78 = vector.broadcast %77 : vector<1x1x8xf32> to vector<4x8x8xf32>
    %79 = arith.addf %76, %78 : vector<4x8x8xf32>
    %cst_39 = arith.constant dense<0xFF800000> : vector<4x8xf32>
    %80 = vector.multi_reduction <maximumf>, %79, %cst_39 [2] : vector<4x8x8xf32> to vector<4x8xf32>
    %81 = vector.shape_cast %80 : vector<4x8xf32> to vector<4x8x1xf32>
    %82 = vector.broadcast %81 : vector<4x8x1xf32> to vector<4x8x8xf32>
    %83 = arith.subf %79, %82 : vector<4x8x8xf32>
    %84 = math.exp %83 : vector<4x8x8xf32>
    %cst_40 = arith.constant dense<0.000000e+00> : vector<4x8xf32>
    %85 = vector.multi_reduction <add>, %84, %cst_40 [2] : vector<4x8x8xf32> to vector<4x8xf32>
    %86 = vector.shape_cast %85 : vector<4x8xf32> to vector<4x8x1xf32>
    %87 = vector.broadcast %86 : vector<4x8x1xf32> to vector<4x8x8xf32>
    %88 = arith.divf %84, %87 : vector<4x8x8xf32>
    %89 = arith.truncf %88 : vector<4x8x8xf32> to vector<4x8x8xbf16>
    %90 = arith.truncf %67 : vector<4x8x64xf32> to vector<4x8x64xbf16>
    "tpu.trace_start"() <{level = 10 : i32, message = "bqk,bkd->bqd"}> : () -> ()
    %cst_41 = arith.constant dense<0.000000e+00> : vector<4x8x64xf32>
    %91 = tpu.matmul %89, %90, %cst_41 {dimension_numbers = #tpu.dot_dimension_numbers<[2], [1], [1], [2], [0, 0, 0, 1, 1, 2], [0], [0]>} : vector<4x8x8xbf16>, vector<4x8x64xbf16>, vector<4x8x64xf32> -> vector<4x8x64xf32>
    "tpu.trace_stop"() : () -> ()
    %92 = vector.shape_cast %70 : vector<1x64xf32> to vector<1x1x64xf32>
    %93 = vector.broadcast %92 : vector<1x1x64xf32> to vector<4x8x64xf32>
    %94 = arith.mulf %91, %93 : vector<4x8x64xf32>
    %95 = arith.addf %68, %94 : vector<4x8x64xf32>
    %c1 = arith.constant 1 : index
    %c0_42 = arith.constant 0 : index
    %c0_43 = arith.constant 0 : index
    %96 = vector.load %arg6[%c1, %c0_42, %c0_43] : memref<4x1x64xf32, #tpu.memory_space<vmem>>, vector<1x1x64xf32>
    %97 = vector.shape_cast %96 : vector<1x1x64xf32> to vector<1x64xf32>
    %98 = vector.shape_cast %97 : vector<1x64xf32> to vector<1x1x64xf32>
    %99 = vector.broadcast %98 : vector<1x1x64xf32> to vector<4x8x64xf32>
    %100 = arith.mulf %65, %99 : vector<4x8x64xf32>
    %101 = arith.truncf %100 : vector<4x8x64xf32> to vector<4x8x64xbf16>
    %102 = arith.truncf %66 : vector<4x8x64xf32> to vector<4x8x64xbf16>
    "tpu.trace_start"() <{level = 10 : i32, message = "bqd,bkd->bqk"}> : () -> ()
    %cst_44 = arith.constant dense<0.000000e+00> : vector<4x8x8xf32>
    %103 = tpu.matmul %101, %102, %cst_44 {dimension_numbers = #tpu.dot_dimension_numbers<[2], [2], [1], [1], [0, 0, 0, 1, 1, 1], [0], [0]>} : vector<4x8x64xbf16>, vector<4x8x64xbf16>, vector<4x8x8xf32> -> vector<4x8x8xf32>
    "tpu.trace_stop"() : () -> ()
    %104 = vector.shape_cast %29 : vector<1x8xf32> to vector<1x1x8xf32>
    %105 = vector.broadcast %104 : vector<1x1x8xf32> to vector<4x8x8xf32>
    %106 = arith.addf %103, %105 : vector<4x8x8xf32>
    %cst_45 = arith.constant dense<0xFF800000> : vector<4x8xf32>
    %107 = vector.multi_reduction <maximumf>, %106, %cst_45 [2] : vector<4x8x8xf32> to vector<4x8xf32>
    %108 = vector.shape_cast %107 : vector<4x8xf32> to vector<4x8x1xf32>
    %109 = vector.broadcast %108 : vector<4x8x1xf32> to vector<4x8x8xf32>
    %110 = arith.subf %106, %109 : vector<4x8x8xf32>
    %111 = math.exp %110 : vector<4x8x8xf32>
    %cst_46 = arith.constant dense<0.000000e+00> : vector<4x8xf32>
    %112 = vector.multi_reduction <add>, %111, %cst_46 [2] : vector<4x8x8xf32> to vector<4x8xf32>
    %113 = vector.shape_cast %112 : vector<4x8xf32> to vector<4x8x1xf32>
    %114 = vector.broadcast %113 : vector<4x8x1xf32> to vector<4x8x8xf32>
    %115 = arith.divf %111, %114 : vector<4x8x8xf32>
    %116 = arith.truncf %115 : vector<4x8x8xf32> to vector<4x8x8xbf16>
    %117 = arith.truncf %67 : vector<4x8x64xf32> to vector<4x8x64xbf16>
    "tpu.trace_start"() <{level = 10 : i32, message = "bqk,bkd->bqd"}> : () -> ()
    %cst_47 = arith.constant dense<0.000000e+00> : vector<4x8x64xf32>
    %118 = tpu.matmul %116, %117, %cst_47 {dimension_numbers = #tpu.dot_dimension_numbers<[2], [1], [1], [2], [0, 0, 0, 1, 1, 2], [0], [0]>} : vector<4x8x8xbf16>, vector<4x8x64xbf16>, vector<4x8x64xf32> -> vector<4x8x64xf32>
    "tpu.trace_stop"() : () -> ()
    %119 = vector.shape_cast %97 : vector<1x64xf32> to vector<1x1x64xf32>
    %120 = vector.broadcast %119 : vector<1x1x64xf32> to vector<4x8x64xf32>
    %121 = arith.mulf %118, %120 : vector<4x8x64xf32>
    %122 = arith.addf %95, %121 : vector<4x8x64xf32>
    %c2 = arith.constant 2 : index
    %c0_48 = arith.constant 0 : index
    %c0_49 = arith.constant 0 : index
    %123 = vector.load %arg6[%c2, %c0_48, %c0_49] : memref<4x1x64xf32, #tpu.memory_space<vmem>>, vector<1x1x64xf32>
    %124 = vector.shape_cast %123 : vector<1x1x64xf32> to vector<1x64xf32>
    %125 = vector.shape_cast %124 : vector<1x64xf32> to vector<1x1x64xf32>
    %126 = vector.broadcast %125 : vector<1x1x64xf32> to vector<4x8x64xf32>
    %127 = arith.mulf %65, %126 : vector<4x8x64xf32>
    %128 = arith.truncf %127 : vector<4x8x64xf32> to vector<4x8x64xbf16>
    %129 = arith.truncf %66 : vector<4x8x64xf32> to vector<4x8x64xbf16>
    "tpu.trace_start"() <{level = 10 : i32, message = "bqd,bkd->bqk"}> : () -> ()
    %cst_50 = arith.constant dense<0.000000e+00> : vector<4x8x8xf32>
    %130 = tpu.matmul %128, %129, %cst_50 {dimension_numbers = #tpu.dot_dimension_numbers<[2], [2], [1], [1], [0, 0, 0, 1, 1, 1], [0], [0]>} : vector<4x8x64xbf16>, vector<4x8x64xbf16>, vector<4x8x8xf32> -> vector<4x8x8xf32>
    "tpu.trace_stop"() : () -> ()
    %131 = vector.shape_cast %29 : vector<1x8xf32> to vector<1x1x8xf32>
    %132 = vector.broadcast %131 : vector<1x1x8xf32> to vector<4x8x8xf32>
    %133 = arith.addf %130, %132 : vector<4x8x8xf32>
    %cst_51 = arith.constant dense<0xFF800000> : vector<4x8xf32>
    %134 = vector.multi_reduction <maximumf>, %133, %cst_51 [2] : vector<4x8x8xf32> to vector<4x8xf32>
    %135 = vector.shape_cast %134 : vector<4x8xf32> to vector<4x8x1xf32>
    %136 = vector.broadcast %135 : vector<4x8x1xf32> to vector<4x8x8xf32>
    %137 = arith.subf %133, %136 : vector<4x8x8xf32>
    %138 = math.exp %137 : vector<4x8x8xf32>
    %cst_52 = arith.constant dense<0.000000e+00> : vector<4x8xf32>
    %139 = vector.multi_reduction <add>, %138, %cst_52 [2] : vector<4x8x8xf32> to vector<4x8xf32>
    %140 = vector.shape_cast %139 : vector<4x8xf32> to vector<4x8x1xf32>
    %141 = vector.broadcast %140 : vector<4x8x1xf32> to vector<4x8x8xf32>
    %142 = arith.divf %138, %141 : vector<4x8x8xf32>
    %143 = arith.truncf %142 : vector<4x8x8xf32> to vector<4x8x8xbf16>
    %144 = arith.truncf %67 : vector<4x8x64xf32> to vector<4x8x64xbf16>
    "tpu.trace_start"() <{level = 10 : i32, message = "bqk,bkd->bqd"}> : () -> ()
    %cst_53 = arith.constant dense<0.000000e+00> : vector<4x8x64xf32>
    %145 = tpu.matmul %143, %144, %cst_53 {dimension_numbers = #tpu.dot_dimension_numbers<[2], [1], [1], [2], [0, 0, 0, 1, 1, 2], [0], [0]>} : vector<4x8x8xbf16>, vector<4x8x64xbf16>, vector<4x8x64xf32> -> vector<4x8x64xf32>
    "tpu.trace_stop"() : () -> ()
    %146 = vector.shape_cast %124 : vector<1x64xf32> to vector<1x1x64xf32>
    %147 = vector.broadcast %146 : vector<1x1x64xf32> to vector<4x8x64xf32>
    %148 = arith.mulf %145, %147 : vector<4x8x64xf32>
    %149 = arith.addf %122, %148 : vector<4x8x64xf32>
    %c3 = arith.constant 3 : index
    %c0_54 = arith.constant 0 : index
    %c0_55 = arith.constant 0 : index
    %150 = vector.load %arg6[%c3, %c0_54, %c0_55] : memref<4x1x64xf32, #tpu.memory_space<vmem>>, vector<1x1x64xf32>
    %151 = vector.shape_cast %150 : vector<1x1x64xf32> to vector<1x64xf32>
    %152 = vector.shape_cast %151 : vector<1x64xf32> to vector<1x1x64xf32>
    %153 = vector.broadcast %152 : vector<1x1x64xf32> to vector<4x8x64xf32>
    %154 = arith.mulf %65, %153 : vector<4x8x64xf32>
    %155 = arith.truncf %154 : vector<4x8x64xf32> to vector<4x8x64xbf16>
    %156 = arith.truncf %66 : vector<4x8x64xf32> to vector<4x8x64xbf16>
    "tpu.trace_start"() <{level = 10 : i32, message = "bqd,bkd->bqk"}> : () -> ()
    %cst_56 = arith.constant dense<0.000000e+00> : vector<4x8x8xf32>
    %157 = tpu.matmul %155, %156, %cst_56 {dimension_numbers = #tpu.dot_dimension_numbers<[2], [2], [1], [1], [0, 0, 0, 1, 1, 1], [0], [0]>} : vector<4x8x64xbf16>, vector<4x8x64xbf16>, vector<4x8x8xf32> -> vector<4x8x8xf32>
    "tpu.trace_stop"() : () -> ()
    %158 = vector.shape_cast %29 : vector<1x8xf32> to vector<1x1x8xf32>
    %159 = vector.broadcast %158 : vector<1x1x8xf32> to vector<4x8x8xf32>
    %160 = arith.addf %157, %159 : vector<4x8x8xf32>
    %cst_57 = arith.constant dense<0xFF800000> : vector<4x8xf32>
    %161 = vector.multi_reduction <maximumf>, %160, %cst_57 [2] : vector<4x8x8xf32> to vector<4x8xf32>
    %162 = vector.shape_cast %161 : vector<4x8xf32> to vector<4x8x1xf32>
    %163 = vector.broadcast %162 : vector<4x8x1xf32> to vector<4x8x8xf32>
    %164 = arith.subf %160, %163 : vector<4x8x8xf32>
    %165 = math.exp %164 : vector<4x8x8xf32>
    %cst_58 = arith.constant dense<0.000000e+00> : vector<4x8xf32>
    %166 = vector.multi_reduction <add>, %165, %cst_58 [2] : vector<4x8x8xf32> to vector<4x8xf32>
    %167 = vector.shape_cast %166 : vector<4x8xf32> to vector<4x8x1xf32>
    %168 = vector.broadcast %167 : vector<4x8x1xf32> to vector<4x8x8xf32>
    %169 = arith.divf %165, %168 : vector<4x8x8xf32>
    %170 = arith.truncf %169 : vector<4x8x8xf32> to vector<4x8x8xbf16>
    %171 = arith.truncf %67 : vector<4x8x64xf32> to vector<4x8x64xbf16>
    "tpu.trace_start"() <{level = 10 : i32, message = "bqk,bkd->bqd"}> : () -> ()
    %cst_59 = arith.constant dense<0.000000e+00> : vector<4x8x64xf32>
    %172 = tpu.matmul %170, %171, %cst_59 {dimension_numbers = #tpu.dot_dimension_numbers<[2], [1], [1], [2], [0, 0, 0, 1, 1, 2], [0], [0]>} : vector<4x8x8xbf16>, vector<4x8x64xbf16>, vector<4x8x64xf32> -> vector<4x8x64xf32>
    "tpu.trace_stop"() : () -> ()
    %173 = vector.shape_cast %151 : vector<1x64xf32> to vector<1x1x64xf32>
    %174 = vector.broadcast %173 : vector<1x1x64xf32> to vector<4x8x64xf32>
    %175 = arith.mulf %172, %174 : vector<4x8x64xf32>
    %176 = arith.addf %149, %175 : vector<4x8x64xf32>
    %177 = vector.shape_cast %176 : vector<4x8x64xf32> to vector<32x64xf32>
    %c0_60 = arith.constant 0 : index
    %c0_61 = arith.constant 0 : index
    %c0_62 = arith.constant 0 : index
    %178 = vector.load %arg12[%c0_60, %c0_61, %c0_62] : memref<2x64x64xbf16, #tpu.memory_space<vmem>>, vector<1x64x64xbf16>
    %179 = vector.shape_cast %178 : vector<1x64x64xbf16> to vector<64x64xbf16>
    %180 = arith.truncf %177 : vector<32x64xf32> to vector<32x64xbf16>
    %cst_63 = arith.constant dense<0.000000e+00> : vector<32x64xf32>
    %181 = tpu.matmul %180, %179, %cst_63 {dimension_numbers = #tpu.dot_dimension_numbers<[1], [0], [0], [1], [0, 0, 1, 1], [], []>} : vector<32x64xbf16>, vector<64x64xbf16>, vector<32x64xf32> -> vector<32x64xf32>
    %c0_64 = arith.constant 0 : index
    %c0_65 = arith.constant 0 : index
    %c0_66 = arith.constant 0 : index
    %182 = vector.load %arg13[%c0_64, %c0_65, %c0_66] : memref<2x1x64xf32, #tpu.memory_space<vmem>>, vector<1x1x64xf32>
    %183 = vector.shape_cast %182 : vector<1x1x64xf32> to vector<1x64xf32>
    %184 = vector.broadcast %183 : vector<1x64xf32> to vector<32x64xf32>
    %185 = arith.addf %181, %184 : vector<32x64xf32>
    %186 = arith.addf %28, %185 : vector<32x64xf32>
    %c0_67 = arith.constant 0 : index
    %c0_68 = arith.constant 0 : index
    %c0_69 = arith.constant 0 : index
    %187 = vector.load %arg14[%c0_67, %c0_68, %c0_69] : memref<2x1x64xf32, #tpu.memory_space<vmem>>, vector<1x1x64xf32>
    %188 = vector.shape_cast %187 : vector<1x1x64xf32> to vector<1x64xf32>
    %c0_70 = arith.constant 0 : index
    %c0_71 = arith.constant 0 : index
    %c0_72 = arith.constant 0 : index
    %189 = vector.load %arg15[%c0_70, %c0_71, %c0_72] : memref<2x1x64xf32, #tpu.memory_space<vmem>>, vector<1x1x64xf32>
    %190 = vector.shape_cast %189 : vector<1x1x64xf32> to vector<1x64xf32>
    %cst_73 = arith.constant dense<0.000000e+00> : vector<32xf32>
    %191 = vector.multi_reduction <add>, %186, %cst_73 [1] : vector<32x64xf32> to vector<32xf32>
    %192 = vector.shape_cast %191 : vector<32xf32> to vector<32x1xf32>
    %cst_74 = arith.constant 6.400000e+01 : f32
    %193 = vector.broadcast %cst_74 : f32 to vector<32x1xf32>
    %194 = arith.divf %192, %193 : vector<32x1xf32>
    %195 = vector.broadcast %194 : vector<32x1xf32> to vector<32x64xf32>
    %196 = arith.subf %186, %195 : vector<32x64xf32>
    %197 = arith.mulf %196, %196 : vector<32x64xf32>
    %cst_75 = arith.constant dense<0.000000e+00> : vector<32xf32>
    %198 = vector.multi_reduction <add>, %197, %cst_75 [1] : vector<32x64xf32> to vector<32xf32>
    %199 = vector.shape_cast %198 : vector<32xf32> to vector<32x1xf32>
    %cst_76 = arith.constant 6.400000e+01 : f32
    %200 = vector.broadcast %cst_76 : f32 to vector<32x1xf32>
    %201 = arith.divf %199, %200 : vector<32x1xf32>
    %202 = vector.broadcast %194 : vector<32x1xf32> to vector<32x64xf32>
    %203 = arith.subf %186, %202 : vector<32x64xf32>
    %cst_77 = arith.constant 9.99999974E-6 : f32
    %204 = vector.broadcast %cst_77 : f32 to vector<32x1xf32>
    %205 = arith.addf %201, %204 : vector<32x1xf32>
    %206 = math.rsqrt %205 : vector<32x1xf32>
    %207 = vector.broadcast %206 : vector<32x1xf32> to vector<32x64xf32>
    %208 = arith.mulf %203, %207 : vector<32x64xf32>
    %209 = vector.broadcast %188 : vector<1x64xf32> to vector<32x64xf32>
    %210 = arith.mulf %208, %209 : vector<32x64xf32>
    %211 = vector.broadcast %190 : vector<1x64xf32> to vector<32x64xf32>
    %212 = arith.addf %210, %211 : vector<32x64xf32>
    %c0_78 = arith.constant 0 : index
    %c0_79 = arith.constant 0 : index
    %c0_80 = arith.constant 0 : index
    %213 = vector.load %arg16[%c0_78, %c0_79, %c0_80] : memref<2x64x256xbf16, #tpu.memory_space<vmem>>, vector<1x64x256xbf16>
    %214 = vector.shape_cast %213 : vector<1x64x256xbf16> to vector<64x256xbf16>
    %215 = arith.truncf %212 : vector<32x64xf32> to vector<32x64xbf16>
    %cst_81 = arith.constant dense<0.000000e+00> : vector<32x256xf32>
    %216 = tpu.matmul %215, %214, %cst_81 {dimension_numbers = #tpu.dot_dimension_numbers<[1], [0], [0], [1], [0, 0, 1, 1], [], []>} : vector<32x64xbf16>, vector<64x256xbf16>, vector<32x256xf32> -> vector<32x256xf32>
    %c0_82 = arith.constant 0 : index
    %c0_83 = arith.constant 0 : index
    %c0_84 = arith.constant 0 : index
    %217 = vector.load %arg17[%c0_82, %c0_83, %c0_84] : memref<2x1x256xf32, #tpu.memory_space<vmem>>, vector<1x1x256xf32>
    %218 = vector.shape_cast %217 : vector<1x1x256xf32> to vector<1x256xf32>
    %219 = vector.broadcast %218 : vector<1x256xf32> to vector<32x256xf32>
    %220 = arith.addf %216, %219 : vector<32x256xf32>
    %cst_85 = arith.constant 1.702000e+00 : f32
    %221 = vector.broadcast %cst_85 : f32 to vector<32x256xf32>
    %222 = arith.mulf %221, %220 : vector<32x256xf32>
    %223 = arith.negf %222 : vector<32x256xf32>
    %224 = math.exp %223 : vector<32x256xf32>
    %cst_86 = arith.constant 1.000000e+00 : f32
    %225 = vector.broadcast %cst_86 : f32 to vector<32x256xf32>
    %226 = arith.addf %225, %224 : vector<32x256xf32>
    %227 = arith.divf %225, %226 : vector<32x256xf32>
    %228 = arith.mulf %220, %227 : vector<32x256xf32>
    %c0_87 = arith.constant 0 : index
    %c0_88 = arith.constant 0 : index
    %c0_89 = arith.constant 0 : index
    %229 = vector.load %arg18[%c0_87, %c0_88, %c0_89] : memref<2x256x64xbf16, #tpu.memory_space<vmem>>, vector<1x256x64xbf16>
    %230 = vector.shape_cast %229 : vector<1x256x64xbf16> to vector<256x64xbf16>
    %231 = arith.truncf %228 : vector<32x256xf32> to vector<32x256xbf16>
    %cst_90 = arith.constant dense<0.000000e+00> : vector<32x64xf32>
    %232 = tpu.matmul %231, %230, %cst_90 {dimension_numbers = #tpu.dot_dimension_numbers<[1], [0], [0], [1], [0, 0, 1, 1], [], []>} : vector<32x256xbf16>, vector<256x64xbf16>, vector<32x64xf32> -> vector<32x64xf32>
    %233 = arith.addf %186, %232 : vector<32x64xf32>
    %c0_91 = arith.constant 0 : index
    %c0_92 = arith.constant 0 : index
    %c0_93 = arith.constant 0 : index
    %234 = vector.load %arg19[%c0_91, %c0_92, %c0_93] : memref<2x1x64xf32, #tpu.memory_space<vmem>>, vector<1x1x64xf32>
    %235 = vector.shape_cast %234 : vector<1x1x64xf32> to vector<1x64xf32>
    %236 = vector.broadcast %235 : vector<1x64xf32> to vector<32x64xf32>
    %237 = arith.addf %233, %236 : vector<32x64xf32>
    %c1_94 = arith.constant 1 : index
    %c0_95 = arith.constant 0 : index
    %c0_96 = arith.constant 0 : index
    %238 = vector.load %arg8[%c1_94, %c0_95, %c0_96] : memref<2x1x64xf32, #tpu.memory_space<vmem>>, vector<1x1x64xf32>
    %239 = vector.shape_cast %238 : vector<1x1x64xf32> to vector<1x64xf32>
    %c1_97 = arith.constant 1 : index
    %c0_98 = arith.constant 0 : index
    %c0_99 = arith.constant 0 : index
    %240 = vector.load %arg9[%c1_97, %c0_98, %c0_99] : memref<2x1x64xf32, #tpu.memory_space<vmem>>, vector<1x1x64xf32>
    %241 = vector.shape_cast %240 : vector<1x1x64xf32> to vector<1x64xf32>
    %cst_100 = arith.constant dense<0.000000e+00> : vector<32xf32>
    %242 = vector.multi_reduction <add>, %237, %cst_100 [1] : vector<32x64xf32> to vector<32xf32>
    %243 = vector.shape_cast %242 : vector<32xf32> to vector<32x1xf32>
    %cst_101 = arith.constant 6.400000e+01 : f32
    %244 = vector.broadcast %cst_101 : f32 to vector<32x1xf32>
    %245 = arith.divf %243, %244 : vector<32x1xf32>
    %246 = vector.broadcast %245 : vector<32x1xf32> to vector<32x64xf32>
    %247 = arith.subf %237, %246 : vector<32x64xf32>
    %248 = arith.mulf %247, %247 : vector<32x64xf32>
    %cst_102 = arith.constant dense<0.000000e+00> : vector<32xf32>
    %249 = vector.multi_reduction <add>, %248, %cst_102 [1] : vector<32x64xf32> to vector<32xf32>
    %250 = vector.shape_cast %249 : vector<32xf32> to vector<32x1xf32>
    %cst_103 = arith.constant 6.400000e+01 : f32
    %251 = vector.broadcast %cst_103 : f32 to vector<32x1xf32>
    %252 = arith.divf %250, %251 : vector<32x1xf32>
    %253 = vector.broadcast %245 : vector<32x1xf32> to vector<32x64xf32>
    %254 = arith.subf %237, %253 : vector<32x64xf32>
    %cst_104 = arith.constant 9.99999974E-6 : f32
    %255 = vector.broadcast %cst_104 : f32 to vector<32x1xf32>
    %256 = arith.addf %252, %255 : vector<32x1xf32>
    %257 = math.rsqrt %256 : vector<32x1xf32>
    %258 = vector.broadcast %257 : vector<32x1xf32> to vector<32x64xf32>
    %259 = arith.mulf %254, %258 : vector<32x64xf32>
    %260 = vector.broadcast %239 : vector<1x64xf32> to vector<32x64xf32>
    %261 = arith.mulf %259, %260 : vector<32x64xf32>
    %262 = vector.broadcast %241 : vector<1x64xf32> to vector<32x64xf32>
    %263 = arith.addf %261, %262 : vector<32x64xf32>
    %c1_105 = arith.constant 1 : index
    %c0_106 = arith.constant 0 : index
    %c0_107 = arith.constant 0 : index
    %264 = vector.load %arg10[%c1_105, %c0_106, %c0_107] : memref<2x64x192xbf16, #tpu.memory_space<vmem>>, vector<1x64x192xbf16>
    %265 = vector.shape_cast %264 : vector<1x64x192xbf16> to vector<64x192xbf16>
    %266 = arith.truncf %263 : vector<32x64xf32> to vector<32x64xbf16>
    %cst_108 = arith.constant dense<0.000000e+00> : vector<32x192xf32>
    %267 = tpu.matmul %266, %265, %cst_108 {dimension_numbers = #tpu.dot_dimension_numbers<[1], [0], [0], [1], [0, 0, 1, 1], [], []>} : vector<32x64xbf16>, vector<64x192xbf16>, vector<32x192xf32> -> vector<32x192xf32>
    %c1_109 = arith.constant 1 : index
    %c0_110 = arith.constant 0 : index
    %c0_111 = arith.constant 0 : index
    %268 = vector.load %arg11[%c1_109, %c0_110, %c0_111] : memref<2x1x192xf32, #tpu.memory_space<vmem>>, vector<1x1x192xf32>
    %269 = vector.shape_cast %268 : vector<1x1x192xf32> to vector<1x192xf32>
    %270 = vector.broadcast %269 : vector<1x192xf32> to vector<32x192xf32>
    %271 = arith.addf %267, %270 : vector<32x192xf32>
    %272 = vector.shape_cast %271 : vector<32x192xf32> to vector<4x8x192xf32>
    %273 = vector.extract_strided_slice %272 {offsets = [0, 0, 0], sizes = [4, 8, 64], strides = [1, 1, 1]} : vector<4x8x192xf32> to vector<4x8x64xf32>
    %274 = vector.extract_strided_slice %272 {offsets = [0, 0, 64], sizes = [4, 8, 64], strides = [1, 1, 1]} : vector<4x8x192xf32> to vector<4x8x64xf32>
    %275 = vector.extract_strided_slice %272 {offsets = [0, 0, 128], sizes = [4, 8, 64], strides = [1, 1, 1]} : vector<4x8x192xf32> to vector<4x8x64xf32>
    %cst_112 = arith.constant 0.000000e+00 : f32
    %276 = vector.broadcast %cst_112 : f32 to vector<4x8x64xf32>
    %c0_113 = arith.constant 0 : index
    %c0_114 = arith.constant 0 : index
    %c0_115 = arith.constant 0 : index
    %277 = vector.load %arg6[%c0_113, %c0_114, %c0_115] : memref<4x1x64xf32, #tpu.memory_space<vmem>>, vector<1x1x64xf32>
    %278 = vector.shape_cast %277 : vector<1x1x64xf32> to vector<1x64xf32>
    %279 = vector.shape_cast %278 : vector<1x64xf32> to vector<1x1x64xf32>
    %280 = vector.broadcast %279 : vector<1x1x64xf32> to vector<4x8x64xf32>
    %281 = arith.mulf %273, %280 : vector<4x8x64xf32>
    %282 = arith.truncf %281 : vector<4x8x64xf32> to vector<4x8x64xbf16>
    %283 = arith.truncf %274 : vector<4x8x64xf32> to vector<4x8x64xbf16>
    "tpu.trace_start"() <{level = 10 : i32, message = "bqd,bkd->bqk"}> : () -> ()
    %cst_116 = arith.constant dense<0.000000e+00> : vector<4x8x8xf32>
    %284 = tpu.matmul %282, %283, %cst_116 {dimension_numbers = #tpu.dot_dimension_numbers<[2], [2], [1], [1], [0, 0, 0, 1, 1, 1], [0], [0]>} : vector<4x8x64xbf16>, vector<4x8x64xbf16>, vector<4x8x8xf32> -> vector<4x8x8xf32>
    "tpu.trace_stop"() : () -> ()
    %285 = vector.shape_cast %29 : vector<1x8xf32> to vector<1x1x8xf32>
    %286 = vector.broadcast %285 : vector<1x1x8xf32> to vector<4x8x8xf32>
    %287 = arith.addf %284, %286 : vector<4x8x8xf32>
    %cst_117 = arith.constant dense<0xFF800000> : vector<4x8xf32>
    %288 = vector.multi_reduction <maximumf>, %287, %cst_117 [2] : vector<4x8x8xf32> to vector<4x8xf32>
    %289 = vector.shape_cast %288 : vector<4x8xf32> to vector<4x8x1xf32>
    %290 = vector.broadcast %289 : vector<4x8x1xf32> to vector<4x8x8xf32>
    %291 = arith.subf %287, %290 : vector<4x8x8xf32>
    %292 = math.exp %291 : vector<4x8x8xf32>
    %cst_118 = arith.constant dense<0.000000e+00> : vector<4x8xf32>
    %293 = vector.multi_reduction <add>, %292, %cst_118 [2] : vector<4x8x8xf32> to vector<4x8xf32>
    %294 = vector.shape_cast %293 : vector<4x8xf32> to vector<4x8x1xf32>
    %295 = vector.broadcast %294 : vector<4x8x1xf32> to vector<4x8x8xf32>
    %296 = arith.divf %292, %295 : vector<4x8x8xf32>
    %297 = arith.truncf %296 : vector<4x8x8xf32> to vector<4x8x8xbf16>
    %298 = arith.truncf %275 : vector<4x8x64xf32> to vector<4x8x64xbf16>
    "tpu.trace_start"() <{level = 10 : i32, message = "bqk,bkd->bqd"}> : () -> ()
    %cst_119 = arith.constant dense<0.000000e+00> : vector<4x8x64xf32>
    %299 = tpu.matmul %297, %298, %cst_119 {dimension_numbers = #tpu.dot_dimension_numbers<[2], [1], [1], [2], [0, 0, 0, 1, 1, 2], [0], [0]>} : vector<4x8x8xbf16>, vector<4x8x64xbf16>, vector<4x8x64xf32> -> vector<4x8x64xf32>
    "tpu.trace_stop"() : () -> ()
    %300 = vector.shape_cast %278 : vector<1x64xf32> to vector<1x1x64xf32>
    %301 = vector.broadcast %300 : vector<1x1x64xf32> to vector<4x8x64xf32>
    %302 = arith.mulf %299, %301 : vector<4x8x64xf32>
    %303 = arith.addf %276, %302 : vector<4x8x64xf32>
    %c1_120 = arith.constant 1 : index
    %c0_121 = arith.constant 0 : index
    %c0_122 = arith.constant 0 : index
    %304 = vector.load %arg6[%c1_120, %c0_121, %c0_122] : memref<4x1x64xf32, #tpu.memory_space<vmem>>, vector<1x1x64xf32>
    %305 = vector.shape_cast %304 : vector<1x1x64xf32> to vector<1x64xf32>
    %306 = vector.shape_cast %305 : vector<1x64xf32> to vector<1x1x64xf32>
    %307 = vector.broadcast %306 : vector<1x1x64xf32> to vector<4x8x64xf32>
    %308 = arith.mulf %273, %307 : vector<4x8x64xf32>
    %309 = arith.truncf %308 : vector<4x8x64xf32> to vector<4x8x64xbf16>
    %310 = arith.truncf %274 : vector<4x8x64xf32> to vector<4x8x64xbf16>
    "tpu.trace_start"() <{level = 10 : i32, message = "bqd,bkd->bqk"}> : () -> ()
    %cst_123 = arith.constant dense<0.000000e+00> : vector<4x8x8xf32>
    %311 = tpu.matmul %309, %310, %cst_123 {dimension_numbers = #tpu.dot_dimension_numbers<[2], [2], [1], [1], [0, 0, 0, 1, 1, 1], [0], [0]>} : vector<4x8x64xbf16>, vector<4x8x64xbf16>, vector<4x8x8xf32> -> vector<4x8x8xf32>
    "tpu.trace_stop"() : () -> ()
    %312 = vector.shape_cast %29 : vector<1x8xf32> to vector<1x1x8xf32>
    %313 = vector.broadcast %312 : vector<1x1x8xf32> to vector<4x8x8xf32>
    %314 = arith.addf %311, %313 : vector<4x8x8xf32>
    %cst_124 = arith.constant dense<0xFF800000> : vector<4x8xf32>
    %315 = vector.multi_reduction <maximumf>, %314, %cst_124 [2] : vector<4x8x8xf32> to vector<4x8xf32>
    %316 = vector.shape_cast %315 : vector<4x8xf32> to vector<4x8x1xf32>
    %317 = vector.broadcast %316 : vector<4x8x1xf32> to vector<4x8x8xf32>
    %318 = arith.subf %314, %317 : vector<4x8x8xf32>
    %319 = math.exp %318 : vector<4x8x8xf32>
    %cst_125 = arith.constant dense<0.000000e+00> : vector<4x8xf32>
    %320 = vector.multi_reduction <add>, %319, %cst_125 [2] : vector<4x8x8xf32> to vector<4x8xf32>
    %321 = vector.shape_cast %320 : vector<4x8xf32> to vector<4x8x1xf32>
    %322 = vector.broadcast %321 : vector<4x8x1xf32> to vector<4x8x8xf32>
    %323 = arith.divf %319, %322 : vector<4x8x8xf32>
    %324 = arith.truncf %323 : vector<4x8x8xf32> to vector<4x8x8xbf16>
    %325 = arith.truncf %275 : vector<4x8x64xf32> to vector<4x8x64xbf16>
    "tpu.trace_start"() <{level = 10 : i32, message = "bqk,bkd->bqd"}> : () -> ()
    %cst_126 = arith.constant dense<0.000000e+00> : vector<4x8x64xf32>
    %326 = tpu.matmul %324, %325, %cst_126 {dimension_numbers = #tpu.dot_dimension_numbers<[2], [1], [1], [2], [0, 0, 0, 1, 1, 2], [0], [0]>} : vector<4x8x8xbf16>, vector<4x8x64xbf16>, vector<4x8x64xf32> -> vector<4x8x64xf32>
    "tpu.trace_stop"() : () -> ()
    %327 = vector.shape_cast %305 : vector<1x64xf32> to vector<1x1x64xf32>
    %328 = vector.broadcast %327 : vector<1x1x64xf32> to vector<4x8x64xf32>
    %329 = arith.mulf %326, %328 : vector<4x8x64xf32>
    %330 = arith.addf %303, %329 : vector<4x8x64xf32>
    %c2_127 = arith.constant 2 : index
    %c0_128 = arith.constant 0 : index
    %c0_129 = arith.constant 0 : index
    %331 = vector.load %arg6[%c2_127, %c0_128, %c0_129] : memref<4x1x64xf32, #tpu.memory_space<vmem>>, vector<1x1x64xf32>
    %332 = vector.shape_cast %331 : vector<1x1x64xf32> to vector<1x64xf32>
    %333 = vector.shape_cast %332 : vector<1x64xf32> to vector<1x1x64xf32>
    %334 = vector.broadcast %333 : vector<1x1x64xf32> to vector<4x8x64xf32>
    %335 = arith.mulf %273, %334 : vector<4x8x64xf32>
    %336 = arith.truncf %335 : vector<4x8x64xf32> to vector<4x8x64xbf16>
    %337 = arith.truncf %274 : vector<4x8x64xf32> to vector<4x8x64xbf16>
    "tpu.trace_start"() <{level = 10 : i32, message = "bqd,bkd->bqk"}> : () -> ()
    %cst_130 = arith.constant dense<0.000000e+00> : vector<4x8x8xf32>
    %338 = tpu.matmul %336, %337, %cst_130 {dimension_numbers = #tpu.dot_dimension_numbers<[2], [2], [1], [1], [0, 0, 0, 1, 1, 1], [0], [0]>} : vector<4x8x64xbf16>, vector<4x8x64xbf16>, vector<4x8x8xf32> -> vector<4x8x8xf32>
    "tpu.trace_stop"() : () -> ()
    %339 = vector.shape_cast %29 : vector<1x8xf32> to vector<1x1x8xf32>
    %340 = vector.broadcast %339 : vector<1x1x8xf32> to vector<4x8x8xf32>
    %341 = arith.addf %338, %340 : vector<4x8x8xf32>
    %cst_131 = arith.constant dense<0xFF800000> : vector<4x8xf32>
    %342 = vector.multi_reduction <maximumf>, %341, %cst_131 [2] : vector<4x8x8xf32> to vector<4x8xf32>
    %343 = vector.shape_cast %342 : vector<4x8xf32> to vector<4x8x1xf32>
    %344 = vector.broadcast %343 : vector<4x8x1xf32> to vector<4x8x8xf32>
    %345 = arith.subf %341, %344 : vector<4x8x8xf32>
    %346 = math.exp %345 : vector<4x8x8xf32>
    %cst_132 = arith.constant dense<0.000000e+00> : vector<4x8xf32>
    %347 = vector.multi_reduction <add>, %346, %cst_132 [2] : vector<4x8x8xf32> to vector<4x8xf32>
    %348 = vector.shape_cast %347 : vector<4x8xf32> to vector<4x8x1xf32>
    %349 = vector.broadcast %348 : vector<4x8x1xf32> to vector<4x8x8xf32>
    %350 = arith.divf %346, %349 : vector<4x8x8xf32>
    %351 = arith.truncf %350 : vector<4x8x8xf32> to vector<4x8x8xbf16>
    %352 = arith.truncf %275 : vector<4x8x64xf32> to vector<4x8x64xbf16>
    "tpu.trace_start"() <{level = 10 : i32, message = "bqk,bkd->bqd"}> : () -> ()
    %cst_133 = arith.constant dense<0.000000e+00> : vector<4x8x64xf32>
    %353 = tpu.matmul %351, %352, %cst_133 {dimension_numbers = #tpu.dot_dimension_numbers<[2], [1], [1], [2], [0, 0, 0, 1, 1, 2], [0], [0]>} : vector<4x8x8xbf16>, vector<4x8x64xbf16>, vector<4x8x64xf32> -> vector<4x8x64xf32>
    "tpu.trace_stop"() : () -> ()
    %354 = vector.shape_cast %332 : vector<1x64xf32> to vector<1x1x64xf32>
    %355 = vector.broadcast %354 : vector<1x1x64xf32> to vector<4x8x64xf32>
    %356 = arith.mulf %353, %355 : vector<4x8x64xf32>
    %357 = arith.addf %330, %356 : vector<4x8x64xf32>
    %c3_134 = arith.constant 3 : index
    %c0_135 = arith.constant 0 : index
    %c0_136 = arith.constant 0 : index
    %358 = vector.load %arg6[%c3_134, %c0_135, %c0_136] : memref<4x1x64xf32, #tpu.memory_space<vmem>>, vector<1x1x64xf32>
    %359 = vector.shape_cast %358 : vector<1x1x64xf32> to vector<1x64xf32>
    %360 = vector.shape_cast %359 : vector<1x64xf32> to vector<1x1x64xf32>
    %361 = vector.broadcast %360 : vector<1x1x64xf32> to vector<4x8x64xf32>
    %362 = arith.mulf %273, %361 : vector<4x8x64xf32>
    %363 = arith.truncf %362 : vector<4x8x64xf32> to vector<4x8x64xbf16>
    %364 = arith.truncf %274 : vector<4x8x64xf32> to vector<4x8x64xbf16>
    "tpu.trace_start"() <{level = 10 : i32, message = "bqd,bkd->bqk"}> : () -> ()
    %cst_137 = arith.constant dense<0.000000e+00> : vector<4x8x8xf32>
    %365 = tpu.matmul %363, %364, %cst_137 {dimension_numbers = #tpu.dot_dimension_numbers<[2], [2], [1], [1], [0, 0, 0, 1, 1, 1], [0], [0]>} : vector<4x8x64xbf16>, vector<4x8x64xbf16>, vector<4x8x8xf32> -> vector<4x8x8xf32>
    "tpu.trace_stop"() : () -> ()
    %366 = vector.shape_cast %29 : vector<1x8xf32> to vector<1x1x8xf32>
    %367 = vector.broadcast %366 : vector<1x1x8xf32> to vector<4x8x8xf32>
    %368 = arith.addf %365, %367 : vector<4x8x8xf32>
    %cst_138 = arith.constant dense<0xFF800000> : vector<4x8xf32>
    %369 = vector.multi_reduction <maximumf>, %368, %cst_138 [2] : vector<4x8x8xf32> to vector<4x8xf32>
    %370 = vector.shape_cast %369 : vector<4x8xf32> to vector<4x8x1xf32>
    %371 = vector.broadcast %370 : vector<4x8x1xf32> to vector<4x8x8xf32>
    %372 = arith.subf %368, %371 : vector<4x8x8xf32>
    %373 = math.exp %372 : vector<4x8x8xf32>
    %cst_139 = arith.constant dense<0.000000e+00> : vector<4x8xf32>
    %374 = vector.multi_reduction <add>, %373, %cst_139 [2] : vector<4x8x8xf32> to vector<4x8xf32>
    %375 = vector.shape_cast %374 : vector<4x8xf32> to vector<4x8x1xf32>
    %376 = vector.broadcast %375 : vector<4x8x1xf32> to vector<4x8x8xf32>
    %377 = arith.divf %373, %376 : vector<4x8x8xf32>
    %378 = arith.truncf %377 : vector<4x8x8xf32> to vector<4x8x8xbf16>
    %379 = arith.truncf %275 : vector<4x8x64xf32> to vector<4x8x64xbf16>
    "tpu.trace_start"() <{level = 10 : i32, message = "bqk,bkd->bqd"}> : () -> ()
    %cst_140 = arith.constant dense<0.000000e+00> : vector<4x8x64xf32>
    %380 = tpu.matmul %378, %379, %cst_140 {dimension_numbers = #tpu.dot_dimension_numbers<[2], [1], [1], [2], [0, 0, 0, 1, 1, 2], [0], [0]>} : vector<4x8x8xbf16>, vector<4x8x64xbf16>, vector<4x8x64xf32> -> vector<4x8x64xf32>
    "tpu.trace_stop"() : () -> ()
    %381 = vector.shape_cast %359 : vector<1x64xf32> to vector<1x1x64xf32>
    %382 = vector.broadcast %381 : vector<1x1x64xf32> to vector<4x8x64xf32>
    %383 = arith.mulf %380, %382 : vector<4x8x64xf32>
    %384 = arith.addf %357, %383 : vector<4x8x64xf32>
    %385 = vector.shape_cast %384 : vector<4x8x64xf32> to vector<32x64xf32>
    %c1_141 = arith.constant 1 : index
    %c0_142 = arith.constant 0 : index
    %c0_143 = arith.constant 0 : index
    %386 = vector.load %arg12[%c1_141, %c0_142, %c0_143] : memref<2x64x64xbf16, #tpu.memory_space<vmem>>, vector<1x64x64xbf16>
    %387 = vector.shape_cast %386 : vector<1x64x64xbf16> to vector<64x64xbf16>
    %388 = arith.truncf %385 : vector<32x64xf32> to vector<32x64xbf16>
    %cst_144 = arith.constant dense<0.000000e+00> : vector<32x64xf32>
    %389 = tpu.matmul %388, %387, %cst_144 {dimension_numbers = #tpu.dot_dimension_numbers<[1], [0], [0], [1], [0, 0, 1, 1], [], []>} : vector<32x64xbf16>, vector<64x64xbf16>, vector<32x64xf32> -> vector<32x64xf32>
    %c1_145 = arith.constant 1 : index
    %c0_146 = arith.constant 0 : index
    %c0_147 = arith.constant 0 : index
    %390 = vector.load %arg13[%c1_145, %c0_146, %c0_147] : memref<2x1x64xf32, #tpu.memory_space<vmem>>, vector<1x1x64xf32>
    %391 = vector.shape_cast %390 : vector<1x1x64xf32> to vector<1x64xf32>
    %392 = vector.broadcast %391 : vector<1x64xf32> to vector<32x64xf32>
    %393 = arith.addf %389, %392 : vector<32x64xf32>
    %394 = arith.addf %237, %393 : vector<32x64xf32>
    %c1_148 = arith.constant 1 : index
    %c0_149 = arith.constant 0 : index
    %c0_150 = arith.constant 0 : index
    %395 = vector.load %arg14[%c1_148, %c0_149, %c0_150] : memref<2x1x64xf32, #tpu.memory_space<vmem>>, vector<1x1x64xf32>
    %396 = vector.shape_cast %395 : vector<1x1x64xf32> to vector<1x64xf32>
    %c1_151 = arith.constant 1 : index
    %c0_152 = arith.constant 0 : index
    %c0_153 = arith.constant 0 : index
    %397 = vector.load %arg15[%c1_151, %c0_152, %c0_153] : memref<2x1x64xf32, #tpu.memory_space<vmem>>, vector<1x1x64xf32>
    %398 = vector.shape_cast %397 : vector<1x1x64xf32> to vector<1x64xf32>
    %cst_154 = arith.constant dense<0.000000e+00> : vector<32xf32>
    %399 = vector.multi_reduction <add>, %394, %cst_154 [1] : vector<32x64xf32> to vector<32xf32>
    %400 = vector.shape_cast %399 : vector<32xf32> to vector<32x1xf32>
    %cst_155 = arith.constant 6.400000e+01 : f32
    %401 = vector.broadcast %cst_155 : f32 to vector<32x1xf32>
    %402 = arith.divf %400, %401 : vector<32x1xf32>
    %403 = vector.broadcast %402 : vector<32x1xf32> to vector<32x64xf32>
    %404 = arith.subf %394, %403 : vector<32x64xf32>
    %405 = arith.mulf %404, %404 : vector<32x64xf32>
    %cst_156 = arith.constant dense<0.000000e+00> : vector<32xf32>
    %406 = vector.multi_reduction <add>, %405, %cst_156 [1] : vector<32x64xf32> to vector<32xf32>
    %407 = vector.shape_cast %406 : vector<32xf32> to vector<32x1xf32>
    %cst_157 = arith.constant 6.400000e+01 : f32
    %408 = vector.broadcast %cst_157 : f32 to vector<32x1xf32>
    %409 = arith.divf %407, %408 : vector<32x1xf32>
    %410 = vector.broadcast %402 : vector<32x1xf32> to vector<32x64xf32>
    %411 = arith.subf %394, %410 : vector<32x64xf32>
    %cst_158 = arith.constant 9.99999974E-6 : f32
    %412 = vector.broadcast %cst_158 : f32 to vector<32x1xf32>
    %413 = arith.addf %409, %412 : vector<32x1xf32>
    %414 = math.rsqrt %413 : vector<32x1xf32>
    %415 = vector.broadcast %414 : vector<32x1xf32> to vector<32x64xf32>
    %416 = arith.mulf %411, %415 : vector<32x64xf32>
    %417 = vector.broadcast %396 : vector<1x64xf32> to vector<32x64xf32>
    %418 = arith.mulf %416, %417 : vector<32x64xf32>
    %419 = vector.broadcast %398 : vector<1x64xf32> to vector<32x64xf32>
    %420 = arith.addf %418, %419 : vector<32x64xf32>
    %c1_159 = arith.constant 1 : index
    %c0_160 = arith.constant 0 : index
    %c0_161 = arith.constant 0 : index
    %421 = vector.load %arg16[%c1_159, %c0_160, %c0_161] : memref<2x64x256xbf16, #tpu.memory_space<vmem>>, vector<1x64x256xbf16>
    %422 = vector.shape_cast %421 : vector<1x64x256xbf16> to vector<64x256xbf16>
    %423 = arith.truncf %420 : vector<32x64xf32> to vector<32x64xbf16>
    %cst_162 = arith.constant dense<0.000000e+00> : vector<32x256xf32>
    %424 = tpu.matmul %423, %422, %cst_162 {dimension_numbers = #tpu.dot_dimension_numbers<[1], [0], [0], [1], [0, 0, 1, 1], [], []>} : vector<32x64xbf16>, vector<64x256xbf16>, vector<32x256xf32> -> vector<32x256xf32>
    %c1_163 = arith.constant 1 : index
    %c0_164 = arith.constant 0 : index
    %c0_165 = arith.constant 0 : index
    %425 = vector.load %arg17[%c1_163, %c0_164, %c0_165] : memref<2x1x256xf32, #tpu.memory_space<vmem>>, vector<1x1x256xf32>
    %426 = vector.shape_cast %425 : vector<1x1x256xf32> to vector<1x256xf32>
    %427 = vector.broadcast %426 : vector<1x256xf32> to vector<32x256xf32>
    %428 = arith.addf %424, %427 : vector<32x256xf32>
    %cst_166 = arith.constant 1.702000e+00 : f32
    %429 = vector.broadcast %cst_166 : f32 to vector<32x256xf32>
    %430 = arith.mulf %429, %428 : vector<32x256xf32>
    %431 = arith.negf %430 : vector<32x256xf32>
    %432 = math.exp %431 : vector<32x256xf32>
    %cst_167 = arith.constant 1.000000e+00 : f32
    %433 = vector.broadcast %cst_167 : f32 to vector<32x256xf32>
    %434 = arith.addf %433, %432 : vector<32x256xf32>
    %435 = arith.divf %433, %434 : vector<32x256xf32>
    %436 = arith.mulf %428, %435 : vector<32x256xf32>
    %c1_168 = arith.constant 1 : index
    %c0_169 = arith.constant 0 : index
    %c0_170 = arith.constant 0 : index
    %437 = vector.load %arg18[%c1_168, %c0_169, %c0_170] : memref<2x256x64xbf16, #tpu.memory_space<vmem>>, vector<1x256x64xbf16>
    %438 = vector.shape_cast %437 : vector<1x256x64xbf16> to vector<256x64xbf16>
    %439 = arith.truncf %436 : vector<32x256xf32> to vector<32x256xbf16>
    %cst_171 = arith.constant dense<0.000000e+00> : vector<32x64xf32>
    %440 = tpu.matmul %439, %438, %cst_171 {dimension_numbers = #tpu.dot_dimension_numbers<[1], [0], [0], [1], [0, 0, 1, 1], [], []>} : vector<32x256xbf16>, vector<256x64xbf16>, vector<32x64xf32> -> vector<32x64xf32>
    %441 = arith.addf %394, %440 : vector<32x64xf32>
    %c1_172 = arith.constant 1 : index
    %c0_173 = arith.constant 0 : index
    %c0_174 = arith.constant 0 : index
    %442 = vector.load %arg19[%c1_172, %c0_173, %c0_174] : memref<2x1x64xf32, #tpu.memory_space<vmem>>, vector<1x1x64xf32>
    %443 = vector.shape_cast %442 : vector<1x1x64xf32> to vector<1x64xf32>
    %444 = vector.broadcast %443 : vector<1x64xf32> to vector<32x64xf32>
    %445 = arith.addf %441, %444 : vector<32x64xf32>
    %446 = vector.shape_cast %445 : vector<32x64xf32> to vector<4x8x64xf32>
    %447 = vector.extract_strided_slice %446 {offsets = [0, 1, 0], sizes = [4, 1, 64], strides = [1, 1, 1]} : vector<4x8x64xf32> to vector<4x1x64xf32>
    %448 = vector.shape_cast %447 : vector<4x1x64xf32> to vector<4x64xf32>
    %449 = vector.extract_strided_slice %446 {offsets = [0, 2, 0], sizes = [4, 1, 64], strides = [1, 1, 1]} : vector<4x8x64xf32> to vector<4x1x64xf32>
    %450 = vector.shape_cast %449 : vector<4x1x64xf32> to vector<4x64xf32>
    %451 = vector.extract_strided_slice %446 {offsets = [0, 3, 0], sizes = [4, 1, 64], strides = [1, 1, 1]} : vector<4x8x64xf32> to vector<4x1x64xf32>
    %452 = vector.shape_cast %451 : vector<4x1x64xf32> to vector<4x64xf32>
    %453 = vector.extract_strided_slice %446 {offsets = [0, 4, 0], sizes = [4, 1, 64], strides = [1, 1, 1]} : vector<4x8x64xf32> to vector<4x1x64xf32>
    %454 = vector.shape_cast %453 : vector<4x1x64xf32> to vector<4x64xf32>
    %455 = tpu.concatenate %448, %450, %452, %454 in 1 : vector<4x64xf32>, vector<4x64xf32>, vector<4x64xf32>, vector<4x64xf32> -> vector<4x256xf32>
    %c0_175 = arith.constant 0 : index
    %c0_176 = arith.constant 0 : index
    %c0_177 = arith.constant 0 : index
    %456 = vector.load %arg20[%c0_175, %c0_176, %c0_177] : memref<1x4x256xf32, #tpu.memory_space<vmem>>, vector<1x4x256xf32>
    %457 = vector.shape_cast %456 : vector<1x4x256xf32> to vector<4x256xf32>
    %458 = vector.shape_cast %455 : vector<4x256xf32> to vector<1x4x256xf32>
    tpu.vector_store %arg20[%c0_175, %c0_176, %c0_177], %458 {strides = array<i32>} : memref<1x4x256xf32, #tpu.memory_space<vmem>>, vector<1x4x256xf32>,
    return
  }
  func.func @transform_0(%arg0: i32) -> (i32, i32) {
    %c0_i32 = arith.constant 0 : i32
    %c0_i32_0 = arith.constant 0 : i32
    return %arg0, %c0_i32 : i32, i32
  }
  func.func @transform_1(%arg0: i32) -> (i32, i32) {
    %c0_i32 = arith.constant 0 : i32
    %c0_i32_0 = arith.constant 0 : i32
    %c0_i32_1 = arith.constant 0 : i32
    return %c0_i32, %c0_i32_0 : i32, i32
  }
  func.func @transform_2(%arg0: i32) -> (i32, i32) {
    %c0_i32 = arith.constant 0 : i32
    %c0_i32_0 = arith.constant 0 : i32
    %c0_i32_1 = arith.constant 0 : i32
    return %c0_i32, %c0_i32_0 : i32, i32
  }
  func.func @transform_3(%arg0: i32) -> (i32, i32) {
    %c0_i32 = arith.constant 0 : i32
    %c0_i32_0 = arith.constant 0 : i32
    %c0_i32_1 = arith.constant 0 : i32
    return %c0_i32, %c0_i32_0 : i32, i32
  }
  func.func @transform_4(%arg0: i32) -> (i32, i32) {
    %c0_i32 = arith.constant 0 : i32
    %c0_i32_0 = arith.constant 0 : i32
    %c0_i32_1 = arith.constant 0 : i32
    return %c0_i32, %c0_i32_0 : i32, i32
  }
  func.func @transform_5(%arg0: i32) -> (i32, i32, i32) {
    %c0_i32 = arith.constant 0 : i32
    %c0_i32_0 = arith.constant 0 : i32
    %c0_i32_1 = arith.constant 0 : i32
    %c0_i32_2 = arith.constant 0 : i32
    return %c0_i32, %c0_i32_0, %c0_i32_1 : i32, i32, i32
  }
  func.func @transform_6(%arg0: i32) -> (i32, i32) {
    %c0_i32 = arith.constant 0 : i32
    %c0_i32_0 = arith.constant 0 : i32
    %c0_i32_1 = arith.constant 0 : i32
    return %c0_i32, %c0_i32_0 : i32, i32
  }
  func.func @transform_7(%arg0: i32) -> (i32, i32, i32) {
    %c0_i32 = arith.constant 0 : i32
    %c0_i32_0 = arith.constant 0 : i32
    %c0_i32_1 = arith.constant 0 : i32
    %c0_i32_2 = arith.constant 0 : i32
    return %c0_i32, %c0_i32_0, %c0_i32_1 : i32, i32, i32
  }
  func.func @transform_8(%arg0: i32) -> (i32, i32, i32) {
    %c0_i32 = arith.constant 0 : i32
    %c0_i32_0 = arith.constant 0 : i32
    %c0_i32_1 = arith.constant 0 : i32
    %c0_i32_2 = arith.constant 0 : i32
    return %c0_i32, %c0_i32_0, %c0_i32_1 : i32, i32, i32
  }
  func.func @transform_9(%arg0: i32) -> (i32, i32, i32) {
    %c0_i32 = arith.constant 0 : i32
    %c0_i32_0 = arith.constant 0 : i32
    %c0_i32_1 = arith.constant 0 : i32
    %c0_i32_2 = arith.constant 0 : i32
    return %c0_i32, %c0_i32_0, %c0_i32_1 : i32, i32, i32
  }
  func.func @transform_10(%arg0: i32) -> (i32, i32, i32) {
    %c0_i32 = arith.constant 0 : i32
    %c0_i32_0 = arith.constant 0 : i32
    %c0_i32_1 = arith.constant 0 : i32
    %c0_i32_2 = arith.constant 0 : i32
    return %c0_i32, %c0_i32_0, %c0_i32_1 : i32, i32, i32
  }
  func.func @transform_11(%arg0: i32) -> (i32, i32, i32) {
    %c0_i32 = arith.constant 0 : i32
    %c0_i32_0 = arith.constant 0 : i32
    %c0_i32_1 = arith.constant 0 : i32
    %c0_i32_2 = arith.constant 0 : i32
    return %c0_i32, %c0_i32_0, %c0_i32_1 : i32, i32, i32
  }
  func.func @transform_12(%arg0: i32) -> (i32, i32, i32) {
    %c0_i32 = arith.constant 0 : i32
    %c0_i32_0 = arith.constant 0 : i32
    %c0_i32_1 = arith.constant 0 : i32
    %c0_i32_2 = arith.constant 0 : i32
    return %c0_i32, %c0_i32_0, %c0_i32_1 : i32, i32, i32
  }
  func.func @transform_13(%arg0: i32) -> (i32, i32, i32) {
    %c0_i32 = arith.constant 0 : i32
    %c0_i32_0 = arith.constant 0 : i32
    %c0_i32_1 = arith.constant 0 : i32
    %c0_i32_2 = arith.constant 0 : i32
    return %c0_i32, %c0_i32_0, %c0_i32_1 : i32, i32, i32
  }
  func.func @transform_14(%arg0: i32) -> (i32, i32, i32) {
    %c0_i32 = arith.constant 0 : i32
    %c0_i32_0 = arith.constant 0 : i32
    %c0_i32_1 = arith.constant 0 : i32
    %c0_i32_2 = arith.constant 0 : i32
    return %c0_i32, %c0_i32_0, %c0_i32_1 : i32, i32, i32
  }
  func.func @transform_15(%arg0: i32) -> (i32, i32, i32) {
    %c0_i32 = arith.constant 0 : i32
    %c0_i32_0 = arith.constant 0 : i32
    %c0_i32_1 = arith.constant 0 : i32
    %c0_i32_2 = arith.constant 0 : i32
    return %c0_i32, %c0_i32_0, %c0_i32_1 : i32, i32, i32
  }
  func.func @transform_16(%arg0: i32) -> (i32, i32, i32) {
    %c0_i32 = arith.constant 0 : i32
    %c0_i32_0 = arith.constant 0 : i32
    %c0_i32_1 = arith.constant 0 : i32
    %c0_i32_2 = arith.constant 0 : i32
    return %c0_i32, %c0_i32_0, %c0_i32_1 : i32, i32, i32
  }
  func.func @transform_17(%arg0: i32) -> (i32, i32, i32) {
    %c0_i32 = arith.constant 0 : i32
    %c0_i32_0 = arith.constant 0 : i32
    %c0_i32_1 = arith.constant 0 : i32
    %c0_i32_2 = arith.constant 0 : i32
    return %c0_i32, %c0_i32_0, %c0_i32_1 : i32, i32, i32
  }
  func.func @transform_18(%arg0: i32) -> (i32, i32, i32) {
    %c0_i32 = arith.constant 0 : i32
    %c0_i32_0 = arith.constant 0 : i32
    %c0_i32_1 = arith.constant 0 : i32
    %c0_i32_2 = arith.constant 0 : i32
    return %c0_i32, %c0_i32_0, %c0_i32_1 : i32, i32, i32
  }
  func.func @transform_19(%arg0: i32) -> (i32, i32, i32) {
    %c0_i32 = arith.constant 0 : i32
    %c0_i32_0 = arith.constant 0 : i32
    %c0_i32_1 = arith.constant 0 : i32
    return %arg0, %c0_i32, %c0_i32_0 : i32, i32, i32
  }
}

</mosaic_0001>

<llo_original>
// kernel: clip_vision_tower_forward.1
$region0: #{clip_vision_tower_forward.1}
  #allocation0 [shape = 'u32[]', space=smem, size = 0x4, offset = 0x4, fixed_abs, tag = 'smem constant byte address 0x4 - core index']
  #allocation1 [shape = 'u32[144,128]{1,0:T(1,128)}', space=vmem, size = 0x12000, scoped, tag = 'internal scratch']
  %s0 = inlined_call_operand.vmem [shape: bf16[64,192], index: 0, kind: input, shape index: {}]
  %s1 = inlined_call_operand.vmem [shape: bf16[192,64], index: 1, kind: input, shape index: {}]
  %s2 = inlined_call_operand.vmem [shape: f32[32,64], index: 2, kind: input, shape index: {}]
  %s3 = inlined_call_operand.vmem [shape: f32[1,64], index: 3, kind: input, shape index: {}]
  %s4 = inlined_call_operand.vmem [shape: f32[1,64], index: 4, kind: input, shape index: {}]
  %s5 = inlined_call_operand.vmem [shape: f32[4,1,64], index: 5, kind: input, shape index: {}]
  %s6 = inlined_call_operand.vmem [shape: f32[1,8], index: 6, kind: input, shape index: {}]
  %s7 = inlined_call_operand.vmem [shape: f32[2,1,64], index: 7, kind: input, shape index: {}]
  %s8 = inlined_call_operand.vmem [shape: f32[2,1,64], index: 8, kind: input, shape index: {}]
  %s9 = inlined_call_operand.vmem [shape: bf16[2,64,192], index: 9, kind: input, shape index: {}]
  %s10 = inlined_call_operand.vmem [shape: f32[2,1,192], index: 10, kind: input, shape index: {}]
  %s11 = inlined_call_operand.vmem [shape: bf16[2,64,64], index: 11, kind: input, shape index: {}]
  %s12 = inlined_call_operand.vmem [shape: f32[2,1,64], index: 12, kind: input, shape index: {}]
  %s13 = inlined_call_operand.vmem [shape: f32[2,1,64], index: 13, kind: input, shape index: {}]
  %s14 = inlined_call_operand.vmem [shape: f32[2,1,64], index: 14, kind: input, shape index: {}]
  %s15 = inlined_call_operand.vmem [shape: bf16[2,64,256], index: 15, kind: input, shape index: {}]
  %s16 = inlined_call_operand.vmem [shape: f32[2,1,256], index: 16, kind: input, shape index: {}]
  %s17 = inlined_call_operand.vmem [shape: bf16[2,256,64], index: 17, kind: input, shape index: {}]
  %s18 = inlined_call_operand.vmem [shape: f32[2,1,64], index: 18, kind: input, shape index: {}]
  %s19 = inlined_call_operand.vmem [shape: f32[2,4,256], index: 19, kind: output, shape index: {}]
  %s20 = sld [smem:[#allocation0]]
  $region109: #{clip_vision_tower_forward.1} parent=0
    _
  %s22 = ssub.s32 1, %s20
  %s23 = scalar_select 0, %s22, %s20
  loop: start=0, step=1, limit=4
  $region2: #{clip_vision_tower_forward.1} parent=0 // loop_pre_header
    _
  $region3: #{clip_vision_tower_forward.1} parent=0 // loop_header
    %s25 = sphi 0, %s29
    %p26 = scmp.ge.s32.totalorder %s25, 4
    %s35 = sphi 0, %s37
    %s38 = sphi 0, %s35
    %s39 = sphi 0, %s38
    %s55 = sphi 0, %s39
    %s59 = sphi 0, %s59
    %s61 = sphi 0, %s59
    %s62 = sphi 0, %s61
    %s76 = sphi 0, %s62
    %s80 = sphi 0, %s80
    %s82 = sphi 0, %s80
    %s83 = sphi 0, %s82
    %s97 = sphi 0, %s83
    %s101 = sphi 0, %s101
    %s103 = sphi 0, %s101
    %s104 = sphi 0, %s103
    %s118 = sphi 0, %s104
    %s122 = sphi 0, %s122
    %s124 = sphi 0, %s122
    %s125 = sphi 0, %s124
    %s139 = sphi 0, %s125
    %s143 = sphi 0, %s143
    %s145 = sphi 0, %s143
    %s146 = sphi 0, %s145
    %s160 = sphi 0, %s146
    %s164 = sphi 0, %s164
    %s166 = sphi 0, %s164
    %s167 = sphi 0, %s166
    %s181 = sphi 0, %s167
    %s185 = sphi 0, %s185
    %s187 = sphi 0, %s185
    %s188 = sphi 0, %s187
    %s202 = sphi 0, %s188
    %s206 = sphi 0, %s206
    %s208 = sphi 0, %s206
    %s209 = sphi 0, %s208
    %s223 = sphi 0, %s209
    %s227 = sphi 0, %s227
    %s229 = sphi 0, %s227
    %s230 = sphi 0, %s229
    %s244 = sphi 0, %s230
    %s248 = sphi 0, %s248
    %s250 = sphi 0, %s248
    %s251 = sphi 0, %s250
    %s265 = sphi 0, %s251
    %s269 = sphi 0, %s269
    %s271 = sphi 0, %s269
    %s272 = sphi 0, %s271
    %s286 = sphi 0, %s272
    %s290 = sphi 0, %s290
    %s292 = sphi 0, %s290
    %s293 = sphi 0, %s292
    %s307 = sphi 0, %s293
    %s311 = sphi 0, %s311
    %s313 = sphi 0, %s311
    %s314 = sphi 0, %s313
    %s328 = sphi 0, %s314
    %s332 = sphi 0, %s332
    %s334 = sphi 0, %s332
    %s335 = sphi 0, %s334
    %s349 = sphi 0, %s335
    %s353 = sphi 0, %s353
    %s355 = sphi 0, %s353
    %s356 = sphi 0, %s355
    %s370 = sphi 0, %s356
    %s374 = sphi 0, %s374
    %s376 = sphi 0, %s374
    %s377 = sphi 0, %s376
    %s391 = sphi 0, %s377
    %s395 = sphi 0, %s395
    %s397 = sphi 0, %s395
    %s398 = sphi 0, %s397
    %s412 = sphi 0, %s398
    %s416 = sphi 0, %s416
    %s418 = sphi 0, %s416
    %s419 = sphi 0, %s418
    %s433 = sphi 0, %s419
    %s439 = sphi 0, %s441
    %s442 = sphi 0, %s439
    %s443 = sphi 0, %s442
    %s459 = sphi 0, %s443
  $region4: #{clip_vision_tower_forward.1} parent=0 // loop_header_branch
    %28 = sbr.rel (%p26) target = $region8
  $region5: #{clip_vision_tower_forward.1} parent=0 // loop_body
    %s30 = ssub.s32 %s25, 1
    %s31 = ssub.s32 %s25, 2
    %s32 = sadd.s32 %s25, 1
    %s33 = ssub.s32 %s25, %s32
    %p34 = scmp.eq.s32.totalorder %s33, 0
    %s36 = sadd.s32 %s35, 1
    %s37 = scalar_select %p34, %s35, %s36
    %p40 = pneg %p34
    %p41 = scmp.eq.s32.totalorder %s25, 1
    %p42 = por %p40, %p41
    %p43 = scmp.ne.s32.totalorder %s35, %s38
    %p44 = scmp.eq.s32.totalorder %s25, 0
    %p45 = por %p43, %p44
    %p46 = scmp.ne.s32.totalorder %s35, %s38
    %p47 = scmp.eq.s32.totalorder %s30, 1
    %p48 = por %p46, %p47
    %p49 = scmp.ne.s32.totalorder %s38, %s39
    %p50 = scmp.eq.s32.totalorder %s30, 0
    %p51 = por %p49, %p50
    %p52 = scmp.ne.s32.totalorder %s38, %s39
    %p53 = scmp.eq.s32.totalorder %s31, 1
    %p54 = por %p52, %p53
    %p56 = scmp.ne.s32.totalorder %s39, %s55
    %p57 = scmp.eq.s32.totalorder %s31, 0
    %p58 = por %p56, %p57
    %s60 = sadd.s32 %s59, 1
    %p63 = scmp.eq.s32.totalorder %s25, 1
    %p64 = scmp.ne.s32.totalorder %s59, %s61
    %p65 = scmp.eq.s32.totalorder %s25, 0
    %p66 = por %p64, %p65
    %p67 = scmp.ne.s32.totalorder %s59, %s61
    %p68 = scmp.eq.s32.totalorder %s30, 1
    %p69 = por %p67, %p68
    %p70 = scmp.ne.s32.totalorder %s61, %s62
    %p71 = scmp.eq.s32.totalorder %s30, 0
    %p72 = por %p70, %p71
    %p73 = scmp.ne.s32.totalorder %s61, %s62
    %p74 = scmp.eq.s32.totalorder %s31, 1
    %p75 = por %p73, %p74
    %p77 = scmp.ne.s32.totalorder %s62, %s76
    %p78 = scmp.eq.s32.totalorder %s31, 0
    %p79 = por %p77, %p78
    %s81 = sadd.s32 %s80, 1
    %p84 = scmp.eq.s32.totalorder %s25, 1
    %p85 = scmp.ne.s32.totalorder %s80, %s82
    %p86 = scmp.eq.s32.totalorder %s25, 0
    %p87 = por %p85, %p86
    %p88 = scmp.ne.s32.totalorder %s80, %s82
    %p89 = scmp.eq.s32.totalorder %s30, 1
    %p90 = por %p88, %p89
    %p91 = scmp.ne.s32.totalorder %s82, %s83
    %p92 = scmp.eq.s32.totalorder %s30, 0
    %p93 = por %p91, %p92
    %p94 = scmp.ne.s32.totalorder %s82, %s83
    %p95 = scmp.eq.s32.totalorder %s31, 1
    %p96 = por %p94, %p95
    %p98 = scmp.ne.s32.totalorder %s83, %s97
    %p99 = scmp.eq.s32.totalorder %s31, 0
    %p100 = por %p98, %p99
    %s102 = sadd.s32 %s101, 1
    %p105 = scmp.eq.s32.totalorder %s25, 1
    %p106 = scmp.ne.s32.totalorder %s101, %s103
    %p107 = scmp.eq.s32.totalorder %s25, 0
    %p108 = por %p106, %p107
    %p109 = scmp.ne.s32.totalorder %s101, %s103
    %p110 = scmp.eq.s32.totalorder %s30, 1
    %p111 = por %p109, %p110
    %p112 = scmp.ne.s32.totalorder %s103, %s104
    %p113 = scmp.eq.s32.totalorder %s30, 0
    %p114 = por %p112, %p113
    %p115 = scmp.ne.s32.totalorder %s103, %s104
    %p116 = scmp.eq.s32.totalorder %s31, 1
    %p117 = por %p115, %p116
    %p119 = scmp.ne.s32.totalorder %s104, %s118
    %p120 = scmp.eq.s32.totalorder %s31, 0
    %p121 = por %p119, %p120
    %s123 = sadd.s32 %s122, 1
    %p126 = scmp.eq.s32.totalorder %s25, 1
    %p127 = scmp.ne.s32.totalorder %s122, %s124
    %p128 = scmp.eq.s32.totalorder %s25, 0
    %p129 = por %p127, %p128
    %p130 = scmp.ne.s32.totalorder %s122, %s124
    %p131 = scmp.eq.s32.totalorder %s30, 1
    %p132 = por %p130, %p131
    %p133 = scmp.ne.s32.totalorder %s124, %s125
    %p134 = scmp.eq.s32.totalorder %s30, 0
    %p135 = por %p133, %p134
    %p136 = scmp.ne.s32.totalorder %s124, %s125
    %p137 = scmp.eq.s32.totalorder %s31, 1
    %p138 = por %p136, %p137
    %p140 = scmp.ne.s32.totalorder %s125, %s139
    %p141 = scmp.eq.s32.totalorder %s31, 0
    %p142 = por %p140, %p141
    %s144 = sadd.s32 %s143, 1
    %p147 = scmp.eq.s32.totalorder %s25, 1
    %p148 = scmp.ne.s32.totalorder %s143, %s145
    %p149 = scmp.eq.s32.totalorder %s25, 0
    %p150 = por %p148, %p149
    %p151 = scmp.ne.s32.totalorder %s143, %s145
    %p152 = scmp.eq.s32.totalorder %s30, 1
    %p153 = por %p151, %p152
    %p154 = scmp.ne.s32.totalorder %s145, %s146
    %p155 = scmp.eq.s32.totalorder %s30, 0
    %p156 = por %p154, %p155
    %p157 = scmp.ne.s32.totalorder %s145, %s146
    %p158 = scmp.eq.s32.totalorder %s31, 1
    %p159 = por %p157, %p158
    %p161 = scmp.ne.s32.totalorder %s146, %s160
    %p162 = scmp.eq.s32.totalorder %s31, 0
    %p163 = por %p161, %p162
    %s165 = sadd.s32 %s164, 1
    %p168 = scmp.eq.s32.totalorder %s25, 1
    %p169 = scmp.ne.s32.totalorder %s164, %s166
    %p170 = scmp.eq.s32.totalorder %s25, 0
    %p171 = por %p169, %p170
    %p172 = scmp.ne.s32.totalorder %s164, %s166
    %p173 = scmp.eq.s32.totalorder %s30, 1
    %p174 = por %p172, %p173
    %p175 = scmp.ne.s32.totalorder %s166, %s167
    %p176 = scmp.eq.s32.totalorder %s30, 0
    %p177 = por %p175, %p176
    %p178 = scmp.ne.s32.totalorder %s166, %s167
    %p179 = scmp.eq.s32.totalorder %s31, 1
    %p180 = por %p178, %p179
    %p182 = scmp.ne.s32.totalorder %s167, %s181
    %p183 = scmp.eq.s32.totalorder %s31, 0
    %p184 = por %p182, %p183
    %s186 = sadd.s32 %s185, 1
    %p189 = scmp.eq.s32.totalorder %s25, 1
    %p190 = scmp.ne.s32.totalorder %s185, %s187
    %p191 = scmp.eq.s32.totalorder %s25, 0
    %p192 = por %p190, %p191
    %p193 = scmp.ne.s32.totalorder %s185, %s187
    %p194 = scmp.eq.s32.totalorder %s30, 1
    %p195 = por %p193, %p194
    %p196 = scmp.ne.s32.totalorder %s187, %s188
    %p197 = scmp.eq.s32.totalorder %s30, 0
    %p198 = por %p196, %p197
    %p199 = scmp.ne.s32.totalorder %s187, %s188
    %p200 = scmp.eq.s32.totalorder %s31, 1
    %p201 = por %p199, %p200
    %p203 = scmp.ne.s32.totalorder %s188, %s202
    %p204 = scmp.eq.s32.totalorder %s31, 0
    %p205 = por %p203, %p204
    %s207 = sadd.s32 %s206, 1
    %p210 = scmp.eq.s32.totalorder %s25, 1
    %p211 = scmp.ne.s32.totalorder %s206, %s208
    %p212 = scmp.eq.s32.totalorder %s25, 0
    %p213 = por %p211, %p212
    %p214 = scmp.ne.s32.totalorder %s206, %s208
    %p215 = scmp.eq.s32.totalorder %s30, 1
    %p216 = por %p214, %p215
    %p217 = scmp.ne.s32.totalorder %s208, %s209
    %p218 = scmp.eq.s32.totalorder %s30, 0
    %p219 = por %p217, %p218
    %p220 = scmp.ne.s32.totalorder %s208, %s209
    %p221 = scmp.eq.s32.totalorder %s31, 1
    %p222 = por %p220, %p221
    %p224 = scmp.ne.s32.totalorder %s209, %s223
    %p225 = scmp.eq.s32.totalorder %s31, 0
    %p226 = por %p224, %p225
    %s228 = sadd.s32 %s227, 1
    %p231 = scmp.eq.s32.totalorder %s25, 1
    %p232 = scmp.ne.s32.totalorder %s227, %s229
    %p233 = scmp.eq.s32.totalorder %s25, 0
    %p234 = por %p232, %p233
    %p235 = scmp.ne.s32.totalorder %s227, %s229
    %p236 = scmp.eq.s32.totalorder %s30, 1
    %p237 = por %p235, %p236
    %p238 = scmp.ne.s32.totalorder %s229, %s230
    %p239 = scmp.eq.s32.totalorder %s30, 0
    %p240 = por %p238, %p239
    %p241 = scmp.ne.s32.totalorder %s229, %s230
    %p242 = scmp.eq.s32.totalorder %s31, 1
    %p243 = por %p241, %p242
    %p245 = scmp.ne.s32.totalorder %s230, %s244
    %p246 = scmp.eq.s32.totalorder %s31, 0
    %p247 = por %p245, %p246
    %s249 = sadd.s32 %s248, 1
    %p252 = scmp.eq.s32.totalorder %s25, 1
    %p253 = scmp.ne.s32.totalorder %s248, %s250
    %p254 = scmp.eq.s32.totalorder %s25, 0
    %p255 = por %p253, %p254
    %p256 = scmp.ne.s32.totalorder %s248, %s250
    %p257 = scmp.eq.s32.totalorder %s30, 1
    %p258 = por %p256, %p257
    %p259 = scmp.ne.s32.totalorder %s250, %s251
    %p260 = scmp.eq.s32.totalorder %s30, 0
    %p261 = por %p259, %p260
    %p262 = scmp.ne.s32.totalorder %s250, %s251
    %p263 = scmp.eq.s32.totalorder %s31, 1
    %p264 = por %p262, %p263
    %p266 = scmp.ne.s32.totalorder %s251, %s265
    %p267 = scmp.eq.s32.totalorder %s31, 0
    %p268 = por %p266, %p267
    %s270 = sadd.s32 %s269, 1
    %p273 = scmp.eq.s32.totalorder %s25, 1
    %p274 = scmp.ne.s32.totalorder %s269, %s271
    %p275 = scmp.eq.s32.totalorder %s25, 0
    %p276 = por %p274, %p275
    %p277 = scmp.ne.s32.totalorder %s269, %s271
    %p278 = scmp.eq.s32.totalorder %s30, 1
    %p279 = por %p277, %p278
    %p280 = scmp.ne.s32.totalorder %s271, %s272
    %p281 = scmp.eq.s32.totalorder %s30, 0
    %p282 = por %p280, %p281
    %p283 = scmp.ne.s32.totalorder %s271, %s272
    %p284 = scmp.eq.s32.totalorder %s31, 1
    %p285 = por %p283, %p284
    %p287 = scmp.ne.s32.totalorder %s272, %s286
    %p288 = scmp.eq.s32.totalorder %s31, 0
    %p289 = por %p287, %p288
    %s291 = sadd.s32 %s290, 1
    %p294 = scmp.eq.s32.totalorder %s25, 1
    %p295 = scmp.ne.s32.totalorder %s290, %s292
    %p296 = scmp.eq.s32.totalorder %s25, 0
    %p297 = por %p295, %p296
    %p298 = scmp.ne.s32.totalorder %s290, %s292
    %p299 = scmp.eq.s32.totalorder %s30, 1
    %p300 = por %p298, %p299
    %p301 = scmp.ne.s32.totalorder %s292, %s293
    %p302 = scmp.eq.s32.totalorder %s30, 0
    %p303 = por %p301, %p302
    %p304 = scmp.ne.s32.totalorder %s292, %s293
    %p305 = scmp.eq.s32.totalorder %s31, 1
    %p306 = por %p304, %p305
    %p308 = scmp.ne.s32.totalorder %s293, %s307
    %p309 = scmp.eq.s32.totalorder %s31, 0
    %p310 = por %p308, %p309
    %s312 = sadd.s32 %s311, 1
    %p315 = scmp.eq.s32.totalorder %s25, 1
    %p316 = scmp.ne.s32.totalorder %s311, %s313
    %p317 = scmp.eq.s32.totalorder %s25, 0
    %p318 = por %p316, %p317
    %p319 = scmp.ne.s32.totalorder %s311, %s313
    %p320 = scmp.eq.s32.totalorder %s30, 1
    %p321 = por %p319, %p320
    %p322 = scmp.ne.s32.totalorder %s313, %s314
    %p323 = scmp.eq.s32.totalorder %s30, 0
    %p324 = por %p322, %p323
    %p325 = scmp.ne.s32.totalorder %s313, %s314
    %p326 = scmp.eq.s32.totalorder %s31, 1
    %p327 = por %p325, %p326
    %p329 = scmp.ne.s32.totalorder %s314, %s328
    %p330 = scmp.eq.s32.totalorder %s31, 0
    %p331 = por %p329, %p330
    %s333 = sadd.s32 %s332, 1
    %p336 = scmp.eq.s32.totalorder %s25, 1
    %p337 = scmp.ne.s32.totalorder %s332, %s334
    %p338 = scmp.eq.s32.totalorder %s25, 0
    %p339 = por %p337, %p338
    %p340 = scmp.ne.s32.totalorder %s332, %s334
    %p341 = scmp.eq.s32.totalorder %s30, 1
    %p342 = por %p340, %p341
    %p343 = scmp.ne.s32.totalorder %s334, %s335
    %p344 = scmp.eq.s32.totalorder %s30, 0
    %p345 = por %p343, %p344
    %p346 = scmp.ne.s32.totalorder %s334, %s335
    %p347 = scmp.eq.s32.totalorder %s31, 1
    %p348 = por %p346, %p347
    %p350 = scmp.ne.s32.totalorder %s335, %s349
    %p351 = scmp.eq.s32.totalorder %s31, 0
    %p352 = por %p350, %p351
    %s354 = sadd.s32 %s353, 1
    %p357 = scmp.eq.s32.totalorder %s25, 1
    %p358 = scmp.ne.s32.totalorder %s353, %s355
    %p359 = scmp.eq.s32.totalorder %s25, 0
    %p360 = por %p358, %p359
    %p361 = scmp.ne.s32.totalorder %s353, %s355
    %p362 = scmp.eq.s32.totalorder %s30, 1
    %p363 = por %p361, %p362
    %p364 = scmp.ne.s32.totalorder %s355, %s356
    %p365 = scmp.eq.s32.totalorder %s30, 0
    %p366 = por %p364, %p365
    %p367 = scmp.ne.s32.totalorder %s355, %s356
    %p368 = scmp.eq.s32.totalorder %s31, 1
    %p369 = por %p367, %p368
    %p371 = scmp.ne.s32.totalorder %s356, %s370
    %p372 = scmp.eq.s32.totalorder %s31, 0
    %p373 = por %p371, %p372
    %s375 = sadd.s32 %s374, 1
    %p378 = scmp.eq.s32.totalorder %s25, 1
    %p379 = scmp.ne.s32.totalorder %s374, %s376
    %p380 = scmp.eq.s32.totalorder %s25, 0
    %p381 = por %p379, %p380
    %p382 = scmp.ne.s32.totalorder %s374, %s376
    %p383 = scmp.eq.s32.totalorder %s30, 1
    %p384 = por %p382, %p383
    %p385 = scmp.ne.s32.totalorder %s376, %s377
    %p386 = scmp.eq.s32.totalorder %s30, 0
    %p387 = por %p385, %p386
    %p388 = scmp.ne.s32.totalorder %s376, %s377
    %p389 = scmp.eq.s32.totalorder %s31, 1
    %p390 = por %p388, %p389
    %p392 = scmp.ne.s32.totalorder %s377, %s391
    %p393 = scmp.eq.s32.totalorder %s31, 0
    %p394 = por %p392, %p393
    %s396 = sadd.s32 %s395, 1
    %p399 = scmp.eq.s32.totalorder %s25, 1
    %p400 = scmp.ne.s32.totalorder %s395, %s397
    %p401 = scmp.eq.s32.totalorder %s25, 0
    %p402 = por %p400, %p401
    %p403 = scmp.ne.s32.totalorder %s395, %s397
    %p404 = scmp.eq.s32.totalorder %s30, 1
    %p405 = por %p403, %p404
    %p406 = scmp.ne.s32.totalorder %s397, %s398
    %p407 = scmp.eq.s32.totalorder %s30, 0
    %p408 = por %p406, %p407
    %p409 = scmp.ne.s32.totalorder %s397, %s398
    %p410 = scmp.eq.s32.totalorder %s31, 1
    %p411 = por %p409, %p410
    %p413 = scmp.ne.s32.totalorder %s398, %s412
    %p414 = scmp.eq.s32.totalorder %s31, 0
    %p415 = por %p413, %p414
    %s417 = sadd.s32 %s416, 1
    %p420 = scmp.eq.s32.totalorder %s25, 1
    %p421 = scmp.ne.s32.totalorder %s416, %s418
    %p422 = scmp.eq.s32.totalorder %s25, 0
    %p423 = por %p421, %p422
    %p424 = scmp.ne.s32.totalorder %s416, %s418
    %p425 = scmp.eq.s32.totalorder %s30, 1
    %p426 = por %p424, %p425
    %p427 = scmp.ne.s32.totalorder %s418, %s419
    %p428 = scmp.eq.s32.totalorder %s30, 0
    %p429 = por %p427, %p428
    %p430 = scmp.ne.s32.totalorder %s418, %s419
    %p431 = scmp.eq.s32.totalorder %s31, 1
    %p432 = por %p430, %p431
    %p434 = scmp.ne.s32.totalorder %s419, %s433
    %p435 = scmp.eq.s32.totalorder %s31, 0
    %p436 = por %p434, %p435
    %s437 = ssub.s32 %s25, %s32
    %p438 = scmp.eq.s32.totalorder %s437, 0
    %s440 = sadd.s32 %s439, 1
    %s441 = scalar_select %p438, %s439, %s440
    %p444 = pneg %p438
    %p445 = scmp.eq.s32.totalorder %s25, 1
    %p446 = por %p444, %p445
    %p447 = scmp.ne.s32.totalorder %s439, %s442
    %p448 = scmp.eq.s32.totalorder %s25, 0
    %p449 = por %p447, %p448
    %p450 = scmp.ne.s32.totalorder %s439, %s442
    %p451 = scmp.eq.s32.totalorder %s30, 1
    %p452 = por %p450, %p451
    %p453 = scmp.ne.s32.totalorder %s442, %s443
    %p454 = scmp.eq.s32.totalorder %s30, 0
    %p455 = por %p453, %p454
    %p456 = scmp.ne.s32.totalorder %s442, %s443
    %p457 = scmp.eq.s32.totalorder %s31, 1
    %p458 = por %p456, %p457
    %p460 = scmp.ne.s32.totalorder %s443, %s459
    %p461 = scmp.eq.s32.totalorder %s31, 0
    %p462 = por %p460, %p461
    %p463 = scmp.le.s32.totalorder 1, %s25
    %p464 = scmp.lt.s32.totalorder %s25, 3
    %p465 = pnand %p463, %p464
    %p466 = pneg %p465
    // Predicated region
    $region9: #{clip_vision_tower_forward.1} parent=5 // pred_check
      _
    $region10: #{clip_vision_tower_forward.1} parent=5 // pred_check_branch
      %468 = sbr.rel (%p465) target = $region12
    $region11: #{clip_vision_tower_forward.1} parent=5 // pred_region
      %s469 = ssub.s32 %s25, 1
      // Predicated region
      $region13: #{clip_vision_tower_forward.1} parent=11 // pred_check
        %p470 = pneg %p72
      $region14: #{clip_vision_tower_forward.1} parent=11 // pred_check_branch
        %472 = sbr.rel (%p470) target = $region16
      $region15: #{clip_vision_tower_forward.1} parent=11 // pred_region
        _
      $region16: #{clip_vision_tower_forward.1} parent=11 // pred_fallthru
        _
      // Predicated region
      $region17: #{clip_vision_tower_forward.1} parent=11 // pred_check
        %p473 = pneg %p93
      $region18: #{clip_vision_tower_forward.1} parent=11 // pred_check_branch
        %475 = sbr.rel (%p473) target = $region20
      $region19: #{clip_vision_tower_forward.1} parent=11 // pred_region
        _
      $region20: #{clip_vision_tower_forward.1} parent=11 // pred_fallthru
        _
      // Predicated region
      $region21: #{clip_vision_tower_forward.1} parent=11 // pred_check
        %p476 = pneg %p114
      $region22: #{clip_vision_tower_forward.1} parent=11 // pred_check_branch
        %478 = sbr.rel (%p476) target = $region24
      $region23: #{clip_vision_tower_forward.1} parent=11 // pred_region
        _
      $region24: #{clip_vision_tower_forward.1} parent=11 // pred_fallthru
        _
      // Predicated region
      $region25: #{clip_vision_tower_forward.1} parent=11 // pred_check
        %p479 = pneg %p135
      $region26: #{clip_vision_tower_forward.1} parent=11 // pred_check_branch
        %481 = sbr.rel (%p479) target = $region28
      $region27: #{clip_vision_tower_forward.1} parent=11 // pred_region
        _
      $region28: #{clip_vision_tower_forward.1} parent=11 // pred_fallthru
        _
      // Predicated region
      $region29: #{clip_vision_tower_forward.1} parent=11 // pred_check
        %p482 = pneg %p156
      $region30: #{clip_vision_tower_forward.1} parent=11 // pred_check_branch
        %484 = sbr.rel (%p482) target = $region32
      $region31: #{clip_vision_tower_forward.1} parent=11 // pred_region
        _
      $region32: #{clip_vision_tower_forward.1} parent=11 // pred_fallthru
        _
      // Predicated region
      $region33: #{clip_vision_tower_forward.1} parent=11 // pred_check
        %p485 = pneg %p177
      $region34: #{clip_vision_tower_forward.1} parent=11 // pred_check_branch
        %487 = sbr.rel (%p485) target = $region36
      $region35: #{clip_vision_tower_forward.1} parent=11 // pred_region
        _
      $region36: #{clip_vision_tower_forward.1} parent=11 // pred_fallthru
        _
      // Predicated region
      $region37: #{clip_vision_tower_forward.1} parent=11 // pred_check
        %p488 = pneg %p198
      $region38: #{clip_vision_tower_forward.1} parent=11 // pred_check_branch
        %490 = sbr.rel (%p488) target = $region40
      $region39: #{clip_vision_tower_forward.1} parent=11 // pred_region
        _
      $region40: #{clip_vision_tower_forward.1} parent=11 // pred_fallthru
        _
      // Predicated region
      $region41: #{clip_vision_tower_forward.1} parent=11 // pred_check
        %p491 = pneg %p219
      $region42: #{clip_vision_tower_forward.1} parent=11 // pred_check_branch
        %493 = sbr.rel (%p491) target = $region44
      $region43: #{clip_vision_tower_forward.1} parent=11 // pred_region
        _
      $region44: #{clip_vision_tower_forward.1} parent=11 // pred_fallthru
        _
      // Predicated region
      $region45: #{clip_vision_tower_forward.1} parent=11 // pred_check
        %p494 = pneg %p240
      $region46: #{clip_vision_tower_forward.1} parent=11 // pred_check_branch
        %496 = sbr.rel (%p494) target = $region48
      $region47: #{clip_vision_tower_forward.1} parent=11 // pred_region
        _
      $region48: #{clip_vision_tower_forward.1} parent=11 // pred_fallthru
        _
      // Predicated region
      $region49: #{clip_vision_tower_forward.1} parent=11 // pred_check
        %p497 = pneg %p261
      $region50: #{clip_vision_tower_forward.1} parent=11 // pred_check_branch
        %499 = sbr.rel (%p497) target = $region52
      $region51: #{clip_vision_tower_forward.1} parent=11 // pred_region
        _
      $region52: #{clip_vision_tower_forward.1} parent=11 // pred_fallthru
        _
      // Predicated region
      $region53: #{clip_vision_tower_forward.1} parent=11 // pred_check
        %p500 = pneg %p282
      $region54: #{clip_vision_tower_forward.1} parent=11 // pred_check_branch
        %502 = sbr.rel (%p500) target = $region56
      $region55: #{clip_vision_tower_forward.1} parent=11 // pred_region
        _
      $region56: #{clip_vision_tower_forward.1} parent=11 // pred_fallthru
        _
      // Predicated region
      $region57: #{clip_vision_tower_forward.1} parent=11 // pred_check
        %p503 = pneg %p303
      $region58: #{clip_vision_tower_forward.1} parent=11 // pred_check_branch
        %505 = sbr.rel (%p503) target = $region60
      $region59: #{clip_vision_tower_forward.1} parent=11 // pred_region
        _
      $region60: #{clip_vision_tower_forward.1} parent=11 // pred_fallthru
        _
      // Predicated region
      $region61: #{clip_vision_tower_forward.1} parent=11 // pred_check
        %p506 = pneg %p324
      $region62: #{clip_vision_tower_forward.1} parent=11 // pred_check_branch
        %508 = sbr.rel (%p506) target = $region64
      $region63: #{clip_vision_tower_forward.1} parent=11 // pred_region
        _
      $region64: #{clip_vision_tower_forward.1} parent=11 // pred_fallthru
        _
      // Predicated region
      $region65: #{clip_vision_tower_forward.1} parent=11 // pred_check
        %p509 = pneg %p345
      $region66: #{clip_vision_tower_forward.1} parent=11 // pred_check_branch
        %511 = sbr.rel (%p509) target = $region68
      $region67: #{clip_vision_tower_forward.1} parent=11 // pred_region
        _
      $region68: #{clip_vision_tower_forward.1} parent=11 // pred_fallthru
        _
      // Predicated region
      $region69: #{clip_vision_tower_forward.1} parent=11 // pred_check
        %p512 = pneg %p366
      $region70: #{clip_vision_tower_forward.1} parent=11 // pred_check_branch
        %514 = sbr.rel (%p512) target = $region72
      $region71: #{clip_vision_tower_forward.1} parent=11 // pred_region
        _
      $region72: #{clip_vision_tower_forward.1} parent=11 // pred_fallthru
        _
      // Predicated region
      $region73: #{clip_vision_tower_forward.1} parent=11 // pred_check
        %p515 = pneg %p387
      $region74: #{clip_vision_tower_forward.1} parent=11 // pred_check_branch
        %517 = sbr.rel (%p515) target = $region76
      $region75: #{clip_vision_tower_forward.1} parent=11 // pred_region
        _
      $region76: #{clip_vision_tower_forward.1} parent=11 // pred_fallthru
        _
      // Predicated region
      $region77: #{clip_vision_tower_forward.1} parent=11 // pred_check
        %p518 = pneg %p408
      $region78: #{clip_vision_tower_forward.1} parent=11 // pred_check_branch
        %520 = sbr.rel (%p518) target = $region80
      $region79: #{clip_vision_tower_forward.1} parent=11 // pred_region
        _
      $region80: #{clip_vision_tower_forward.1} parent=11 // pred_fallthru
        _
      // Predicated region
      $region81: #{clip_vision_tower_forward.1} parent=11 // pred_check
        %p521 = pneg %p429
      $region82: #{clip_vision_tower_forward.1} parent=11 // pred_check_branch
        %523 = sbr.rel (%p521) target = $region84
      $region83: #{clip_vision_tower_forward.1} parent=11 // pred_region
        _
      $region84: #{clip_vision_tower_forward.1} parent=11 // pred_fallthru
        _
    $region12: #{clip_vision_tower_forward.1} parent=5 // pred_fallthru
      _
    %p524 = scmp.lt.s32.totalorder %s25, 2
    // Predicated region
    $region85: #{clip_vision_tower_forward.1} parent=5 // pred_check
      %p525 = pneg %p524
    $region86: #{clip_vision_tower_forward.1} parent=5 // pred_check_branch
      %527 = sbr.rel (%p525) target = $region88
    $region87: #{clip_vision_tower_forward.1} parent=5 // pred_region
      // Predicated region
      $region89: #{clip_vision_tower_forward.1} parent=87 // pred_check
        %p528 = pneg %p45
      $region90: #{clip_vision_tower_forward.1} parent=87 // pred_check_branch
        %530 = sbr.rel (%p528) target = $region92
      $region91: #{clip_vision_tower_forward.1} parent=87 // pred_region
        %s531 = smul.u32 4, %s25
        %p532 = scmp.lt.s32.totalorder %s531, 7
        %s533 = scalar_select %p532, %s531, 7
        %s534 = smul.addr %s533, 2
        %s535 = smul.addr %s534, 4
        %s536 = scalar_lea.vmem %s0, %s535
        %s537 = smul.u32 4, %s25
      $region92: #{clip_vision_tower_forward.1} parent=87 // pred_fallthru
        _
    $region88: #{clip_vision_tower_forward.1} parent=5 // pred_fallthru
      _
    %p538 = scmp.le.s32.totalorder 1, %s25
    %p539 = scmp.lt.s32.totalorder %s25, 3
    %p540 = pnand %p538, %p539
    %p541 = pneg %p540
    // Predicated region
    $region93: #{clip_vision_tower_forward.1} parent=5 // pred_check
      _
    $region94: #{clip_vision_tower_forward.1} parent=5 // pred_check_branch
      %543 = sbr.rel (%p540) target = $region96
    $region95: #{clip_vision_tower_forward.1} parent=5 // pred_region
      %s544 = ssub.s32 %s25, 1
      %s545 = smul.u32 4, %s30
      %p546 = scmp.lt.s32.totalorder %s545, 7
      %s547 = scalar_select %p546, %s545, 7
      %s548 = smul.addr %s547, 2
      %s549 = smul.addr %s548, 4
      %s550 = scalar_lea.vmem %s0, %s549
      %p551 = pneg %p51
      %p552 = pneg %p48
      %p553 = pneg %p72
      %p554 = pneg %p69
      %p555 = pneg %p93
      %p556 = pneg %p90
      %p557 = pneg %p114
      %p558 = pneg %p111
      %p559 = pneg %p135
      %p560 = pneg %p132
      %p561 = pneg %p156
      %p562 = pneg %p153
      %p563 = pneg %p177
      %p564 = pneg %p174
      %p565 = pneg %p198
      %p566 = pneg %p195
      %p567 = pneg %p219
      %p568 = pneg %p216
      %p569 = pneg %p240
      %p570 = pneg %p237
      %p571 = pneg %p261
      %p572 = pneg %p258
      %p573 = pneg %p282
      %p574 = pneg %p279
      %p575 = pneg %p303
      %p576 = pneg %p300
      %p577 = pneg %p324
      %p578 = pneg %p321
      %p579 = pneg %p345
      %p580 = pneg %p342
      %p581 = pneg %p366
      %p582 = pneg %p363
      %p583 = pneg %p387
      %p584 = pneg %p384
      %p585 = pneg %p408
      %p586 = pneg %p405
      %p587 = pneg %p429
      %p588 = pneg %p426
      %p589 = pneg %p455
      %p590 = pneg %p452
      %p591 = scmp.lt.s32.totalorder %s30, 1
      %s592 = scalar_select %p591, %s30, 1
      %s593 = smul.addr %s592, 2
      %s594 = smul.addr %s593, 4
      %s595 = scalar_lea.vmem %s19, %s594
      %s596 = smul.u32 4, %s30
      %p597 = scmp.lt.s32.totalorder %s596, 7
      %s598 = scalar_select %p597, %s596, 7
      %s599 = smul.addr %s598, 2
      %s600 = smul.addr %s599, 4
      %s601 = scalar_lea.vmem %s0, %s600
      %s602 = smul.u32 4, %s30
      %p603 = scmp.lt.s32.totalorder %s30, 1
      %s604 = scalar_select %p603, %s30, 1
      %s605 = smul.addr %s604, 2
      %s606 = smul.addr %s605, 4
      %s607 = scalar_lea.vmem %s19, %s606
      %v609 = vld [vmem:[%s601] sm:$0xff]
      %v610 = vld [vmem:[%s601 + $0x8] sm:$0xff]
      %v611 = vld [vmem:[%s601 + $0x10] sm:$0xff]
      %v612 = vld [vmem:[%s601 + $0x18] sm:$0xff]
      %v613 = vld [vmem:[%s1] sm:$0xf]
      %v614 = vld [vmem:[%s1 + $0x4] sm:$0xf]
      %v615 = vld [vmem:[%s1 + $0x8] sm:$0xf]
      %v616 = vld [vmem:[%s1 + $0xc] sm:$0xf]
      %v617 = vld [vmem:[%s1 + $0x10] sm:$0xf]
      %v618 = vld [vmem:[%s1 + $0x14] sm:$0xf]
      %v619 = vld [vmem:[%s1 + $0x18] sm:$0xf]
      %v620 = vld [vmem:[%s1 + $0x1c] sm:$0xf]
      %v621 = vld [vmem:[%s1 + $0x20] sm:$0xf]
      %v622 = vld [vmem:[%s1 + $0x24] sm:$0xf]
      %v623 = vld [vmem:[%s1 + $0x28] sm:$0xf]
      %v624 = vld [vmem:[%s1 + $0x2c] sm:$0xf]
      %v625 = vld [vmem:[%s1 + $0x30] sm:$0xf]
      %v626 = vld [vmem:[%s1 + $0x34] sm:$0xf]
      %v627 = vld [vmem:[%s1 + $0x38] sm:$0xf]
      %v628 = vld [vmem:[%s1 + $0x3c] sm:$0xf]
      %v629 = vld [vmem:[%s1 + $0x40] sm:$0xf]
      %v630 = vld [vmem:[%s1 + $0x44] sm:$0xf]
      %v631 = vld [vmem:[%s1 + $0x48] sm:$0xf]
      %v632 = vld [vmem:[%s1 + $0x4c] sm:$0xf]
      %v633 = vld [vmem:[%s1 + $0x50] sm:$0xf]
      %v634 = vld [vmem:[%s1 + $0x54] sm:$0xf]
      %v635 = vld [vmem:[%s1 + $0x58] sm:$0xf]
      %v636 = vld [vmem:[%s1 + $0x5c] sm:$0xf]
      %v637 = vld [vmem:[%s2] sm:$0xff]
      %v638 = vld [vmem:[%s2 + $0x8] sm:$0xff]
      %v639 = vld [vmem:[%s2 + $0x10] sm:$0xff]
      %v640 = vld [vmem:[%s2 + $0x18] sm:$0xff]
      %v645 = vunpack.c.l.b16 %v609
      %v646 = vunpack.c.h.b16 %v609
      %v647 = vunpack.c.l.b16 %v610
      %v648 = vunpack.c.h.b16 %v610
      %v649 = vunpack.c.l.b16 %v611
      %v650 = vunpack.c.h.b16 %v611
      %v651 = vunpack.c.l.b16 %v612
      %v652 = vunpack.c.h.b16 %v612
      %v653 = vpack.c.b16 %v647, %v645
      %v654 = vpack.c.b16 %v648, %v646
      %v655 = vpack.c.b16 %v651, %v649
      %v656 = vpack.c.b16 %v652, %v650
      %v683 = vunpack.c.l.b16 %v613
      %v684 = vunpack.c.l.b16 %v614
      %v685 = vunpack.c.l.b16 %v615
      %v686 = vunpack.c.l.b16 %v616
      %v687 = vunpack.c.l.b16 %v617
      %v688 = vunpack.c.l.b16 %v618
      %v689 = vunpack.c.l.b16 %v619
      %v690 = vunpack.c.l.b16 %v620
      %v691 = vunpack.c.l.b16 %v621
      %v692 = vunpack.c.l.b16 %v622
      %v693 = vunpack.c.l.b16 %v623
      %v694 = vunpack.c.l.b16 %v624
      %v695 = vunpack.c.l.b16 %v625
      %v696 = vunpack.c.l.b16 %v626
      %v697 = vunpack.c.l.b16 %v627
      %v698 = vunpack.c.l.b16 %v628
      %v699 = vunpack.c.l.b16 %v629
      %v700 = vunpack.c.l.b16 %v630
      %v701 = vunpack.c.l.b16 %v631
      %v702 = vunpack.c.l.b16 %v632
      %v703 = vunpack.c.l.b16 %v633
      %v704 = vunpack.c.l.b16 %v634
      %v705 = vunpack.c.l.b16 %v635
      %v706 = vunpack.c.l.b16 %v636
      %v707 = vpack.c.b16 %v684, %v683
      %v708 = vpack.c.b16 %v686, %v685
      %v709 = vpack.c.b16 %v688, %v687
      %v710 = vpack.c.b16 %v690, %v689
      %v711 = vpack.c.b16 %v692, %v691
      %v712 = vpack.c.b16 %v694, %v693
      %v713 = vpack.c.b16 %v696, %v695
      %v714 = vpack.c.b16 %v698, %v697
      %v715 = vpack.c.b16 %v700, %v699
      %v716 = vpack.c.b16 %v702, %v701
      %v717 = vpack.c.b16 %v704, %v703
      %v718 = vpack.c.b16 %v706, %v705
      %vm731 = vcmask 523264
      %v733 = vsel %vm731, %v654, 0
      %v736 = vsel %vm731, %v656, 0
      %738 = vmatprep.subr.bf16.mxu0 0
      %739 = vmatpush1.bf16.msra.mxu0 %v714
      %740 = vmatprep.subr.bf16.mxu0 0
      %741 = vmatpush1.bf16.msra.mxu0 %v713
      %742 = vmatprep.subr.bf16.mxu0 0
      %743 = vmatpush1.bf16.msra.mxu0 %v712
      %744 = vmatprep.subr.bf16.mxu0 0
      %745 = vmatpush1.bf16.msra.mxu0 %v711
      %746 = vmatprep.subr.bf16.mxu0 0
      %747 = vmatpush1.bf16.msra.mxu0 %v710
      %748 = vmatprep.subr.bf16.mxu0 0
      %749 = vmatpush1.bf16.msra.mxu0 %v709
      %750 = vmatprep.subr.bf16.mxu0 0
      %751 = vmatpush1.bf16.msra.mxu0 %v708
      %752 = vmatprep.subr.bf16.mxu0 0
      %753 = vmatpush1.bf16.msra.mxu0 %v707
      %754 = vmatprep.subr.bf16.mxu0 0
      %755 = vmatpush2.bf16.msra.mxu0 0
      %756 = vmatprep.subr.bf16.mxu0 0
      %757 = vmatpush2.bf16.msra.mxu0 0
      %758 = vmatprep.subr.bf16.mxu0 0
      %759 = vmatpush2.bf16.msra.mxu0 0
      %760 = vmatprep.subr.bf16.mxu0 0
      %761 = vmatpush2.bf16.msra.mxu0 0
      %762 = vmatprep.subr.bf16.mxu0 0
      %763 = vmatpush2.bf16.msra.mxu0 %v718
      %764 = vmatprep.subr.bf16.mxu0 0
      %765 = vmatpush2.bf16.msra.mxu0 %v717
      %766 = vmatprep.subr.bf16.mxu0 0
      %767 = vmatpush2.bf16.msra.mxu0 %v716
      %768 = vmatprep.subr.bf16.mxu0 0
      %769 = vmatpush2.bf16.msra.mxu0 %v715
      %770 = vmatprep.mubr.bf16.mxu0 %v733
      %771 = vmatmul.mubr.bf16.gmra.mxu0 %v653
      %v772 = vpop.f32.mrf.mxu0
      %v773 = vadd.f32 %v637, %v772
      %v774 = vpop.f32.mrf.mxu0
      %v775 = vpop.f32.mrf.mxu0
      %v776 = vadd.f32 %v638, %v775
      %v777 = vpop.f32.mrf.mxu0
      %778 = vmatprep.mubr.bf16.mxu0 %v736
      %779 = vmatmul.mubr.bf16.gmra.mxu0 %v655
      %v780 = vpop.f32.mrf.mxu0
      %v781 = vadd.f32 %v639, %v780
      %v782 = vpop.f32.mrf.mxu0
      %v783 = vpop.f32.mrf.mxu0
      %v784 = vadd.f32 %v640, %v783
      %v785 = vpop.f32.mrf.mxu0
      %786 = vdwg.mxu0
      %v787 = vld [vmem:[%s3] sm:$0x1]
      %v788 = vld [vmem:[%s4] sm:$0x1]
      %v789 = vsel %vm731, %v773, 0.0
      %790 = vadd.xlane.f32.xlu0 %v789
      %v791 = vpop.xlane.xlu0 %790
      %v792 = vsel %vm731, %v776, 0.0
      %793 = vadd.xlane.f32.xlu0 %v792
      %v794 = vpop.xlane.xlu0 %793
      %v795 = vsel %vm731, %v781, 0.0
      %796 = vadd.xlane.f32.xlu0 %v795
      %v797 = vpop.xlane.xlu0 %796
      %v798 = vsel %vm731, %v784, 0.0
      %799 = vadd.xlane.f32.xlu0 %v798
      %v800 = vpop.xlane.xlu0 %799
      %v801 = vrcp.pop 64.0
      %v802 = vmul.f32 %v791, %v801
      %v803 = vmul.f32 %v794, %v801
      %v804 = vmul.f32 %v797, %v801
      %v805 = vmul.f32 %v800, %v801
      %v806 = vsub.f32 %v773, %v802
      %v807 = vsub.f32 %v776, %v803
      %v808 = vsub.f32 %v781, %v804
      %v809 = vsub.f32 %v784, %v805
      %v810 = vmul.f32 %v806, %v806
      %v811 = vmul.f32 %v807, %v807
      %v812 = vmul.f32 %v808, %v808
      %v813 = vmul.f32 %v809, %v809
      %v814 = vsel %vm731, %v810, 0.0
      %815 = vadd.xlane.f32.xlu0 %v814
      %v816 = vpop.xlane.xlu0 %815
      %v817 = vsel %vm731, %v811, 0.0
      %818 = vadd.xlane.f32.xlu0 %v817
      %v819 = vpop.xlane.xlu0 %818
      %v820 = vsel %vm731, %v812, 0.0
      %821 = vadd.xlane.f32.xlu0 %v820
      %v822 = vpop.xlane.xlu0 %821
      %v823 = vsel %vm731, %v813, 0.0
      %824 = vadd.xlane.f32.xlu0 %v823
      %v825 = vpop.xlane.xlu0 %824
      %v826 = vmul.f32 %v816, %v801
      %v827 = vmul.f32 %v819, %v801
      %v828 = vmul.f32 %v822, %v801
      %v829 = vmul.f32 %v825, %v801
      %v830 = vadd.f32 %v826, 1e-05
      %v831 = vadd.f32 %v827, 1e-05
      %v832 = vadd.f32 %v828, 1e-05
      %v833 = vadd.f32 %v829, 1e-05
      %v834 = vrsqrt.pop %v830
      %v835 = vrsqrt.pop %v831
      %v836 = vrsqrt.pop %v832
      %v837 = vrsqrt.pop %v833
      %v838 = vmul.f32 %v806, %v834
      %v839 = vmul.f32 %v807, %v835
      %v840 = vmul.f32 %v808, %v836
      %v841 = vmul.f32 %v809, %v837
      %v843 = vlaneseq
      %v844 = vshrl.u32 %v843, 7
      %v845 = vsub.s32 0, %v844
      %v846 = vrot.slane %v787, %v845
      %v848 = vmul.f32 %v838, %v846
      %v849 = vmul.f32 %v839, %v846
      %v850 = vmul.f32 %v840, %v846
      %v851 = vmul.f32 %v841, %v846
      %v853 = vlaneseq
      %v854 = vshrl.u32 %v853, 7
      %v855 = vsub.s32 0, %v854
      %v856 = vrot.slane %v788, %v855
      %v858 = vadd.f32 %v848, %v856
      %v859 = vadd.f32 %v849, %v856
      %v860 = vadd.f32 %v850, %v856
      %v861 = vadd.f32 %v851, %v856
      %v862 = vld [vmem:[%s6] sm:$0x1]
      %v863 = vld [vmem:[%s7] sm:$0x1]
      %v864 = vld [vmem:[%s8] sm:$0x1]
      %v865 = vsel %vm731, %v858, 0.0
      %866 = vadd.xlane.f32.xlu0 %v865
      %v867 = vpop.xlane.xlu0 %866
      %v868 = vsel %vm731, %v859, 0.0
      %869 = vadd.xlane.f32.xlu0 %v868
      %v870 = vpop.xlane.xlu0 %869
      %v871 = vsel %vm731, %v860, 0.0
      %872 = vadd.xlane.f32.xlu0 %v871
      %v873 = vpop.xlane.xlu0 %872
      %v874 = vsel %vm731, %v861, 0.0
      %875 = vadd.xlane.f32.xlu0 %v874
      %v876 = vpop.xlane.xlu0 %875
      %v877 = vmul.f32 %v867, %v801
      %v878 = vmul.f32 %v870, %v801
      %v879 = vmul.f32 %v873, %v801
      %v880 = vmul.f32 %v876, %v801
      %v881 = vsub.f32 %v858, %v877
      %v882 = vsub.f32 %v859, %v878
      %v883 = vsub.f32 %v860, %v879
      %v884 = vsub.f32 %v861, %v880
      %v885 = vmul.f32 %v881, %v881
      %v886 = vmul.f32 %v882, %v882
      %v887 = vmul.f32 %v883, %v883
      %v888 = vmul.f32 %v884, %v884
      %v889 = vsel %vm731, %v885, 0.0
      %890 = vadd.xlane.f32.xlu0 %v889
      %v891 = vpop.xlane.xlu0 %890
      %v892 = vsel %vm731, %v886, 0.0
      %893 = vadd.xlane.f32.xlu0 %v892
      %v894 = vpop.xlane.xlu0 %893
      %v895 = vsel %vm731, %v887, 0.0
      %896 = vadd.xlane.f32.xlu0 %v895
      %v897 = vpop.xlane.xlu0 %896
      %v898 = vsel %vm731, %v888, 0.0
      %899 = vadd.xlane.f32.xlu0 %v898
      %v900 = vpop.xlane.xlu0 %899
      %v901 = vmul.f32 %v891, %v801
      %v902 = vmul.f32 %v894, %v801
      %v903 = vmul.f32 %v897, %v801
      %v904 = vmul.f32 %v900, %v801
      %v905 = vadd.f32 %v901, 1e-05
      %v906 = vadd.f32 %v902, 1e-05
      %v907 = vadd.f32 %v903, 1e-05
      %v908 = vadd.f32 %v904, 1e-05
      %v909 = vrsqrt.pop %v905
      %v910 = vrsqrt.pop %v906
      %v911 = vrsqrt.pop %v907
      %v912 = vrsqrt.pop %v908
      %v913 = vmul.f32 %v881, %v909
      %v914 = vmul.f32 %v882, %v910
      %v915 = vmul.f32 %v883, %v911
      %v916 = vmul.f32 %v884, %v912
      %v918 = vlaneseq
      %v919 = vshrl.u32 %v918, 7
      %v920 = vsub.s32 0, %v919
      %v921 = vrot.slane %v863, %v920
      %v923 = vmul.f32 %v913, %v921
      %v924 = vmul.f32 %v914, %v921
      %v925 = vmul.f32 %v915, %v921
      %v926 = vmul.f32 %v916, %v921
      %v928 = vlaneseq
      %v929 = vshrl.u32 %v928, 7
      %v930 = vsub.s32 0, %v929
      %v931 = vrot.slane %v864, %v930
      %v933 = vadd.f32 %v923, %v931
      %v934 = vadd.f32 %v924, %v931
      %v935 = vadd.f32 %v925, %v931
      %v936 = vadd.f32 %v926, %v931
      %v937 = vld [vmem:[%s9] sm:$0xff]
      %v938 = vld [vmem:[%s9 + $0x8] sm:$0xff]
      %v939 = vld [vmem:[%s9 + $0x10] sm:$0xff]
      %v940 = vld [vmem:[%s9 + $0x18] sm:$0xff]
      %v941 = vld [vmem:[%s9 + $0x20] sm:$0xff]
      %v942 = vld [vmem:[%s9 + $0x28] sm:$0xff]
      %v943 = vld [vmem:[%s9 + $0x30] sm:$0xff]
      %v944 = vld [vmem:[%s9 + $0x38] sm:$0xff]
      %v945 = vpack.c.bf16 %v934, %v933
      %v946 = vpack.c.bf16 %v936, %v935
      %v947 = vld [vmem:[%s10] sm:$0x3]
      %v949 = vlaneseq
      %v950 = vshrl.u32 %v949, 7
      %v951 = vsub.s32 0, %v950
      %v952 = vrot.slane %v947, %v951
      %v953 = vlaneseq
      %v954 = vshrl.u32 %v953, 7
      %v955 = vsub.s32 1, %v954
      %v956 = vrot.slane %v947, %v955
      %v967 = vunpack.c.l.b16 %v937
      %v968 = vunpack.c.h.b16 %v937
      %v969 = vunpack.c.l.b16 %v938
      %v970 = vunpack.c.h.b16 %v938
      %v971 = vunpack.c.l.b16 %v939
      %v972 = vunpack.c.h.b16 %v939
      %v973 = vunpack.c.l.b16 %v940
      %v974 = vunpack.c.h.b16 %v940
      %v975 = vunpack.c.l.b16 %v941
      %v976 = vunpack.c.h.b16 %v941
      %v977 = vunpack.c.l.b16 %v942
      %v978 = vunpack.c.h.b16 %v942
      %v979 = vunpack.c.l.b16 %v943
      %v980 = vunpack.c.h.b16 %v943
      %v981 = vunpack.c.l.b16 %v944
      %v982 = vunpack.c.h.b16 %v944
      %v983 = vpack.c.b16 %v969, %v967
      %v984 = vpack.c.b16 %v970, %v968
      %v985 = vpack.c.b16 %v973, %v971
      %v986 = vpack.c.b16 %v974, %v972
      %v987 = vpack.c.b16 %v977, %v975
      %v988 = vpack.c.b16 %v978, %v976
      %v989 = vpack.c.b16 %v981, %v979
      %v990 = vpack.c.b16 %v982, %v980
      %v1000 = vsel %vm731, %v945, 0
      %v1003 = vsel %vm731, %v946, 0
      %1005 = vmatprep.subr.bf16.mxu0 0
      %1006 = vmatpush1.bf16.msra.mxu0 0
      %1007 = vmatprep.subr.bf16.mxu0 0
      %1008 = vmatpush1.bf16.msra.mxu0 0
      %1009 = vmatprep.subr.bf16.mxu0 0
      %1010 = vmatpush1.bf16.msra.mxu0 0
      %1011 = vmatprep.subr.bf16.mxu0 0
      %1012 = vmatpush1.bf16.msra.mxu0 0
      %1013 = vmatprep.subr.bf16.mxu0 %v990
      %1014 = vmatpush1.bf16.msra.mxu0 %v989
      %1015 = vmatprep.subr.bf16.mxu0 %v988
      %1016 = vmatpush1.bf16.msra.mxu0 %v987
      %1017 = vmatprep.subr.bf16.mxu0 %v986
      %1018 = vmatpush1.bf16.msra.mxu0 %v985
      %1019 = vmatprep.subr.bf16.mxu0 %v984
      %1020 = vmatpush1.bf16.msra.mxu0 %v983
      %1021 = vmatprep.subr.bf16.mxu0 0
      %1022 = vmatpush2.bf16.msra.mxu0 0
      %1023 = vmatprep.subr.bf16.mxu0 0
      %1024 = vmatpush2.bf16.msra.mxu0 0
      %1025 = vmatprep.subr.bf16.mxu0 0
      %1026 = vmatpush2.bf16.msra.mxu0 0
      %1027 = vmatprep.subr.bf16.mxu0 0
      %1028 = vmatpush2.bf16.msra.mxu0 0
      %1029 = vmatprep.subr.bf16.mxu0 0
      %1030 = vmatpush2.bf16.msra.mxu0 0
      %1031 = vmatprep.subr.bf16.mxu0 0
      %1032 = vmatpush2.bf16.msra.mxu0 0
      %1033 = vmatprep.subr.bf16.mxu0 0
      %1034 = vmatpush2.bf16.msra.mxu0 0
      %1035 = vmatprep.subr.bf16.mxu0 0
      %1036 = vmatpush2.bf16.msra.mxu0 0
      %1037 = vmatprep.mubr.bf16.mxu0 0
      %1038 = vmatmul.mubr.bf16.gmra.mxu0 %v1000
      %v1039 = vpop.f32.mrf.mxu0
      %v1040 = vadd.f32 %v952, %v1039
      %v1041 = vpop.f32.mrf.mxu0
      %v1042 = vadd.f32 %v956, %v1041
      %v1043 = vpop.f32.mrf.mxu0
      %v1044 = vadd.f32 %v952, %v1043
      %v1045 = vpop.f32.mrf.mxu0
      %v1046 = vadd.f32 %v956, %v1045
      %1047 = vmatprep.mubr.bf16.mxu0 0
      %1048 = vmatmul.mubr.bf16.gmra.mxu0 %v1003
      %v1049 = vpop.f32.mrf.mxu0
      %v1050 = vadd.f32 %v952, %v1049
      %v1051 = vpop.f32.mrf.mxu0
      %v1052 = vadd.f32 %v956, %v1051
      %v1053 = vpop.f32.mrf.mxu0
      %v1054 = vadd.f32 %v952, %v1053
      %v1055 = vpop.f32.mrf.mxu0
      %v1056 = vadd.f32 %v956, %v1055
      %1057 = vdwg.mxu0
      %v1058 = vld [vmem:[%s5] sm:$0x1]
      %v1060 = vlaneseq
      %v1061 = vshrl.u32 %v1060, 7
      %v1062 = vsub.s32 0, %v1061
      %v1063 = vrot.slane %v1058, %v1062
      %v1065 = vmul.f32 %v1040, %v1063
      %v1066 = vmul.f32 %v1044, %v1063
      %v1067 = vmul.f32 %v1050, %v1063
      %v1068 = vmul.f32 %v1054, %v1063
      %v1069 = vpack.c.bf16 %v1065, %v1065
      %v1070 = vpack.c.bf16 %v1066, %v1066
      %v1071 = vpack.c.bf16 %v1067, %v1067
      %v1072 = vpack.c.bf16 %v1068, %v1068
      %v1073 = vpack.c.bf16 %v1040, %v1040
      %v1074 = vpack.c.bf16 %v1044, %v1044
      %v1075 = vpack.c.bf16 %v1050, %v1050
      %v1076 = vpack.c.bf16 %v1054, %v1054
      %v1078 = vlaneseq
      %v1079 = vshrl.u32 %v1078, 7
      %v1080 = vsub.s32 0, %v1079
      %v1081 = vrot.slane %v862, %v1080
      %1084 = vrot.lane.b32.xlu0 %v1073, 64
      %v1085 = vpop.permute.xlu0 %1084
      %v1087 = vsel %vm731, %v1069, 0
      %v1090 = vsel %vm731, %v1085, 0
      %1092 = vmatprep.subr.bf16.mxu0 0
      %1093 = vmatpush1.bf16.xpose.msra.mxu0 0
      %1094 = vmatprep.subr.bf16.mxu0 0
      %1095 = vmatpush1.bf16.xpose.msra.mxu0 0
      %1096 = vmatprep.subr.bf16.mxu0 0
      %1097 = vmatpush1.bf16.xpose.msra.mxu0 0
      %1098 = vmatprep.subr.bf16.mxu0 0
      %1099 = vmatpush1.bf16.xpose.msra.mxu0 0
      %1100 = vmatprep.subr.bf16.mxu0 0
      %1101 = vmatpush1.bf16.xpose.msra.mxu0 0
      %1102 = vmatprep.subr.bf16.mxu0 0
      %1103 = vmatpush1.bf16.xpose.msra.mxu0 0
      %1104 = vmatprep.subr.bf16.mxu0 0
      %1105 = vmatpush1.bf16.xpose.msra.mxu0 0
      %1106 = vmatprep.subr.bf16.mxu0 0
      %1107 = vmatpush1.bf16.xpose.msra.mxu0 %v1090
      %1108 = vmatprep.subr.bf16.mxu0 0
      %1109 = vmatpush2.bf16.xpose.msra.mxu0 0
      %1110 = vmatprep.subr.bf16.mxu0 0
      %1111 = vmatpush2.bf16.xpose.msra.mxu0 0
      %1112 = vmatprep.subr.bf16.mxu0 0
      %1113 = vmatpush2.bf16.xpose.msra.mxu0 0
      %1114 = vmatprep.subr.bf16.mxu0 0
      %1115 = vmatpush2.bf16.xpose.msra.mxu0 0
      %1116 = vmatprep.subr.bf16.mxu0 0
      %1117 = vmatpush2.bf16.xpose.msra.mxu0 0
      %1118 = vmatprep.subr.bf16.mxu0 0
      %1119 = vmatpush2.bf16.xpose.msra.mxu0 0
      %1120 = vmatprep.subr.bf16.mxu0 0
      %1121 = vmatpush2.bf16.xpose.msra.mxu0 0
      %1122 = vmatprep.subr.bf16.mxu0 0
      %1123 = vmatpush2.bf16.xpose.msra.mxu0 0
      %1124 = vmatprep.mubr.bf16.mxu0 0
      %1125 = vmatmul.mubr.bf16.gmra.mxu0 %v1087
      %v1126 = vpop.f32.mrf.mxu0
      %v1127 = vadd.f32 %v1081, %v1126
      %v1128 = vpop.f32.mrf.mxu0
      %v1129 = vpop.f32.mrf.mxu0
      %v1130 = vpop.f32.mrf.mxu0
      %1131 = vdwg.mxu0
      %1133 = vrot.lane.b32.xlu0 %v1074, 64
      %v1134 = vpop.permute.xlu0 %1133
      %v1136 = vsel %vm731, %v1070, 0
      %v1139 = vsel %vm731, %v1134, 0
      %1141 = vmatprep.subr.bf16.mxu0 0
      %1142 = vmatpush1.bf16.xpose.msra.mxu0 0
      %1143 = vmatprep.subr.bf16.mxu0 0
      %1144 = vmatpush1.bf16.xpose.msra.mxu0 0
      %1145 = vmatprep.subr.bf16.mxu0 0
      %1146 = vmatpush1.bf16.xpose.msra.mxu0 0
      %1147 = vmatprep.subr.bf16.mxu0 0
      %1148 = vmatpush1.bf16.xpose.msra.mxu0 0
      %1149 = vmatprep.subr.bf16.mxu0 0
      %1150 = vmatpush1.bf16.xpose.msra.mxu0 0
      %1151 = vmatprep.subr.bf16.mxu0 0
      %1152 = vmatpush1.bf16.xpose.msra.mxu0 0
      %1153 = vmatprep.subr.bf16.mxu0 0
      %1154 = vmatpush1.bf16.xpose.msra.mxu0 0
      %1155 = vmatprep.subr.bf16.mxu0 0
      %1156 = vmatpush1.bf16.xpose.msra.mxu0 %v1139
      %1157 = vmatprep.subr.bf16.mxu0 0
      %1158 = vmatpush2.bf16.xpose.msra.mxu0 0
      %1159 = vmatprep.subr.bf16.mxu0 0
      %1160 = vmatpush2.bf16.xpose.msra.mxu0 0
      %1161 = vmatprep.subr.bf16.mxu0 0
      %1162 = vmatpush2.bf16.xpose.msra.mxu0 0
      %1163 = vmatprep.subr.bf16.mxu0 0
      %1164 = vmatpush2.bf16.xpose.msra.mxu0 0
      %1165 = vmatprep.subr.bf16.mxu0 0
      %1166 = vmatpush2.bf16.xpose.msra.mxu0 0
      %1167 = vmatprep.subr.bf16.mxu0 0
      %1168 = vmatpush2.bf16.xpose.msra.mxu0 0
      %1169 = vmatprep.subr.bf16.mxu0 0
      %1170 = vmatpush2.bf16.xpose.msra.mxu0 0
      %1171 = vmatprep.subr.bf16.mxu0 0
      %1172 = vmatpush2.bf16.xpose.msra.mxu0 0
      %1173 = vmatprep.mubr.bf16.mxu0 0
      %1174 = vmatmul.mubr.bf16.gmra.mxu0 %v1136
      %v1175 = vpop.f32.mrf.mxu0
      %v1176 = vadd.f32 %v1081, %v1175
      %v1177 = vpop.f32.mrf.mxu0
      %v1178 = vpop.f32.mrf.mxu0
      %v1179 = vpop.f32.mrf.mxu0
      %1180 = vdwg.mxu0
      %1182 = vrot.lane.b32.xlu0 %v1075, 64
      %v1183 = vpop.permute.xlu0 %1182
      %v1185 = vsel %vm731, %v1071, 0
      %v1188 = vsel %vm731, %v1183, 0
      %1190 = vmatprep.subr.bf16.mxu0 0
      %1191 = vmatpush1.bf16.xpose.msra.mxu0 0
      %1192 = vmatprep.subr.bf16.mxu0 0
      %1193 = vmatpush1.bf16.xpose.msra.mxu0 0
      %1194 = vmatprep.subr.bf16.mxu0 0
      %1195 = vmatpush1.bf16.xpose.msra.mxu0 0
      %1196 = vmatprep.subr.bf16.mxu0 0
      %1197 = vmatpush1.bf16.xpose.msra.mxu0 0
      %1198 = vmatprep.subr.bf16.mxu0 0
      %1199 = vmatpush1.bf16.xpose.msra.mxu0 0
      %1200 = vmatprep.subr.bf16.mxu0 0
      %1201 = vmatpush1.bf16.xpose.msra.mxu0 0
      %1202 = vmatprep.subr.bf16.mxu0 0
      %1203 = vmatpush1.bf16.xpose.msra.mxu0 0
      %1204 = vmatprep.subr.bf16.mxu0 0
      %1205 = vmatpush1.bf16.xpose.msra.mxu0 %v1188
      %1206 = vmatprep.subr.bf16.mxu0 0
      %1207 = vmatpush2.bf16.xpose.msra.mxu0 0
      %1208 = vmatprep.subr.bf16.mxu0 0
      %1209 = vmatpush2.bf16.xpose.msra.mxu0 0
      %1210 = vmatprep.subr.bf16.mxu0 0
      %1211 = vmatpush2.bf16.xpose.msra.mxu0 0
      %1212 = vmatprep.subr.bf16.mxu0 0
      %1213 = vmatpush2.bf16.xpose.msra.mxu0 0
      %1214 = vmatprep.subr.bf16.mxu0 0
      %1215 = vmatpush2.bf16.xpose.msra.mxu0 0
      %1216 = vmatprep.subr.bf16.mxu0 0
      %1217 = vmatpush2.bf16.xpose.msra.mxu0 0
      %1218 = vmatprep.subr.bf16.mxu0 0
      %1219 = vmatpush2.bf16.xpose.msra.mxu0 0
      %1220 = vmatprep.subr.bf16.mxu0 0
      %1221 = vmatpush2.bf16.xpose.msra.mxu0 0
      %1222 = vmatprep.mubr.bf16.mxu0 0
      %1223 = vmatmul.mubr.bf16.gmra.mxu0 %v1185
      %v1224 = vpop.f32.mrf.mxu0
      %v1225 = vadd.f32 %v1081, %v1224
      %v1226 = vpop.f32.mrf.mxu0
      %v1227 = vpop.f32.mrf.mxu0
      %v1228 = vpop.f32.mrf.mxu0
      %1229 = vdwg.mxu0
      %1231 = vrot.lane.b32.xlu0 %v1076, 64
      %v1232 = vpop.permute.xlu0 %1231
      %v1234 = vsel %vm731, %v1072, 0
      %v1237 = vsel %vm731, %v1232, 0
      %1239 = vmatprep.subr.bf16.mxu0 0
      %1240 = vmatpush1.bf16.xpose.msra.mxu0 0
      %1241 = vmatprep.subr.bf16.mxu0 0
      %1242 = vmatpush1.bf16.xpose.msra.mxu0 0
      %1243 = vmatprep.subr.bf16.mxu0 0
      %1244 = vmatpush1.bf16.xpose.msra.mxu0 0
      %1245 = vmatprep.subr.bf16.mxu0 0
      %1246 = vmatpush1.bf16.xpose.msra.mxu0 0
      %1247 = vmatprep.subr.bf16.mxu0 0
      %1248 = vmatpush1.bf16.xpose.msra.mxu0 0
      %1249 = vmatprep.subr.bf16.mxu0 0
      %1250 = vmatpush1.bf16.xpose.msra.mxu0 0
      %1251 = vmatprep.subr.bf16.mxu0 0
      %1252 = vmatpush1.bf16.xpose.msra.mxu0 0
      %1253 = vmatprep.subr.bf16.mxu0 0
      %1254 = vmatpush1.bf16.xpose.msra.mxu0 %v1237
      %1255 = vmatprep.subr.bf16.mxu0 0
      %1256 = vmatpush2.bf16.xpose.msra.mxu0 0
      %1257 = vmatprep.subr.bf16.mxu0 0
      %1258 = vmatpush2.bf16.xpose.msra.mxu0 0
      %1259 = vmatprep.subr.bf16.mxu0 0
      %1260 = vmatpush2.bf16.xpose.msra.mxu0 0
      %1261 = vmatprep.subr.bf16.mxu0 0
      %1262 = vmatpush2.bf16.xpose.msra.mxu0 0
      %1263 = vmatprep.subr.bf16.mxu0 0
      %1264 = vmatpush2.bf16.xpose.msra.mxu0 0
      %1265 = vmatprep.subr.bf16.mxu0 0
      %1266 = vmatpush2.bf16.xpose.msra.mxu0 0
      %1267 = vmatprep.subr.bf16.mxu0 0
      %1268 = vmatpush2.bf16.xpose.msra.mxu0 0
      %1269 = vmatprep.subr.bf16.mxu0 0
      %1270 = vmatpush2.bf16.xpose.msra.mxu0 0
      %1271 = vmatprep.mubr.bf16.mxu0 0
      %1272 = vmatmul.mubr.bf16.gmra.mxu0 %v1234
      %v1273 = vpop.f32.mrf.mxu0
      %v1274 = vadd.f32 %v1081, %v1273
      %v1275 = vpop.f32.mrf.mxu0
      %v1276 = vpop.f32.mrf.mxu0
      %v1277 = vpop.f32.mrf.mxu0
      %1278 = vdwg.mxu0
      %vm1279 = vcmask 64512
      %v1280 = vsel %vm1279, %v1127, -inf
      %1281 = vmax.xlane.f32.xlu0 %v1280
      %v1282 = vpop.xlane.xlu0 %1281
      %v1283 = vsel %vm1279, %v1176, -inf
      %1284 = vmax.xlane.f32.xlu0 %v1283
      %v1285 = vpop.xlane.xlu0 %1284
      %v1286 = vsel %vm1279, %v1225, -inf
      %1287 = vmax.xlane.f32.xlu0 %v1286
      %v1288 = vpop.xlane.xlu0 %1287
      %v1289 = vsel %vm1279, %v1274, -inf
      %1290 = vmax.xlane.f32.xlu0 %v1289
      %v1291 = vpop.xlane.xlu0 %1290
      %v1292 = vsub.f32 %v1127, %v1282
      %v1293 = vsub.f32 %v1176, %v1285
      %v1294 = vsub.f32 %v1225, %v1288
      %v1295 = vsub.f32 %v1274, %v1291
      %v1296 = vmul.f32 %v1292, 1.442695
      %v1297 = vpow.pop %v1296
      %v1298 = vmul.f32 %v1293, 1.442695
      %v1299 = vpow.pop %v1298
      %v1300 = vmul.f32 %v1294, 1.442695
      %v1301 = vpow.pop %v1300
      %v1302 = vmul.f32 %v1295, 1.442695
      %v1303 = vpow.pop %v1302
      %v1304 = vsel %vm1279, %v1297, 0.0
      %1305 = vadd.xlane.f32.xlu0 %v1304
      %v1306 = vpop.xlane.xlu0 %1305
      %v1307 = vsel %vm1279, %v1299, 0.0
      %1308 = vadd.xlane.f32.xlu0 %v1307
      %v1309 = vpop.xlane.xlu0 %1308
      %v1310 = vsel %vm1279, %v1301, 0.0
      %1311 = vadd.xlane.f32.xlu0 %v1310
      %v1312 = vpop.xlane.xlu0 %1311
      %v1313 = vsel %vm1279, %v1303, 0.0
      %1314 = vadd.xlane.f32.xlu0 %v1313
      %v1315 = vpop.xlane.xlu0 %1314
      %v1316 = vrcp.pop %v1306
      %v1317 = vmul.f32 %v1297, %v1316
      %v1318 = vrcp.pop %v1309
      %v1319 = vmul.f32 %v1299, %v1318
      %v1320 = vrcp.pop %v1312
      %v1321 = vmul.f32 %v1301, %v1320
      %v1322 = vrcp.pop %v1315
      %v1323 = vmul.f32 %v1303, %v1322
      %v1324 = vpack.c.bf16 %v1317, %v1317
      %v1325 = vpack.c.bf16 %v1319, %v1319
      %v1326 = vpack.c.bf16 %v1321, %v1321
      %v1327 = vpack.c.bf16 %v1323, %v1323
      %v1328 = vpack.c.bf16 %v1042, %v1042
      %v1329 = vpack.c.bf16 %v1046, %v1046
      %v1330 = vpack.c.bf16 %v1052, %v1052
      %v1331 = vpack.c.bf16 %v1056, %v1056
      %v1333 = vsel %vm1279, %v1324, 0
      %vm1335 = vcmask 1043456
      %v1337 = vsel %vm1335, %v1328, 0
      %1339 = vmatprep.subr.bf16.mxu0 0
      %1340 = vmatpush1.bf16.msra.mxu0 0
      %1341 = vmatprep.subr.bf16.mxu0 0
      %1342 = vmatpush1.bf16.msra.mxu0 0
      %1343 = vmatprep.subr.bf16.mxu0 0
      %1344 = vmatpush1.bf16.msra.mxu0 0
      %1345 = vmatprep.subr.bf16.mxu0 0
      %1346 = vmatpush1.bf16.msra.mxu0 0
      %1347 = vmatprep.subr.bf16.mxu0 0
      %1348 = vmatpush1.bf16.msra.mxu0 0
      %1349 = vmatprep.subr.bf16.mxu0 0
      %1350 = vmatpush1.bf16.msra.mxu0 0
      %1351 = vmatprep.subr.bf16.mxu0 0
      %1352 = vmatpush1.bf16.msra.mxu0 0
      %1353 = vmatprep.subr.bf16.mxu0 0
      %1354 = vmatpush1.bf16.msra.mxu0 %v1337
      %1355 = vmatprep.subr.bf16.mxu0 0
      %1356 = vmatpush2.bf16.msra.mxu0 0
      %1357 = vmatprep.subr.bf16.mxu0 0
      %1358 = vmatpush2.bf16.msra.mxu0 0
      %1359 = vmatprep.subr.bf16.mxu0 0
      %1360 = vmatpush2.bf16.msra.mxu0 0
      %1361 = vmatprep.subr.bf16.mxu0 0
      %1362 = vmatpush2.bf16.msra.mxu0 0
      %1363 = vmatprep.subr.bf16.mxu0 0
      %1364 = vmatpush2.bf16.msra.mxu0 0
      %1365 = vmatprep.subr.bf16.mxu0 0
      %1366 = vmatpush2.bf16.msra.mxu0 0
      %1367 = vmatprep.subr.bf16.mxu0 0
      %1368 = vmatpush2.bf16.msra.mxu0 0
      %1369 = vmatprep.subr.bf16.mxu0 0
      %1370 = vmatpush2.bf16.msra.mxu0 0
      %1371 = vmatprep.mubr.bf16.mxu0 0
      %1372 = vmatmul.mubr.bf16.gmra.mxu0 %v1333
      %v1373 = vpop.f32.mrf.mxu0
      %v1374 = vadd.f32 0.0, %v1373
      %v1375 = vpop.f32.mrf.mxu0
      %v1376 = vpop.f32.mrf.mxu0
      %v1377 = vpop.f32.mrf.mxu0
      %1378 = vdwg.mxu0
      %v1380 = vsel %vm1279, %v1325, 0
      %v1383 = vsel %vm1335, %v1329, 0
      %1385 = vmatprep.subr.bf16.mxu0 0
      %1386 = vmatpush1.bf16.msra.mxu0 0
      %1387 = vmatprep.subr.bf16.mxu0 0
      %1388 = vmatpush1.bf16.msra.mxu0 0
      %1389 = vmatprep.subr.bf16.mxu0 0
      %1390 = vmatpush1.bf16.msra.mxu0 0
      %1391 = vmatprep.subr.bf16.mxu0 0
      %1392 = vmatpush1.bf16.msra.mxu0 0
      %1393 = vmatprep.subr.bf16.mxu0 0
      %1394 = vmatpush1.bf16.msra.mxu0 0
      %1395 = vmatprep.subr.bf16.mxu0 0
      %1396 = vmatpush1.bf16.msra.mxu0 0
      %1397 = vmatprep.subr.bf16.mxu0 0
      %1398 = vmatpush1.bf16.msra.mxu0 0
      %1399 = vmatprep.subr.bf16.mxu0 0
      %1400 = vmatpush1.bf16.msra.mxu0 %v1383
      %1401 = vmatprep.subr.bf16.mxu0 0
      %1402 = vmatpush2.bf16.msra.mxu0 0
      %1403 = vmatprep.subr.bf16.mxu0 0
      %1404 = vmatpush2.bf16.msra.mxu0 0
      %1405 = vmatprep.subr.bf16.mxu0 0
      %1406 = vmatpush2.bf16.msra.mxu0 0
      %1407 = vmatprep.subr.bf16.mxu0 0
      %1408 = vmatpush2.bf16.msra.mxu0 0
      %1409 = vmatprep.subr.bf16.mxu0 0
      %1410 = vmatpush2.bf16.msra.mxu0 0
      %1411 = vmatprep.subr.bf16.mxu0 0
      %1412 = vmatpush2.bf16.msra.mxu0 0
      %1413 = vmatprep.subr.bf16.mxu0 0
      %1414 = vmatpush2.bf16.msra.mxu0 0
      %1415 = vmatprep.subr.bf16.mxu0 0
      %1416 = vmatpush2.bf16.msra.mxu0 0
      %1417 = vmatprep.mubr.bf16.mxu0 0
      %1418 = vmatmul.mubr.bf16.gmra.mxu0 %v1380
      %v1419 = vpop.f32.mrf.mxu0
      %v1420 = vadd.f32 0.0, %v1419
      %v1421 = vpop.f32.mrf.mxu0
      %v1422 = vpop.f32.mrf.mxu0
      %v1423 = vpop.f32.mrf.mxu0
      %1424 = vdwg.mxu0
      %v1426 = vsel %vm1279, %v1326, 0
      %v1429 = vsel %vm1335, %v1330, 0
      %1431 = vmatprep.subr.bf16.mxu0 0
      %1432 = vmatpush1.bf16.msra.mxu0 0
      %1433 = vmatprep.subr.bf16.mxu0 0
      %1434 = vmatpush1.bf16.msra.mxu0 0
      %1435 = vmatprep.subr.bf16.mxu0 0
      %1436 = vmatpush1.bf16.msra.mxu0 0
      %1437 = vmatprep.subr.bf16.mxu0 0
      %1438 = vmatpush1.bf16.msra.mxu0 0
      %1439 = vmatprep.subr.bf16.mxu0 0
      %1440 = vmatpush1.bf16.msra.mxu0 0
      %1441 = vmatprep.subr.bf16.mxu0 0
      %1442 = vmatpush1.bf16.msra.mxu0 0
      %1443 = vmatprep.subr.bf16.mxu0 0
      %1444 = vmatpush1.bf16.msra.mxu0 0
      %1445 = vmatprep.subr.bf16.mxu0 0
      %1446 = vmatpush1.bf16.msra.mxu0 %v1429
      %1447 = vmatprep.subr.bf16.mxu0 0
      %1448 = vmatpush2.bf16.msra.mxu0 0
      %1449 = vmatprep.subr.bf16.mxu0 0
      %1450 = vmatpush2.bf16.msra.mxu0 0
      %1451 = vmatprep.subr.bf16.mxu0 0
      %1452 = vmatpush2.bf16.msra.mxu0 0
      %1453 = vmatprep.subr.bf16.mxu0 0
      %1454 = vmatpush2.bf16.msra.mxu0 0
      %1455 = vmatprep.subr.bf16.mxu0 0
      %1456 = vmatpush2.bf16.msra.mxu0 0
      %1457 = vmatprep.subr.bf16.mxu0 0
      %1458 = vmatpush2.bf16.msra.mxu0 0
      %1459 = vmatprep.subr.bf16.mxu0 0
      %1460 = vmatpush2.bf16.msra.mxu0 0
      %1461 = vmatprep.subr.bf16.mxu0 0
      %1462 = vmatpush2.bf16.msra.mxu0 0
      %1463 = vmatprep.mubr.bf16.mxu0 0
      %1464 = vmatmul.mubr.bf16.gmra.mxu0 %v1426
      %v1465 = vpop.f32.mrf.mxu0
      %v1466 = vadd.f32 0.0, %v1465
      %v1467 = vpop.f32.mrf.mxu0
      %v1468 = vpop.f32.mrf.mxu0
      %v1469 = vpop.f32.mrf.mxu0
      %1470 = vdwg.mxu0
      %v1472 = vsel %vm1279, %v1327, 0
      %v1475 = vsel %vm1335, %v1331, 0
      %1477 = vmatprep.subr.bf16.mxu0 0
      %1478 = vmatpush1.bf16.msra.mxu0 0
      %1479 = vmatprep.subr.bf16.mxu0 0
      %1480 = vmatpush1.bf16.msra.mxu0 0
      %1481 = vmatprep.subr.bf16.mxu0 0
      %1482 = vmatpush1.bf16.msra.mxu0 0
      %1483 = vmatprep.subr.bf16.mxu0 0
      %1484 = vmatpush1.bf16.msra.mxu0 0
      %1485 = vmatprep.subr.bf16.mxu0 0
      %1486 = vmatpush1.bf16.msra.mxu0 0
      %1487 = vmatprep.subr.bf16.mxu0 0
      %1488 = vmatpush1.bf16.msra.mxu0 0
      %1489 = vmatprep.subr.bf16.mxu0 0
      %1490 = vmatpush1.bf16.msra.mxu0 0
      %1491 = vmatprep.subr.bf16.mxu0 0
      %1492 = vmatpush1.bf16.msra.mxu0 %v1475
      %1493 = vmatprep.subr.bf16.mxu0 0
      %1494 = vmatpush2.bf16.msra.mxu0 0
      %1495 = vmatprep.subr.bf16.mxu0 0
      %1496 = vmatpush2.bf16.msra.mxu0 0
      %1497 = vmatprep.subr.bf16.mxu0 0
      %1498 = vmatpush2.bf16.msra.mxu0 0
      %1499 = vmatprep.subr.bf16.mxu0 0
      %1500 = vmatpush2.bf16.msra.mxu0 0
      %1501 = vmatprep.subr.bf16.mxu0 0
      %1502 = vmatpush2.bf16.msra.mxu0 0
      %1503 = vmatprep.subr.bf16.mxu0 0
      %1504 = vmatpush2.bf16.msra.mxu0 0
      %1505 = vmatprep.subr.bf16.mxu0 0
      %1506 = vmatpush2.bf16.msra.mxu0 0
      %1507 = vmatprep.subr.bf16.mxu0 0
      %1508 = vmatpush2.bf16.msra.mxu0 0
      %1509 = vmatprep.mubr.bf16.mxu0 0
      %1510 = vmatmul.mubr.bf16.gmra.mxu0 %v1472
      %v1511 = vpop.f32.mrf.mxu0
      %v1512 = vadd.f32 0.0, %v1511
      %v1513 = vpop.f32.mrf.mxu0
      %v1514 = vpop.f32.mrf.mxu0
      %v1515 = vpop.f32.mrf.mxu0
      %1516 = vdwg.mxu0
      %v1517 = vmul.f32 %v1374, %v1063
      %v1518 = vmul.f32 %v1420, %v1063
      %v1519 = vmul.f32 %v1466, %v1063
      %v1520 = vmul.f32 %v1512, %v1063
      %v1521 = vadd.f32 %v1517, 0.0
      %v1522 = vadd.f32 %v1518, 0.0
      %v1523 = vadd.f32 %v1519, 0.0
      %v1524 = vadd.f32 %v1520, 0.0
      %s1525 = scalar_lea.vmem %s5, 1
      %v1526 = vld [vmem:[%s1525] sm:$0x1]
      %v1528 = vlaneseq
      %v1529 = vshrl.u32 %v1528, 7
      %v1530 = vsub.s32 0, %v1529
      %v1531 = vrot.slane %v1526, %v1530
      %v1533 = vmul.f32 %v1040, %v1531
      %v1534 = vmul.f32 %v1044, %v1531
      %v1535 = vmul.f32 %v1050, %v1531
      %v1536 = vmul.f32 %v1054, %v1531
      %v1537 = vpack.c.bf16 %v1533, %v1533
      %v1538 = vpack.c.bf16 %v1534, %v1534
      %v1539 = vpack.c.bf16 %v1535, %v1535
      %v1540 = vpack.c.bf16 %v1536, %v1536
      %v1542 = vsel %vm731, %v1537, 0
      %1544 = vmatprep.subr.bf16.mxu0 0
      %1545 = vmatpush1.bf16.xpose.msra.mxu0 0
      %1546 = vmatprep.subr.bf16.mxu0 0
      %1547 = vmatpush1.bf16.xpose.msra.mxu0 0
      %1548 = vmatprep.subr.bf16.mxu0 0
      %1549 = vmatpush1.bf16.xpose.msra.mxu0 0
      %1550 = vmatprep.subr.bf16.mxu0 0
      %1551 = vmatpush1.bf16.xpose.msra.mxu0 0
      %1552 = vmatprep.subr.bf16.mxu0 0
      %1553 = vmatpush1.bf16.xpose.msra.mxu0 0
      %1554 = vmatprep.subr.bf16.mxu0 0
      %1555 = vmatpush1.bf16.xpose.msra.mxu0 0
      %1556 = vmatprep.subr.bf16.mxu0 0
      %1557 = vmatpush1.bf16.xpose.msra.mxu0 0
      %1558 = vmatprep.subr.bf16.mxu0 0
      %1559 = vmatpush1.bf16.xpose.msra.mxu0 %v1090
      %1560 = vmatprep.subr.bf16.mxu0 0
      %1561 = vmatpush2.bf16.xpose.msra.mxu0 0
      %1562 = vmatprep.subr.bf16.mxu0 0
      %1563 = vmatpush2.bf16.xpose.msra.mxu0 0
      %1564 = vmatprep.subr.bf16.mxu0 0
      %1565 = vmatpush2.bf16.xpose.msra.mxu0 0
      %1566 = vmatprep.subr.bf16.mxu0 0
      %1567 = vmatpush2.bf16.xpose.msra.mxu0 0
      %1568 = vmatprep.subr.bf16.mxu0 0
      %1569 = vmatpush2.bf16.xpose.msra.mxu0 0
      %1570 = vmatprep.subr.bf16.mxu0 0
      %1571 = vmatpush2.bf16.xpose.msra.mxu0 0
      %1572 = vmatprep.subr.bf16.mxu0 0
      %1573 = vmatpush2.bf16.xpose.msra.mxu0 0
      %1574 = vmatprep.subr.bf16.mxu0 0
      %1575 = vmatpush2.bf16.xpose.msra.mxu0 0
      %1576 = vmatprep.mubr.bf16.mxu0 0
      %1577 = vmatmul.mubr.bf16.gmra.mxu0 %v1542
      %v1578 = vpop.f32.mrf.mxu0
      %v1579 = vadd.f32 %v1081, %v1578
      %v1580 = vpop.f32.mrf.mxu0
      %v1581 = vpop.f32.mrf.mxu0
      %v1582 = vpop.f32.mrf.mxu0
      %1583 = vdwg.mxu0
      %v1585 = vsel %vm731, %v1538, 0
      %1587 = vmatprep.subr.bf16.mxu0 0
      %1588 = vmatpush1.bf16.xpose.msra.mxu0 0
      %1589 = vmatprep.subr.bf16.mxu0 0
      %1590 = vmatpush1.bf16.xpose.msra.mxu0 0
      %1591 = vmatprep.subr.bf16.mxu0 0
      %1592 = vmatpush1.bf16.xpose.msra.mxu0 0
      %1593 = vmatprep.subr.bf16.mxu0 0
      %1594 = vmatpush1.bf16.xpose.msra.mxu0 0
      %1595 = vmatprep.subr.bf16.mxu0 0
      %1596 = vmatpush1.bf16.xpose.msra.mxu0 0
      %1597 = vmatprep.subr.bf16.mxu0 0
      %1598 = vmatpush1.bf16.xpose.msra.mxu0 0
      %1599 = vmatprep.subr.bf16.mxu0 0
      %1600 = vmatpush1.bf16.xpose.msra.mxu0 0
      %1601 = vmatprep.subr.bf16.mxu0 0
      %1602 = vmatpush1.bf16.xpose.msra.mxu0 %v1139
      %1603 = vmatprep.subr.bf16.mxu0 0
      %1604 = vmatpush2.bf16.xpose.msra.mxu0 0
      %1605 = vmatprep.subr.bf16.mxu0 0
      %1606 = vmatpush2.bf16.xpose.msra.mxu0 0
      %1607 = vmatprep.subr.bf16.mxu0 0
      %1608 = vmatpush2.bf16.xpose.msra.mxu0 0
      %1609 = vmatprep.subr.bf16.mxu0 0
      %1610 = vmatpush2.bf16.xpose.msra.mxu0 0
      %1611 = vmatprep.subr.bf16.mxu0 0
      %1612 = vmatpush2.bf16.xpose.msra.mxu0 0
      %1613 = vmatprep.subr.bf16.mxu0 0
      %1614 = vmatpush2.bf16.xpose.msra.mxu0 0
      %1615 = vmatprep.subr.bf16.mxu0 0
      %1616 = vmatpush2.bf16.xpose.msra.mxu0 0
      %1617 = vmatprep.subr.bf16.mxu0 0
      %1618 = vmatpush2.bf16.xpose.msra.mxu0 0
      %1619 = vmatprep.mubr.bf16.mxu0 0
      %1620 = vmatmul.mubr.bf16.gmra.mxu0 %v1585
      %v1621 = vpop.f32.mrf.mxu0
      %v1622 = vadd.f32 %v1081, %v1621
      %v1623 = vpop.f32.mrf.mxu0
      %v1624 = vpop.f32.mrf.mxu0
      %v1625 = vpop.f32.mrf.mxu0
      %1626 = vdwg.mxu0
      %v1628 = vsel %vm731, %v1539, 0
      %1630 = vmatprep.subr.bf16.mxu0 0
      %1631 = vmatpush1.bf16.xpose.msra.mxu0 0
      %1632 = vmatprep.subr.bf16.mxu0 0
      %1633 = vmatpush1.bf16.xpose.msra.mxu0 0
      %1634 = vmatprep.subr.bf16.mxu0 0
      %1635 = vmatpush1.bf16.xpose.msra.mxu0 0
      %1636 = vmatprep.subr.bf16.mxu0 0
      %1637 = vmatpush1.bf16.xpose.msra.mxu0 0
      %1638 = vmatprep.subr.bf16.mxu0 0
      %1639 = vmatpush1.bf16.xpose.msra.mxu0 0
      %1640 = vmatprep.subr.bf16.mxu0 0
      %1641 = vmatpush1.bf16.xpose.msra.mxu0 0
      %1642 = vmatprep.subr.bf16.mxu0 0
      %1643 = vmatpush1.bf16.xpose.msra.mxu0 0
      %1644 = vmatprep.subr.bf16.mxu0 0
      %1645 = vmatpush1.bf16.xpose.msra.mxu0 %v1188
      %1646 = vmatprep.subr.bf16.mxu0 0
      %1647 = vmatpush2.bf16.xpose.msra.mxu0 0
      %1648 = vmatprep.subr.bf16.mxu0 0
      %1649 = vmatpush2.bf16.xpose.msra.mxu0 0
      %1650 = vmatprep.subr.bf16.mxu0 0
      %1651 = vmatpush2.bf16.xpose.msra.mxu0 0
      %1652 = vmatprep.subr.bf16.mxu0 0
      %1653 = vmatpush2.bf16.xpose.msra.mxu0 0
      %1654 = vmatprep.subr.bf16.mxu0 0
      %1655 = vmatpush2.bf16.xpose.msra.mxu0 0
      %1656 = vmatprep.subr.bf16.mxu0 0
      %1657 = vmatpush2.bf16.xpose.msra.mxu0 0
      %1658 = vmatprep.subr.bf16.mxu0 0
      %1659 = vmatpush2.bf16.xpose.msra.mxu0 0
      %1660 = vmatprep.subr.bf16.mxu0 0
      %1661 = vmatpush2.bf16.xpose.msra.mxu0 0
      %1662 = vmatprep.mubr.bf16.mxu0 0
      %1663 = vmatmul.mubr.bf16.gmra.mxu0 %v1628
      %v1664 = vpop.f32.mrf.mxu0
      %v1665 = vadd.f32 %v1081, %v1664
      %v1666 = vpop.f32.mrf.mxu0
      %v1667 = vpop.f32.mrf.mxu0
      %v1668 = vpop.f32.mrf.mxu0
      %1669 = vdwg.mxu0
      %v1671 = vsel %vm731, %v1540, 0
      %1673 = vmatprep.subr.bf16.mxu0 0
      %1674 = vmatpush1.bf16.xpose.msra.mxu0 0
      %1675 = vmatprep.subr.bf16.mxu0 0
      %1676 = vmatpush1.bf16.xpose.msra.mxu0 0
      %1677 = vmatprep.subr.bf16.mxu0 0
      %1678 = vmatpush1.bf16.xpose.msra.mxu0 0
      %1679 = vmatprep.subr.bf16.mxu0 0
      %1680 = vmatpush1.bf16.xpose.msra.mxu0 0
      %1681 = vmatprep.subr.bf16.mxu0 0
      %1682 = vmatpush1.bf16.xpose.msra.mxu0 0
      %1683 = vmatprep.subr.bf16.mxu0 0
      %1684 = vmatpush1.bf16.xpose.msra.mxu0 0
      %1685 = vmatprep.subr.bf16.mxu0 0
      %1686 = vmatpush1.bf16.xpose.msra.mxu0 0
      %1687 = vmatprep.subr.bf16.mxu0 0
      %1688 = vmatpush1.bf16.xpose.msra.mxu0 %v1237
      %1689 = vmatprep.subr.bf16.mxu0 0
      %1690 = vmatpush2.bf16.xpose.msra.mxu0 0
      %1691 = vmatprep.subr.bf16.mxu0 0
      %1692 = vmatpush2.bf16.xpose.msra.mxu0 0
      %1693 = vmatprep.subr.bf16.mxu0 0
      %1694 = vmatpush2.bf16.xpose.msra.mxu0 0
      %1695 = vmatprep.subr.bf16.mxu0 0
      %1696 = vmatpush2.bf16.xpose.msra.mxu0 0
      %1697 = vmatprep.subr.bf16.mxu0 0
      %1698 = vmatpush2.bf16.xpose.msra.mxu0 0
      %1699 = vmatprep.subr.bf16.mxu0 0
      %1700 = vmatpush2.bf16.xpose.msra.mxu0 0
      %1701 = vmatprep.subr.bf16.mxu0 0
      %1702 = vmatpush2.bf16.xpose.msra.mxu0 0
      %1703 = vmatprep.subr.bf16.mxu0 0
      %1704 = vmatpush2.bf16.xpose.msra.mxu0 0
      %1705 = vmatprep.mubr.bf16.mxu0 0
      %1706 = vmatmul.mubr.bf16.gmra.mxu0 %v1671
      %v1707 = vpop.f32.mrf.mxu0
      %v1708 = vadd.f32 %v1081, %v1707
      %v1709 = vpop.f32.mrf.mxu0
      %v1710 = vpop.f32.mrf.mxu0
      %v1711 = vpop.f32.mrf.mxu0
      %1712 = vdwg.mxu0
      %v1713 = vsel %vm1279, %v1579, -inf
      %1714 = vmax.xlane.f32.xlu0 %v1713
      %v1715 = vpop.xlane.xlu0 %1714
      %v1716 = vsel %vm1279, %v1622, -inf
      %1717 = vmax.xlane.f32.xlu0 %v1716
      %v1718 = vpop.xlane.xlu0 %1717
      %v1719 = vsel %vm1279, %v1665, -inf
      %1720 = vmax.xlane.f32.xlu0 %v1719
      %v1721 = vpop.xlane.xlu0 %1720
      %v1722 = vsel %vm1279, %v1708, -inf
      %1723 = vmax.xlane.f32.xlu0 %v1722
      %v1724 = vpop.xlane.xlu0 %1723
      %v1725 = vsub.f32 %v1579, %v1715
      %v1726 = vsub.f32 %v1622, %v1718
      %v1727 = vsub.f32 %v1665, %v1721
      %v1728 = vsub.f32 %v1708, %v1724
      %v1729 = vmul.f32 %v1725, 1.442695
      %v1730 = vpow.pop %v1729
      %v1731 = vmul.f32 %v1726, 1.442695
      %v1732 = vpow.pop %v1731
      %v1733 = vmul.f32 %v1727, 1.442695
      %v1734 = vpow.pop %v1733
      %v1735 = vmul.f32 %v1728, 1.442695
      %v1736 = vpow.pop %v1735
      %v1737 = vsel %vm1279, %v1730, 0.0
      %1738 = vadd.xlane.f32.xlu0 %v1737
      %v1739 = vpop.xlane.xlu0 %1738
      %v1740 = vsel %vm1279, %v1732, 0.0
      %1741 = vadd.xlane.f32.xlu0 %v1740
      %v1742 = vpop.xlane.xlu0 %1741
      %v1743 = vsel %vm1279, %v1734, 0.0
      %1744 = vadd.xlane.f32.xlu0 %v1743
      %v1745 = vpop.xlane.xlu0 %1744
      %v1746 = vsel %vm1279, %v1736, 0.0
      %1747 = vadd.xlane.f32.xlu0 %v1746
      %v1748 = vpop.xlane.xlu0 %1747
      %v1749 = vrcp.pop %v1739
      %v1750 = vmul.f32 %v1730, %v1749
      %v1751 = vrcp.pop %v1742
      %v1752 = vmul.f32 %v1732, %v1751
      %v1753 = vrcp.pop %v1745
      %v1754 = vmul.f32 %v1734, %v1753
      %v1755 = vrcp.pop %v1748
      %v1756 = vmul.f32 %v1736, %v1755
      %v1757 = vpack.c.bf16 %v1750, %v1750
      %v1758 = vpack.c.bf16 %v1752, %v1752
      %v1759 = vpack.c.bf16 %v1754, %v1754
      %v1760 = vpack.c.bf16 %v1756, %v1756
      %v1762 = vsel %vm1279, %v1757, 0
      %1764 = vmatprep.subr.bf16.mxu0 0
      %1765 = vmatpush1.bf16.msra.mxu0 0
      %1766 = vmatprep.subr.bf16.mxu0 0
      %1767 = vmatpush1.bf16.msra.mxu0 0
      %1768 = vmatprep.subr.bf16.mxu0 0
      %1769 = vmatpush1.bf16.msra.mxu0 0
      %1770 = vmatprep.subr.bf16.mxu0 0
      %1771 = vmatpush1.bf16.msra.mxu0 0
      %1772 = vmatprep.subr.bf16.mxu0 0
      %1773 = vmatpush1.bf16.msra.mxu0 0
      %1774 = vmatprep.subr.bf16.mxu0 0
      %1775 = vmatpush1.bf16.msra.mxu0 0
      %1776 = vmatprep.subr.bf16.mxu0 0
      %1777 = vmatpush1.bf16.msra.mxu0 0
      %1778 = vmatprep.subr.bf16.mxu0 0
      %1779 = vmatpush1.bf16.msra.mxu0 %v1337
      %1780 = vmatprep.subr.bf16.mxu0 0
      %1781 = vmatpush2.bf16.msra.mxu0 0
      %1782 = vmatprep.subr.bf16.mxu0 0
      %1783 = vmatpush2.bf16.msra.mxu0 0
      %1784 = vmatprep.subr.bf16.mxu0 0
      %1785 = vmatpush2.bf16.msra.mxu0 0
      %1786 = vmatprep.subr.bf16.mxu0 0
      %1787 = vmatpush2.bf16.msra.mxu0 0
      %1788 = vmatprep.subr.bf16.mxu0 0
      %1789 = vmatpush2.bf16.msra.mxu0 0
      %1790 = vmatprep.subr.bf16.mxu0 0
      %1791 = vmatpush2.bf16.msra.mxu0 0
      %1792 = vmatprep.subr.bf16.mxu0 0
      %1793 = vmatpush2.bf16.msra.mxu0 0
      %1794 = vmatprep.subr.bf16.mxu0 0
      %1795 = vmatpush2.bf16.msra.mxu0 0
      %1796 = vmatprep.mubr.bf16.mxu0 0
      %1797 = vmatmul.mubr.bf16.gmra.mxu0 %v1762
      %v1798 = vpop.f32.mrf.mxu0
      %v1799 = vadd.f32 0.0, %v1798
      %v1800 = vpop.f32.mrf.mxu0
      %v1801 = vpop.f32.mrf.mxu0
      %v1802 = vpop.f32.mrf.mxu0
      %1803 = vdwg.mxu0
      %v1805 = vsel %vm1279, %v1758, 0
      %1807 = vmatprep.subr.bf16.mxu0 0
      %1808 = vmatpush1.bf16.msra.mxu0 0
      %1809 = vmatprep.subr.bf16.mxu0 0
      %1810 = vmatpush1.bf16.msra.mxu0 0
      %1811 = vmatprep.subr.bf16.mxu0 0
      %1812 = vmatpush1.bf16.msra.mxu0 0
      %1813 = vmatprep.subr.bf16.mxu0 0
      %1814 = vmatpush1.bf16.msra.mxu0 0
      %1815 = vmatprep.subr.bf16.mxu0 0
      %1816 = vmatpush1.bf16.msra.mxu0 0
      %1817 = vmatprep.subr.bf16.mxu0 0
      %1818 = vmatpush1.bf16.msra.mxu0 0
      %1819 = vmatprep.subr.bf16.mxu0 0
      %1820 = vmatpush1.bf16.msra.mxu0 0
      %1821 = vmatprep.subr.bf16.mxu0 0
      %1822 = vmatpush1.bf16.msra.mxu0 %v1383
      %1823 = vmatprep.subr.bf16.mxu0 0
      %1824 = vmatpush2.bf16.msra.mxu0 0
      %1825 = vmatprep.subr.bf16.mxu0 0
      %1826 = vmatpush2.bf16.msra.mxu0 0
      %1827 = vmatprep.subr.bf16.mxu0 0
      %1828 = vmatpush2.bf16.msra.mxu0 0
      %1829 = vmatprep.subr.bf16.mxu0 0
      %1830 = vmatpush2.bf16.msra.mxu0 0
      %1831 = vmatprep.subr.bf16.mxu0 0
      %1832 = vmatpush2.bf16.msra.mxu0 0
      %1833 = vmatprep.subr.bf16.mxu0 0
      %1834 = vmatpush2.bf16.msra.mxu0 0
      %1835 = vmatprep.subr.bf16.mxu0 0
      %1836 = vmatpush2.bf16.msra.mxu0 0
      %1837 = vmatprep.subr.bf16.mxu0 0
      %1838 = vmatpush2.bf16.msra.mxu0 0
      %1839 = vmatprep.mubr.bf16.mxu0 0
      %1840 = vmatmul.mubr.bf16.gmra.mxu0 %v1805
      %v1841 = vpop.f32.mrf.mxu0
      %v1842 = vadd.f32 0.0, %v1841
      %v1843 = vpop.f32.mrf.mxu0
      %v1844 = vpop.f32.mrf.mxu0
      %v1845 = vpop.f32.mrf.mxu0
      %1846 = vdwg.mxu0
      %v1848 = vsel %vm1279, %v1759, 0
      %1850 = vmatprep.subr.bf16.mxu0 0
      %1851 = vmatpush1.bf16.msra.mxu0 0
      %1852 = vmatprep.subr.bf16.mxu0 0
      %1853 = vmatpush1.bf16.msra.mxu0 0
      %1854 = vmatprep.subr.bf16.mxu0 0
      %1855 = vmatpush1.bf16.msra.mxu0 0
      %1856 = vmatprep.subr.bf16.mxu0 0
      %1857 = vmatpush1.bf16.msra.mxu0 0
      %1858 = vmatprep.subr.bf16.mxu0 0
      %1859 = vmatpush1.bf16.msra.mxu0 0
      %1860 = vmatprep.subr.bf16.mxu0 0
      %1861 = vmatpush1.bf16.msra.mxu0 0
      %1862 = vmatprep.subr.bf16.mxu0 0
      %1863 = vmatpush1.bf16.msra.mxu0 0
      %1864 = vmatprep.subr.bf16.mxu0 0
      %1865 = vmatpush1.bf16.msra.mxu0 %v1429
      %1866 = vmatprep.subr.bf16.mxu0 0
      %1867 = vmatpush2.bf16.msra.mxu0 0
      %1868 = vmatprep.subr.bf16.mxu0 0
      %1869 = vmatpush2.bf16.msra.mxu0 0
      %1870 = vmatprep.subr.bf16.mxu0 0
      %1871 = vmatpush2.bf16.msra.mxu0 0
      %1872 = vmatprep.subr.bf16.mxu0 0
      %1873 = vmatpush2.bf16.msra.mxu0 0
      %1874 = vmatprep.subr.bf16.mxu0 0
      %1875 = vmatpush2.bf16.msra.mxu0 0
      %1876 = vmatprep.subr.bf16.mxu0 0
      %1877 = vmatpush2.bf16.msra.mxu0 0
      %1878 = vmatprep.subr.bf16.mxu0 0
      %1879 = vmatpush2.bf16.msra.mxu0 0
      %1880 = vmatprep.subr.bf16.mxu0 0
      %1881 = vmatpush2.bf16.msra.mxu0 0
      %1882 = vmatprep.mubr.bf16.mxu0 0
      %1883 = vmatmul.mubr.bf16.gmra.mxu0 %v1848
      %v1884 = vpop.f32.mrf.mxu0
      %v1885 = vadd.f32 0.0, %v1884
      %v1886 = vpop.f32.mrf.mxu0
      %v1887 = vpop.f32.mrf.mxu0
      %v1888 = vpop.f32.mrf.mxu0
      %1889 = vdwg.mxu0
      %v1891 = vsel %vm1279, %v1760, 0
      %1893 = vmatprep.subr.bf16.mxu0 0
      %1894 = vmatpush1.bf16.msra.mxu0 0
      %1895 = vmatprep.subr.bf16.mxu0 0
      %1896 = vmatpush1.bf16.msra.mxu0 0
      %1897 = vmatprep.subr.bf16.mxu0 0
      %1898 = vmatpush1.bf16.msra.mxu0 0
      %1899 = vmatprep.subr.bf16.mxu0 0
      %1900 = vmatpush1.bf16.msra.mxu0 0
      %1901 = vmatprep.subr.bf16.mxu0 0
      %1902 = vmatpush1.bf16.msra.mxu0 0
      %1903 = vmatprep.subr.bf16.mxu0 0
      %1904 = vmatpush1.bf16.msra.mxu0 0
      %1905 = vmatprep.subr.bf16.mxu0 0
      %1906 = vmatpush1.bf16.msra.mxu0 0
      %1907 = vmatprep.subr.bf16.mxu0 0
      %1908 = vmatpush1.bf16.msra.mxu0 %v1475
      %1909 = vmatprep.subr.bf16.mxu0 0
      %1910 = vmatpush2.bf16.msra.mxu0 0
      %1911 = vmatprep.subr.bf16.mxu0 0
      %1912 = vmatpush2.bf16.msra.mxu0 0
      %1913 = vmatprep.subr.bf16.mxu0 0
      %1914 = vmatpush2.bf16.msra.mxu0 0
      %1915 = vmatprep.subr.bf16.mxu0 0
      %1916 = vmatpush2.bf16.msra.mxu0 0
      %1917 = vmatprep.subr.bf16.mxu0 0
      %1918 = vmatpush2.bf16.msra.mxu0 0
      %1919 = vmatprep.subr.bf16.mxu0 0
      %1920 = vmatpush2.bf16.msra.mxu0 0
      %1921 = vmatprep.subr.bf16.mxu0 0
      %1922 = vmatpush2.bf16.msra.mxu0 0
      %1923 = vmatprep.subr.bf16.mxu0 0
      %1924 = vmatpush2.bf16.msra.mxu0 0
      %1925 = vmatprep.mubr.bf16.mxu0 0
      %1926 = vmatmul.mubr.bf16.gmra.mxu0 %v1891
      %v1927 = vpop.f32.mrf.mxu0
      %v1928 = vadd.f32 0.0, %v1927
      %v1929 = vpop.f32.mrf.mxu0
      %v1930 = vpop.f32.mrf.mxu0
      %v1931 = vpop.f32.mrf.mxu0
      %1932 = vdwg.mxu0
      %v1933 = vmul.f32 %v1799, %v1531
      %v1934 = vmul.f32 %v1842, %v1531
      %v1935 = vmul.f32 %v1885, %v1531
      %v1936 = vmul.f32 %v1928, %v1531
      %v1937 = vadd.f32 %v1521, %v1933
      %v1938 = vadd.f32 %v1522, %v1934
      %v1939 = vadd.f32 %v1523, %v1935
      %v1940 = vadd.f32 %v1524, %v1936
      %s1941 = scalar_lea.vmem %s5, 2
      %v1942 = vld [vmem:[%s1941] sm:$0x1]
      %v1944 = vlaneseq
      %v1945 = vshrl.u32 %v1944, 7
      %v1946 = vsub.s32 0, %v1945
      %v1947 = vrot.slane %v1942, %v1946
      %v1949 = vmul.f32 %v1040, %v1947
      %v1950 = vmul.f32 %v1044, %v1947
      %v1951 = vmul.f32 %v1050, %v1947
      %v1952 = vmul.f32 %v1054, %v1947
      %v1953 = vpack.c.bf16 %v1949, %v1949
      %v1954 = vpack.c.bf16 %v1950, %v1950
      %v1955 = vpack.c.bf16 %v1951, %v1951
      %v1956 = vpack.c.bf16 %v1952, %v1952
      %v1958 = vsel %vm731, %v1953, 0
      %1960 = vmatprep.subr.bf16.mxu0 0
      %1961 = vmatpush1.bf16.xpose.msra.mxu0 0
      %1962 = vmatprep.subr.bf16.mxu0 0
      %1963 = vmatpush1.bf16.xpose.msra.mxu0 0
      %1964 = vmatprep.subr.bf16.mxu0 0
      %1965 = vmatpush1.bf16.xpose.msra.mxu0 0
      %1966 = vmatprep.subr.bf16.mxu0 0
      %1967 = vmatpush1.bf16.xpose.msra.mxu0 0
      %1968 = vmatprep.subr.bf16.mxu0 0
      %1969 = vmatpush1.bf16.xpose.msra.mxu0 0
      %1970 = vmatprep.subr.bf16.mxu0 0
      %1971 = vmatpush1.bf16.xpose.msra.mxu0 0
      %1972 = vmatprep.subr.bf16.mxu0 0
      %1973 = vmatpush1.bf16.xpose.msra.mxu0 0
      %1974 = vmatprep.subr.bf16.mxu0 0
      %1975 = vmatpush1.bf16.xpose.msra.mxu0 %v1090
      %1976 = vmatprep.subr.bf16.mxu0 0
      %1977 = vmatpush2.bf16.xpose.msra.mxu0 0
      %1978 = vmatprep.subr.bf16.mxu0 0
      %1979 = vmatpush2.bf16.xpose.msra.mxu0 0
      %1980 = vmatprep.subr.bf16.mxu0 0
      %1981 = vmatpush2.bf16.xpose.msra.mxu0 0
      %1982 = vmatprep.subr.bf16.mxu0 0
      %1983 = vmatpush2.bf16.xpose.msra.mxu0 0
      %1984 = vmatprep.subr.bf16.mxu0 0
      %1985 = vmatpush2.bf16.xpose.msra.mxu0 0
      %1986 = vmatprep.subr.bf16.mxu0 0
      %1987 = vmatpush2.bf16.xpose.msra.mxu0 0
      %1988 = vmatprep.subr.bf16.mxu0 0
      %1989 = vmatpush2.bf16.xpose.msra.mxu0 0
      %1990 = vmatprep.subr.bf16.mxu0 0
      %1991 = vmatpush2.bf16.xpose.msra.mxu0 0
      %1992 = vmatprep.mubr.bf16.mxu0 0
      %1993 = vmatmul.mubr.bf16.gmra.mxu0 %v1958
      %v1994 = vpop.f32.mrf.mxu0
      %v1995 = vadd.f32 %v1081, %v1994
      %v1996 = vpop.f32.mrf.mxu0
      %v1997 = vpop.f32.mrf.mxu0
      %v1998 = vpop.f32.mrf.mxu0
      %1999 = vdwg.mxu0
      %v2001 = vsel %vm731, %v1954, 0
      %2003 = vmatprep.subr.bf16.mxu0 0
      %2004 = vmatpush1.bf16.xpose.msra.mxu0 0
      %2005 = vmatprep.subr.bf16.mxu0 0
      %2006 = vmatpush1.bf16.xpose.msra.mxu0 0
      %2007 = vmatprep.subr.bf16.mxu0 0
      %2008 = vmatpush1.bf16.xpose.msra.mxu0 0
      %2009 = vmatprep.subr.bf16.mxu0 0
      %2010 = vmatpush1.bf16.xpose.msra.mxu0 0
      %2011 = vmatprep.subr.bf16.mxu0 0
      %2012 = vmatpush1.bf16.xpose.msra.mxu0 0
      %2013 = vmatprep.subr.bf16.mxu0 0
      %2014 = vmatpush1.bf16.xpose.msra.mxu0 0
      %2015 = vmatprep.subr.bf16.mxu0 0
      %2016 = vmatpush1.bf16.xpose.msra.mxu0 0
      %2017 = vmatprep.subr.bf16.mxu0 0
      %2018 = vmatpush1.bf16.xpose.msra.mxu0 %v1139
      %2019 = vmatprep.subr.bf16.mxu0 0
      %2020 = vmatpush2.bf16.xpose.msra.mxu0 0
      %2021 = vmatprep.subr.bf16.mxu0 0
      %2022 = vmatpush2.bf16.xpose.msra.mxu0 0
      %2023 = vmatprep.subr.bf16.mxu0 0
      %2024 = vmatpush2.bf16.xpose.msra.mxu0 0
      %2025 = vmatprep.subr.bf16.mxu0 0
      %2026 = vmatpush2.bf16.xpose.msra.mxu0 0
      %2027 = vmatprep.subr.bf16.mxu0 0
      %2028 = vmatpush2.bf16.xpose.msra.mxu0 0
      %2029 = vmatprep.subr.bf16.mxu0 0
      %2030 = vmatpush2.bf16.xpose.msra.mxu0 0
      %2031 = vmatprep.subr.bf16.mxu0 0
      %2032 = vmatpush2.bf16.xpose.msra.mxu0 0
      %2033 = vmatprep.subr.bf16.mxu0 0
      %2034 = vmatpush2.bf16.xpose.msra.mxu0 0
      %2035 = vmatprep.mubr.bf16.mxu0 0
      %2036 = vmatmul.mubr.bf16.gmra.mxu0 %v2001
      %v2037 = vpop.f32.mrf.mxu0
      %v2038 = vadd.f32 %v1081, %v2037
      %v2039 = vpop.f32.mrf.mxu0
      %v2040 = vpop.f32.mrf.mxu0
      %v2041 = vpop.f32.mrf.mxu0
      %2042 = vdwg.mxu0
      %v2044 = vsel %vm731, %v1955, 0
      %2046 = vmatprep.subr.bf16.mxu0 0
      %2047 = vmatpush1.bf16.xpose.msra.mxu0 0
      %2048 = vmatprep.subr.bf16.mxu0 0
      %2049 = vmatpush1.bf16.xpose.msra.mxu0 0
      %2050 = vmatprep.subr.bf16.mxu0 0
      %2051 = vmatpush1.bf16.xpose.msra.mxu0 0
      %2052 = vmatprep.subr.bf16.mxu0 0
      %2053 = vmatpush1.bf16.xpose.msra.mxu0 0
      %2054 = vmatprep.subr.bf16.mxu0 0
      %2055 = vmatpush1.bf16.xpose.msra.mxu0 0
      %2056 = vmatprep.subr.bf16.mxu0 0
      %2057 = vmatpush1.bf16.xpose.msra.mxu0 0
      %2058 = vmatprep.subr.bf16.mxu0 0
      %2059 = vmatpush1.bf16.xpose.msra.mxu0 0
      %2060 = vmatprep.subr.bf16.mxu0 0
      %2061 = vmatpush1.bf16.xpose.msra.mxu0 %v1188
      %2062 = vmatprep.subr.bf16.mxu0 0
      %2063 = vmatpush2.bf16.xpose.msra.mxu0 0
      %2064 = vmatprep.subr.bf16.mxu0 0
      %2065 = vmatpush2.bf16.xpose.msra.mxu0 0
      %2066 = vmatprep.subr.bf16.mxu0 0
      %2067 = vmatpush2.bf16.xpose.msra.mxu0 0
      %2068 = vmatprep.subr.bf16.mxu0 0
      %2069 = vmatpush2.bf16.xpose.msra.mxu0 0
      %2070 = vmatprep.subr.bf16.mxu0 0
      %2071 = vmatpush2.bf16.xpose.msra.mxu0 0
      %2072 = vmatprep.subr.bf16.mxu0 0
      %2073 = vmatpush2.bf16.xpose.msra.mxu0 0
      %2074 = vmatprep.subr.bf16.mxu0 0
      %2075 = vmatpush2.bf16.xpose.msra.mxu0 0
      %2076 = vmatprep.subr.bf16.mxu0 0
      %2077 = vmatpush2.bf16.xpose.msra.mxu0 0
      %2078 = vmatprep.mubr.bf16.mxu0 0
      %2079 = vmatmul.mubr.bf16.gmra.mxu0 %v2044
      %v2080 = vpop.f32.mrf.mxu0
      %v2081 = vadd.f32 %v1081, %v2080
      %v2082 = vpop.f32.mrf.mxu0
      %v2083 = vpop.f32.mrf.mxu0
      %v2084 = vpop.f32.mrf.mxu0
      %2085 = vdwg.mxu0
      %v2087 = vsel %vm731, %v1956, 0
      %2089 = vmatprep.subr.bf16.mxu0 0
      %2090 = vmatpush1.bf16.xpose.msra.mxu0 0
      %2091 = vmatprep.subr.bf16.mxu0 0
      %2092 = vmatpush1.bf16.xpose.msra.mxu0 0
      %2093 = vmatprep.subr.bf16.mxu0 0
      %2094 = vmatpush1.bf16.xpose.msra.mxu0 0
      %2095 = vmatprep.subr.bf16.mxu0 0
      %2096 = vmatpush1.bf16.xpose.msra.mxu0 0
      %2097 = vmatprep.subr.bf16.mxu0 0
      %2098 = vmatpush1.bf16.xpose.msra.mxu0 0
      %2099 = vmatprep.subr.bf16.mxu0 0
      %2100 = vmatpush1.bf16.xpose.msra.mxu0 0
      %2101 = vmatprep.subr.bf16.mxu0 0
      %2102 = vmatpush1.bf16.xpose.msra.mxu0 0
      %2103 = vmatprep.subr.bf16.mxu0 0
      %2104 = vmatpush1.bf16.xpose.msra.mxu0 %v1237
      %2105 = vmatprep.subr.bf16.mxu0 0
      %2106 = vmatpush2.bf16.xpose.msra.mxu0 0
      %2107 = vmatprep.subr.bf16.mxu0 0
      %2108 = vmatpush2.bf16.xpose.msra.mxu0 0
      %2109 = vmatprep.subr.bf16.mxu0 0
      %2110 = vmatpush2.bf16.xpose.msra.mxu0 0
      %2111 = vmatprep.subr.bf16.mxu0 0
      %2112 = vmatpush2.bf16.xpose.msra.mxu0 0
      %2113 = vmatprep.subr.bf16.mxu0 0
      %2114 = vmatpush2.bf16.xpose.msra.mxu0 0
      %2115 = vmatprep.subr.bf16.mxu0 0
      %2116 = vmatpush2.bf16.xpose.msra.mxu0 0
      %2117 = vmatprep.subr.bf16.mxu0 0
      %2118 = vmatpush2.bf16.xpose.msra.mxu0 0
      %2119 = vmatprep.subr.bf16.mxu0 0
      %2120 = vmatpush2.bf16.xpose.msra.mxu0 0
      %2121 = vmatprep.mubr.bf16.mxu0 0
      %2122 = vmatmul.mubr.bf16.gmra.mxu0 %v2087
      %v2123 = vpop.f32.mrf.mxu0
      %v2124 = vadd.f32 %v1081, %v2123
      %v2125 = vpop.f32.mrf.mxu0
      %v2126 = vpop.f32.mrf.mxu0
      %v2127 = vpop.f32.mrf.mxu0
      %2128 = vdwg.mxu0
      %v2129 = vsel %vm1279, %v1995, -inf
      %2130 = vmax.xlane.f32.xlu0 %v2129
      %v2131 = vpop.xlane.xlu0 %2130
      %v2132 = vsel %vm1279, %v2038, -inf
      %2133 = vmax.xlane.f32.xlu0 %v2132
      %v2134 = vpop.xlane.xlu0 %2133
      %v2135 = vsel %vm1279, %v2081, -inf
      %2136 = vmax.xlane.f32.xlu0 %v2135
      %v2137 = vpop.xlane.xlu0 %2136
      %v2138 = vsel %vm1279, %v2124, -inf
      %2139 = vmax.xlane.f32.xlu0 %v2138
      %v2140 = vpop.xlane.xlu0 %2139
      %v2141 = vsub.f32 %v1995, %v2131
      %v2142 = vsub.f32 %v2038, %v2134
      %v2143 = vsub.f32 %v2081, %v2137
      %v2144 = vsub.f32 %v2124, %v2140
      %v2145 = vmul.f32 %v2141, 1.442695
      %v2146 = vpow.pop %v2145
      %v2147 = vmul.f32 %v2142, 1.442695
      %v2148 = vpow.pop %v2147
      %v2149 = vmul.f32 %v2143, 1.442695
      %v2150 = vpow.pop %v2149
      %v2151 = vmul.f32 %v2144, 1.442695
      %v2152 = vpow.pop %v2151
      %v2153 = vsel %vm1279, %v2146, 0.0
      %2154 = vadd.xlane.f32.xlu0 %v2153
      %v2155 = vpop.xlane.xlu0 %2154
      %v2156 = vsel %vm1279, %v2148, 0.0
      %2157 = vadd.xlane.f32.xlu0 %v2156
      %v2158 = vpop.xlane.xlu0 %2157
      %v2159 = vsel %vm1279, %v2150, 0.0
      %2160 = vadd.xlane.f32.xlu0 %v2159
      %v2161 = vpop.xlane.xlu0 %2160
      %v2162 = vsel %vm1279, %v2152, 0.0
      %2163 = vadd.xlane.f32.xlu0 %v2162
      %v2164 = vpop.xlane.xlu0 %2163
      %v2165 = vrcp.pop %v2155
      %v2166 = vmul.f32 %v2146, %v2165
      %v2167 = vrcp.pop %v2158
      %v2168 = vmul.f32 %v2148, %v2167
      %v2169 = vrcp.pop %v2161
      %v2170 = vmul.f32 %v2150, %v2169
      %v2171 = vrcp.pop %v2164
      %v2172 = vmul.f32 %v2152, %v2171
      %v2173 = vpack.c.bf16 %v2166, %v2166
      %v2174 = vpack.c.bf16 %v2168, %v2168
      %v2175 = vpack.c.bf16 %v2170, %v2170
      %v2176 = vpack.c.bf16 %v2172, %v2172
      %v2178 = vsel %vm1279, %v2173, 0
      %2180 = vmatprep.subr.bf16.mxu0 0
      %2181 = vmatpush1.bf16.msra.mxu0 0
      %2182 = vmatprep.subr.bf16.mxu0 0
      %2183 = vmatpush1.bf16.msra.mxu0 0
      %2184 = vmatprep.subr.bf16.mxu0 0
      %2185 = vmatpush1.bf16.msra.mxu0 0
      %2186 = vmatprep.subr.bf16.mxu0 0
      %2187 = vmatpush1.bf16.msra.mxu0 0
      %2188 = vmatprep.subr.bf16.mxu0 0
      %2189 = vmatpush1.bf16.msra.mxu0 0
      %2190 = vmatprep.subr.bf16.mxu0 0
      %2191 = vmatpush1.bf16.msra.mxu0 0
      %2192 = vmatprep.subr.bf16.mxu0 0
      %2193 = vmatpush1.bf16.msra.mxu0 0
      %2194 = vmatprep.subr.bf16.mxu0 0
      %2195 = vmatpush1.bf16.msra.mxu0 %v1337
      %2196 = vmatprep.subr.bf16.mxu0 0
      %2197 = vmatpush2.bf16.msra.mxu0 0
      %2198 = vmatprep.subr.bf16.mxu0 0
      %2199 = vmatpush2.bf16.msra.mxu0 0
      %2200 = vmatprep.subr.bf16.mxu0 0
      %2201 = vmatpush2.bf16.msra.mxu0 0
      %2202 = vmatprep.subr.bf16.mxu0 0
      %2203 = vmatpush2.bf16.msra.mxu0 0
      %2204 = vmatprep.subr.bf16.mxu0 0
      %2205 = vmatpush2.bf16.msra.mxu0 0
      %2206 = vmatprep.subr.bf16.mxu0 0
      %2207 = vmatpush2.bf16.msra.mxu0 0
      %2208 = vmatprep.subr.bf16.mxu0 0
      %2209 = vmatpush2.bf16.msra.mxu0 0
      %2210 = vmatprep.subr.bf16.mxu0 0
      %2211 = vmatpush2.bf16.msra.mxu0 0
      %2212 = vmatprep.mubr.bf16.mxu0 0
      %2213 = vmatmul.mubr.bf16.gmra.mxu0 %v2178
      %v2214 = vpop.f32.mrf.mxu0
      %v2215 = vadd.f32 0.0, %v2214
      %v2216 = vpop.f32.mrf.mxu0
      %v2217 = vpop.f32.mrf.mxu0
      %v2218 = vpop.f32.mrf.mxu0
      %2219 = vdwg.mxu0
      %v2221 = vsel %vm1279, %v2174, 0
      %2223 = vmatprep.subr.bf16.mxu0 0
      %2224 = vmatpush1.bf16.msra.mxu0 0
      %2225 = vmatprep.subr.bf16.mxu0 0
      %2226 = vmatpush1.bf16.msra.mxu0 0
      %2227 = vmatprep.subr.bf16.mxu0 0
      %2228 = vmatpush1.bf16.msra.mxu0 0
      %2229 = vmatprep.subr.bf16.mxu0 0
      %2230 = vmatpush1.bf16.msra.mxu0 0
      %2231 = vmatprep.subr.bf16.mxu0 0
      %2232 = vmatpush1.bf16.msra.mxu0 0
      %2233 = vmatprep.subr.bf16.mxu0 0
      %2234 = vmatpush1.bf16.msra.mxu0 0
      %2235 = vmatprep.subr.bf16.mxu0 0
      %2236 = vmatpush1.bf16.msra.mxu0 0
      %2237 = vmatprep.subr.bf16.mxu0 0
      %2238 = vmatpush1.bf16.msra.mxu0 %v1383
      %2239 = vmatprep.subr.bf16.mxu0 0
      %2240 = vmatpush2.bf16.msra.mxu0 0
      %2241 = vmatprep.subr.bf16.mxu0 0
      %2242 = vmatpush2.bf16.msra.mxu0 0
      %2243 = vmatprep.subr.bf16.mxu0 0
      %2244 = vmatpush2.bf16.msra.mxu0 0
      %2245 = vmatprep.subr.bf16.mxu0 0
      %2246 = vmatpush2.bf16.msra.mxu0 0
      %2247 = vmatprep.subr.bf16.mxu0 0
      %2248 = vmatpush2.bf16.msra.mxu0 0
      %2249 = vmatprep.subr.bf16.mxu0 0
      %2250 = vmatpush2.bf16.msra.mxu0 0
      %2251 = vmatprep.subr.bf16.mxu0 0
      %2252 = vmatpush2.bf16.msra.mxu0 0
      %2253 = vmatprep.subr.bf16.mxu0 0
      %2254 = vmatpush2.bf16.msra.mxu0 0
      %2255 = vmatprep.mubr.bf16.mxu0 0
      %2256 = vmatmul.mubr.bf16.gmra.mxu0 %v2221
      %v2257 = vpop.f32.mrf.mxu0
      %v2258 = vadd.f32 0.0, %v2257
      %v2259 = vpop.f32.mrf.mxu0
      %v2260 = vpop.f32.mrf.mxu0
      %v2261 = vpop.f32.mrf.mxu0
      %2262 = vdwg.mxu0
      %v2264 = vsel %vm1279, %v2175, 0
      %2266 = vmatprep.subr.bf16.mxu0 0
      %2267 = vmatpush1.bf16.msra.mxu0 0
      %2268 = vmatprep.subr.bf16.mxu0 0
      %2269 = vmatpush1.bf16.msra.mxu0 0
      %2270 = vmatprep.subr.bf16.mxu0 0
      %2271 = vmatpush1.bf16.msra.mxu0 0
      %2272 = vmatprep.subr.bf16.mxu0 0
      %2273 = vmatpush1.bf16.msra.mxu0 0
      %2274 = vmatprep.subr.bf16.mxu0 0
      %2275 = vmatpush1.bf16.msra.mxu0 0
      %2276 = vmatprep.subr.bf16.mxu0 0
      %2277 = vmatpush1.bf16.msra.mxu0 0
      %2278 = vmatprep.subr.bf16.mxu0 0
      %2279 = vmatpush1.bf16.msra.mxu0 0
      %2280 = vmatprep.subr.bf16.mxu0 0
      %2281 = vmatpush1.bf16.msra.mxu0 %v1429
      %2282 = vmatprep.subr.bf16.mxu0 0
      %2283 = vmatpush2.bf16.msra.mxu0 0
      %2284 = vmatprep.subr.bf16.mxu0 0
      %2285 = vmatpush2.bf16.msra.mxu0 0
      %2286 = vmatprep.subr.bf16.mxu0 0
      %2287 = vmatpush2.bf16.msra.mxu0 0
      %2288 = vmatprep.subr.bf16.mxu0 0
      %2289 = vmatpush2.bf16.msra.mxu0 0
      %2290 = vmatprep.subr.bf16.mxu0 0
      %2291 = vmatpush2.bf16.msra.mxu0 0
      %2292 = vmatprep.subr.bf16.mxu0 0
      %2293 = vmatpush2.bf16.msra.mxu0 0
      %2294 = vmatprep.subr.bf16.mxu0 0
      %2295 = vmatpush2.bf16.msra.mxu0 0
      %2296 = vmatprep.subr.bf16.mxu0 0
      %2297 = vmatpush2.bf16.msra.mxu0 0
      %2298 = vmatprep.mubr.bf16.mxu0 0
      %2299 = vmatmul.mubr.bf16.gmra.mxu0 %v2264
      %v2300 = vpop.f32.mrf.mxu0
      %v2301 = vadd.f32 0.0, %v2300
      %v2302 = vpop.f32.mrf.mxu0
      %v2303 = vpop.f32.mrf.mxu0
      %v2304 = vpop.f32.mrf.mxu0
      %2305 = vdwg.mxu0
      %v2307 = vsel %vm1279, %v2176, 0
      %2309 = vmatprep.subr.bf16.mxu0 0
      %2310 = vmatpush1.bf16.msra.mxu0 0
      %2311 = vmatprep.subr.bf16.mxu0 0
      %2312 = vmatpush1.bf16.msra.mxu0 0
      %2313 = vmatprep.subr.bf16.mxu0 0
      %2314 = vmatpush1.bf16.msra.mxu0 0
      %2315 = vmatprep.subr.bf16.mxu0 0
      %2316 = vmatpush1.bf16.msra.mxu0 0
      %2317 = vmatprep.subr.bf16.mxu0 0
      %2318 = vmatpush1.bf16.msra.mxu0 0
      %2319 = vmatprep.subr.bf16.mxu0 0
      %2320 = vmatpush1.bf16.msra.mxu0 0
      %2321 = vmatprep.subr.bf16.mxu0 0
      %2322 = vmatpush1.bf16.msra.mxu0 0
      %2323 = vmatprep.subr.bf16.mxu0 0
      %2324 = vmatpush1.bf16.msra.mxu0 %v1475
      %2325 = vmatprep.subr.bf16.mxu0 0
      %2326 = vmatpush2.bf16.msra.mxu0 0
      %2327 = vmatprep.subr.bf16.mxu0 0
      %2328 = vmatpush2.bf16.msra.mxu0 0
      %2329 = vmatprep.subr.bf16.mxu0 0
      %2330 = vmatpush2.bf16.msra.mxu0 0
      %2331 = vmatprep.subr.bf16.mxu0 0
      %2332 = vmatpush2.bf16.msra.mxu0 0
      %2333 = vmatprep.subr.bf16.mxu0 0
      %2334 = vmatpush2.bf16.msra.mxu0 0
      %2335 = vmatprep.subr.bf16.mxu0 0
      %2336 = vmatpush2.bf16.msra.mxu0 0
      %2337 = vmatprep.subr.bf16.mxu0 0
      %2338 = vmatpush2.bf16.msra.mxu0 0
      %2339 = vmatprep.subr.bf16.mxu0 0
      %2340 = vmatpush2.bf16.msra.mxu0 0
      %2341 = vmatprep.mubr.bf16.mxu0 0
      %2342 = vmatmul.mubr.bf16.gmra.mxu0 %v2307
      %v2343 = vpop.f32.mrf.mxu0
      %v2344 = vadd.f32 0.0, %v2343
      %v2345 = vpop.f32.mrf.mxu0
      %v2346 = vpop.f32.mrf.mxu0
      %v2347 = vpop.f32.mrf.mxu0
      %2348 = vdwg.mxu0
      %v2349 = vmul.f32 %v2215, %v1947
      %v2350 = vmul.f32 %v2258, %v1947
      %v2351 = vmul.f32 %v2301, %v1947
      %v2352 = vmul.f32 %v2344, %v1947
      %v2353 = vadd.f32 %v1937, %v2349
      %v2354 = vadd.f32 %v1938, %v2350
      %v2355 = vadd.f32 %v1939, %v2351
      %v2356 = vadd.f32 %v1940, %v2352
      %s2357 = scalar_lea.vmem %s5, 3
      %v2358 = vld [vmem:[%s2357] sm:$0x1]
      %v2360 = vlaneseq
      %v2361 = vshrl.u32 %v2360, 7
      %v2362 = vsub.s32 0, %v2361
      %v2363 = vrot.slane %v2358, %v2362
      %v2365 = vmul.f32 %v1040, %v2363
      %v2366 = vmul.f32 %v1044, %v2363
      %v2367 = vmul.f32 %v1050, %v2363
      %v2368 = vmul.f32 %v1054, %v2363
      %v2369 = vpack.c.bf16 %v2365, %v2365
      %v2370 = vpack.c.bf16 %v2366, %v2366
      %v2371 = vpack.c.bf16 %v2367, %v2367
      %v2372 = vpack.c.bf16 %v2368, %v2368
      %v2374 = vsel %vm731, %v2369, 0
      %2376 = vmatprep.subr.bf16.mxu0 0
      %2377 = vmatpush1.bf16.xpose.msra.mxu0 0
      %2378 = vmatprep.subr.bf16.mxu0 0
      %2379 = vmatpush1.bf16.xpose.msra.mxu0 0
      %2380 = vmatprep.subr.bf16.mxu0 0
      %2381 = vmatpush1.bf16.xpose.msra.mxu0 0
      %2382 = vmatprep.subr.bf16.mxu0 0
      %2383 = vmatpush1.bf16.xpose.msra.mxu0 0
      %2384 = vmatprep.subr.bf16.mxu0 0
      %2385 = vmatpush1.bf16.xpose.msra.mxu0 0
      %2386 = vmatprep.subr.bf16.mxu0 0
      %2387 = vmatpush1.bf16.xpose.msra.mxu0 0
      %2388 = vmatprep.subr.bf16.mxu0 0
      %2389 = vmatpush1.bf16.xpose.msra.mxu0 0
      %2390 = vmatprep.subr.bf16.mxu0 0
      %2391 = vmatpush1.bf16.xpose.msra.mxu0 %v1090
      %2392 = vmatprep.subr.bf16.mxu0 0
      %2393 = vmatpush2.bf16.xpose.msra.mxu0 0
      %2394 = vmatprep.subr.bf16.mxu0 0
      %2395 = vmatpush2.bf16.xpose.msra.mxu0 0
      %2396 = vmatprep.subr.bf16.mxu0 0
      %2397 = vmatpush2.bf16.xpose.msra.mxu0 0
      %2398 = vmatprep.subr.bf16.mxu0 0
      %2399 = vmatpush2.bf16.xpose.msra.mxu0 0
      %2400 = vmatprep.subr.bf16.mxu0 0
      %2401 = vmatpush2.bf16.xpose.msra.mxu0 0
      %2402 = vmatprep.subr.bf16.mxu0 0
      %2403 = vmatpush2.bf16.xpose.msra.mxu0 0
      %2404 = vmatprep.subr.bf16.mxu0 0
      %2405 = vmatpush2.bf16.xpose.msra.mxu0 0
      %2406 = vmatprep.subr.bf16.mxu0 0
      %2407 = vmatpush2.bf16.xpose.msra.mxu0 0
      %2408 = vmatprep.mubr.bf16.mxu0 0
      %2409 = vmatmul.mubr.bf16.gmra.mxu0 %v2374
      %v2410 = vpop.f32.mrf.mxu0
      %v2411 = vadd.f32 %v1081, %v2410
      %v2412 = vpop.f32.mrf.mxu0
      %v2413 = vpop.f32.mrf.mxu0
      %v2414 = vpop.f32.mrf.mxu0
      %2415 = vdwg.mxu0
      %v2417 = vsel %vm731, %v2370, 0
      %2419 = vmatprep.subr.bf16.mxu0 0
      %2420 = vmatpush1.bf16.xpose.msra.mxu0 0
      %2421 = vmatprep.subr.bf16.mxu0 0
      %2422 = vmatpush1.bf16.xpose.msra.mxu0 0
      %2423 = vmatprep.subr.bf16.mxu0 0
      %2424 = vmatpush1.bf16.xpose.msra.mxu0 0
      %2425 = vmatprep.subr.bf16.mxu0 0
      %2426 = vmatpush1.bf16.xpose.msra.mxu0 0
      %2427 = vmatprep.subr.bf16.mxu0 0
      %2428 = vmatpush1.bf16.xpose.msra.mxu0 0
      %2429 = vmatprep.subr.bf16.mxu0 0
      %2430 = vmatpush1.bf16.xpose.msra.mxu0 0
      %2431 = vmatprep.subr.bf16.mxu0 0
      %2432 = vmatpush1.bf16.xpose.msra.mxu0 0
      %2433 = vmatprep.subr.bf16.mxu0 0
      %2434 = vmatpush1.bf16.xpose.msra.mxu0 %v1139
      %2435 = vmatprep.subr.bf16.mxu0 0
      %2436 = vmatpush2.bf16.xpose.msra.mxu0 0
      %2437 = vmatprep.subr.bf16.mxu0 0
      %2438 = vmatpush2.bf16.xpose.msra.mxu0 0
      %2439 = vmatprep.subr.bf16.mxu0 0
      %2440 = vmatpush2.bf16.xpose.msra.mxu0 0
      %2441 = vmatprep.subr.bf16.mxu0 0
      %2442 = vmatpush2.bf16.xpose.msra.mxu0 0
      %2443 = vmatprep.subr.bf16.mxu0 0
      %2444 = vmatpush2.bf16.xpose.msra.mxu0 0
      %2445 = vmatprep.subr.bf16.mxu0 0
      %2446 = vmatpush2.bf16.xpose.msra.mxu0 0
      %2447 = vmatprep.subr.bf16.mxu0 0
      %2448 = vmatpush2.bf16.xpose.msra.mxu0 0
      %2449 = vmatprep.subr.bf16.mxu0 0
      %2450 = vmatpush2.bf16.xpose.msra.mxu0 0
      %2451 = vmatprep.mubr.bf16.mxu0 0
      %2452 = vmatmul.mubr.bf16.gmra.mxu0 %v2417
      %v2453 = vpop.f32.mrf.mxu0
      %v2454 = vadd.f32 %v1081, %v2453
      %v2455 = vpop.f32.mrf.mxu0
      %v2456 = vpop.f32.mrf.mxu0
      %v2457 = vpop.f32.mrf.mxu0
      %2458 = vdwg.mxu0
      %v2460 = vsel %vm731, %v2371, 0
      %2462 = vmatprep.subr.bf16.mxu0 0
      %2463 = vmatpush1.bf16.xpose.msra.mxu0 0
      %2464 = vmatprep.subr.bf16.mxu0 0
      %2465 = vmatpush1.bf16.xpose.msra.mxu0 0
      %2466 = vmatprep.subr.bf16.mxu0 0
      %2467 = vmatpush1.bf16.xpose.msra.mxu0 0
      %2468 = vmatprep.subr.bf16.mxu0 0
      %2469 = vmatpush1.bf16.xpose.msra.mxu0 0
      %2470 = vmatprep.subr.bf16.mxu0 0
      %2471 = vmatpush1.bf16.xpose.msra.mxu0 0
      %2472 = vmatprep.subr.bf16.mxu0 0
      %2473 = vmatpush1.bf16.xpose.msra.mxu0 0
      %2474 = vmatprep.subr.bf16.mxu0 0
      %2475 = vmatpush1.bf16.xpose.msra.mxu0 0
      %2476 = vmatprep.subr.bf16.mxu0 0
      %2477 = vmatpush1.bf16.xpose.msra.mxu0 %v1188
      %2478 = vmatprep.subr.bf16.mxu0 0
      %2479 = vmatpush2.bf16.xpose.msra.mxu0 0
      %2480 = vmatprep.subr.bf16.mxu0 0
      %2481 = vmatpush2.bf16.xpose.msra.mxu0 0
      %2482 = vmatprep.subr.bf16.mxu0 0
      %2483 = vmatpush2.bf16.xpose.msra.mxu0 0
      %2484 = vmatprep.subr.bf16.mxu0 0
      %2485 = vmatpush2.bf16.xpose.msra.mxu0 0
      %2486 = vmatprep.subr.bf16.mxu0 0
      %2487 = vmatpush2.bf16.xpose.msra.mxu0 0
      %2488 = vmatprep.subr.bf16.mxu0 0
      %2489 = vmatpush2.bf16.xpose.msra.mxu0 0
      %2490 = vmatprep.subr.bf16.mxu0 0
      %2491 = vmatpush2.bf16.xpose.msra.mxu0 0
      %2492 = vmatprep.subr.bf16.mxu0 0
      %2493 = vmatpush2.bf16.xpose.msra.mxu0 0
      %2494 = vmatprep.mubr.bf16.mxu0 0
      %2495 = vmatmul.mubr.bf16.gmra.mxu0 %v2460
      %v2496 = vpop.f32.mrf.mxu0
      %v2497 = vadd.f32 %v1081, %v2496
      %v2498 = vpop.f32.mrf.mxu0
      %v2499 = vpop.f32.mrf.mxu0
      %v2500 = vpop.f32.mrf.mxu0
      %2501 = vdwg.mxu0
      %v2503 = vsel %vm731, %v2372, 0
      %2505 = vmatprep.subr.bf16.mxu0 0
      %2506 = vmatpush1.bf16.xpose.msra.mxu0 0
      %2507 = vmatprep.subr.bf16.mxu0 0
      %2508 = vmatpush1.bf16.xpose.msra.mxu0 0
      %2509 = vmatprep.subr.bf16.mxu0 0
      %2510 = vmatpush1.bf16.xpose.msra.mxu0 0
      %2511 = vmatprep.subr.bf16.mxu0 0
      %2512 = vmatpush1.bf16.xpose.msra.mxu0 0
      %2513 = vmatprep.subr.bf16.mxu0 0
      %2514 = vmatpush1.bf16.xpose.msra.mxu0 0
      %2515 = vmatprep.subr.bf16.mxu0 0
      %2516 = vmatpush1.bf16.xpose.msra.mxu0 0
      %2517 = vmatprep.subr.bf16.mxu0 0
      %2518 = vmatpush1.bf16.xpose.msra.mxu0 0
      %2519 = vmatprep.subr.bf16.mxu0 0
      %2520 = vmatpush1.bf16.xpose.msra.mxu0 %v1237
      %2521 = vmatprep.subr.bf16.mxu0 0
      %2522 = vmatpush2.bf16.xpose.msra.mxu0 0
      %2523 = vmatprep.subr.bf16.mxu0 0
      %2524 = vmatpush2.bf16.xpose.msra.mxu0 0
      %2525 = vmatprep.subr.bf16.mxu0 0
      %2526 = vmatpush2.bf16.xpose.msra.mxu0 0
      %2527 = vmatprep.subr.bf16.mxu0 0
      %2528 = vmatpush2.bf16.xpose.msra.mxu0 0
      %2529 = vmatprep.subr.bf16.mxu0 0
      %2530 = vmatpush2.bf16.xpose.msra.mxu0 0
      %2531 = vmatprep.subr.bf16.mxu0 0
      %2532 = vmatpush2.bf16.xpose.msra.mxu0 0
      %2533 = vmatprep.subr.bf16.mxu0 0
      %2534 = vmatpush2.bf16.xpose.msra.mxu0 0
      %2535 = vmatprep.subr.bf16.mxu0 0
      %2536 = vmatpush2.bf16.xpose.msra.mxu0 0
      %2537 = vmatprep.mubr.bf16.mxu0 0
      %2538 = vmatmul.mubr.bf16.gmra.mxu0 %v2503
      %v2539 = vpop.f32.mrf.mxu0
      %v2540 = vadd.f32 %v1081, %v2539
      %v2541 = vpop.f32.mrf.mxu0
      %v2542 = vpop.f32.mrf.mxu0
      %v2543 = vpop.f32.mrf.mxu0
      %2544 = vdwg.mxu0
      %v2545 = vsel %vm1279, %v2411, -inf
      %2546 = vmax.xlane.f32.xlu0 %v2545
      %v2547 = vpop.xlane.xlu0 %2546
      %v2548 = vsel %vm1279, %v2454, -inf
      %2549 = vmax.xlane.f32.xlu0 %v2548
      %v2550 = vpop.xlane.xlu0 %2549
      %v2551 = vsel %vm1279, %v2497, -inf
      %2552 = vmax.xlane.f32.xlu0 %v2551
      %v2553 = vpop.xlane.xlu0 %2552
      %v2554 = vsel %vm1279, %v2540, -inf
      %2555 = vmax.xlane.f32.xlu0 %v2554
      %v2556 = vpop.xlane.xlu0 %2555
      %v2557 = vsub.f32 %v2411, %v2547
      %v2558 = vsub.f32 %v2454, %v2550
      %v2559 = vsub.f32 %v2497, %v2553
      %v2560 = vsub.f32 %v2540, %v2556
      %v2561 = vmul.f32 %v2557, 1.442695
      %v2562 = vpow.pop %v2561
      %v2563 = vmul.f32 %v2558, 1.442695
      %v2564 = vpow.pop %v2563
      %v2565 = vmul.f32 %v2559, 1.442695
      %v2566 = vpow.pop %v2565
      %v2567 = vmul.f32 %v2560, 1.442695
      %v2568 = vpow.pop %v2567
      %v2569 = vsel %vm1279, %v2562, 0.0
      %2570 = vadd.xlane.f32.xlu0 %v2569
      %v2571 = vpop.xlane.xlu0 %2570
      %v2572 = vsel %vm1279, %v2564, 0.0
      %2573 = vadd.xlane.f32.xlu0 %v2572
      %v2574 = vpop.xlane.xlu0 %2573
      %v2575 = vsel %vm1279, %v2566, 0.0
      %2576 = vadd.xlane.f32.xlu0 %v2575
      %v2577 = vpop.xlane.xlu0 %2576
      %v2578 = vsel %vm1279, %v2568, 0.0
      %2579 = vadd.xlane.f32.xlu0 %v2578
      %v2580 = vpop.xlane.xlu0 %2579
      %v2581 = vrcp.pop %v2571
      %v2582 = vmul.f32 %v2562, %v2581
      %v2583 = vrcp.pop %v2574
      %v2584 = vmul.f32 %v2564, %v2583
      %v2585 = vrcp.pop %v2577
      %v2586 = vmul.f32 %v2566, %v2585
      %v2587 = vrcp.pop %v2580
      %v2588 = vmul.f32 %v2568, %v2587
      %v2589 = vpack.c.bf16 %v2582, %v2582
      %v2590 = vpack.c.bf16 %v2584, %v2584
      %v2591 = vpack.c.bf16 %v2586, %v2586
      %v2592 = vpack.c.bf16 %v2588, %v2588
      %v2594 = vsel %vm1279, %v2589, 0
      %2596 = vmatprep.subr.bf16.mxu0 0
      %2597 = vmatpush1.bf16.msra.mxu0 0
      %2598 = vmatprep.subr.bf16.mxu0 0
      %2599 = vmatpush1.bf16.msra.mxu0 0
      %2600 = vmatprep.subr.bf16.mxu0 0
      %2601 = vmatpush1.bf16.msra.mxu0 0
      %2602 = vmatprep.subr.bf16.mxu0 0
      %2603 = vmatpush1.bf16.msra.mxu0 0
      %2604 = vmatprep.subr.bf16.mxu0 0
      %2605 = vmatpush1.bf16.msra.mxu0 0
      %2606 = vmatprep.subr.bf16.mxu0 0
      %2607 = vmatpush1.bf16.msra.mxu0 0
      %2608 = vmatprep.subr.bf16.mxu0 0
      %2609 = vmatpush1.bf16.msra.mxu0 0
      %2610 = vmatprep.subr.bf16.mxu0 0
      %2611 = vmatpush1.bf16.msra.mxu0 %v1337
      %2612 = vmatprep.subr.bf16.mxu0 0
      %2613 = vmatpush2.bf16.msra.mxu0 0
      %2614 = vmatprep.subr.bf16.mxu0 0
      %2615 = vmatpush2.bf16.msra.mxu0 0
      %2616 = vmatprep.subr.bf16.mxu0 0
      %2617 = vmatpush2.bf16.msra.mxu0 0
      %2618 = vmatprep.subr.bf16.mxu0 0
      %2619 = vmatpush2.bf16.msra.mxu0 0
      %2620 = vmatprep.subr.bf16.mxu0 0
      %2621 = vmatpush2.bf16.msra.mxu0 0
      %2622 = vmatprep.subr.bf16.mxu0 0
      %2623 = vmatpush2.bf16.msra.mxu0 0
      %2624 = vmatprep.subr.bf16.mxu0 0
      %2625 = vmatpush2.bf16.msra.mxu0 0
      %2626 = vmatprep.subr.bf16.mxu0 0
      %2627 = vmatpush2.bf16.msra.mxu0 0
      %2628 = vmatprep.mubr.bf16.mxu0 0
      %2629 = vmatmul.mubr.bf16.gmra.mxu0 %v2594
      %v2630 = vpop.f32.mrf.mxu0
      %v2631 = vadd.f32 0.0, %v2630
      %v2632 = vpop.f32.mrf.mxu0
      %v2633 = vpop.f32.mrf.mxu0
      %v2634 = vpop.f32.mrf.mxu0
      %2635 = vdwg.mxu0
      %v2637 = vsel %vm1279, %v2590, 0
      %2639 = vmatprep.subr.bf16.mxu0 0
      %2640 = vmatpush1.bf16.msra.mxu0 0
      %2641 = vmatprep.subr.bf16.mxu0 0
      %2642 = vmatpush1.bf16.msra.mxu0 0
      %2643 = vmatprep.subr.bf16.mxu0 0
      %2644 = vmatpush1.bf16.msra.mxu0 0
      %2645 = vmatprep.subr.bf16.mxu0 0
      %2646 = vmatpush1.bf16.msra.mxu0 0
      %2647 = vmatprep.subr.bf16.mxu0 0
      %2648 = vmatpush1.bf16.msra.mxu0 0
      %2649 = vmatprep.subr.bf16.mxu0 0
      %2650 = vmatpush1.bf16.msra.mxu0 0
      %2651 = vmatprep.subr.bf16.mxu0 0
      %2652 = vmatpush1.bf16.msra.mxu0 0
      %2653 = vmatprep.subr.bf16.mxu0 0
      %2654 = vmatpush1.bf16.msra.mxu0 %v1383
      %2655 = vmatprep.subr.bf16.mxu0 0
      %2656 = vmatpush2.bf16.msra.mxu0 0
      %2657 = vmatprep.subr.bf16.mxu0 0
      %2658 = vmatpush2.bf16.msra.mxu0 0
      %2659 = vmatprep.subr.bf16.mxu0 0
      %2660 = vmatpush2.bf16.msra.mxu0 0
      %2661 = vmatprep.subr.bf16.mxu0 0
      %2662 = vmatpush2.bf16.msra.mxu0 0
      %2663 = vmatprep.subr.bf16.mxu0 0
      %2664 = vmatpush2.bf16.msra.mxu0 0
      %2665 = vmatprep.subr.bf16.mxu0 0
      %2666 = vmatpush2.bf16.msra.mxu0 0
      %2667 = vmatprep.subr.bf16.mxu0 0
      %2668 = vmatpush2.bf16.msra.mxu0 0
      %2669 = vmatprep.subr.bf16.mxu0 0
      %2670 = vmatpush2.bf16.msra.mxu0 0
      %2671 = vmatprep.mubr.bf16.mxu0 0
      %2672 = vmatmul.mubr.bf16.gmra.mxu0 %v2637
      %v2673 = vpop.f32.mrf.mxu0
      %v2674 = vadd.f32 0.0, %v2673
      %v2675 = vpop.f32.mrf.mxu0
      %v2676 = vpop.f32.mrf.mxu0
      %v2677 = vpop.f32.mrf.mxu0
      %2678 = vdwg.mxu0
      %v2680 = vsel %vm1279, %v2591, 0
      %2682 = vmatprep.subr.bf16.mxu0 0
      %2683 = vmatpush1.bf16.msra.mxu0 0
      %2684 = vmatprep.subr.bf16.mxu0 0
      %2685 = vmatpush1.bf16.msra.mxu0 0
      %2686 = vmatprep.subr.bf16.mxu0 0
      %2687 = vmatpush1.bf16.msra.mxu0 0
      %2688 = vmatprep.subr.bf16.mxu0 0
      %2689 = vmatpush1.bf16.msra.mxu0 0
      %2690 = vmatprep.subr.bf16.mxu0 0
      %2691 = vmatpush1.bf16.msra.mxu0 0
      %2692 = vmatprep.subr.bf16.mxu0 0
      %2693 = vmatpush1.bf16.msra.mxu0 0
      %2694 = vmatprep.subr.bf16.mxu0 0
      %2695 = vmatpush1.bf16.msra.mxu0 0
      %2696 = vmatprep.subr.bf16.mxu0 0
      %2697 = vmatpush1.bf16.msra.mxu0 %v1429
      %2698 = vmatprep.subr.bf16.mxu0 0
      %2699 = vmatpush2.bf16.msra.mxu0 0
      %2700 = vmatprep.subr.bf16.mxu0 0
      %2701 = vmatpush2.bf16.msra.mxu0 0
      %2702 = vmatprep.subr.bf16.mxu0 0
      %2703 = vmatpush2.bf16.msra.mxu0 0
      %2704 = vmatprep.subr.bf16.mxu0 0
      %2705 = vmatpush2.bf16.msra.mxu0 0
      %2706 = vmatprep.subr.bf16.mxu0 0
      %2707 = vmatpush2.bf16.msra.mxu0 0
      %2708 = vmatprep.subr.bf16.mxu0 0
      %2709 = vmatpush2.bf16.msra.mxu0 0
      %2710 = vmatprep.subr.bf16.mxu0 0
      %2711 = vmatpush2.bf16.msra.mxu0 0
      %2712 = vmatprep.subr.bf16.mxu0 0
      %2713 = vmatpush2.bf16.msra.mxu0 0
      %2714 = vmatprep.mubr.bf16.mxu0 0
      %2715 = vmatmul.mubr.bf16.gmra.mxu0 %v2680
      %v2716 = vpop.f32.mrf.mxu0
      %v2717 = vadd.f32 0.0, %v2716
      %v2718 = vpop.f32.mrf.mxu0
      %v2719 = vpop.f32.mrf.mxu0
      %v2720 = vpop.f32.mrf.mxu0
      %2721 = vdwg.mxu0
      %v2723 = vsel %vm1279, %v2592, 0
      %2725 = vmatprep.subr.bf16.mxu0 0
      %2726 = vmatpush1.bf16.msra.mxu0 0
      %2727 = vmatprep.subr.bf16.mxu0 0
      %2728 = vmatpush1.bf16.msra.mxu0 0
      %2729 = vmatprep.subr.bf16.mxu0 0
      %2730 = vmatpush1.bf16.msra.mxu0 0
      %2731 = vmatprep.subr.bf16.mxu0 0
      %2732 = vmatpush1.bf16.msra.mxu0 0
      %2733 = vmatprep.subr.bf16.mxu0 0
      %2734 = vmatpush1.bf16.msra.mxu0 0
      %2735 = vmatprep.subr.bf16.mxu0 0
      %2736 = vmatpush1.bf16.msra.mxu0 0
      %2737 = vmatprep.subr.bf16.mxu0 0
      %2738 = vmatpush1.bf16.msra.mxu0 0
      %2739 = vmatprep.subr.bf16.mxu0 0
      %2740 = vmatpush1.bf16.msra.mxu0 %v1475
      %2741 = vmatprep.subr.bf16.mxu0 0
      %2742 = vmatpush2.bf16.msra.mxu0 0
      %2743 = vmatprep.subr.bf16.mxu0 0
      %2744 = vmatpush2.bf16.msra.mxu0 0
      %2745 = vmatprep.subr.bf16.mxu0 0
      %2746 = vmatpush2.bf16.msra.mxu0 0
      %2747 = vmatprep.subr.bf16.mxu0 0
      %2748 = vmatpush2.bf16.msra.mxu0 0
      %2749 = vmatprep.subr.bf16.mxu0 0
      %2750 = vmatpush2.bf16.msra.mxu0 0
      %2751 = vmatprep.subr.bf16.mxu0 0
      %2752 = vmatpush2.bf16.msra.mxu0 0
      %2753 = vmatprep.subr.bf16.mxu0 0
      %2754 = vmatpush2.bf16.msra.mxu0 0
      %2755 = vmatprep.subr.bf16.mxu0 0
      %2756 = vmatpush2.bf16.msra.mxu0 0
      %2757 = vmatprep.mubr.bf16.mxu0 0
      %2758 = vmatmul.mubr.bf16.gmra.mxu0 %v2723
      %v2759 = vpop.f32.mrf.mxu0
      %v2760 = vadd.f32 0.0, %v2759
      %v2761 = vpop.f32.mrf.mxu0
      %v2762 = vpop.f32.mrf.mxu0
      %v2763 = vpop.f32.mrf.mxu0
      %2764 = vdwg.mxu0
      %v2765 = vmul.f32 %v2631, %v2363
      %v2766 = vmul.f32 %v2674, %v2363
      %v2767 = vmul.f32 %v2717, %v2363
      %v2768 = vmul.f32 %v2760, %v2363
      %v2769 = vadd.f32 %v2353, %v2765
      %v2770 = vadd.f32 %v2354, %v2766
      %v2771 = vadd.f32 %v2355, %v2767
      %v2772 = vadd.f32 %v2356, %v2768
      %v2773 = vld [vmem:[%s11] sm:$0xf]
      %v2774 = vld [vmem:[%s11 + $0x4] sm:$0xf]
      %v2775 = vld [vmem:[%s11 + $0x8] sm:$0xf]
      %v2776 = vld [vmem:[%s11 + $0xc] sm:$0xf]
      %v2777 = vld [vmem:[%s11 + $0x10] sm:$0xf]
      %v2778 = vld [vmem:[%s11 + $0x14] sm:$0xf]
      %v2779 = vld [vmem:[%s11 + $0x18] sm:$0xf]
      %v2780 = vld [vmem:[%s11 + $0x1c] sm:$0xf]
      %v2781 = vpack.c.bf16 %v2770, %v2769
      %v2782 = vpack.c.bf16 %v2772, %v2771
      %v2783 = vld [vmem:[%s12] sm:$0x1]
      %v2785 = vlaneseq
      %v2786 = vshrl.u32 %v2785, 7
      %v2787 = vsub.s32 0, %v2786
      %v2788 = vrot.slane %v2783, %v2787
      %v2798 = vunpack.c.l.b16 %v2773
      %v2799 = vunpack.c.l.b16 %v2774
      %v2800 = vunpack.c.l.b16 %v2775
      %v2801 = vunpack.c.l.b16 %v2776
      %v2802 = vunpack.c.l.b16 %v2777
      %v2803 = vunpack.c.l.b16 %v2778
      %v2804 = vunpack.c.l.b16 %v2779
      %v2805 = vunpack.c.l.b16 %v2780
      %v2806 = vpack.c.b16 %v2799, %v2798
      %v2807 = vpack.c.b16 %v2801, %v2800
      %v2808 = vpack.c.b16 %v2803, %v2802
      %v2809 = vpack.c.b16 %v2805, %v2804
      %v2815 = vsel %vm731, %v2781, 0
      %v2818 = vsel %vm731, %v2782, 0
      %2820 = vmatprep.subr.bf16.mxu0 0
      %2821 = vmatpush1.bf16.msra.mxu0 0
      %2822 = vmatprep.subr.bf16.mxu0 0
      %2823 = vmatpush1.bf16.msra.mxu0 0
      %2824 = vmatprep.subr.bf16.mxu0 0
      %2825 = vmatpush1.bf16.msra.mxu0 0
      %2826 = vmatprep.subr.bf16.mxu0 0
      %2827 = vmatpush1.bf16.msra.mxu0 0
      %2828 = vmatprep.subr.bf16.mxu0 0
      %2829 = vmatpush1.bf16.msra.mxu0 %v2809
      %2830 = vmatprep.subr.bf16.mxu0 0
      %2831 = vmatpush1.bf16.msra.mxu0 %v2808
      %2832 = vmatprep.subr.bf16.mxu0 0
      %2833 = vmatpush1.bf16.msra.mxu0 %v2807
      %2834 = vmatprep.subr.bf16.mxu0 0
      %2835 = vmatpush1.bf16.msra.mxu0 %v2806
      %2836 = vmatprep.subr.bf16.mxu0 0
      %2837 = vmatpush2.bf16.msra.mxu0 0
      %2838 = vmatprep.subr.bf16.mxu0 0
      %2839 = vmatpush2.bf16.msra.mxu0 0
      %2840 = vmatprep.subr.bf16.mxu0 0
      %2841 = vmatpush2.bf16.msra.mxu0 0
      %2842 = vmatprep.subr.bf16.mxu0 0
      %2843 = vmatpush2.bf16.msra.mxu0 0
      %2844 = vmatprep.subr.bf16.mxu0 0
      %2845 = vmatpush2.bf16.msra.mxu0 0
      %2846 = vmatprep.subr.bf16.mxu0 0
      %2847 = vmatpush2.bf16.msra.mxu0 0
      %2848 = vmatprep.subr.bf16.mxu0 0
      %2849 = vmatpush2.bf16.msra.mxu0 0
      %2850 = vmatprep.subr.bf16.mxu0 0
      %2851 = vmatpush2.bf16.msra.mxu0 0
      %2852 = vmatprep.mubr.bf16.mxu0 0
      %2853 = vmatmul.mubr.bf16.gmra.mxu0 %v2815
      %v2854 = vpop.f32.mrf.mxu0
      %v2855 = vadd.f32 %v2788, %v2854
      %v2856 = vpop.f32.mrf.mxu0
      %v2857 = vpop.f32.mrf.mxu0
      %v2858 = vadd.f32 %v2788, %v2857
      %v2859 = vpop.f32.mrf.mxu0
      %2860 = vmatprep.mubr.bf16.mxu0 0
      %2861 = vmatmul.mubr.bf16.gmra.mxu0 %v2818
      %v2862 = vpop.f32.mrf.mxu0
      %v2863 = vadd.f32 %v2788, %v2862
      %v2864 = vpop.f32.mrf.mxu0
      %v2865 = vpop.f32.mrf.mxu0
      %v2866 = vadd.f32 %v2788, %v2865
      %v2867 = vpop.f32.mrf.mxu0
      %2868 = vdwg.mxu0
      %v2869 = vadd.f32 %v858, %v2855
      %v2870 = vadd.f32 %v859, %v2858
      %v2871 = vadd.f32 %v860, %v2863
      %v2872 = vadd.f32 %v861, %v2866
      %v2873 = vld [vmem:[%s13] sm:$0x1]
      %v2874 = vld [vmem:[%s14] sm:$0x1]
      %v2875 = vsel %vm731, %v2869, 0.0
      %2876 = vadd.xlane.f32.xlu0 %v2875
      %v2877 = vpop.xlane.xlu0 %2876
      %v2878 = vsel %vm731, %v2870, 0.0
      %2879 = vadd.xlane.f32.xlu0 %v2878
      %v2880 = vpop.xlane.xlu0 %2879
      %v2881 = vsel %vm731, %v2871, 0.0
      %2882 = vadd.xlane.f32.xlu0 %v2881
      %v2883 = vpop.xlane.xlu0 %2882
      %v2884 = vsel %vm731, %v2872, 0.0
      %2885 = vadd.xlane.f32.xlu0 %v2884
      %v2886 = vpop.xlane.xlu0 %2885
      %v2887 = vmul.f32 %v2877, %v801
      %v2888 = vmul.f32 %v2880, %v801
      %v2889 = vmul.f32 %v2883, %v801
      %v2890 = vmul.f32 %v2886, %v801
      %v2891 = vsub.f32 %v2869, %v2887
      %v2892 = vsub.f32 %v2870, %v2888
      %v2893 = vsub.f32 %v2871, %v2889
      %v2894 = vsub.f32 %v2872, %v2890
      %v2895 = vmul.f32 %v2891, %v2891
      %v2896 = vmul.f32 %v2892, %v2892
      %v2897 = vmul.f32 %v2893, %v2893
      %v2898 = vmul.f32 %v2894, %v2894
      %v2899 = vsel %vm731, %v2895, 0.0
      %2900 = vadd.xlane.f32.xlu0 %v2899
      %v2901 = vpop.xlane.xlu0 %2900
      %v2902 = vsel %vm731, %v2896, 0.0
      %2903 = vadd.xlane.f32.xlu0 %v2902
      %v2904 = vpop.xlane.xlu0 %2903
      %v2905 = vsel %vm731, %v2897, 0.0
      %2906 = vadd.xlane.f32.xlu0 %v2905
      %v2907 = vpop.xlane.xlu0 %2906
      %v2908 = vsel %vm731, %v2898, 0.0
      %2909 = vadd.xlane.f32.xlu0 %v2908
      %v2910 = vpop.xlane.xlu0 %2909
      %v2911 = vmul.f32 %v2901, %v801
      %v2912 = vmul.f32 %v2904, %v801
      %v2913 = vmul.f32 %v2907, %v801
      %v2914 = vmul.f32 %v2910, %v801
      %v2915 = vadd.f32 %v2911, 1e-05
      %v2916 = vadd.f32 %v2912, 1e-05
      %v2917 = vadd.f32 %v2913, 1e-05
      %v2918 = vadd.f32 %v2914, 1e-05
      %v2919 = vrsqrt.pop %v2915
      %v2920 = vrsqrt.pop %v2916
      %v2921 = vrsqrt.pop %v2917
      %v2922 = vrsqrt.pop %v2918
      %v2923 = vmul.f32 %v2891, %v2919
      %v2924 = vmul.f32 %v2892, %v2920
      %v2925 = vmul.f32 %v2893, %v2921
      %v2926 = vmul.f32 %v2894, %v2922
      %v2928 = vlaneseq
      %v2929 = vshrl.u32 %v2928, 7
      %v2930 = vsub.s32 0, %v2929
      %v2931 = vrot.slane %v2873, %v2930
      %v2933 = vmul.f32 %v2923, %v2931
      %v2934 = vmul.f32 %v2924, %v2931
      %v2935 = vmul.f32 %v2925, %v2931
      %v2936 = vmul.f32 %v2926, %v2931
      %v2938 = vlaneseq
      %v2939 = vshrl.u32 %v2938, 7
      %v2940 = vsub.s32 0, %v2939
      %v2941 = vrot.slane %v2874, %v2940
      %v2943 = vadd.f32 %v2933, %v2941
      %v2944 = vadd.f32 %v2934, %v2941
      %v2945 = vadd.f32 %v2935, %v2941
      %v2946 = vadd.f32 %v2936, %v2941
      %v2947 = vld [vmem:[%s15] sm:$0xff]
      %v2948 = vld [vmem:[%s15 + $0x8] sm:$0xff]
      %v2949 = vld [vmem:[%s15 + $0x10] sm:$0xff]
      %v2950 = vld [vmem:[%s15 + $0x18] sm:$0xff]
      %v2951 = vld [vmem:[%s15 + $0x20] sm:$0xff]
      %v2952 = vld [vmem:[%s15 + $0x28] sm:$0xff]
      %v2953 = vld [vmem:[%s15 + $0x30] sm:$0xff]
      %v2954 = vld [vmem:[%s15 + $0x38] sm:$0xff]
      %v2955 = vpack.c.bf16 %v2944, %v2943
      %v2956 = vpack.c.bf16 %v2946, %v2945
      %v2957 = vld [vmem:[%s16] sm:$0x3]
      %v2959 = vlaneseq
      %v2960 = vshrl.u32 %v2959, 7
      %v2961 = vsub.s32 0, %v2960
      %v2962 = vrot.slane %v2957, %v2961
      %v2963 = vlaneseq
      %v2964 = vshrl.u32 %v2963, 7
      %v2965 = vsub.s32 1, %v2964
      %v2966 = vrot.slane %v2957, %v2965
      %v2977 = vunpack.c.l.b16 %v2947
      %v2978 = vunpack.c.h.b16 %v2947
      %v2979 = vunpack.c.l.b16 %v2948
      %v2980 = vunpack.c.h.b16 %v2948
      %v2981 = vunpack.c.l.b16 %v2949
      %v2982 = vunpack.c.h.b16 %v2949
      %v2983 = vunpack.c.l.b16 %v2950
      %v2984 = vunpack.c.h.b16 %v2950
      %v2985 = vunpack.c.l.b16 %v2951
      %v2986 = vunpack.c.h.b16 %v2951
      %v2987 = vunpack.c.l.b16 %v2952
      %v2988 = vunpack.c.h.b16 %v2952
      %v2989 = vunpack.c.l.b16 %v2953
      %v2990 = vunpack.c.h.b16 %v2953
      %v2991 = vunpack.c.l.b16 %v2954
      %v2992 = vunpack.c.h.b16 %v2954
      %v2993 = vpack.c.b16 %v2979, %v2977
      %v2994 = vpack.c.b16 %v2980, %v2978
      %v2995 = vpack.c.b16 %v2983, %v2981
      %v2996 = vpack.c.b16 %v2984, %v2982
      %v2997 = vpack.c.b16 %v2987, %v2985
      %v2998 = vpack.c.b16 %v2988, %v2986
      %v2999 = vpack.c.b16 %v2991, %v2989
      %v3000 = vpack.c.b16 %v2992, %v2990
      %v3010 = vsel %vm731, %v2955, 0
      %v3013 = vsel %vm731, %v2956, 0
      %3015 = vmatprep.subr.bf16.mxu0 0
      %3016 = vmatpush1.bf16.msra.mxu0 0
      %3017 = vmatprep.subr.bf16.mxu0 0
      %3018 = vmatpush1.bf16.msra.mxu0 0
      %3019 = vmatprep.subr.bf16.mxu0 0
      %3020 = vmatpush1.bf16.msra.mxu0 0
      %3021 = vmatprep.subr.bf16.mxu0 0
      %3022 = vmatpush1.bf16.msra.mxu0 0
      %3023 = vmatprep.subr.bf16.mxu0 %v3000
      %3024 = vmatpush1.bf16.msra.mxu0 %v2999
      %3025 = vmatprep.subr.bf16.mxu0 %v2998
      %3026 = vmatpush1.bf16.msra.mxu0 %v2997
      %3027 = vmatprep.subr.bf16.mxu0 %v2996
      %3028 = vmatpush1.bf16.msra.mxu0 %v2995
      %3029 = vmatprep.subr.bf16.mxu0 %v2994
      %3030 = vmatpush1.bf16.msra.mxu0 %v2993
      %3031 = vmatprep.subr.bf16.mxu0 0
      %3032 = vmatpush2.bf16.msra.mxu0 0
      %3033 = vmatprep.subr.bf16.mxu0 0
      %3034 = vmatpush2.bf16.msra.mxu0 0
      %3035 = vmatprep.subr.bf16.mxu0 0
      %3036 = vmatpush2.bf16.msra.mxu0 0
      %3037 = vmatprep.subr.bf16.mxu0 0
      %3038 = vmatpush2.bf16.msra.mxu0 0
      %3039 = vmatprep.subr.bf16.mxu0 0
      %3040 = vmatpush2.bf16.msra.mxu0 0
      %3041 = vmatprep.subr.bf16.mxu0 0
      %3042 = vmatpush2.bf16.msra.mxu0 0
      %3043 = vmatprep.subr.bf16.mxu0 0
      %3044 = vmatpush2.bf16.msra.mxu0 0
      %3045 = vmatprep.subr.bf16.mxu0 0
      %3046 = vmatpush2.bf16.msra.mxu0 0
      %3047 = vmatprep.mubr.bf16.mxu0 0
      %3048 = vmatmul.mubr.bf16.gmra.mxu0 %v3010
      %v3049 = vpop.f32.mrf.mxu0
      %v3050 = vadd.f32 %v2962, %v3049
      %v3051 = vpop.f32.mrf.mxu0
      %v3052 = vadd.f32 %v2966, %v3051
      %v3053 = vpop.f32.mrf.mxu0
      %v3054 = vadd.f32 %v2962, %v3053
      %v3055 = vpop.f32.mrf.mxu0
      %v3056 = vadd.f32 %v2966, %v3055
      %3057 = vmatprep.mubr.bf16.mxu0 0
      %3058 = vmatmul.mubr.bf16.gmra.mxu0 %v3013
      %v3059 = vpop.f32.mrf.mxu0
      %v3060 = vadd.f32 %v2962, %v3059
      %v3061 = vpop.f32.mrf.mxu0
      %v3062 = vadd.f32 %v2966, %v3061
      %v3063 = vpop.f32.mrf.mxu0
      %v3064 = vadd.f32 %v2962, %v3063
      %v3065 = vpop.f32.mrf.mxu0
      %v3066 = vadd.f32 %v2966, %v3065
      %3067 = vdwg.mxu0
      %v3068 = vmul.f32 %v3050, 1.702
      %v3069 = vmul.f32 %v3052, 1.702
      %v3070 = vmul.f32 %v3054, 1.702
      %v3071 = vmul.f32 %v3056, 1.702
      %v3072 = vmul.f32 %v3060, 1.702
      %v3073 = vmul.f32 %v3062, 1.702
      %v3074 = vmul.f32 %v3064, 1.702
      %v3075 = vmul.f32 %v3066, 1.702
      %v3076 = vxor.u32 %v3068, 2147483648
      %v3077 = vxor.u32 %v3069, 2147483648
      %v3078 = vxor.u32 %v3070, 2147483648
      %v3079 = vxor.u32 %v3071, 2147483648
      %v3080 = vxor.u32 %v3072, 2147483648
      %v3081 = vxor.u32 %v3073, 2147483648
      %v3082 = vxor.u32 %v3074, 2147483648
      %v3083 = vxor.u32 %v3075, 2147483648
      %v3084 = vmul.f32 %v3076, 1.442695
      %v3085 = vpow.pop %v3084
      %v3086 = vmul.f32 %v3077, 1.442695
      %v3087 = vpow.pop %v3086
      %v3088 = vmul.f32 %v3078, 1.442695
      %v3089 = vpow.pop %v3088
      %v3090 = vmul.f32 %v3079, 1.442695
      %v3091 = vpow.pop %v3090
      %v3092 = vmul.f32 %v3080, 1.442695
      %v3093 = vpow.pop %v3092
      %v3094 = vmul.f32 %v3081, 1.442695
      %v3095 = vpow.pop %v3094
      %v3096 = vmul.f32 %v3082, 1.442695
      %v3097 = vpow.pop %v3096
      %v3098 = vmul.f32 %v3083, 1.442695
      %v3099 = vpow.pop %v3098
      %v3100 = vadd.f32 %v3085, 1.0
      %v3101 = vadd.f32 %v3087, 1.0
      %v3102 = vadd.f32 %v3089, 1.0
      %v3103 = vadd.f32 %v3091, 1.0
      %v3104 = vadd.f32 %v3093, 1.0
      %v3105 = vadd.f32 %v3095, 1.0
      %v3106 = vadd.f32 %v3097, 1.0
      %v3107 = vadd.f32 %v3099, 1.0
      %v3108 = vrcp.pop %v3100
      %v3109 = vmul.f32 1.0, %v3108
      %v3110 = vrcp.pop %v3101
      %v3111 = vmul.f32 1.0, %v3110
      %v3112 = vrcp.pop %v3102
      %v3113 = vmul.f32 1.0, %v3112
      %v3114 = vrcp.pop %v3103
      %v3115 = vmul.f32 1.0, %v3114
      %v3116 = vrcp.pop %v3104
      %v3117 = vmul.f32 1.0, %v3116
      %v3118 = vrcp.pop %v3105
      %v3119 = vmul.f32 1.0, %v3118
      %v3120 = vrcp.pop %v3106
      %v3121 = vmul.f32 1.0, %v3120
      %v3122 = vrcp.pop %v3107
      %v3123 = vmul.f32 1.0, %v3122
      %v3124 = vmul.f32 %v3050, %v3109
      %v3125 = vmul.f32 %v3052, %v3111
      %v3126 = vmul.f32 %v3054, %v3113
      %v3127 = vmul.f32 %v3056, %v3115
      %v3128 = vmul.f32 %v3060, %v3117
      %v3129 = vmul.f32 %v3062, %v3119
      %v3130 = vmul.f32 %v3064, %v3121
      %v3131 = vmul.f32 %v3066, %v3123
      %v3132 = vld [vmem:[%s17] sm:$0xf]
      %v3133 = vld [vmem:[%s17 + $0x4] sm:$0xf]
      %v3134 = vld [vmem:[%s17 + $0x8] sm:$0xf]
      %v3135 = vld [vmem:[%s17 + $0xc] sm:$0xf]
      %v3136 = vld [vmem:[%s17 + $0x10] sm:$0xf]
      %v3137 = vld [vmem:[%s17 + $0x14] sm:$0xf]
      %v3138 = vld [vmem:[%s17 + $0x18] sm:$0xf]
      %v3139 = vld [vmem:[%s17 + $0x1c] sm:$0xf]
      %v3140 = vld [vmem:[%s17 + $0x20] sm:$0xf]
      %v3141 = vld [vmem:[%s17 + $0x24] sm:$0xf]
      %v3142 = vld [vmem:[%s17 + $0x28] sm:$0xf]
      %v3143 = vld [vmem:[%s17 + $0x2c] sm:$0xf]
      %v3144 = vld [vmem:[%s17 + $0x30] sm:$0xf]
      %v3145 = vld [vmem:[%s17 + $0x34] sm:$0xf]
      %v3146 = vld [vmem:[%s17 + $0x38] sm:$0xf]
      %v3147 = vld [vmem:[%s17 + $0x3c] sm:$0xf]
      %v3148 = vld [vmem:[%s17 + $0x40] sm:$0xf]
      %v3149 = vld [vmem:[%s17 + $0x44] sm:$0xf]
      %v3150 = vld [vmem:[%s17 + $0x48] sm:$0xf]
      %v3151 = vld [vmem:[%s17 + $0x4c] sm:$0xf]
      %v3152 = vld [vmem:[%s17 + $0x50] sm:$0xf]
      %v3153 = vld [vmem:[%s17 + $0x54] sm:$0xf]
      %v3154 = vld [vmem:[%s17 + $0x58] sm:$0xf]
      %v3155 = vld [vmem:[%s17 + $0x5c] sm:$0xf]
      %v3156 = vld [vmem:[%s17 + $0x60] sm:$0xf]
      %v3157 = vld [vmem:[%s17 + $0x64] sm:$0xf]
      %v3158 = vld [vmem:[%s17 + $0x68] sm:$0xf]
      %v3159 = vld [vmem:[%s17 + $0x6c] sm:$0xf]
      %v3160 = vld [vmem:[%s17 + $0x70] sm:$0xf]
      %v3161 = vld [vmem:[%s17 + $0x74] sm:$0xf]
      %v3162 = vld [vmem:[%s17 + $0x78] sm:$0xf]
      %v3163 = vld [vmem:[%s17 + $0x7c] sm:$0xf]
      %v3164 = vpack.c.bf16 %v3126, %v3124
      %v3165 = vpack.c.bf16 %v3127, %v3125
      %v3166 = vpack.c.bf16 %v3130, %v3128
      %v3167 = vpack.c.bf16 %v3131, %v3129
      %v3200 = vunpack.c.l.b16 %v3132
      %v3201 = vunpack.c.l.b16 %v3133
      %v3202 = vunpack.c.l.b16 %v3134
      %v3203 = vunpack.c.l.b16 %v3135
      %v3204 = vunpack.c.l.b16 %v3136
      %v3205 = vunpack.c.l.b16 %v3137
      %v3206 = vunpack.c.l.b16 %v3138
      %v3207 = vunpack.c.l.b16 %v3139
      %v3208 = vunpack.c.l.b16 %v3140
      %v3209 = vunpack.c.l.b16 %v3141
      %v3210 = vunpack.c.l.b16 %v3142
      %v3211 = vunpack.c.l.b16 %v3143
      %v3212 = vunpack.c.l.b16 %v3144
      %v3213 = vunpack.c.l.b16 %v3145
      %v3214 = vunpack.c.l.b16 %v3146
      %v3215 = vunpack.c.l.b16 %v3147
      %v3216 = vunpack.c.l.b16 %v3148
      %v3217 = vunpack.c.l.b16 %v3149
      %v3218 = vunpack.c.l.b16 %v3150
      %v3219 = vunpack.c.l.b16 %v3151
      %v3220 = vunpack.c.l.b16 %v3152
      %v3221 = vunpack.c.l.b16 %v3153
      %v3222 = vunpack.c.l.b16 %v3154
      %v3223 = vunpack.c.l.b16 %v3155
      %v3224 = vunpack.c.l.b16 %v3156
      %v3225 = vunpack.c.l.b16 %v3157
      %v3226 = vunpack.c.l.b16 %v3158
      %v3227 = vunpack.c.l.b16 %v3159
      %v3228 = vunpack.c.l.b16 %v3160
      %v3229 = vunpack.c.l.b16 %v3161
      %v3230 = vunpack.c.l.b16 %v3162
      %v3231 = vunpack.c.l.b16 %v3163
      %v3232 = vpack.c.b16 %v3201, %v3200
      %v3233 = vpack.c.b16 %v3203, %v3202
      %v3234 = vpack.c.b16 %v3205, %v3204
      %v3235 = vpack.c.b16 %v3207, %v3206
      %v3236 = vpack.c.b16 %v3209, %v3208
      %v3237 = vpack.c.b16 %v3211, %v3210
      %v3238 = vpack.c.b16 %v3213, %v3212
      %v3239 = vpack.c.b16 %v3215, %v3214
      %v3240 = vpack.c.b16 %v3217, %v3216
      %v3241 = vpack.c.b16 %v3219, %v3218
      %v3242 = vpack.c.b16 %v3221, %v3220
      %v3243 = vpack.c.b16 %v3223, %v3222
      %v3244 = vpack.c.b16 %v3225, %v3224
      %v3245 = vpack.c.b16 %v3227, %v3226
      %v3246 = vpack.c.b16 %v3229, %v3228
      %v3247 = vpack.c.b16 %v3231, %v3230
      %3264 = vmatprep.subr.bf16.mxu0 0
      %3265 = vmatpush1.bf16.msra.mxu0 %v3239
      %3266 = vmatprep.subr.bf16.mxu0 0
      %3267 = vmatpush1.bf16.msra.mxu0 %v3238
      %3268 = vmatprep.subr.bf16.mxu0 0
      %3269 = vmatpush1.bf16.msra.mxu0 %v3237
      %3270 = vmatprep.subr.bf16.mxu0 0
      %3271 = vmatpush1.bf16.msra.mxu0 %v3236
      %3272 = vmatprep.subr.bf16.mxu0 0
      %3273 = vmatpush1.bf16.msra.mxu0 %v3235
      %3274 = vmatprep.subr.bf16.mxu0 0
      %3275 = vmatpush1.bf16.msra.mxu0 %v3234
      %3276 = vmatprep.subr.bf16.mxu0 0
      %3277 = vmatpush1.bf16.msra.mxu0 %v3233
      %3278 = vmatprep.subr.bf16.mxu0 0
      %3279 = vmatpush1.bf16.msra.mxu0 %v3232
      %3280 = vmatprep.subr.bf16.mxu0 0
      %3281 = vmatpush2.bf16.msra.mxu0 %v3247
      %3282 = vmatprep.subr.bf16.mxu0 0
      %3283 = vmatpush2.bf16.msra.mxu0 %v3246
      %3284 = vmatprep.subr.bf16.mxu0 0
      %3285 = vmatpush2.bf16.msra.mxu0 %v3245
      %3286 = vmatprep.subr.bf16.mxu0 0
      %3287 = vmatpush2.bf16.msra.mxu0 %v3244
      %3288 = vmatprep.subr.bf16.mxu0 0
      %3289 = vmatpush2.bf16.msra.mxu0 %v3243
      %3290 = vmatprep.subr.bf16.mxu0 0
      %3291 = vmatpush2.bf16.msra.mxu0 %v3242
      %3292 = vmatprep.subr.bf16.mxu0 0
      %3293 = vmatpush2.bf16.msra.mxu0 %v3241
      %3294 = vmatprep.subr.bf16.mxu0 0
      %3295 = vmatpush2.bf16.msra.mxu0 %v3240
      %3296 = vmatprep.mubr.bf16.mxu0 %v3165
      %3297 = vmatmul.mubr.bf16.gmra.mxu0 %v3164
      %v3298 = vpop.f32.mrf.mxu0
      %v3299 = vadd.f32 0.0, %v3298
      %v3300 = vpop.f32.mrf.mxu0
      %v3301 = vpop.f32.mrf.mxu0
      %v3302 = vadd.f32 0.0, %v3301
      %v3303 = vpop.f32.mrf.mxu0
      %3304 = vmatprep.mubr.bf16.mxu0 %v3167
      %3305 = vmatmul.mubr.bf16.gmra.mxu0 %v3166
      %v3306 = vpop.f32.mrf.mxu0
      %v3307 = vadd.f32 0.0, %v3306
      %v3308 = vpop.f32.mrf.mxu0
      %v3309 = vpop.f32.mrf.mxu0
      %v3310 = vadd.f32 0.0, %v3309
      %v3311 = vpop.f32.mrf.mxu0
      %3312 = vdwg.mxu0
      %v3313 = vadd.f32 %v2869, %v3299
      %v3314 = vadd.f32 %v2870, %v3302
      %v3315 = vadd.f32 %v2871, %v3307
      %v3316 = vadd.f32 %v2872, %v3310
      %v3317 = vld [vmem:[%s18] sm:$0x1]
      %v3319 = vlaneseq
      %v3320 = vshrl.u32 %v3319, 7
      %v3321 = vsub.s32 0, %v3320
      %v3322 = vrot.slane %v3317, %v3321
      %v3324 = vadd.f32 %v3313, %v3322
      %v3325 = vadd.f32 %v3314, %v3322
      %v3326 = vadd.f32 %v3315, %v3322
      %v3327 = vadd.f32 %v3316, %v3322
      %s3328 = scalar_lea.vmem %s7, 1
      %v3329 = vld [vmem:[%s3328] sm:$0x1]
      %s3330 = scalar_lea.vmem %s8, 1
      %v3331 = vld [vmem:[%s3330] sm:$0x1]
      %v3332 = vsel %vm731, %v3324, 0.0
      %3333 = vadd.xlane.f32.xlu0 %v3332
      %v3334 = vpop.xlane.xlu0 %3333
      %v3335 = vsel %vm731, %v3325, 0.0
      %3336 = vadd.xlane.f32.xlu0 %v3335
      %v3337 = vpop.xlane.xlu0 %3336
      %v3338 = vsel %vm731, %v3326, 0.0
      %3339 = vadd.xlane.f32.xlu0 %v3338
      %v3340 = vpop.xlane.xlu0 %3339
      %v3341 = vsel %vm731, %v3327, 0.0
      %3342 = vadd.xlane.f32.xlu0 %v3341
      %v3343 = vpop.xlane.xlu0 %3342
      %v3344 = vmul.f32 %v3334, %v801
      %v3345 = vmul.f32 %v3337, %v801
      %v3346 = vmul.f32 %v3340, %v801
      %v3347 = vmul.f32 %v3343, %v801
      %v3348 = vsub.f32 %v3324, %v3344
      %v3349 = vsub.f32 %v3325, %v3345
      %v3350 = vsub.f32 %v3326, %v3346
      %v3351 = vsub.f32 %v3327, %v3347
      %v3352 = vmul.f32 %v3348, %v3348
      %v3353 = vmul.f32 %v3349, %v3349
      %v3354 = vmul.f32 %v3350, %v3350
      %v3355 = vmul.f32 %v3351, %v3351
      %v3356 = vsel %vm731, %v3352, 0.0
      %3357 = vadd.xlane.f32.xlu0 %v3356
      %v3358 = vpop.xlane.xlu0 %3357
      %v3359 = vsel %vm731, %v3353, 0.0
      %3360 = vadd.xlane.f32.xlu0 %v3359
      %v3361 = vpop.xlane.xlu0 %3360
      %v3362 = vsel %vm731, %v3354, 0.0
      %3363 = vadd.xlane.f32.xlu0 %v3362
      %v3364 = vpop.xlane.xlu0 %3363
      %v3365 = vsel %vm731, %v3355, 0.0
      %3366 = vadd.xlane.f32.xlu0 %v3365
      %v3367 = vpop.xlane.xlu0 %3366
      %v3368 = vmul.f32 %v3358, %v801
      %v3369 = vmul.f32 %v3361, %v801
      %v3370 = vmul.f32 %v3364, %v801
      %v3371 = vmul.f32 %v3367, %v801
      %v3372 = vadd.f32 %v3368, 1e-05
      %v3373 = vadd.f32 %v3369, 1e-05
      %v3374 = vadd.f32 %v3370, 1e-05
      %v3375 = vadd.f32 %v3371, 1e-05
      %v3376 = vrsqrt.pop %v3372
      %v3377 = vrsqrt.pop %v3373
      %v3378 = vrsqrt.pop %v3374
      %v3379 = vrsqrt.pop %v3375
      %v3380 = vmul.f32 %v3348, %v3376
      %v3381 = vmul.f32 %v3349, %v3377
      %v3382 = vmul.f32 %v3350, %v3378
      %v3383 = vmul.f32 %v3351, %v3379
      %v3385 = vlaneseq
      %v3386 = vshrl.u32 %v3385, 7
      %v3387 = vsub.s32 0, %v3386
      %v3388 = vrot.slane %v3329, %v3387
      %v3390 = vmul.f32 %v3380, %v3388
      %v3391 = vmul.f32 %v3381, %v3388
      %v3392 = vmul.f32 %v3382, %v3388
      %v3393 = vmul.f32 %v3383, %v3388
      %v3395 = vlaneseq
      %v3396 = vshrl.u32 %v3395, 7
      %v3397 = vsub.s32 0, %v3396
      %v3398 = vrot.slane %v3331, %v3397
      %v3400 = vadd.f32 %v3390, %v3398
      %v3401 = vadd.f32 %v3391, %v3398
      %v3402 = vadd.f32 %v3392, %v3398
      %v3403 = vadd.f32 %v3393, %v3398
      %s3404 = scalar_lea.vmem %s9, 64
      %v3405 = vld [vmem:[%s3404] sm:$0xff]
      %v3406 = vld [vmem:[%s3404 + $0x8] sm:$0xff]
      %v3407 = vld [vmem:[%s3404 + $0x10] sm:$0xff]
      %v3408 = vld [vmem:[%s3404 + $0x18] sm:$0xff]
      %v3409 = vld [vmem:[%s3404 + $0x20] sm:$0xff]
      %v3410 = vld [vmem:[%s3404 + $0x28] sm:$0xff]
      %v3411 = vld [vmem:[%s3404 + $0x30] sm:$0xff]
      %v3412 = vld [vmem:[%s3404 + $0x38] sm:$0xff]
      %v3413 = vpack.c.bf16 %v3401, %v3400
      %v3414 = vpack.c.bf16 %v3403, %v3402
      %s3415 = scalar_lea.vmem %s10, 2
      %v3416 = vld [vmem:[%s3415] sm:$0x3]
      %v3418 = vlaneseq
      %v3419 = vshrl.u32 %v3418, 7
      %v3420 = vsub.s32 0, %v3419
      %v3421 = vrot.slane %v3416, %v3420
      %v3422 = vlaneseq
      %v3423 = vshrl.u32 %v3422, 7
      %v3424 = vsub.s32 1, %v3423
      %v3425 = vrot.slane %v3416, %v3424
      %v3436 = vunpack.c.l.b16 %v3405
      %v3437 = vunpack.c.h.b16 %v3405
      %v3438 = vunpack.c.l.b16 %v3406
      %v3439 = vunpack.c.h.b16 %v3406
      %v3440 = vunpack.c.l.b16 %v3407
      %v3441 = vunpack.c.h.b16 %v3407
      %v3442 = vunpack.c.l.b16 %v3408
      %v3443 = vunpack.c.h.b16 %v3408
      %v3444 = vunpack.c.l.b16 %v3409
      %v3445 = vunpack.c.h.b16 %v3409
      %v3446 = vunpack.c.l.b16 %v3410
      %v3447 = vunpack.c.h.b16 %v3410
      %v3448 = vunpack.c.l.b16 %v3411
      %v3449 = vunpack.c.h.b16 %v3411
      %v3450 = vunpack.c.l.b16 %v3412
      %v3451 = vunpack.c.h.b16 %v3412
      %v3452 = vpack.c.b16 %v3438, %v3436
      %v3453 = vpack.c.b16 %v3439, %v3437
      %v3454 = vpack.c.b16 %v3442, %v3440
      %v3455 = vpack.c.b16 %v3443, %v3441
      %v3456 = vpack.c.b16 %v3446, %v3444
      %v3457 = vpack.c.b16 %v3447, %v3445
      %v3458 = vpack.c.b16 %v3450, %v3448
      %v3459 = vpack.c.b16 %v3451, %v3449
      %v3469 = vsel %vm731, %v3413, 0
      %v3472 = vsel %vm731, %v3414, 0
      %3474 = vmatprep.subr.bf16.mxu0 0
      %3475 = vmatpush1.bf16.msra.mxu0 0
      %3476 = vmatprep.subr.bf16.mxu0 0
      %3477 = vmatpush1.bf16.msra.mxu0 0
      %3478 = vmatprep.subr.bf16.mxu0 0
      %3479 = vmatpush1.bf16.msra.mxu0 0
      %3480 = vmatprep.subr.bf16.mxu0 0
      %3481 = vmatpush1.bf16.msra.mxu0 0
      %3482 = vmatprep.subr.bf16.mxu0 %v3459
      %3483 = vmatpush1.bf16.msra.mxu0 %v3458
      %3484 = vmatprep.subr.bf16.mxu0 %v3457
      %3485 = vmatpush1.bf16.msra.mxu0 %v3456
      %3486 = vmatprep.subr.bf16.mxu0 %v3455
      %3487 = vmatpush1.bf16.msra.mxu0 %v3454
      %3488 = vmatprep.subr.bf16.mxu0 %v3453
      %3489 = vmatpush1.bf16.msra.mxu0 %v3452
      %3490 = vmatprep.subr.bf16.mxu0 0
      %3491 = vmatpush2.bf16.msra.mxu0 0
      %3492 = vmatprep.subr.bf16.mxu0 0
      %3493 = vmatpush2.bf16.msra.mxu0 0
      %3494 = vmatprep.subr.bf16.mxu0 0
      %3495 = vmatpush2.bf16.msra.mxu0 0
      %3496 = vmatprep.subr.bf16.mxu0 0
      %3497 = vmatpush2.bf16.msra.mxu0 0
      %3498 = vmatprep.subr.bf16.mxu0 0
      %3499 = vmatpush2.bf16.msra.mxu0 0
      %3500 = vmatprep.subr.bf16.mxu0 0
      %3501 = vmatpush2.bf16.msra.mxu0 0
      %3502 = vmatprep.subr.bf16.mxu0 0
      %3503 = vmatpush2.bf16.msra.mxu0 0
      %3504 = vmatprep.subr.bf16.mxu0 0
      %3505 = vmatpush2.bf16.msra.mxu0 0
      %3506 = vmatprep.mubr.bf16.mxu0 0
      %3507 = vmatmul.mubr.bf16.gmra.mxu0 %v3469
      %v3508 = vpop.f32.mrf.mxu0
      %v3509 = vadd.f32 %v3421, %v3508
      %v3510 = vpop.f32.mrf.mxu0
      %v3511 = vadd.f32 %v3425, %v3510
      %v3512 = vpop.f32.mrf.mxu0
      %v3513 = vadd.f32 %v3421, %v3512
      %v3514 = vpop.f32.mrf.mxu0
      %v3515 = vadd.f32 %v3425, %v3514
      %3516 = vmatprep.mubr.bf16.mxu0 0
      %3517 = vmatmul.mubr.bf16.gmra.mxu0 %v3472
      %v3518 = vpop.f32.mrf.mxu0
      %v3519 = vadd.f32 %v3421, %v3518
      %v3520 = vpop.f32.mrf.mxu0
      %v3521 = vadd.f32 %v3425, %v3520
      %v3522 = vpop.f32.mrf.mxu0
      %v3523 = vadd.f32 %v3421, %v3522
      %v3524 = vpop.f32.mrf.mxu0
      %v3525 = vadd.f32 %v3425, %v3524
      %3526 = vdwg.mxu0
      %v3527 = vld [vmem:[%s5] sm:$0x1]
      %v3529 = vlaneseq
      %v3530 = vshrl.u32 %v3529, 7
      %v3531 = vsub.s32 0, %v3530
      %v3532 = vrot.slane %v3527, %v3531
      %v3534 = vmul.f32 %v3509, %v3532
      %v3535 = vmul.f32 %v3513, %v3532
      %v3536 = vmul.f32 %v3519, %v3532
      %v3537 = vmul.f32 %v3523, %v3532
      %v3538 = vpack.c.bf16 %v3534, %v3534
      %v3539 = vpack.c.bf16 %v3535, %v3535
      %v3540 = vpack.c.bf16 %v3536, %v3536
      %v3541 = vpack.c.bf16 %v3537, %v3537
      %v3542 = vpack.c.bf16 %v3509, %v3509
      %v3543 = vpack.c.bf16 %v3513, %v3513
      %v3544 = vpack.c.bf16 %v3519, %v3519
      %v3545 = vpack.c.bf16 %v3523, %v3523
      %3547 = vrot.lane.b32.xlu0 %v3542, 64
      %v3548 = vpop.permute.xlu0 %3547
      %v3550 = vsel %vm731, %v3538, 0
      %v3553 = vsel %vm731, %v3548, 0
      %3555 = vmatprep.subr.bf16.mxu0 0
      %3556 = vmatpush1.bf16.xpose.msra.mxu0 0
      %3557 = vmatprep.subr.bf16.mxu0 0
      %3558 = vmatpush1.bf16.xpose.msra.mxu0 0
      %3559 = vmatprep.subr.bf16.mxu0 0
      %3560 = vmatpush1.bf16.xpose.msra.mxu0 0
      %3561 = vmatprep.subr.bf16.mxu0 0
      %3562 = vmatpush1.bf16.xpose.msra.mxu0 0
      %3563 = vmatprep.subr.bf16.mxu0 0
      %3564 = vmatpush1.bf16.xpose.msra.mxu0 0
      %3565 = vmatprep.subr.bf16.mxu0 0
      %3566 = vmatpush1.bf16.xpose.msra.mxu0 0
      %3567 = vmatprep.subr.bf16.mxu0 0
      %3568 = vmatpush1.bf16.xpose.msra.mxu0 0
      %3569 = vmatprep.subr.bf16.mxu0 0
      %3570 = vmatpush1.bf16.xpose.msra.mxu0 %v3553
      %3571 = vmatprep.subr.bf16.mxu0 0
      %3572 = vmatpush2.bf16.xpose.msra.mxu0 0
      %3573 = vmatprep.subr.bf16.mxu0 0
      %3574 = vmatpush2.bf16.xpose.msra.mxu0 0
      %3575 = vmatprep.subr.bf16.mxu0 0
      %3576 = vmatpush2.bf16.xpose.msra.mxu0 0
      %3577 = vmatprep.subr.bf16.mxu0 0
      %3578 = vmatpush2.bf16.xpose.msra.mxu0 0
      %3579 = vmatprep.subr.bf16.mxu0 0
      %3580 = vmatpush2.bf16.xpose.msra.mxu0 0
      %3581 = vmatprep.subr.bf16.mxu0 0
      %3582 = vmatpush2.bf16.xpose.msra.mxu0 0
      %3583 = vmatprep.subr.bf16.mxu0 0
      %3584 = vmatpush2.bf16.xpose.msra.mxu0 0
      %3585 = vmatprep.subr.bf16.mxu0 0
      %3586 = vmatpush2.bf16.xpose.msra.mxu0 0
      %3587 = vmatprep.mubr.bf16.mxu0 0
      %3588 = vmatmul.mubr.bf16.gmra.mxu0 %v3550
      %v3589 = vpop.f32.mrf.mxu0
      %v3590 = vadd.f32 %v1081, %v3589
      %v3591 = vpop.f32.mrf.mxu0
      %v3592 = vpop.f32.mrf.mxu0
      %v3593 = vpop.f32.mrf.mxu0
      %3594 = vdwg.mxu0
      %3596 = vrot.lane.b32.xlu0 %v3543, 64
      %v3597 = vpop.permute.xlu0 %3596
      %v3599 = vsel %vm731, %v3539, 0
      %v3602 = vsel %vm731, %v3597, 0
      %3604 = vmatprep.subr.bf16.mxu0 0
      %3605 = vmatpush1.bf16.xpose.msra.mxu0 0
      %3606 = vmatprep.subr.bf16.mxu0 0
      %3607 = vmatpush1.bf16.xpose.msra.mxu0 0
      %3608 = vmatprep.subr.bf16.mxu0 0
      %3609 = vmatpush1.bf16.xpose.msra.mxu0 0
      %3610 = vmatprep.subr.bf16.mxu0 0
      %3611 = vmatpush1.bf16.xpose.msra.mxu0 0
      %3612 = vmatprep.subr.bf16.mxu0 0
      %3613 = vmatpush1.bf16.xpose.msra.mxu0 0
      %3614 = vmatprep.subr.bf16.mxu0 0
      %3615 = vmatpush1.bf16.xpose.msra.mxu0 0
      %3616 = vmatprep.subr.bf16.mxu0 0
      %3617 = vmatpush1.bf16.xpose.msra.mxu0 0
      %3618 = vmatprep.subr.bf16.mxu0 0
      %3619 = vmatpush1.bf16.xpose.msra.mxu0 %v3602
      %3620 = vmatprep.subr.bf16.mxu0 0
      %3621 = vmatpush2.bf16.xpose.msra.mxu0 0
      %3622 = vmatprep.subr.bf16.mxu0 0
      %3623 = vmatpush2.bf16.xpose.msra.mxu0 0
      %3624 = vmatprep.subr.bf16.mxu0 0
      %3625 = vmatpush2.bf16.xpose.msra.mxu0 0
      %3626 = vmatprep.subr.bf16.mxu0 0
      %3627 = vmatpush2.bf16.xpose.msra.mxu0 0
      %3628 = vmatprep.subr.bf16.mxu0 0
      %3629 = vmatpush2.bf16.xpose.msra.mxu0 0
      %3630 = vmatprep.subr.bf16.mxu0 0
      %3631 = vmatpush2.bf16.xpose.msra.mxu0 0
      %3632 = vmatprep.subr.bf16.mxu0 0
      %3633 = vmatpush2.bf16.xpose.msra.mxu0 0
      %3634 = vmatprep.subr.bf16.mxu0 0
      %3635 = vmatpush2.bf16.xpose.msra.mxu0 0
      %3636 = vmatprep.mubr.bf16.mxu0 0
      %3637 = vmatmul.mubr.bf16.gmra.mxu0 %v3599
      %v3638 = vpop.f32.mrf.mxu0
      %v3639 = vadd.f32 %v1081, %v3638
      %v3640 = vpop.f32.mrf.mxu0
      %v3641 = vpop.f32.mrf.mxu0
      %v3642 = vpop.f32.mrf.mxu0
      %3643 = vdwg.mxu0
      %3645 = vrot.lane.b32.xlu0 %v3544, 64
      %v3646 = vpop.permute.xlu0 %3645
      %v3648 = vsel %vm731, %v3540, 0
      %v3651 = vsel %vm731, %v3646, 0
      %3653 = vmatprep.subr.bf16.mxu0 0
      %3654 = vmatpush1.bf16.xpose.msra.mxu0 0
      %3655 = vmatprep.subr.bf16.mxu0 0
      %3656 = vmatpush1.bf16.xpose.msra.mxu0 0
      %3657 = vmatprep.subr.bf16.mxu0 0
      %3658 = vmatpush1.bf16.xpose.msra.mxu0 0
      %3659 = vmatprep.subr.bf16.mxu0 0
      %3660 = vmatpush1.bf16.xpose.msra.mxu0 0
      %3661 = vmatprep.subr.bf16.mxu0 0
      %3662 = vmatpush1.bf16.xpose.msra.mxu0 0
      %3663 = vmatprep.subr.bf16.mxu0 0
      %3664 = vmatpush1.bf16.xpose.msra.mxu0 0
      %3665 = vmatprep.subr.bf16.mxu0 0
      %3666 = vmatpush1.bf16.xpose.msra.mxu0 0
      %3667 = vmatprep.subr.bf16.mxu0 0
      %3668 = vmatpush1.bf16.xpose.msra.mxu0 %v3651
      %3669 = vmatprep.subr.bf16.mxu0 0
      %3670 = vmatpush2.bf16.xpose.msra.mxu0 0
      %3671 = vmatprep.subr.bf16.mxu0 0
      %3672 = vmatpush2.bf16.xpose.msra.mxu0 0
      %3673 = vmatprep.subr.bf16.mxu0 0
      %3674 = vmatpush2.bf16.xpose.msra.mxu0 0
      %3675 = vmatprep.subr.bf16.mxu0 0
      %3676 = vmatpush2.bf16.xpose.msra.mxu0 0
      %3677 = vmatprep.subr.bf16.mxu0 0
      %3678 = vmatpush2.bf16.xpose.msra.mxu0 0
      %3679 = vmatprep.subr.bf16.mxu0 0
      %3680 = vmatpush2.bf16.xpose.msra.mxu0 0
      %3681 = vmatprep.subr.bf16.mxu0 0
      %3682 = vmatpush2.bf16.xpose.msra.mxu0 0
      %3683 = vmatprep.subr.bf16.mxu0 0
      %3684 = vmatpush2.bf16.xpose.msra.mxu0 0
      %3685 = vmatprep.mubr.bf16.mxu0 0
      %3686 = vmatmul.mubr.bf16.gmra.mxu0 %v3648
      %v3687 = vpop.f32.mrf.mxu0
      %v3688 = vadd.f32 %v1081, %v3687
      %v3689 = vpop.f32.mrf.mxu0
      %v3690 = vpop.f32.mrf.mxu0
      %v3691 = vpop.f32.mrf.mxu0
      %3692 = vdwg.mxu0
      %3694 = vrot.lane.b32.xlu0 %v3545, 64
      %v3695 = vpop.permute.xlu0 %3694
      %v3697 = vsel %vm731, %v3541, 0
      %v3700 = vsel %vm731, %v3695, 0
      %3702 = vmatprep.subr.bf16.mxu0 0
      %3703 = vmatpush1.bf16.xpose.msra.mxu0 0
      %3704 = vmatprep.subr.bf16.mxu0 0
      %3705 = vmatpush1.bf16.xpose.msra.mxu0 0
      %3706 = vmatprep.subr.bf16.mxu0 0
      %3707 = vmatpush1.bf16.xpose.msra.mxu0 0
      %3708 = vmatprep.subr.bf16.mxu0 0
      %3709 = vmatpush1.bf16.xpose.msra.mxu0 0
      %3710 = vmatprep.subr.bf16.mxu0 0
      %3711 = vmatpush1.bf16.xpose.msra.mxu0 0
      %3712 = vmatprep.subr.bf16.mxu0 0
      %3713 = vmatpush1.bf16.xpose.msra.mxu0 0
      %3714 = vmatprep.subr.bf16.mxu0 0
      %3715 = vmatpush1.bf16.xpose.msra.mxu0 0
      %3716 = vmatprep.subr.bf16.mxu0 0
      %3717 = vmatpush1.bf16.xpose.msra.mxu0 %v3700
      %3718 = vmatprep.subr.bf16.mxu0 0
      %3719 = vmatpush2.bf16.xpose.msra.mxu0 0
      %3720 = vmatprep.subr.bf16.mxu0 0
      %3721 = vmatpush2.bf16.xpose.msra.mxu0 0
      %3722 = vmatprep.subr.bf16.mxu0 0
      %3723 = vmatpush2.bf16.xpose.msra.mxu0 0
      %3724 = vmatprep.subr.bf16.mxu0 0
      %3725 = vmatpush2.bf16.xpose.msra.mxu0 0
      %3726 = vmatprep.subr.bf16.mxu0 0
      %3727 = vmatpush2.bf16.xpose.msra.mxu0 0
      %3728 = vmatprep.subr.bf16.mxu0 0
      %3729 = vmatpush2.bf16.xpose.msra.mxu0 0
      %3730 = vmatprep.subr.bf16.mxu0 0
      %3731 = vmatpush2.bf16.xpose.msra.mxu0 0
      %3732 = vmatprep.subr.bf16.mxu0 0
      %3733 = vmatpush2.bf16.xpose.msra.mxu0 0
      %3734 = vmatprep.mubr.bf16.mxu0 0
      %3735 = vmatmul.mubr.bf16.gmra.mxu0 %v3697
      %v3736 = vpop.f32.mrf.mxu0
      %v3737 = vadd.f32 %v1081, %v3736
      %v3738 = vpop.f32.mrf.mxu0
      %v3739 = vpop.f32.mrf.mxu0
      %v3740 = vpop.f32.mrf.mxu0
      %3741 = vdwg.mxu0
      %v3742 = vsel %vm1279, %v3590, -inf
      %3743 = vmax.xlane.f32.xlu0 %v3742
      %v3744 = vpop.xlane.xlu0 %3743
      %v3745 = vsel %vm1279, %v3639, -inf
      %3746 = vmax.xlane.f32.xlu0 %v3745
      %v3747 = vpop.xlane.xlu0 %3746
      %v3748 = vsel %vm1279, %v3688, -inf
      %3749 = vmax.xlane.f32.xlu0 %v3748
      %v3750 = vpop.xlane.xlu0 %3749
      %v3751 = vsel %vm1279, %v3737, -inf
      %3752 = vmax.xlane.f32.xlu0 %v3751
      %v3753 = vpop.xlane.xlu0 %3752
      %v3754 = vsub.f32 %v3590, %v3744
      %v3755 = vsub.f32 %v3639, %v3747
      %v3756 = vsub.f32 %v3688, %v3750
      %v3757 = vsub.f32 %v3737, %v3753
      %v3758 = vmul.f32 %v3754, 1.442695
      %v3759 = vpow.pop %v3758
      %v3760 = vmul.f32 %v3755, 1.442695
      %v3761 = vpow.pop %v3760
      %v3762 = vmul.f32 %v3756, 1.442695
      %v3763 = vpow.pop %v3762
      %v3764 = vmul.f32 %v3757, 1.442695
      %v3765 = vpow.pop %v3764
      %v3766 = vsel %vm1279, %v3759, 0.0
      %3767 = vadd.xlane.f32.xlu0 %v3766
      %v3768 = vpop.xlane.xlu0 %3767
      %v3769 = vsel %vm1279, %v3761, 0.0
      %3770 = vadd.xlane.f32.xlu0 %v3769
      %v3771 = vpop.xlane.xlu0 %3770
      %v3772 = vsel %vm1279, %v3763, 0.0
      %3773 = vadd.xlane.f32.xlu0 %v3772
      %v3774 = vpop.xlane.xlu0 %3773
      %v3775 = vsel %vm1279, %v3765, 0.0
      %3776 = vadd.xlane.f32.xlu0 %v3775
      %v3777 = vpop.xlane.xlu0 %3776
      %v3778 = vrcp.pop %v3768
      %v3779 = vmul.f32 %v3759, %v3778
      %v3780 = vrcp.pop %v3771
      %v3781 = vmul.f32 %v3761, %v3780
      %v3782 = vrcp.pop %v3774
      %v3783 = vmul.f32 %v3763, %v3782
      %v3784 = vrcp.pop %v3777
      %v3785 = vmul.f32 %v3765, %v3784
      %v3786 = vpack.c.bf16 %v3779, %v3779
      %v3787 = vpack.c.bf16 %v3781, %v3781
      %v3788 = vpack.c.bf16 %v3783, %v3783
      %v3789 = vpack.c.bf16 %v3785, %v3785
      %v3790 = vpack.c.bf16 %v3511, %v3511
      %v3791 = vpack.c.bf16 %v3515, %v3515
      %v3792 = vpack.c.bf16 %v3521, %v3521
      %v3793 = vpack.c.bf16 %v3525, %v3525
      %v3795 = vsel %vm1279, %v3786, 0
      %v3798 = vsel %vm1335, %v3790, 0
      %3800 = vmatprep.subr.bf16.mxu0 0
      %3801 = vmatpush1.bf16.msra.mxu0 0
      %3802 = vmatprep.subr.bf16.mxu0 0
      %3803 = vmatpush1.bf16.msra.mxu0 0
      %3804 = vmatprep.subr.bf16.mxu0 0
      %3805 = vmatpush1.bf16.msra.mxu0 0
      %3806 = vmatprep.subr.bf16.mxu0 0
      %3807 = vmatpush1.bf16.msra.mxu0 0
      %3808 = vmatprep.subr.bf16.mxu0 0
      %3809 = vmatpush1.bf16.msra.mxu0 0
      %3810 = vmatprep.subr.bf16.mxu0 0
      %3811 = vmatpush1.bf16.msra.mxu0 0
      %3812 = vmatprep.subr.bf16.mxu0 0
      %3813 = vmatpush1.bf16.msra.mxu0 0
      %3814 = vmatprep.subr.bf16.mxu0 0
      %3815 = vmatpush1.bf16.msra.mxu0 %v3798
      %3816 = vmatprep.subr.bf16.mxu0 0
      %3817 = vmatpush2.bf16.msra.mxu0 0
      %3818 = vmatprep.subr.bf16.mxu0 0
      %3819 = vmatpush2.bf16.msra.mxu0 0
      %3820 = vmatprep.subr.bf16.mxu0 0
      %3821 = vmatpush2.bf16.msra.mxu0 0
      %3822 = vmatprep.subr.bf16.mxu0 0
      %3823 = vmatpush2.bf16.msra.mxu0 0
      %3824 = vmatprep.subr.bf16.mxu0 0
      %3825 = vmatpush2.bf16.msra.mxu0 0
      %3826 = vmatprep.subr.bf16.mxu0 0
      %3827 = vmatpush2.bf16.msra.mxu0 0
      %3828 = vmatprep.subr.bf16.mxu0 0
      %3829 = vmatpush2.bf16.msra.mxu0 0
      %3830 = vmatprep.subr.bf16.mxu0 0
      %3831 = vmatpush2.bf16.msra.mxu0 0
      %3832 = vmatprep.mubr.bf16.mxu0 0
      %3833 = vmatmul.mubr.bf16.gmra.mxu0 %v3795
      %v3834 = vpop.f32.mrf.mxu0
      %v3835 = vadd.f32 0.0, %v3834
      %v3836 = vpop.f32.mrf.mxu0
      %v3837 = vpop.f32.mrf.mxu0
      %v3838 = vpop.f32.mrf.mxu0
      %3839 = vdwg.mxu0
      %v3841 = vsel %vm1279, %v3787, 0
      %v3844 = vsel %vm1335, %v3791, 0
      %3846 = vmatprep.subr.bf16.mxu0 0
      %3847 = vmatpush1.bf16.msra.mxu0 0
      %3848 = vmatprep.subr.bf16.mxu0 0
      %3849 = vmatpush1.bf16.msra.mxu0 0
      %3850 = vmatprep.subr.bf16.mxu0 0
      %3851 = vmatpush1.bf16.msra.mxu0 0
      %3852 = vmatprep.subr.bf16.mxu0 0
      %3853 = vmatpush1.bf16.msra.mxu0 0
      %3854 = vmatprep.subr.bf16.mxu0 0
      %3855 = vmatpush1.bf16.msra.mxu0 0
      %3856 = vmatprep.subr.bf16.mxu0 0
      %3857 = vmatpush1.bf16.msra.mxu0 0
      %3858 = vmatprep.subr.bf16.mxu0 0
      %3859 = vmatpush1.bf16.msra.mxu0 0
      %3860 = vmatprep.subr.bf16.mxu0 0
      %3861 = vmatpush1.bf16.msra.mxu0 %v3844
      %3862 = vmatprep.subr.bf16.mxu0 0
      %3863 = vmatpush2.bf16.msra.mxu0 0
      %3864 = vmatprep.subr.bf16.mxu0 0
      %3865 = vmatpush2.bf16.msra.mxu0 0
      %3866 = vmatprep.subr.bf16.mxu0 0
      %3867 = vmatpush2.bf16.msra.mxu0 0
      %3868 = vmatprep.subr.bf16.mxu0 0
      %3869 = vmatpush2.bf16.msra.mxu0 0
      %3870 = vmatprep.subr.bf16.mxu0 0
      %3871 = vmatpush2.bf16.msra.mxu0 0
      %3872 = vmatprep.subr.bf16.mxu0 0
      %3873 = vmatpush2.bf16.msra.mxu0 0
      %3874 = vmatprep.subr.bf16.mxu0 0
      %3875 = vmatpush2.bf16.msra.mxu0 0
      %3876 = vmatprep.subr.bf16.mxu0 0
      %3877 = vmatpush2.bf16.msra.mxu0 0
      %3878 = vmatprep.mubr.bf16.mxu0 0
      %3879 = vmatmul.mubr.bf16.gmra.mxu0 %v3841
      %v3880 = vpop.f32.mrf.mxu0
      %v3881 = vadd.f32 0.0, %v3880
      %v3882 = vpop.f32.mrf.mxu0
      %v3883 = vpop.f32.mrf.mxu0
      %v3884 = vpop.f32.mrf.mxu0
      %3885 = vdwg.mxu0
      %v3887 = vsel %vm1279, %v3788, 0
      %v3890 = vsel %vm1335, %v3792, 0
      %3892 = vmatprep.subr.bf16.mxu0 0
      %3893 = vmatpush1.bf16.msra.mxu0 0
      %3894 = vmatprep.subr.bf16.mxu0 0
      %3895 = vmatpush1.bf16.msra.mxu0 0
      %3896 = vmatprep.subr.bf16.mxu0 0
      %3897 = vmatpush1.bf16.msra.mxu0 0
      %3898 = vmatprep.subr.bf16.mxu0 0
      %3899 = vmatpush1.bf16.msra.mxu0 0
      %3900 = vmatprep.subr.bf16.mxu0 0
      %3901 = vmatpush1.bf16.msra.mxu0 0
      %3902 = vmatprep.subr.bf16.mxu0 0
      %3903 = vmatpush1.bf16.msra.mxu0 0
      %3904 = vmatprep.subr.bf16.mxu0 0
      %3905 = vmatpush1.bf16.msra.mxu0 0
      %3906 = vmatprep.subr.bf16.mxu0 0
      %3907 = vmatpush1.bf16.msra.mxu0 %v3890
      %3908 = vmatprep.subr.bf16.mxu0 0
      %3909 = vmatpush2.bf16.msra.mxu0 0
      %3910 = vmatprep.subr.bf16.mxu0 0
      %3911 = vmatpush2.bf16.msra.mxu0 0
      %3912 = vmatprep.subr.bf16.mxu0 0
      %3913 = vmatpush2.bf16.msra.mxu0 0
      %3914 = vmatprep.subr.bf16.mxu0 0
      %3915 = vmatpush2.bf16.msra.mxu0 0
      %3916 = vmatprep.subr.bf16.mxu0 0
      %3917 = vmatpush2.bf16.msra.mxu0 0
      %3918 = vmatprep.subr.bf16.mxu0 0
      %3919 = vmatpush2.bf16.msra.mxu0 0
      %3920 = vmatprep.subr.bf16.mxu0 0
      %3921 = vmatpush2.bf16.msra.mxu0 0
      %3922 = vmatprep.subr.bf16.mxu0 0
      %3923 = vmatpush2.bf16.msra.mxu0 0
      %3924 = vmatprep.mubr.bf16.mxu0 0
      %3925 = vmatmul.mubr.bf16.gmra.mxu0 %v3887
      %v3926 = vpop.f32.mrf.mxu0
      %v3927 = vadd.f32 0.0, %v3926
      %v3928 = vpop.f32.mrf.mxu0
      %v3929 = vpop.f32.mrf.mxu0
      %v3930 = vpop.f32.mrf.mxu0
      %3931 = vdwg.mxu0
      %v3933 = vsel %vm1279, %v3789, 0
      %v3936 = vsel %vm1335, %v3793, 0
      %3938 = vmatprep.subr.bf16.mxu0 0
      %3939 = vmatpush1.bf16.msra.mxu0 0
      %3940 = vmatprep.subr.bf16.mxu0 0
      %3941 = vmatpush1.bf16.msra.mxu0 0
      %3942 = vmatprep.subr.bf16.mxu0 0
      %3943 = vmatpush1.bf16.msra.mxu0 0
      %3944 = vmatprep.subr.bf16.mxu0 0
      %3945 = vmatpush1.bf16.msra.mxu0 0
      %3946 = vmatprep.subr.bf16.mxu0 0
      %3947 = vmatpush1.bf16.msra.mxu0 0
      %3948 = vmatprep.subr.bf16.mxu0 0
      %3949 = vmatpush1.bf16.msra.mxu0 0
      %3950 = vmatprep.subr.bf16.mxu0 0
      %3951 = vmatpush1.bf16.msra.mxu0 0
      %3952 = vmatprep.subr.bf16.mxu0 0
      %3953 = vmatpush1.bf16.msra.mxu0 %v3936
      %3954 = vmatprep.subr.bf16.mxu0 0
      %3955 = vmatpush2.bf16.msra.mxu0 0
      %3956 = vmatprep.subr.bf16.mxu0 0
      %3957 = vmatpush2.bf16.msra.mxu0 0
      %3958 = vmatprep.subr.bf16.mxu0 0
      %3959 = vmatpush2.bf16.msra.mxu0 0
      %3960 = vmatprep.subr.bf16.mxu0 0
      %3961 = vmatpush2.bf16.msra.mxu0 0
      %3962 = vmatprep.subr.bf16.mxu0 0
      %3963 = vmatpush2.bf16.msra.mxu0 0
      %3964 = vmatprep.subr.bf16.mxu0 0
      %3965 = vmatpush2.bf16.msra.mxu0 0
      %3966 = vmatprep.subr.bf16.mxu0 0
      %3967 = vmatpush2.bf16.msra.mxu0 0
      %3968 = vmatprep.subr.bf16.mxu0 0
      %3969 = vmatpush2.bf16.msra.mxu0 0
      %3970 = vmatprep.mubr.bf16.mxu0 0
      %3971 = vmatmul.mubr.bf16.gmra.mxu0 %v3933
      %v3972 = vpop.f32.mrf.mxu0
      %v3973 = vadd.f32 0.0, %v3972
      %v3974 = vpop.f32.mrf.mxu0
      %v3975 = vpop.f32.mrf.mxu0
      %v3976 = vpop.f32.mrf.mxu0
      %3977 = vdwg.mxu0
      %v3978 = vmul.f32 %v3835, %v3532
      %v3979 = vmul.f32 %v3881, %v3532
      %v3980 = vmul.f32 %v3927, %v3532
      %v3981 = vmul.f32 %v3973, %v3532
      %v3982 = vadd.f32 %v3978, 0.0
      %v3983 = vadd.f32 %v3979, 0.0
      %v3984 = vadd.f32 %v3980, 0.0
      %v3985 = vadd.f32 %v3981, 0.0
      %v3986 = vld [vmem:[%s1525] sm:$0x1]
      %v3988 = vlaneseq
      %v3989 = vshrl.u32 %v3988, 7
      %v3990 = vsub.s32 0, %v3989
      %v3991 = vrot.slane %v3986, %v3990
      %v3993 = vmul.f32 %v3509, %v3991
      %v3994 = vmul.f32 %v3513, %v3991
      %v3995 = vmul.f32 %v3519, %v3991
      %v3996 = vmul.f32 %v3523, %v3991
      %v3997 = vpack.c.bf16 %v3993, %v3993
      %v3998 = vpack.c.bf16 %v3994, %v3994
      %v3999 = vpack.c.bf16 %v3995, %v3995
      %v4000 = vpack.c.bf16 %v3996, %v3996
      %v4002 = vsel %vm731, %v3997, 0
      %4004 = vmatprep.subr.bf16.mxu0 0
      %4005 = vmatpush1.bf16.xpose.msra.mxu0 0
      %4006 = vmatprep.subr.bf16.mxu0 0
      %4007 = vmatpush1.bf16.xpose.msra.mxu0 0
      %4008 = vmatprep.subr.bf16.mxu0 0
      %4009 = vmatpush1.bf16.xpose.msra.mxu0 0
      %4010 = vmatprep.subr.bf16.mxu0 0
      %4011 = vmatpush1.bf16.xpose.msra.mxu0 0
      %4012 = vmatprep.subr.bf16.mxu0 0
      %4013 = vmatpush1.bf16.xpose.msra.mxu0 0
      %4014 = vmatprep.subr.bf16.mxu0 0
      %4015 = vmatpush1.bf16.xpose.msra.mxu0 0
      %4016 = vmatprep.subr.bf16.mxu0 0
      %4017 = vmatpush1.bf16.xpose.msra.mxu0 0
      %4018 = vmatprep.subr.bf16.mxu0 0
      %4019 = vmatpush1.bf16.xpose.msra.mxu0 %v3553
      %4020 = vmatprep.subr.bf16.mxu0 0
      %4021 = vmatpush2.bf16.xpose.msra.mxu0 0
      %4022 = vmatprep.subr.bf16.mxu0 0
      %4023 = vmatpush2.bf16.xpose.msra.mxu0 0
      %4024 = vmatprep.subr.bf16.mxu0 0
      %4025 = vmatpush2.bf16.xpose.msra.mxu0 0
      %4026 = vmatprep.subr.bf16.mxu0 0
      %4027 = vmatpush2.bf16.xpose.msra.mxu0 0
      %4028 = vmatprep.subr.bf16.mxu0 0
      %4029 = vmatpush2.bf16.xpose.msra.mxu0 0
      %4030 = vmatprep.subr.bf16.mxu0 0
      %4031 = vmatpush2.bf16.xpose.msra.mxu0 0
      %4032 = vmatprep.subr.bf16.mxu0 0
      %4033 = vmatpush2.bf16.xpose.msra.mxu0 0
      %4034 = vmatprep.subr.bf16.mxu0 0
      %4035 = vmatpush2.bf16.xpose.msra.mxu0 0
      %4036 = vmatprep.mubr.bf16.mxu0 0
      %4037 = vmatmul.mubr.bf16.gmra.mxu0 %v4002
      %v4038 = vpop.f32.mrf.mxu0
      %v4039 = vadd.f32 %v1081, %v4038
      %v4040 = vpop.f32.mrf.mxu0
      %v4041 = vpop.f32.mrf.mxu0
      %v4042 = vpop.f32.mrf.mxu0
      %4043 = vdwg.mxu0
      %v4045 = vsel %vm731, %v3998, 0
      %4047 = vmatprep.subr.bf16.mxu0 0
      %4048 = vmatpush1.bf16.xpose.msra.mxu0 0
      %4049 = vmatprep.subr.bf16.mxu0 0
      %4050 = vmatpush1.bf16.xpose.msra.mxu0 0
      %4051 = vmatprep.subr.bf16.mxu0 0
      %4052 = vmatpush1.bf16.xpose.msra.mxu0 0
      %4053 = vmatprep.subr.bf16.mxu0 0
      %4054 = vmatpush1.bf16.xpose.msra.mxu0 0
      %4055 = vmatprep.subr.bf16.mxu0 0
      %4056 = vmatpush1.bf16.xpose.msra.mxu0 0
      %4057 = vmatprep.subr.bf16.mxu0 0
      %4058 = vmatpush1.bf16.xpose.msra.mxu0 0
      %4059 = vmatprep.subr.bf16.mxu0 0
      %4060 = vmatpush1.bf16.xpose.msra.mxu0 0
      %4061 = vmatprep.subr.bf16.mxu0 0
      %4062 = vmatpush1.bf16.xpose.msra.mxu0 %v3602
      %4063 = vmatprep.subr.bf16.mxu0 0
      %4064 = vmatpush2.bf16.xpose.msra.mxu0 0
      %4065 = vmatprep.subr.bf16.mxu0 0
      %4066 = vmatpush2.bf16.xpose.msra.mxu0 0
      %4067 = vmatprep.subr.bf16.mxu0 0
      %4068 = vmatpush2.bf16.xpose.msra.mxu0 0
      %4069 = vmatprep.subr.bf16.mxu0 0
      %4070 = vmatpush2.bf16.xpose.msra.mxu0 0
      %4071 = vmatprep.subr.bf16.mxu0 0
      %4072 = vmatpush2.bf16.xpose.msra.mxu0 0
      %4073 = vmatprep.subr.bf16.mxu0 0
      %4074 = vmatpush2.bf16.xpose.msra.mxu0 0
      %4075 = vmatprep.subr.bf16.mxu0 0
      %4076 = vmatpush2.bf16.xpose.msra.mxu0 0
      %4077 = vmatprep.subr.bf16.mxu0 0
      %4078 = vmatpush2.bf16.xpose.msra.mxu0 0
      %4079 = vmatprep.mubr.bf16.mxu0 0
      %4080 = vmatmul.mubr.bf16.gmra.mxu0 %v4045
      %v4081 = vpop.f32.mrf.mxu0
      %v4082 = vadd.f32 %v1081, %v4081
      %v4083 = vpop.f32.mrf.mxu0
      %v4084 = vpop.f32.mrf.mxu0
      %v4085 = vpop.f32.mrf.mxu0
      %4086 = vdwg.mxu0
      %v4088 = vsel %vm731, %v3999, 0
      %4090 = vmatprep.subr.bf16.mxu0 0
      %4091 = vmatpush1.bf16.xpose.msra.mxu0 0
      %4092 = vmatprep.subr.bf16.mxu0 0
      %4093 = vmatpush1.bf16.xpose.msra.mxu0 0
      %4094 = vmatprep.subr.bf16.mxu0 0
      %4095 = vmatpush1.bf16.xpose.msra.mxu0 0
      %4096 = vmatprep.subr.bf16.mxu0 0
      %4097 = vmatpush1.bf16.xpose.msra.mxu0 0
      %4098 = vmatprep.subr.bf16.mxu0 0
      %4099 = vmatpush1.bf16.xpose.msra.mxu0 0
      %4100 = vmatprep.subr.bf16.mxu0 0
      %4101 = vmatpush1.bf16.xpose.msra.mxu0 0
      %4102 = vmatprep.subr.bf16.mxu0 0
      %4103 = vmatpush1.bf16.xpose.msra.mxu0 0
      %4104 = vmatprep.subr.bf16.mxu0 0
      %4105 = vmatpush1.bf16.xpose.msra.mxu0 %v3651
      %4106 = vmatprep.subr.bf16.mxu0 0
      %4107 = vmatpush2.bf16.xpose.msra.mxu0 0
      %4108 = vmatprep.subr.bf16.mxu0 0
      %4109 = vmatpush2.bf16.xpose.msra.mxu0 0
      %4110 = vmatprep.subr.bf16.mxu0 0
      %4111 = vmatpush2.bf16.xpose.msra.mxu0 0
      %4112 = vmatprep.subr.bf16.mxu0 0
      %4113 = vmatpush2.bf16.xpose.msra.mxu0 0
      %4114 = vmatprep.subr.bf16.mxu0 0
      %4115 = vmatpush2.bf16.xpose.msra.mxu0 0
      %4116 = vmatprep.subr.bf16.mxu0 0
      %4117 = vmatpush2.bf16.xpose.msra.mxu0 0
      %4118 = vmatprep.subr.bf16.mxu0 0
      %4119 = vmatpush2.bf16.xpose.msra.mxu0 0
      %4120 = vmatprep.subr.bf16.mxu0 0
      %4121 = vmatpush2.bf16.xpose.msra.mxu0 0
      %4122 = vmatprep.mubr.bf16.mxu0 0
      %4123 = vmatmul.mubr.bf16.gmra.mxu0 %v4088
      %v4124 = vpop.f32.mrf.mxu0
      %v4125 = vadd.f32 %v1081, %v4124
      %v4126 = vpop.f32.mrf.mxu0
      %v4127 = vpop.f32.mrf.mxu0
      %v4128 = vpop.f32.mrf.mxu0
      %4129 = vdwg.mxu0
      %v4131 = vsel %vm731, %v4000, 0
      %4133 = vmatprep.subr.bf16.mxu0 0
      %4134 = vmatpush1.bf16.xpose.msra.mxu0 0
      %4135 = vmatprep.subr.bf16.mxu0 0
      %4136 = vmatpush1.bf16.xpose.msra.mxu0 0
      %4137 = vmatprep.subr.bf16.mxu0 0
      %4138 = vmatpush1.bf16.xpose.msra.mxu0 0
      %4139 = vmatprep.subr.bf16.mxu0 0
      %4140 = vmatpush1.bf16.xpose.msra.mxu0 0
      %4141 = vmatprep.subr.bf16.mxu0 0
      %4142 = vmatpush1.bf16.xpose.msra.mxu0 0
      %4143 = vmatprep.subr.bf16.mxu0 0
      %4144 = vmatpush1.bf16.xpose.msra.mxu0 0
      %4145 = vmatprep.subr.bf16.mxu0 0
      %4146 = vmatpush1.bf16.xpose.msra.mxu0 0
      %4147 = vmatprep.subr.bf16.mxu0 0
      %4148 = vmatpush1.bf16.xpose.msra.mxu0 %v3700
      %4149 = vmatprep.subr.bf16.mxu0 0
      %4150 = vmatpush2.bf16.xpose.msra.mxu0 0
      %4151 = vmatprep.subr.bf16.mxu0 0
      %4152 = vmatpush2.bf16.xpose.msra.mxu0 0
      %4153 = vmatprep.subr.bf16.mxu0 0
      %4154 = vmatpush2.bf16.xpose.msra.mxu0 0
      %4155 = vmatprep.subr.bf16.mxu0 0
      %4156 = vmatpush2.bf16.xpose.msra.mxu0 0
      %4157 = vmatprep.subr.bf16.mxu0 0
      %4158 = vmatpush2.bf16.xpose.msra.mxu0 0
      %4159 = vmatprep.subr.bf16.mxu0 0
      %4160 = vmatpush2.bf16.xpose.msra.mxu0 0
      %4161 = vmatprep.subr.bf16.mxu0 0
      %4162 = vmatpush2.bf16.xpose.msra.mxu0 0
      %4163 = vmatprep.subr.bf16.mxu0 0
      %4164 = vmatpush2.bf16.xpose.msra.mxu0 0
      %4165 = vmatprep.mubr.bf16.mxu0 0
      %4166 = vmatmul.mubr.bf16.gmra.mxu0 %v4131
      %v4167 = vpop.f32.mrf.mxu0
      %v4168 = vadd.f32 %v1081, %v4167
      %v4169 = vpop.f32.mrf.mxu0
      %v4170 = vpop.f32.mrf.mxu0
      %v4171 = vpop.f32.mrf.mxu0
      %4172 = vdwg.mxu0
      %v4173 = vsel %vm1279, %v4039, -inf
      %4174 = vmax.xlane.f32.xlu0 %v4173
      %v4175 = vpop.xlane.xlu0 %4174
      %v4176 = vsel %vm1279, %v4082, -inf
      %4177 = vmax.xlane.f32.xlu0 %v4176
      %v4178 = vpop.xlane.xlu0 %4177
      %v4179 = vsel %vm1279, %v4125, -inf
      %4180 = vmax.xlane.f32.xlu0 %v4179
      %v4181 = vpop.xlane.xlu0 %4180
      %v4182 = vsel %vm1279, %v4168, -inf
      %4183 = vmax.xlane.f32.xlu0 %v4182
      %v4184 = vpop.xlane.xlu0 %4183
      %v4185 = vsub.f32 %v4039, %v4175
      %v4186 = vsub.f32 %v4082, %v4178
      %v4187 = vsub.f32 %v4125, %v4181
      %v4188 = vsub.f32 %v4168, %v4184
      %v4189 = vmul.f32 %v4185, 1.442695
      %v4190 = vpow.pop %v4189
      %v4191 = vmul.f32 %v4186, 1.442695
      %v4192 = vpow.pop %v4191
      %v4193 = vmul.f32 %v4187, 1.442695
      %v4194 = vpow.pop %v4193
      %v4195 = vmul.f32 %v4188, 1.442695
      %v4196 = vpow.pop %v4195
      %v4197 = vsel %vm1279, %v4190, 0.0
      %4198 = vadd.xlane.f32.xlu0 %v4197
      %v4199 = vpop.xlane.xlu0 %4198
      %v4200 = vsel %vm1279, %v4192, 0.0
      %4201 = vadd.xlane.f32.xlu0 %v4200
      %v4202 = vpop.xlane.xlu0 %4201
      %v4203 = vsel %vm1279, %v4194, 0.0
      %4204 = vadd.xlane.f32.xlu0 %v4203
      %v4205 = vpop.xlane.xlu0 %4204
      %v4206 = vsel %vm1279, %v4196, 0.0
      %4207 = vadd.xlane.f32.xlu0 %v4206
      %v4208 = vpop.xlane.xlu0 %4207
      %v4209 = vrcp.pop %v4199
      %v4210 = vmul.f32 %v4190, %v4209
      %v4211 = vrcp.pop %v4202
      %v4212 = vmul.f32 %v4192, %v4211
      %v4213 = vrcp.pop %v4205
      %v4214 = vmul.f32 %v4194, %v4213
      %v4215 = vrcp.pop %v4208
      %v4216 = vmul.f32 %v4196, %v4215
      %v4217 = vpack.c.bf16 %v4210, %v4210
      %v4218 = vpack.c.bf16 %v4212, %v4212
      %v4219 = vpack.c.bf16 %v4214, %v4214
      %v4220 = vpack.c.bf16 %v4216, %v4216
      %v4222 = vsel %vm1279, %v4217, 0
      %4224 = vmatprep.subr.bf16.mxu0 0
      %4225 = vmatpush1.bf16.msra.mxu0 0
      %4226 = vmatprep.subr.bf16.mxu0 0
      %4227 = vmatpush1.bf16.msra.mxu0 0
      %4228 = vmatprep.subr.bf16.mxu0 0
      %4229 = vmatpush1.bf16.msra.mxu0 0
      %4230 = vmatprep.subr.bf16.mxu0 0
      %4231 = vmatpush1.bf16.msra.mxu0 0
      %4232 = vmatprep.subr.bf16.mxu0 0
      %4233 = vmatpush1.bf16.msra.mxu0 0
      %4234 = vmatprep.subr.bf16.mxu0 0
      %4235 = vmatpush1.bf16.msra.mxu0 0
      %4236 = vmatprep.subr.bf16.mxu0 0
      %4237 = vmatpush1.bf16.msra.mxu0 0
      %4238 = vmatprep.subr.bf16.mxu0 0
      %4239 = vmatpush1.bf16.msra.mxu0 %v3798
      %4240 = vmatprep.subr.bf16.mxu0 0
      %4241 = vmatpush2.bf16.msra.mxu0 0
      %4242 = vmatprep.subr.bf16.mxu0 0
      %4243 = vmatpush2.bf16.msra.mxu0 0
      %4244 = vmatprep.subr.bf16.mxu0 0
      %4245 = vmatpush2.bf16.msra.mxu0 0
      %4246 = vmatprep.subr.bf16.mxu0 0
      %4247 = vmatpush2.bf16.msra.mxu0 0
      %4248 = vmatprep.subr.bf16.mxu0 0
      %4249 = vmatpush2.bf16.msra.mxu0 0
      %4250 = vmatprep.subr.bf16.mxu0 0
      %4251 = vmatpush2.bf16.msra.mxu0 0
      %4252 = vmatprep.subr.bf16.mxu0 0
      %4253 = vmatpush2.bf16.msra.mxu0 0
      %4254 = vmatprep.subr.bf16.mxu0 0
      %4255 = vmatpush2.bf16.msra.mxu0 0
      %4256 = vmatprep.mubr.bf16.mxu0 0
      %4257 = vmatmul.mubr.bf16.gmra.mxu0 %v4222
      %v4258 = vpop.f32.mrf.mxu0
      %v4259 = vadd.f32 0.0, %v4258
      %v4260 = vpop.f32.mrf.mxu0
      %v4261 = vpop.f32.mrf.mxu0
      %v4262 = vpop.f32.mrf.mxu0
      %4263 = vdwg.mxu0
      %v4265 = vsel %vm1279, %v4218, 0
      %4267 = vmatprep.subr.bf16.mxu0 0
      %4268 = vmatpush1.bf16.msra.mxu0 0
      %4269 = vmatprep.subr.bf16.mxu0 0
      %4270 = vmatpush1.bf16.msra.mxu0 0
      %4271 = vmatprep.subr.bf16.mxu0 0
      %4272 = vmatpush1.bf16.msra.mxu0 0
      %4273 = vmatprep.subr.bf16.mxu0 0
      %4274 = vmatpush1.bf16.msra.mxu0 0
      %4275 = vmatprep.subr.bf16.mxu0 0
      %4276 = vmatpush1.bf16.msra.mxu0 0
      %4277 = vmatprep.subr.bf16.mxu0 0
      %4278 = vmatpush1.bf16.msra.mxu0 0
      %4279 = vmatprep.subr.bf16.mxu0 0
      %4280 = vmatpush1.bf16.msra.mxu0 0
      %4281 = vmatprep.subr.bf16.mxu0 0
      %4282 = vmatpush1.bf16.msra.mxu0 %v3844
      %4283 = vmatprep.subr.bf16.mxu0 0
      %4284 = vmatpush2.bf16.msra.mxu0 0
      %4285 = vmatprep.subr.bf16.mxu0 0
      %4286 = vmatpush2.bf16.msra.mxu0 0
      %4287 = vmatprep.subr.bf16.mxu0 0
      %4288 = vmatpush2.bf16.msra.mxu0 0
      %4289 = vmatprep.subr.bf16.mxu0 0
      %4290 = vmatpush2.bf16.msra.mxu0 0
      %4291 = vmatprep.subr.bf16.mxu0 0
      %4292 = vmatpush2.bf16.msra.mxu0 0
      %4293 = vmatprep.subr.bf16.mxu0 0
      %4294 = vmatpush2.bf16.msra.mxu0 0
      %4295 = vmatprep.subr.bf16.mxu0 0
      %4296 = vmatpush2.bf16.msra.mxu0 0
      %4297 = vmatprep.subr.bf16.mxu0 0
      %4298 = vmatpush2.bf16.msra.mxu0 0
      %4299 = vmatprep.mubr.bf16.mxu0 0
      %4300 = vmatmul.mubr.bf16.gmra.mxu0 %v4265
      %v4301 = vpop.f32.mrf.mxu0
      %v4302 = vadd.f32 0.0, %v4301
      %v4303 = vpop.f32.mrf.mxu0
      %v4304 = vpop.f32.mrf.mxu0
      %v4305 = vpop.f32.mrf.mxu0
      %4306 = vdwg.mxu0
      %v4308 = vsel %vm1279, %v4219, 0
      %4310 = vmatprep.subr.bf16.mxu0 0
      %4311 = vmatpush1.bf16.msra.mxu0 0
      %4312 = vmatprep.subr.bf16.mxu0 0
      %4313 = vmatpush1.bf16.msra.mxu0 0
      %4314 = vmatprep.subr.bf16.mxu0 0
      %4315 = vmatpush1.bf16.msra.mxu0 0
      %4316 = vmatprep.subr.bf16.mxu0 0
      %4317 = vmatpush1.bf16.msra.mxu0 0
      %4318 = vmatprep.subr.bf16.mxu0 0
      %4319 = vmatpush1.bf16.msra.mxu0 0
      %4320 = vmatprep.subr.bf16.mxu0 0
      %4321 = vmatpush1.bf16.msra.mxu0 0
      %4322 = vmatprep.subr.bf16.mxu0 0
      %4323 = vmatpush1.bf16.msra.mxu0 0
      %4324 = vmatprep.subr.bf16.mxu0 0
      %4325 = vmatpush1.bf16.msra.mxu0 %v3890
      %4326 = vmatprep.subr.bf16.mxu0 0
      %4327 = vmatpush2.bf16.msra.mxu0 0
      %4328 = vmatprep.subr.bf16.mxu0 0
      %4329 = vmatpush2.bf16.msra.mxu0 0
      %4330 = vmatprep.subr.bf16.mxu0 0
      %4331 = vmatpush2.bf16.msra.mxu0 0
      %4332 = vmatprep.subr.bf16.mxu0 0
      %4333 = vmatpush2.bf16.msra.mxu0 0
      %4334 = vmatprep.subr.bf16.mxu0 0
      %4335 = vmatpush2.bf16.msra.mxu0 0
      %4336 = vmatprep.subr.bf16.mxu0 0
      %4337 = vmatpush2.bf16.msra.mxu0 0
      %4338 = vmatprep.subr.bf16.mxu0 0
      %4339 = vmatpush2.bf16.msra.mxu0 0
      %4340 = vmatprep.subr.bf16.mxu0 0
      %4341 = vmatpush2.bf16.msra.mxu0 0
      %4342 = vmatprep.mubr.bf16.mxu0 0
      %4343 = vmatmul.mubr.bf16.gmra.mxu0 %v4308
      %v4344 = vpop.f32.mrf.mxu0
      %v4345 = vadd.f32 0.0, %v4344
      %v4346 = vpop.f32.mrf.mxu0
      %v4347 = vpop.f32.mrf.mxu0
      %v4348 = vpop.f32.mrf.mxu0
      %4349 = vdwg.mxu0
      %v4351 = vsel %vm1279, %v4220, 0
      %4353 = vmatprep.subr.bf16.mxu0 0
      %4354 = vmatpush1.bf16.msra.mxu0 0
      %4355 = vmatprep.subr.bf16.mxu0 0
      %4356 = vmatpush1.bf16.msra.mxu0 0
      %4357 = vmatprep.subr.bf16.mxu0 0
      %4358 = vmatpush1.bf16.msra.mxu0 0
      %4359 = vmatprep.subr.bf16.mxu0 0
      %4360 = vmatpush1.bf16.msra.mxu0 0
      %4361 = vmatprep.subr.bf16.mxu0 0
      %4362 = vmatpush1.bf16.msra.mxu0 0
      %4363 = vmatprep.subr.bf16.mxu0 0
      %4364 = vmatpush1.bf16.msra.mxu0 0
      %4365 = vmatprep.subr.bf16.mxu0 0
      %4366 = vmatpush1.bf16.msra.mxu0 0
      %4367 = vmatprep.subr.bf16.mxu0 0
      %4368 = vmatpush1.bf16.msra.mxu0 %v3936
      %4369 = vmatprep.subr.bf16.mxu0 0
      %4370 = vmatpush2.bf16.msra.mxu0 0
      %4371 = vmatprep.subr.bf16.mxu0 0
      %4372 = vmatpush2.bf16.msra.mxu0 0
      %4373 = vmatprep.subr.bf16.mxu0 0
      %4374 = vmatpush2.bf16.msra.mxu0 0
      %4375 = vmatprep.subr.bf16.mxu0 0
      %4376 = vmatpush2.bf16.msra.mxu0 0
      %4377 = vmatprep.subr.bf16.mxu0 0
      %4378 = vmatpush2.bf16.msra.mxu0 0
      %4379 = vmatprep.subr.bf16.mxu0 0
      %4380 = vmatpush2.bf16.msra.mxu0 0
      %4381 = vmatprep.subr.bf16.mxu0 0
      %4382 = vmatpush2.bf16.msra.mxu0 0
      %4383 = vmatprep.subr.bf16.mxu0 0
      %4384 = vmatpush2.bf16.msra.mxu0 0
      %4385 = vmatprep.mubr.bf16.mxu0 0
      %4386 = vmatmul.mubr.bf16.gmra.mxu0 %v4351
      %v4387 = vpop.f32.mrf.mxu0
      %v4388 = vadd.f32 0.0, %v4387
      %v4389 = vpop.f32.mrf.mxu0
      %v4390 = vpop.f32.mrf.mxu0
      %v4391 = vpop.f32.mrf.mxu0
      %4392 = vdwg.mxu0
      %v4393 = vmul.f32 %v4259, %v3991
      %v4394 = vmul.f32 %v4302, %v3991
      %v4395 = vmul.f32 %v4345, %v3991
      %v4396 = vmul.f32 %v4388, %v3991
      %v4397 = vadd.f32 %v3982, %v4393
      %v4398 = vadd.f32 %v3983, %v4394
      %v4399 = vadd.f32 %v3984, %v4395
      %v4400 = vadd.f32 %v3985, %v4396
      %v4401 = vld [vmem:[%s1941] sm:$0x1]
      %v4403 = vlaneseq
      %v4404 = vshrl.u32 %v4403, 7
      %v4405 = vsub.s32 0, %v4404
      %v4406 = vrot.slane %v4401, %v4405
      %v4408 = vmul.f32 %v3509, %v4406
      %v4409 = vmul.f32 %v3513, %v4406
      %v4410 = vmul.f32 %v3519, %v4406
      %v4411 = vmul.f32 %v3523, %v4406
      %v4412 = vpack.c.bf16 %v4408, %v4408
      %v4413 = vpack.c.bf16 %v4409, %v4409
      %v4414 = vpack.c.bf16 %v4410, %v4410
      %v4415 = vpack.c.bf16 %v4411, %v4411
      %v4417 = vsel %vm731, %v4412, 0
      %4419 = vmatprep.subr.bf16.mxu0 0
      %4420 = vmatpush1.bf16.xpose.msra.mxu0 0
      %4421 = vmatprep.subr.bf16.mxu0 0
      %4422 = vmatpush1.bf16.xpose.msra.mxu0 0
      %4423 = vmatprep.subr.bf16.mxu0 0
      %4424 = vmatpush1.bf16.xpose.msra.mxu0 0
      %4425 = vmatprep.subr.bf16.mxu0 0
      %4426 = vmatpush1.bf16.xpose.msra.mxu0 0
      %4427 = vmatprep.subr.bf16.mxu0 0
      %4428 = vmatpush1.bf16.xpose.msra.mxu0 0
      %4429 = vmatprep.subr.bf16.mxu0 0
      %4430 = vmatpush1.bf16.xpose.msra.mxu0 0
      %4431 = vmatprep.subr.bf16.mxu0 0
      %4432 = vmatpush1.bf16.xpose.msra.mxu0 0
      %4433 = vmatprep.subr.bf16.mxu0 0
      %4434 = vmatpush1.bf16.xpose.msra.mxu0 %v3553
      %4435 = vmatprep.subr.bf16.mxu0 0
      %4436 = vmatpush2.bf16.xpose.msra.mxu0 0
      %4437 = vmatprep.subr.bf16.mxu0 0
      %4438 = vmatpush2.bf16.xpose.msra.mxu0 0
      %4439 = vmatprep.subr.bf16.mxu0 0
      %4440 = vmatpush2.bf16.xpose.msra.mxu0 0
      %4441 = vmatprep.subr.bf16.mxu0 0
      %4442 = vmatpush2.bf16.xpose.msra.mxu0 0
      %4443 = vmatprep.subr.bf16.mxu0 0
      %4444 = vmatpush2.bf16.xpose.msra.mxu0 0
      %4445 = vmatprep.subr.bf16.mxu0 0
      %4446 = vmatpush2.bf16.xpose.msra.mxu0 0
      %4447 = vmatprep.subr.bf16.mxu0 0
      %4448 = vmatpush2.bf16.xpose.msra.mxu0 0
      %4449 = vmatprep.subr.bf16.mxu0 0
      %4450 = vmatpush2.bf16.xpose.msra.mxu0 0
      %4451 = vmatprep.mubr.bf16.mxu0 0
      %4452 = vmatmul.mubr.bf16.gmra.mxu0 %v4417
      %v4453 = vpop.f32.mrf.mxu0
      %v4454 = vadd.f32 %v1081, %v4453
      %v4455 = vpop.f32.mrf.mxu0
      %v4456 = vpop.f32.mrf.mxu0
      %v4457 = vpop.f32.mrf.mxu0
      %4458 = vdwg.mxu0
      %v4460 = vsel %vm731, %v4413, 0
      %4462 = vmatprep.subr.bf16.mxu0 0
      %4463 = vmatpush1.bf16.xpose.msra.mxu0 0
      %4464 = vmatprep.subr.bf16.mxu0 0
      %4465 = vmatpush1.bf16.xpose.msra.mxu0 0
      %4466 = vmatprep.subr.bf16.mxu0 0
      %4467 = vmatpush1.bf16.xpose.msra.mxu0 0
      %4468 = vmatprep.subr.bf16.mxu0 0
      %4469 = vmatpush1.bf16.xpose.msra.mxu0 0
      %4470 = vmatprep.subr.bf16.mxu0 0
      %4471 = vmatpush1.bf16.xpose.msra.mxu0 0
      %4472 = vmatprep.subr.bf16.mxu0 0
      %4473 = vmatpush1.bf16.xpose.msra.mxu0 0
      %4474 = vmatprep.subr.bf16.mxu0 0
      %4475 = vmatpush1.bf16.xpose.msra.mxu0 0
      %4476 = vmatprep.subr.bf16.mxu0 0
      %4477 = vmatpush1.bf16.xpose.msra.mxu0 %v3602
      %4478 = vmatprep.subr.bf16.mxu0 0
      %4479 = vmatpush2.bf16.xpose.msra.mxu0 0
      %4480 = vmatprep.subr.bf16.mxu0 0
      %4481 = vmatpush2.bf16.xpose.msra.mxu0 0
      %4482 = vmatprep.subr.bf16.mxu0 0
      %4483 = vmatpush2.bf16.xpose.msra.mxu0 0
      %4484 = vmatprep.subr.bf16.mxu0 0
      %4485 = vmatpush2.bf16.xpose.msra.mxu0 0
      %4486 = vmatprep.subr.bf16.mxu0 0
      %4487 = vmatpush2.bf16.xpose.msra.mxu0 0
      %4488 = vmatprep.subr.bf16.mxu0 0
      %4489 = vmatpush2.bf16.xpose.msra.mxu0 0
      %4490 = vmatprep.subr.bf16.mxu0 0
      %4491 = vmatpush2.bf16.xpose.msra.mxu0 0
      %4492 = vmatprep.subr.bf16.mxu0 0
      %4493 = vmatpush2.bf16.xpose.msra.mxu0 0
      %4494 = vmatprep.mubr.bf16.mxu0 0
      %4495 = vmatmul.mubr.bf16.gmra.mxu0 %v4460
      %v4496 = vpop.f32.mrf.mxu0
      %v4497 = vadd.f32 %v1081, %v4496
      %v4498 = vpop.f32.mrf.mxu0
      %v4499 = vpop.f32.mrf.mxu0
      %v4500 = vpop.f32.mrf.mxu0
      %4501 = vdwg.mxu0
      %v4503 = vsel %vm731, %v4414, 0
      %4505 = vmatprep.subr.bf16.mxu0 0
      %4506 = vmatpush1.bf16.xpose.msra.mxu0 0
      %4507 = vmatprep.subr.bf16.mxu0 0
      %4508 = vmatpush1.bf16.xpose.msra.mxu0 0
      %4509 = vmatprep.subr.bf16.mxu0 0
      %4510 = vmatpush1.bf16.xpose.msra.mxu0 0
      %4511 = vmatprep.subr.bf16.mxu0 0
      %4512 = vmatpush1.bf16.xpose.msra.mxu0 0
      %4513 = vmatprep.subr.bf16.mxu0 0
      %4514 = vmatpush1.bf16.xpose.msra.mxu0 0
      %4515 = vmatprep.subr.bf16.mxu0 0
      %4516 = vmatpush1.bf16.xpose.msra.mxu0 0
      %4517 = vmatprep.subr.bf16.mxu0 0
      %4518 = vmatpush1.bf16.xpose.msra.mxu0 0
      %4519 = vmatprep.subr.bf16.mxu0 0
      %4520 = vmatpush1.bf16.xpose.msra.mxu0 %v3651
      %4521 = vmatprep.subr.bf16.mxu0 0
      %4522 = vmatpush2.bf16.xpose.msra.mxu0 0
      %4523 = vmatprep.subr.bf16.mxu0 0
      %4524 = vmatpush2.bf16.xpose.msra.mxu0 0
      %4525 = vmatprep.subr.bf16.mxu0 0
      %4526 = vmatpush2.bf16.xpose.msra.mxu0 0
      %4527 = vmatprep.subr.bf16.mxu0 0
      %4528 = vmatpush2.bf16.xpose.msra.mxu0 0
      %4529 = vmatprep.subr.bf16.mxu0 0
      %4530 = vmatpush2.bf16.xpose.msra.mxu0 0
      %4531 = vmatprep.subr.bf16.mxu0 0
      %4532 = vmatpush2.bf16.xpose.msra.mxu0 0
      %4533 = vmatprep.subr.bf16.mxu0 0
      %4534 = vmatpush2.bf16.xpose.msra.mxu0 0
      %4535 = vmatprep.subr.bf16.mxu0 0
      %4536 = vmatpush2.bf16.xpose.msra.mxu0 0
      %4537 = vmatprep.mubr.bf16.mxu0 0
      %4538 = vmatmul.mubr.bf16.gmra.mxu0 %v4503
      %v4539 = vpop.f32.mrf.mxu0
      %v4540 = vadd.f32 %v1081, %v4539
      %v4541 = vpop.f32.mrf.mxu0
      %v4542 = vpop.f32.mrf.mxu0
      %v4543 = vpop.f32.mrf.mxu0
      %4544 = vdwg.mxu0
      %v4546 = vsel %vm731, %v4415, 0
      %4548 = vmatprep.subr.bf16.mxu0 0
      %4549 = vmatpush1.bf16.xpose.msra.mxu0 0
      %4550 = vmatprep.subr.bf16.mxu0 0
      %4551 = vmatpush1.bf16.xpose.msra.mxu0 0
      %4552 = vmatprep.subr.bf16.mxu0 0
      %4553 = vmatpush1.bf16.xpose.msra.mxu0 0
      %4554 = vmatprep.subr.bf16.mxu0 0
      %4555 = vmatpush1.bf16.xpose.msra.mxu0 0
      %4556 = vmatprep.subr.bf16.mxu0 0
      %4557 = vmatpush1.bf16.xpose.msra.mxu0 0
      %4558 = vmatprep.subr.bf16.mxu0 0
      %4559 = vmatpush1.bf16.xpose.msra.mxu0 0
      %4560 = vmatprep.subr.bf16.mxu0 0
      %4561 = vmatpush1.bf16.xpose.msra.mxu0 0
      %4562 = vmatprep.subr.bf16.mxu0 0
      %4563 = vmatpush1.bf16.xpose.msra.mxu0 %v3700
      %4564 = vmatprep.subr.bf16.mxu0 0
      %4565 = vmatpush2.bf16.xpose.msra.mxu0 0
      %4566 = vmatprep.subr.bf16.mxu0 0
      %4567 = vmatpush2.bf16.xpose.msra.mxu0 0
      %4568 = vmatprep.subr.bf16.mxu0 0
      %4569 = vmatpush2.bf16.xpose.msra.mxu0 0
      %4570 = vmatprep.subr.bf16.mxu0 0
      %4571 = vmatpush2.bf16.xpose.msra.mxu0 0
      %4572 = vmatprep.subr.bf16.mxu0 0
      %4573 = vmatpush2.bf16.xpose.msra.mxu0 0
      %4574 = vmatprep.subr.bf16.mxu0 0
      %4575 = vmatpush2.bf16.xpose.msra.mxu0 0
      %4576 = vmatprep.subr.bf16.mxu0 0
      %4577 = vmatpush2.bf16.xpose.msra.mxu0 0
      %4578 = vmatprep.subr.bf16.mxu0 0
      %4579 = vmatpush2.bf16.xpose.msra.mxu0 0
      %4580 = vmatprep.mubr.bf16.mxu0 0
      %4581 = vmatmul.mubr.bf16.gmra.mxu0 %v4546
      %v4582 = vpop.f32.mrf.mxu0
      %v4583 = vadd.f32 %v1081, %v4582
      %v4584 = vpop.f32.mrf.mxu0
      %v4585 = vpop.f32.mrf.mxu0
      %v4586 = vpop.f32.mrf.mxu0
      %4587 = vdwg.mxu0
      %v4588 = vsel %vm1279, %v4454, -inf
      %4589 = vmax.xlane.f32.xlu0 %v4588
      %v4590 = vpop.xlane.xlu0 %4589
      %v4591 = vsel %vm1279, %v4497, -inf
      %4592 = vmax.xlane.f32.xlu0 %v4591
      %v4593 = vpop.xlane.xlu0 %4592
      %v4594 = vsel %vm1279, %v4540, -inf
      %4595 = vmax.xlane.f32.xlu0 %v4594
      %v4596 = vpop.xlane.xlu0 %4595
      %v4597 = vsel %vm1279, %v4583, -inf
      %4598 = vmax.xlane.f32.xlu0 %v4597
      %v4599 = vpop.xlane.xlu0 %4598
      %v4600 = vsub.f32 %v4454, %v4590
      %v4601 = vsub.f32 %v4497, %v4593
      %v4602 = vsub.f32 %v4540, %v4596
      %v4603 = vsub.f32 %v4583, %v4599
      %v4604 = vmul.f32 %v4600, 1.442695
      %v4605 = vpow.pop %v4604
      %v4606 = vmul.f32 %v4601, 1.442695
      %v4607 = vpow.pop %v4606
      %v4608 = vmul.f32 %v4602, 1.442695
      %v4609 = vpow.pop %v4608
      %v4610 = vmul.f32 %v4603, 1.442695
      %v4611 = vpow.pop %v4610
      %v4612 = vsel %vm1279, %v4605, 0.0
      %4613 = vadd.xlane.f32.xlu0 %v4612
      %v4614 = vpop.xlane.xlu0 %4613
      %v4615 = vsel %vm1279, %v4607, 0.0
      %4616 = vadd.xlane.f32.xlu0 %v4615
      %v4617 = vpop.xlane.xlu0 %4616
      %v4618 = vsel %vm1279, %v4609, 0.0
      %4619 = vadd.xlane.f32.xlu0 %v4618
      %v4620 = vpop.xlane.xlu0 %4619
      %v4621 = vsel %vm1279, %v4611, 0.0
      %4622 = vadd.xlane.f32.xlu0 %v4621
      %v4623 = vpop.xlane.xlu0 %4622
      %v4624 = vrcp.pop %v4614
      %v4625 = vmul.f32 %v4605, %v4624
      %v4626 = vrcp.pop %v4617
      %v4627 = vmul.f32 %v4607, %v4626
      %v4628 = vrcp.pop %v4620
      %v4629 = vmul.f32 %v4609, %v4628
      %v4630 = vrcp.pop %v4623
      %v4631 = vmul.f32 %v4611, %v4630
      %v4632 = vpack.c.bf16 %v4625, %v4625
      %v4633 = vpack.c.bf16 %v4627, %v4627
      %v4634 = vpack.c.bf16 %v4629, %v4629
      %v4635 = vpack.c.bf16 %v4631, %v4631
      %v4637 = vsel %vm1279, %v4632, 0
      %4639 = vmatprep.subr.bf16.mxu0 0
      %4640 = vmatpush1.bf16.msra.mxu0 0
      %4641 = vmatprep.subr.bf16.mxu0 0
      %4642 = vmatpush1.bf16.msra.mxu0 0
      %4643 = vmatprep.subr.bf16.mxu0 0
      %4644 = vmatpush1.bf16.msra.mxu0 0
      %4645 = vmatprep.subr.bf16.mxu0 0
      %4646 = vmatpush1.bf16.msra.mxu0 0
      %4647 = vmatprep.subr.bf16.mxu0 0
      %4648 = vmatpush1.bf16.msra.mxu0 0
      %4649 = vmatprep.subr.bf16.mxu0 0
      %4650 = vmatpush1.bf16.msra.mxu0 0
      %4651 = vmatprep.subr.bf16.mxu0 0
      %4652 = vmatpush1.bf16.msra.mxu0 0
      %4653 = vmatprep.subr.bf16.mxu0 0
      %4654 = vmatpush1.bf16.msra.mxu0 %v3798
      %4655 = vmatprep.subr.bf16.mxu0 0
      %4656 = vmatpush2.bf16.msra.mxu0 0
      %4657 = vmatprep.subr.bf16.mxu0 0
      %4658 = vmatpush2.bf16.msra.mxu0 0
      %4659 = vmatprep.subr.bf16.mxu0 0
      %4660 = vmatpush2.bf16.msra.mxu0 0
      %4661 = vmatprep.subr.bf16.mxu0 0
      %4662 = vmatpush2.bf16.msra.mxu0 0
      %4663 = vmatprep.subr.bf16.mxu0 0
      %4664 = vmatpush2.bf16.msra.mxu0 0
      %4665 = vmatprep.subr.bf16.mxu0 0
      %4666 = vmatpush2.bf16.msra.mxu0 0
      %4667 = vmatprep.subr.bf16.mxu0 0
      %4668 = vmatpush2.bf16.msra.mxu0 0
      %4669 = vmatprep.subr.bf16.mxu0 0
      %4670 = vmatpush2.bf16.msra.mxu0 0
      %4671 = vmatprep.mubr.bf16.mxu0 0
      %4672 = vmatmul.mubr.bf16.gmra.mxu0 %v4637
      %v4673 = vpop.f32.mrf.mxu0
      %v4674 = vadd.f32 0.0, %v4673
      %v4675 = vpop.f32.mrf.mxu0
      %v4676 = vpop.f32.mrf.mxu0
      %v4677 = vpop.f32.mrf.mxu0
      %4678 = vdwg.mxu0
      %v4680 = vsel %vm1279, %v4633, 0
      %4682 = vmatprep.subr.bf16.mxu0 0
      %4683 = vmatpush1.bf16.msra.mxu0 0
      %4684 = vmatprep.subr.bf16.mxu0 0
      %4685 = vmatpush1.bf16.msra.mxu0 0
      %4686 = vmatprep.subr.bf16.mxu0 0
      %4687 = vmatpush1.bf16.msra.mxu0 0
      %4688 = vmatprep.subr.bf16.mxu0 0
      %4689 = vmatpush1.bf16.msra.mxu0 0
      %4690 = vmatprep.subr.bf16.mxu0 0
      %4691 = vmatpush1.bf16.msra.mxu0 0
      %4692 = vmatprep.subr.bf16.mxu0 0
      %4693 = vmatpush1.bf16.msra.mxu0 0
      %4694 = vmatprep.subr.bf16.mxu0 0
      %4695 = vmatpush1.bf16.msra.mxu0 0
      %4696 = vmatprep.subr.bf16.mxu0 0
      %4697 = vmatpush1.bf16.msra.mxu0 %v3844
      %4698 = vmatprep.subr.bf16.mxu0 0
      %4699 = vmatpush2.bf16.msra.mxu0 0
      %4700 = vmatprep.subr.bf16.mxu0 0
      %4701 = vmatpush2.bf16.msra.mxu0 0
      %4702 = vmatprep.subr.bf16.mxu0 0
      %4703 = vmatpush2.bf16.msra.mxu0 0
      %4704 = vmatprep.subr.bf16.mxu0 0
      %4705 = vmatpush2.bf16.msra.mxu0 0
      %4706 = vmatprep.subr.bf16.mxu0 0
      %4707 = vmatpush2.bf16.msra.mxu0 0
      %4708 = vmatprep.subr.bf16.mxu0 0
      %4709 = vmatpush2.bf16.msra.mxu0 0
      %4710 = vmatprep.subr.bf16.mxu0 0
      %4711 = vmatpush2.bf16.msra.mxu0 0
      %4712 = vmatprep.subr.bf16.mxu0 0
      %4713 = vmatpush2.bf16.msra.mxu0 0
      %4714 = vmatprep.mubr.bf16.mxu0 0
      %4715 = vmatmul.mubr.bf16.gmra.mxu0 %v4680
      %v4716 = vpop.f32.mrf.mxu0
      %v4717 = vadd.f32 0.0, %v4716
      %v4718 = vpop.f32.mrf.mxu0
      %v4719 = vpop.f32.mrf.mxu0
      %v4720 = vpop.f32.mrf.mxu0
      %4721 = vdwg.mxu0
      %v4723 = vsel %vm1279, %v4634, 0
      %4725 = vmatprep.subr.bf16.mxu0 0
      %4726 = vmatpush1.bf16.msra.mxu0 0
      %4727 = vmatprep.subr.bf16.mxu0 0
      %4728 = vmatpush1.bf16.msra.mxu0 0
      %4729 = vmatprep.subr.bf16.mxu0 0
      %4730 = vmatpush1.bf16.msra.mxu0 0
      %4731 = vmatprep.subr.bf16.mxu0 0
      %4732 = vmatpush1.bf16.msra.mxu0 0
      %4733 = vmatprep.subr.bf16.mxu0 0
      %4734 = vmatpush1.bf16.msra.mxu0 0
      %4735 = vmatprep.subr.bf16.mxu0 0
      %4736 = vmatpush1.bf16.msra.mxu0 0
      %4737 = vmatprep.subr.bf16.mxu0 0
      %4738 = vmatpush1.bf16.msra.mxu0 0
      %4739 = vmatprep.subr.bf16.mxu0 0
      %4740 = vmatpush1.bf16.msra.mxu0 %v3890
      %4741 = vmatprep.subr.bf16.mxu0 0
      %4742 = vmatpush2.bf16.msra.mxu0 0
      %4743 = vmatprep.subr.bf16.mxu0 0
      %4744 = vmatpush2.bf16.msra.mxu0 0
      %4745 = vmatprep.subr.bf16.mxu0 0
      %4746 = vmatpush2.bf16.msra.mxu0 0
      %4747 = vmatprep.subr.bf16.mxu0 0
      %4748 = vmatpush2.bf16.msra.mxu0 0
      %4749 = vmatprep.subr.bf16.mxu0 0
      %4750 = vmatpush2.bf16.msra.mxu0 0
      %4751 = vmatprep.subr.bf16.mxu0 0
      %4752 = vmatpush2.bf16.msra.mxu0 0
      %4753 = vmatprep.subr.bf16.mxu0 0
      %4754 = vmatpush2.bf16.msra.mxu0 0
      %4755 = vmatprep.subr.bf16.mxu0 0
      %4756 = vmatpush2.bf16.msra.mxu0 0
      %4757 = vmatprep.mubr.bf16.mxu0 0
      %4758 = vmatmul.mubr.bf16.gmra.mxu0 %v4723
      %v4759 = vpop.f32.mrf.mxu0
      %v4760 = vadd.f32 0.0, %v4759
      %v4761 = vpop.f32.mrf.mxu0
      %v4762 = vpop.f32.mrf.mxu0
      %v4763 = vpop.f32.mrf.mxu0
      %4764 = vdwg.mxu0
      %v4766 = vsel %vm1279, %v4635, 0
      %4768 = vmatprep.subr.bf16.mxu0 0
      %4769 = vmatpush1.bf16.msra.mxu0 0
      %4770 = vmatprep.subr.bf16.mxu0 0
      %4771 = vmatpush1.bf16.msra.mxu0 0
      %4772 = vmatprep.subr.bf16.mxu0 0
      %4773 = vmatpush1.bf16.msra.mxu0 0
      %4774 = vmatprep.subr.bf16.mxu0 0
      %4775 = vmatpush1.bf16.msra.mxu0 0
      %4776 = vmatprep.subr.bf16.mxu0 0
      %4777 = vmatpush1.bf16.msra.mxu0 0
      %4778 = vmatprep.subr.bf16.mxu0 0
      %4779 = vmatpush1.bf16.msra.mxu0 0
      %4780 = vmatprep.subr.bf16.mxu0 0
      %4781 = vmatpush1.bf16.msra.mxu0 0
      %4782 = vmatprep.subr.bf16.mxu0 0
      %4783 = vmatpush1.bf16.msra.mxu0 %v3936
      %4784 = vmatprep.subr.bf16.mxu0 0
      %4785 = vmatpush2.bf16.msra.mxu0 0
      %4786 = vmatprep.subr.bf16.mxu0 0
      %4787 = vmatpush2.bf16.msra.mxu0 0
      %4788 = vmatprep.subr.bf16.mxu0 0
      %4789 = vmatpush2.bf16.msra.mxu0 0
      %4790 = vmatprep.subr.bf16.mxu0 0
      %4791 = vmatpush2.bf16.msra.mxu0 0
      %4792 = vmatprep.subr.bf16.mxu0 0
      %4793 = vmatpush2.bf16.msra.mxu0 0
      %4794 = vmatprep.subr.bf16.mxu0 0
      %4795 = vmatpush2.bf16.msra.mxu0 0
      %4796 = vmatprep.subr.bf16.mxu0 0
      %4797 = vmatpush2.bf16.msra.mxu0 0
      %4798 = vmatprep.subr.bf16.mxu0 0
      %4799 = vmatpush2.bf16.msra.mxu0 0
      %4800 = vmatprep.mubr.bf16.mxu0 0
      %4801 = vmatmul.mubr.bf16.gmra.mxu0 %v4766
      %v4802 = vpop.f32.mrf.mxu0
      %v4803 = vadd.f32 0.0, %v4802
      %v4804 = vpop.f32.mrf.mxu0
      %v4805 = vpop.f32.mrf.mxu0
      %v4806 = vpop.f32.mrf.mxu0
      %4807 = vdwg.mxu0
      %v4808 = vmul.f32 %v4674, %v4406
      %v4809 = vmul.f32 %v4717, %v4406
      %v4810 = vmul.f32 %v4760, %v4406
      %v4811 = vmul.f32 %v4803, %v4406
      %v4812 = vadd.f32 %v4397, %v4808
      %v4813 = vadd.f32 %v4398, %v4809
      %v4814 = vadd.f32 %v4399, %v4810
      %v4815 = vadd.f32 %v4400, %v4811
      %v4816 = vld [vmem:[%s2357] sm:$0x1]
      %v4818 = vlaneseq
      %v4819 = vshrl.u32 %v4818, 7
      %v4820 = vsub.s32 0, %v4819
      %v4821 = vrot.slane %v4816, %v4820
      %v4823 = vmul.f32 %v3509, %v4821
      %v4824 = vmul.f32 %v3513, %v4821
      %v4825 = vmul.f32 %v3519, %v4821
      %v4826 = vmul.f32 %v3523, %v4821
      %v4827 = vpack.c.bf16 %v4823, %v4823
      %v4828 = vpack.c.bf16 %v4824, %v4824
      %v4829 = vpack.c.bf16 %v4825, %v4825
      %v4830 = vpack.c.bf16 %v4826, %v4826
      %v4832 = vsel %vm731, %v4827, 0
      %4834 = vmatprep.subr.bf16.mxu0 0
      %4835 = vmatpush1.bf16.xpose.msra.mxu0 0
      %4836 = vmatprep.subr.bf16.mxu0 0
      %4837 = vmatpush1.bf16.xpose.msra.mxu0 0
      %4838 = vmatprep.subr.bf16.mxu0 0
      %4839 = vmatpush1.bf16.xpose.msra.mxu0 0
      %4840 = vmatprep.subr.bf16.mxu0 0
      %4841 = vmatpush1.bf16.xpose.msra.mxu0 0
      %4842 = vmatprep.subr.bf16.mxu0 0
      %4843 = vmatpush1.bf16.xpose.msra.mxu0 0
      %4844 = vmatprep.subr.bf16.mxu0 0
      %4845 = vmatpush1.bf16.xpose.msra.mxu0 0
      %4846 = vmatprep.subr.bf16.mxu0 0
      %4847 = vmatpush1.bf16.xpose.msra.mxu0 0
      %4848 = vmatprep.subr.bf16.mxu0 0
      %4849 = vmatpush1.bf16.xpose.msra.mxu0 %v3553
      %4850 = vmatprep.subr.bf16.mxu0 0
      %4851 = vmatpush2.bf16.xpose.msra.mxu0 0
      %4852 = vmatprep.subr.bf16.mxu0 0
      %4853 = vmatpush2.bf16.xpose.msra.mxu0 0
      %4854 = vmatprep.subr.bf16.mxu0 0
      %4855 = vmatpush2.bf16.xpose.msra.mxu0 0
      %4856 = vmatprep.subr.bf16.mxu0 0
      %4857 = vmatpush2.bf16.xpose.msra.mxu0 0
      %4858 = vmatprep.subr.bf16.mxu0 0
      %4859 = vmatpush2.bf16.xpose.msra.mxu0 0
      %4860 = vmatprep.subr.bf16.mxu0 0
      %4861 = vmatpush2.bf16.xpose.msra.mxu0 0
      %4862 = vmatprep.subr.bf16.mxu0 0
      %4863 = vmatpush2.bf16.xpose.msra.mxu0 0
      %4864 = vmatprep.subr.bf16.mxu0 0
      %4865 = vmatpush2.bf16.xpose.msra.mxu0 0
      %4866 = vmatprep.mubr.bf16.mxu0 0
      %4867 = vmatmul.mubr.bf16.gmra.mxu0 %v4832
      %v4868 = vpop.f32.mrf.mxu0
      %v4869 = vadd.f32 %v1081, %v4868
      %v4870 = vpop.f32.mrf.mxu0
      %v4871 = vpop.f32.mrf.mxu0
      %v4872 = vpop.f32.mrf.mxu0
      %4873 = vdwg.mxu0
      %v4875 = vsel %vm731, %v4828, 0
      %4877 = vmatprep.subr.bf16.mxu0 0
      %4878 = vmatpush1.bf16.xpose.msra.mxu0 0
      %4879 = vmatprep.subr.bf16.mxu0 0
      %4880 = vmatpush1.bf16.xpose.msra.mxu0 0
      %4881 = vmatprep.subr.bf16.mxu0 0
      %4882 = vmatpush1.bf16.xpose.msra.mxu0 0
      %4883 = vmatprep.subr.bf16.mxu0 0
      %4884 = vmatpush1.bf16.xpose.msra.mxu0 0
      %4885 = vmatprep.subr.bf16.mxu0 0
      %4886 = vmatpush1.bf16.xpose.msra.mxu0 0
      %4887 = vmatprep.subr.bf16.mxu0 0
      %4888 = vmatpush1.bf16.xpose.msra.mxu0 0
      %4889 = vmatprep.subr.bf16.mxu0 0
      %4890 = vmatpush1.bf16.xpose.msra.mxu0 0
      %4891 = vmatprep.subr.bf16.mxu0 0
      %4892 = vmatpush1.bf16.xpose.msra.mxu0 %v3602
      %4893 = vmatprep.subr.bf16.mxu0 0
      %4894 = vmatpush2.bf16.xpose.msra.mxu0 0
      %4895 = vmatprep.subr.bf16.mxu0 0
      %4896 = vmatpush2.bf16.xpose.msra.mxu0 0
      %4897 = vmatprep.subr.bf16.mxu0 0
      %4898 = vmatpush2.bf16.xpose.msra.mxu0 0
      %4899 = vmatprep.subr.bf16.mxu0 0
      %4900 = vmatpush2.bf16.xpose.msra.mxu0 0
      %4901 = vmatprep.subr.bf16.mxu0 0
      %4902 = vmatpush2.bf16.xpose.msra.mxu0 0
      %4903 = vmatprep.subr.bf16.mxu0 0
      %4904 = vmatpush2.bf16.xpose.msra.mxu0 0
      %4905 = vmatprep.subr.bf16.mxu0 0
      %4906 = vmatpush2.bf16.xpose.msra.mxu0 0
      %4907 = vmatprep.subr.bf16.mxu0 0
      %4908 = vmatpush2.bf16.xpose.msra.mxu0 0
      %4909 = vmatprep.mubr.bf16.mxu0 0
      %4910 = vmatmul.mubr.bf16.gmra.mxu0 %v4875
      %v4911 = vpop.f32.mrf.mxu0
      %v4912 = vadd.f32 %v1081, %v4911
      %v4913 = vpop.f32.mrf.mxu0
      %v4914 = vpop.f32.mrf.mxu0
      %v4915 = vpop.f32.mrf.mxu0
      %4916 = vdwg.mxu0
      %v4918 = vsel %vm731, %v4829, 0
      %4920 = vmatprep.subr.bf16.mxu0 0
      %4921 = vmatpush1.bf16.xpose.msra.mxu0 0
      %4922 = vmatprep.subr.bf16.mxu0 0
      %4923 = vmatpush1.bf16.xpose.msra.mxu0 0
      %4924 = vmatprep.subr.bf16.mxu0 0
      %4925 = vmatpush1.bf16.xpose.msra.mxu0 0
      %4926 = vmatprep.subr.bf16.mxu0 0
      %4927 = vmatpush1.bf16.xpose.msra.mxu0 0
      %4928 = vmatprep.subr.bf16.mxu0 0
      %4929 = vmatpush1.bf16.xpose.msra.mxu0 0
      %4930 = vmatprep.subr.bf16.mxu0 0
      %4931 = vmatpush1.bf16.xpose.msra.mxu0 0
      %4932 = vmatprep.subr.bf16.mxu0 0
      %4933 = vmatpush1.bf16.xpose.msra.mxu0 0
      %4934 = vmatprep.subr.bf16.mxu0 0
      %4935 = vmatpush1.bf16.xpose.msra.mxu0 %v3651
      %4936 = vmatprep.subr.bf16.mxu0 0
      %4937 = vmatpush2.bf16.xpose.msra.mxu0 0
      %4938 = vmatprep.subr.bf16.mxu0 0
      %4939 = vmatpush2.bf16.xpose.msra.mxu0 0
      %4940 = vmatprep.subr.bf16.mxu0 0
      %4941 = vmatpush2.bf16.xpose.msra.mxu0 0
      %4942 = vmatprep.subr.bf16.mxu0 0
      %4943 = vmatpush2.bf16.xpose.msra.mxu0 0
      %4944 = vmatprep.subr.bf16.mxu0 0
      %4945 = vmatpush2.bf16.xpose.msra.mxu0 0
      %4946 = vmatprep.subr.bf16.mxu0 0
      %4947 = vmatpush2.bf16.xpose.msra.mxu0 0
      %4948 = vmatprep.subr.bf16.mxu0 0
      %4949 = vmatpush2.bf16.xpose.msra.mxu0 0
      %4950 = vmatprep.subr.bf16.mxu0 0
      %4951 = vmatpush2.bf16.xpose.msra.mxu0 0
      %4952 = vmatprep.mubr.bf16.mxu0 0
      %4953 = vmatmul.mubr.bf16.gmra.mxu0 %v4918
      %v4954 = vpop.f32.mrf.mxu0
      %v4955 = vadd.f32 %v1081, %v4954
      %v4956 = vpop.f32.mrf.mxu0
      %v4957 = vpop.f32.mrf.mxu0
      %v4958 = vpop.f32.mrf.mxu0
      %4959 = vdwg.mxu0
      %v4961 = vsel %vm731, %v4830, 0
      %4963 = vmatprep.subr.bf16.mxu0 0
      %4964 = vmatpush1.bf16.xpose.msra.mxu0 0
      %4965 = vmatprep.subr.bf16.mxu0 0
      %4966 = vmatpush1.bf16.xpose.msra.mxu0 0
      %4967 = vmatprep.subr.bf16.mxu0 0
      %4968 = vmatpush1.bf16.xpose.msra.mxu0 0
      %4969 = vmatprep.subr.bf16.mxu0 0
      %4970 = vmatpush1.bf16.xpose.msra.mxu0 0
      %4971 = vmatprep.subr.bf16.mxu0 0
      %4972 = vmatpush1.bf16.xpose.msra.mxu0 0
      %4973 = vmatprep.subr.bf16.mxu0 0
      %4974 = vmatpush1.bf16.xpose.msra.mxu0 0
      %4975 = vmatprep.subr.bf16.mxu0 0
      %4976 = vmatpush1.bf16.xpose.msra.mxu0 0
      %4977 = vmatprep.subr.bf16.mxu0 0
      %4978 = vmatpush1.bf16.xpose.msra.mxu0 %v3700
      %4979 = vmatprep.subr.bf16.mxu0 0
      %4980 = vmatpush2.bf16.xpose.msra.mxu0 0
      %4981 = vmatprep.subr.bf16.mxu0 0
      %4982 = vmatpush2.bf16.xpose.msra.mxu0 0
      %4983 = vmatprep.subr.bf16.mxu0 0
      %4984 = vmatpush2.bf16.xpose.msra.mxu0 0
      %4985 = vmatprep.subr.bf16.mxu0 0
      %4986 = vmatpush2.bf16.xpose.msra.mxu0 0
      %4987 = vmatprep.subr.bf16.mxu0 0
      %4988 = vmatpush2.bf16.xpose.msra.mxu0 0
      %4989 = vmatprep.subr.bf16.mxu0 0
      %4990 = vmatpush2.bf16.xpose.msra.mxu0 0
      %4991 = vmatprep.subr.bf16.mxu0 0
      %4992 = vmatpush2.bf16.xpose.msra.mxu0 0
      %4993 = vmatprep.subr.bf16.mxu0 0
      %4994 = vmatpush2.bf16.xpose.msra.mxu0 0
      %4995 = vmatprep.mubr.bf16.mxu0 0
      %4996 = vmatmul.mubr.bf16.gmra.mxu0 %v4961
      %v4997 = vpop.f32.mrf.mxu0
      %v4998 = vadd.f32 %v1081, %v4997
      %v4999 = vpop.f32.mrf.mxu0
      %v5000 = vpop.f32.mrf.mxu0
      %v5001 = vpop.f32.mrf.mxu0
      %5002 = vdwg.mxu0
      %v5003 = vsel %vm1279, %v4869, -inf
      %5004 = vmax.xlane.f32.xlu0 %v5003
      %v5005 = vpop.xlane.xlu0 %5004
      %v5006 = vsel %vm1279, %v4912, -inf
      %5007 = vmax.xlane.f32.xlu0 %v5006
      %v5008 = vpop.xlane.xlu0 %5007
      %v5009 = vsel %vm1279, %v4955, -inf
      %5010 = vmax.xlane.f32.xlu0 %v5009
      %v5011 = vpop.xlane.xlu0 %5010
      %v5012 = vsel %vm1279, %v4998, -inf
      %5013 = vmax.xlane.f32.xlu0 %v5012
      %v5014 = vpop.xlane.xlu0 %5013
      %v5015 = vsub.f32 %v4869, %v5005
      %v5016 = vsub.f32 %v4912, %v5008
      %v5017 = vsub.f32 %v4955, %v5011
      %v5018 = vsub.f32 %v4998, %v5014
      %v5019 = vmul.f32 %v5015, 1.442695
      %v5020 = vpow.pop %v5019
      %v5021 = vmul.f32 %v5016, 1.442695
      %v5022 = vpow.pop %v5021
      %v5023 = vmul.f32 %v5017, 1.442695
      %v5024 = vpow.pop %v5023
      %v5025 = vmul.f32 %v5018, 1.442695
      %v5026 = vpow.pop %v5025
      %v5027 = vsel %vm1279, %v5020, 0.0
      %5028 = vadd.xlane.f32.xlu0 %v5027
      %v5029 = vpop.xlane.xlu0 %5028
      %v5030 = vsel %vm1279, %v5022, 0.0
      %5031 = vadd.xlane.f32.xlu0 %v5030
      %v5032 = vpop.xlane.xlu0 %5031
      %v5033 = vsel %vm1279, %v5024, 0.0
      %5034 = vadd.xlane.f32.xlu0 %v5033
      %v5035 = vpop.xlane.xlu0 %5034
      %v5036 = vsel %vm1279, %v5026, 0.0
      %5037 = vadd.xlane.f32.xlu0 %v5036
      %v5038 = vpop.xlane.xlu0 %5037
      %v5039 = vrcp.pop %v5029
      %v5040 = vmul.f32 %v5020, %v5039
      %v5041 = vrcp.pop %v5032
      %v5042 = vmul.f32 %v5022, %v5041
      %v5043 = vrcp.pop %v5035
      %v5044 = vmul.f32 %v5024, %v5043
      %v5045 = vrcp.pop %v5038
      %v5046 = vmul.f32 %v5026, %v5045
      %v5047 = vpack.c.bf16 %v5040, %v5040
      %v5048 = vpack.c.bf16 %v5042, %v5042
      %v5049 = vpack.c.bf16 %v5044, %v5044
      %v5050 = vpack.c.bf16 %v5046, %v5046
      %v5052 = vsel %vm1279, %v5047, 0
      %5054 = vmatprep.subr.bf16.mxu0 0
      %5055 = vmatpush1.bf16.msra.mxu0 0
      %5056 = vmatprep.subr.bf16.mxu0 0
      %5057 = vmatpush1.bf16.msra.mxu0 0
      %5058 = vmatprep.subr.bf16.mxu0 0
      %5059 = vmatpush1.bf16.msra.mxu0 0
      %5060 = vmatprep.subr.bf16.mxu0 0
      %5061 = vmatpush1.bf16.msra.mxu0 0
      %5062 = vmatprep.subr.bf16.mxu0 0
      %5063 = vmatpush1.bf16.msra.mxu0 0
      %5064 = vmatprep.subr.bf16.mxu0 0
      %5065 = vmatpush1.bf16.msra.mxu0 0
      %5066 = vmatprep.subr.bf16.mxu0 0
      %5067 = vmatpush1.bf16.msra.mxu0 0
      %5068 = vmatprep.subr.bf16.mxu0 0
      %5069 = vmatpush1.bf16.msra.mxu0 %v3798
      %5070 = vmatprep.subr.bf16.mxu0 0
      %5071 = vmatpush2.bf16.msra.mxu0 0
      %5072 = vmatprep.subr.bf16.mxu0 0
      %5073 = vmatpush2.bf16.msra.mxu0 0
      %5074 = vmatprep.subr.bf16.mxu0 0
      %5075 = vmatpush2.bf16.msra.mxu0 0
      %5076 = vmatprep.subr.bf16.mxu0 0
      %5077 = vmatpush2.bf16.msra.mxu0 0
      %5078 = vmatprep.subr.bf16.mxu0 0
      %5079 = vmatpush2.bf16.msra.mxu0 0
      %5080 = vmatprep.subr.bf16.mxu0 0
      %5081 = vmatpush2.bf16.msra.mxu0 0
      %5082 = vmatprep.subr.bf16.mxu0 0
      %5083 = vmatpush2.bf16.msra.mxu0 0
      %5084 = vmatprep.subr.bf16.mxu0 0
      %5085 = vmatpush2.bf16.msra.mxu0 0
      %5086 = vmatprep.mubr.bf16.mxu0 0
      %5087 = vmatmul.mubr.bf16.gmra.mxu0 %v5052
      %v5088 = vpop.f32.mrf.mxu0
      %v5089 = vadd.f32 0.0, %v5088
      %v5090 = vpop.f32.mrf.mxu0
      %v5091 = vpop.f32.mrf.mxu0
      %v5092 = vpop.f32.mrf.mxu0
      %5093 = vdwg.mxu0
      %v5095 = vsel %vm1279, %v5048, 0
      %5097 = vmatprep.subr.bf16.mxu0 0
      %5098 = vmatpush1.bf16.msra.mxu0 0
      %5099 = vmatprep.subr.bf16.mxu0 0
      %5100 = vmatpush1.bf16.msra.mxu0 0
      %5101 = vmatprep.subr.bf16.mxu0 0
      %5102 = vmatpush1.bf16.msra.mxu0 0
      %5103 = vmatprep.subr.bf16.mxu0 0
      %5104 = vmatpush1.bf16.msra.mxu0 0
      %5105 = vmatprep.subr.bf16.mxu0 0
      %5106 = vmatpush1.bf16.msra.mxu0 0
      %5107 = vmatprep.subr.bf16.mxu0 0
      %5108 = vmatpush1.bf16.msra.mxu0 0
      %5109 = vmatprep.subr.bf16.mxu0 0
      %5110 = vmatpush1.bf16.msra.mxu0 0
      %5111 = vmatprep.subr.bf16.mxu0 0
      %5112 = vmatpush1.bf16.msra.mxu0 %v3844
      %5113 = vmatprep.subr.bf16.mxu0 0
      %5114 = vmatpush2.bf16.msra.mxu0 0
      %5115 = vmatprep.subr.bf16.mxu0 0
      %5116 = vmatpush2.bf16.msra.mxu0 0
      %5117 = vmatprep.subr.bf16.mxu0 0
      %5118 = vmatpush2.bf16.msra.mxu0 0
      %5119 = vmatprep.subr.bf16.mxu0 0
      %5120 = vmatpush2.bf16.msra.mxu0 0
      %5121 = vmatprep.subr.bf16.mxu0 0
      %5122 = vmatpush2.bf16.msra.mxu0 0
      %5123 = vmatprep.subr.bf16.mxu0 0
      %5124 = vmatpush2.bf16.msra.mxu0 0
      %5125 = vmatprep.subr.bf16.mxu0 0
      %5126 = vmatpush2.bf16.msra.mxu0 0
      %5127 = vmatprep.subr.bf16.mxu0 0
      %5128 = vmatpush2.bf16.msra.mxu0 0
      %5129 = vmatprep.mubr.bf16.mxu0 0
      %5130 = vmatmul.mubr.bf16.gmra.mxu0 %v5095
      %v5131 = vpop.f32.mrf.mxu0
      %v5132 = vadd.f32 0.0, %v5131
      %v5133 = vpop.f32.mrf.mxu0
      %v5134 = vpop.f32.mrf.mxu0
      %v5135 = vpop.f32.mrf.mxu0
      %5136 = vdwg.mxu0
      %v5138 = vsel %vm1279, %v5049, 0
      %5140 = vmatprep.subr.bf16.mxu0 0
      %5141 = vmatpush1.bf16.msra.mxu0 0
      %5142 = vmatprep.subr.bf16.mxu0 0
      %5143 = vmatpush1.bf16.msra.mxu0 0
      %5144 = vmatprep.subr.bf16.mxu0 0
      %5145 = vmatpush1.bf16.msra.mxu0 0
      %5146 = vmatprep.subr.bf16.mxu0 0
      %5147 = vmatpush1.bf16.msra.mxu0 0
      %5148 = vmatprep.subr.bf16.mxu0 0
      %5149 = vmatpush1.bf16.msra.mxu0 0
      %5150 = vmatprep.subr.bf16.mxu0 0
      %5151 = vmatpush1.bf16.msra.mxu0 0
      %5152 = vmatprep.subr.bf16.mxu0 0
      %5153 = vmatpush1.bf16.msra.mxu0 0
      %5154 = vmatprep.subr.bf16.mxu0 0
      %5155 = vmatpush1.bf16.msra.mxu0 %v3890
      %5156 = vmatprep.subr.bf16.mxu0 0
      %5157 = vmatpush2.bf16.msra.mxu0 0
      %5158 = vmatprep.subr.bf16.mxu0 0
      %5159 = vmatpush2.bf16.msra.mxu0 0
      %5160 = vmatprep.subr.bf16.mxu0 0
      %5161 = vmatpush2.bf16.msra.mxu0 0
      %5162 = vmatprep.subr.bf16.mxu0 0
      %5163 = vmatpush2.bf16.msra.mxu0 0
      %5164 = vmatprep.subr.bf16.mxu0 0
      %5165 = vmatpush2.bf16.msra.mxu0 0
      %5166 = vmatprep.subr.bf16.mxu0 0
      %5167 = vmatpush2.bf16.msra.mxu0 0
      %5168 = vmatprep.subr.bf16.mxu0 0
      %5169 = vmatpush2.bf16.msra.mxu0 0
      %5170 = vmatprep.subr.bf16.mxu0 0
      %5171 = vmatpush2.bf16.msra.mxu0 0
      %5172 = vmatprep.mubr.bf16.mxu0 0
      %5173 = vmatmul.mubr.bf16.gmra.mxu0 %v5138
      %v5174 = vpop.f32.mrf.mxu0
      %v5175 = vadd.f32 0.0, %v5174
      %v5176 = vpop.f32.mrf.mxu0
      %v5177 = vpop.f32.mrf.mxu0
      %v5178 = vpop.f32.mrf.mxu0
      %5179 = vdwg.mxu0
      %v5181 = vsel %vm1279, %v5050, 0
      %5183 = vmatprep.subr.bf16.mxu0 0
      %5184 = vmatpush1.bf16.msra.mxu0 0
      %5185 = vmatprep.subr.bf16.mxu0 0
      %5186 = vmatpush1.bf16.msra.mxu0 0
      %5187 = vmatprep.subr.bf16.mxu0 0
      %5188 = vmatpush1.bf16.msra.mxu0 0
      %5189 = vmatprep.subr.bf16.mxu0 0
      %5190 = vmatpush1.bf16.msra.mxu0 0
      %5191 = vmatprep.subr.bf16.mxu0 0
      %5192 = vmatpush1.bf16.msra.mxu0 0
      %5193 = vmatprep.subr.bf16.mxu0 0
      %5194 = vmatpush1.bf16.msra.mxu0 0
      %5195 = vmatprep.subr.bf16.mxu0 0
      %5196 = vmatpush1.bf16.msra.mxu0 0
      %5197 = vmatprep.subr.bf16.mxu0 0
      %5198 = vmatpush1.bf16.msra.mxu0 %v3936
      %5199 = vmatprep.subr.bf16.mxu0 0
      %5200 = vmatpush2.bf16.msra.mxu0 0
      %5201 = vmatprep.subr.bf16.mxu0 0
      %5202 = vmatpush2.bf16.msra.mxu0 0
      %5203 = vmatprep.subr.bf16.mxu0 0
      %5204 = vmatpush2.bf16.msra.mxu0 0
      %5205 = vmatprep.subr.bf16.mxu0 0
      %5206 = vmatpush2.bf16.msra.mxu0 0
      %5207 = vmatprep.subr.bf16.mxu0 0
      %5208 = vmatpush2.bf16.msra.mxu0 0
      %5209 = vmatprep.subr.bf16.mxu0 0
      %5210 = vmatpush2.bf16.msra.mxu0 0
      %5211 = vmatprep.subr.bf16.mxu0 0
      %5212 = vmatpush2.bf16.msra.mxu0 0
      %5213 = vmatprep.subr.bf16.mxu0 0
      %5214 = vmatpush2.bf16.msra.mxu0 0
      %5215 = vmatprep.mubr.bf16.mxu0 0
      %5216 = vmatmul.mubr.bf16.gmra.mxu0 %v5181
      %v5217 = vpop.f32.mrf.mxu0
      %v5218 = vadd.f32 0.0, %v5217
      %v5219 = vpop.f32.mrf.mxu0
      %v5220 = vpop.f32.mrf.mxu0
      %v5221 = vpop.f32.mrf.mxu0
      %5222 = vdwg.mxu0
      %v5223 = vmul.f32 %v5089, %v4821
      %v5224 = vmul.f32 %v5132, %v4821
      %v5225 = vmul.f32 %v5175, %v4821
      %v5226 = vmul.f32 %v5218, %v4821
      %v5227 = vadd.f32 %v4812, %v5223
      %v5228 = vadd.f32 %v4813, %v5224
      %v5229 = vadd.f32 %v4814, %v5225
      %v5230 = vadd.f32 %v4815, %v5226
      %s5231 = scalar_lea.vmem %s11, 32
      %v5232 = vld [vmem:[%s5231] sm:$0xf]
      %v5233 = vld [vmem:[%s5231 + $0x4] sm:$0xf]
      %v5234 = vld [vmem:[%s5231 + $0x8] sm:$0xf]
      %v5235 = vld [vmem:[%s5231 + $0xc] sm:$0xf]
      %v5236 = vld [vmem:[%s5231 + $0x10] sm:$0xf]
      %v5237 = vld [vmem:[%s5231 + $0x14] sm:$0xf]
      %v5238 = vld [vmem:[%s5231 + $0x18] sm:$0xf]
      %v5239 = vld [vmem:[%s5231 + $0x1c] sm:$0xf]
      %v5240 = vpack.c.bf16 %v5228, %v5227
      %v5241 = vpack.c.bf16 %v5230, %v5229
      %s5242 = scalar_lea.vmem %s12, 1
      %v5243 = vld [vmem:[%s5242] sm:$0x1]
      %v5245 = vlaneseq
      %v5246 = vshrl.u32 %v5245, 7
      %v5247 = vsub.s32 0, %v5246
      %v5248 = vrot.slane %v5243, %v5247
      %v5258 = vunpack.c.l.b16 %v5232
      %v5259 = vunpack.c.l.b16 %v5233
      %v5260 = vunpack.c.l.b16 %v5234
      %v5261 = vunpack.c.l.b16 %v5235
      %v5262 = vunpack.c.l.b16 %v5236
      %v5263 = vunpack.c.l.b16 %v5237
      %v5264 = vunpack.c.l.b16 %v5238
      %v5265 = vunpack.c.l.b16 %v5239
      %v5266 = vpack.c.b16 %v5259, %v5258
      %v5267 = vpack.c.b16 %v5261, %v5260
      %v5268 = vpack.c.b16 %v5263, %v5262
      %v5269 = vpack.c.b16 %v5265, %v5264
      %v5275 = vsel %vm731, %v5240, 0
      %v5278 = vsel %vm731, %v5241, 0
      %5280 = vmatprep.subr.bf16.mxu0 0
      %5281 = vmatpush1.bf16.msra.mxu0 0
      %5282 = vmatprep.subr.bf16.mxu0 0
      %5283 = vmatpush1.bf16.msra.mxu0 0
      %5284 = vmatprep.subr.bf16.mxu0 0
      %5285 = vmatpush1.bf16.msra.mxu0 0
      %5286 = vmatprep.subr.bf16.mxu0 0
      %5287 = vmatpush1.bf16.msra.mxu0 0
      %5288 = vmatprep.subr.bf16.mxu0 0
      %5289 = vmatpush1.bf16.msra.mxu0 %v5269
      %5290 = vmatprep.subr.bf16.mxu0 0
      %5291 = vmatpush1.bf16.msra.mxu0 %v5268
      %5292 = vmatprep.subr.bf16.mxu0 0
      %5293 = vmatpush1.bf16.msra.mxu0 %v5267
      %5294 = vmatprep.subr.bf16.mxu0 0
      %5295 = vmatpush1.bf16.msra.mxu0 %v5266
      %5296 = vmatprep.subr.bf16.mxu0 0
      %5297 = vmatpush2.bf16.msra.mxu0 0
      %5298 = vmatprep.subr.bf16.mxu0 0
      %5299 = vmatpush2.bf16.msra.mxu0 0
      %5300 = vmatprep.subr.bf16.mxu0 0
      %5301 = vmatpush2.bf16.msra.mxu0 0
      %5302 = vmatprep.subr.bf16.mxu0 0
      %5303 = vmatpush2.bf16.msra.mxu0 0
      %5304 = vmatprep.subr.bf16.mxu0 0
      %5305 = vmatpush2.bf16.msra.mxu0 0
      %5306 = vmatprep.subr.bf16.mxu0 0
      %5307 = vmatpush2.bf16.msra.mxu0 0
      %5308 = vmatprep.subr.bf16.mxu0 0
      %5309 = vmatpush2.bf16.msra.mxu0 0
      %5310 = vmatprep.subr.bf16.mxu0 0
      %5311 = vmatpush2.bf16.msra.mxu0 0
      %5312 = vmatprep.mubr.bf16.mxu0 0
      %5313 = vmatmul.mubr.bf16.gmra.mxu0 %v5275
      %v5314 = vpop.f32.mrf.mxu0
      %v5315 = vadd.f32 %v5248, %v5314
      %v5316 = vpop.f32.mrf.mxu0
      %v5317 = vpop.f32.mrf.mxu0
      %v5318 = vadd.f32 %v5248, %v5317
      %v5319 = vpop.f32.mrf.mxu0
      %5320 = vmatprep.mubr.bf16.mxu0 0
      %5321 = vmatmul.mubr.bf16.gmra.mxu0 %v5278
      %v5322 = vpop.f32.mrf.mxu0
      %v5323 = vadd.f32 %v5248, %v5322
      %v5324 = vpop.f32.mrf.mxu0
      %v5325 = vpop.f32.mrf.mxu0
      %v5326 = vadd.f32 %v5248, %v5325
      %v5327 = vpop.f32.mrf.mxu0
      %5328 = vdwg.mxu0
      %v5329 = vadd.f32 %v3324, %v5315
      %v5330 = vadd.f32 %v3325, %v5318
      %v5331 = vadd.f32 %v3326, %v5323
      %v5332 = vadd.f32 %v3327, %v5326
      %s5333 = scalar_lea.vmem %s13, 1
      %v5334 = vld [vmem:[%s5333] sm:$0x1]
      %s5335 = scalar_lea.vmem %s14, 1
      %v5336 = vld [vmem:[%s5335] sm:$0x1]
      %v5337 = vsel %vm731, %v5329, 0.0
      %5338 = vadd.xlane.f32.xlu0 %v5337
      %v5339 = vpop.xlane.xlu0 %5338
      %v5340 = vsel %vm731, %v5330, 0.0
      %5341 = vadd.xlane.f32.xlu0 %v5340
      %v5342 = vpop.xlane.xlu0 %5341
      %v5343 = vsel %vm731, %v5331, 0.0
      %5344 = vadd.xlane.f32.xlu0 %v5343
      %v5345 = vpop.xlane.xlu0 %5344
      %v5346 = vsel %vm731, %v5332, 0.0
      %5347 = vadd.xlane.f32.xlu0 %v5346
      %v5348 = vpop.xlane.xlu0 %5347
      %v5349 = vmul.f32 %v5339, %v801
      %v5350 = vmul.f32 %v5342, %v801
      %v5351 = vmul.f32 %v5345, %v801
      %v5352 = vmul.f32 %v5348, %v801
      %v5353 = vsub.f32 %v5329, %v5349
      %v5354 = vsub.f32 %v5330, %v5350
      %v5355 = vsub.f32 %v5331, %v5351
      %v5356 = vsub.f32 %v5332, %v5352
      %v5357 = vmul.f32 %v5353, %v5353
      %v5358 = vmul.f32 %v5354, %v5354
      %v5359 = vmul.f32 %v5355, %v5355
      %v5360 = vmul.f32 %v5356, %v5356
      %v5361 = vsel %vm731, %v5357, 0.0
      %5362 = vadd.xlane.f32.xlu0 %v5361
      %v5363 = vpop.xlane.xlu0 %5362
      %v5364 = vsel %vm731, %v5358, 0.0
      %5365 = vadd.xlane.f32.xlu0 %v5364
      %v5366 = vpop.xlane.xlu0 %5365
      %v5367 = vsel %vm731, %v5359, 0.0
      %5368 = vadd.xlane.f32.xlu0 %v5367
      %v5369 = vpop.xlane.xlu0 %5368
      %v5370 = vsel %vm731, %v5360, 0.0
      %5371 = vadd.xlane.f32.xlu0 %v5370
      %v5372 = vpop.xlane.xlu0 %5371
      %v5373 = vmul.f32 %v5363, %v801
      %v5374 = vmul.f32 %v5366, %v801
      %v5375 = vmul.f32 %v5369, %v801
      %v5376 = vmul.f32 %v5372, %v801
      %v5377 = vadd.f32 %v5373, 1e-05
      %v5378 = vadd.f32 %v5374, 1e-05
      %v5379 = vadd.f32 %v5375, 1e-05
      %v5380 = vadd.f32 %v5376, 1e-05
      %v5381 = vrsqrt.pop %v5377
      %v5382 = vrsqrt.pop %v5378
      %v5383 = vrsqrt.pop %v5379
      %v5384 = vrsqrt.pop %v5380
      %v5385 = vmul.f32 %v5353, %v5381
      %v5386 = vmul.f32 %v5354, %v5382
      %v5387 = vmul.f32 %v5355, %v5383
      %v5388 = vmul.f32 %v5356, %v5384
      %v5390 = vlaneseq
      %v5391 = vshrl.u32 %v5390, 7
      %v5392 = vsub.s32 0, %v5391
      %v5393 = vrot.slane %v5334, %v5392
      %v5395 = vmul.f32 %v5385, %v5393
      %v5396 = vmul.f32 %v5386, %v5393
      %v5397 = vmul.f32 %v5387, %v5393
      %v5398 = vmul.f32 %v5388, %v5393
      %v5400 = vlaneseq
      %v5401 = vshrl.u32 %v5400, 7
      %v5402 = vsub.s32 0, %v5401
      %v5403 = vrot.slane %v5336, %v5402
      %v5405 = vadd.f32 %v5395, %v5403
      %v5406 = vadd.f32 %v5396, %v5403
      %v5407 = vadd.f32 %v5397, %v5403
      %v5408 = vadd.f32 %v5398, %v5403
      %s5409 = scalar_lea.vmem %s15, 64
      %v5410 = vld [vmem:[%s5409] sm:$0xff]
      %v5411 = vld [vmem:[%s5409 + $0x8] sm:$0xff]
      %v5412 = vld [vmem:[%s5409 + $0x10] sm:$0xff]
      %v5413 = vld [vmem:[%s5409 + $0x18] sm:$0xff]
      %v5414 = vld [vmem:[%s5409 + $0x20] sm:$0xff]
      %v5415 = vld [vmem:[%s5409 + $0x28] sm:$0xff]
      %v5416 = vld [vmem:[%s5409 + $0x30] sm:$0xff]
      %v5417 = vld [vmem:[%s5409 + $0x38] sm:$0xff]
      %v5418 = vpack.c.bf16 %v5406, %v5405
      %v5419 = vpack.c.bf16 %v5408, %v5407
      %s5420 = scalar_lea.vmem %s16, 2
      %v5421 = vld [vmem:[%s5420] sm:$0x3]
      %v5423 = vlaneseq
      %v5424 = vshrl.u32 %v5423, 7
      %v5425 = vsub.s32 0, %v5424
      %v5426 = vrot.slane %v5421, %v5425
      %v5427 = vlaneseq
      %v5428 = vshrl.u32 %v5427, 7
      %v5429 = vsub.s32 1, %v5428
      %v5430 = vrot.slane %v5421, %v5429
      %v5441 = vunpack.c.l.b16 %v5410
      %v5442 = vunpack.c.h.b16 %v5410
      %v5443 = vunpack.c.l.b16 %v5411
      %v5444 = vunpack.c.h.b16 %v5411
      %v5445 = vunpack.c.l.b16 %v5412
      %v5446 = vunpack.c.h.b16 %v5412
      %v5447 = vunpack.c.l.b16 %v5413
      %v5448 = vunpack.c.h.b16 %v5413
      %v5449 = vunpack.c.l.b16 %v5414
      %v5450 = vunpack.c.h.b16 %v5414
      %v5451 = vunpack.c.l.b16 %v5415
      %v5452 = vunpack.c.h.b16 %v5415
      %v5453 = vunpack.c.l.b16 %v5416
      %v5454 = vunpack.c.h.b16 %v5416
      %v5455 = vunpack.c.l.b16 %v5417
      %v5456 = vunpack.c.h.b16 %v5417
      %v5457 = vpack.c.b16 %v5443, %v5441
      %v5458 = vpack.c.b16 %v5444, %v5442
      %v5459 = vpack.c.b16 %v5447, %v5445
      %v5460 = vpack.c.b16 %v5448, %v5446
      %v5461 = vpack.c.b16 %v5451, %v5449
      %v5462 = vpack.c.b16 %v5452, %v5450
      %v5463 = vpack.c.b16 %v5455, %v5453
      %v5464 = vpack.c.b16 %v5456, %v5454
      %v5474 = vsel %vm731, %v5418, 0
      %v5477 = vsel %vm731, %v5419, 0
      %5479 = vmatprep.subr.bf16.mxu0 0
      %5480 = vmatpush1.bf16.msra.mxu0 0
      %5481 = vmatprep.subr.bf16.mxu0 0
      %5482 = vmatpush1.bf16.msra.mxu0 0
      %5483 = vmatprep.subr.bf16.mxu0 0
      %5484 = vmatpush1.bf16.msra.mxu0 0
      %5485 = vmatprep.subr.bf16.mxu0 0
      %5486 = vmatpush1.bf16.msra.mxu0 0
      %5487 = vmatprep.subr.bf16.mxu0 %v5464
      %5488 = vmatpush1.bf16.msra.mxu0 %v5463
      %5489 = vmatprep.subr.bf16.mxu0 %v5462
      %5490 = vmatpush1.bf16.msra.mxu0 %v5461
      %5491 = vmatprep.subr.bf16.mxu0 %v5460
      %5492 = vmatpush1.bf16.msra.mxu0 %v5459
      %5493 = vmatprep.subr.bf16.mxu0 %v5458
      %5494 = vmatpush1.bf16.msra.mxu0 %v5457
      %5495 = vmatprep.subr.bf16.mxu0 0
      %5496 = vmatpush2.bf16.msra.mxu0 0
      %5497 = vmatprep.subr.bf16.mxu0 0
      %5498 = vmatpush2.bf16.msra.mxu0 0
      %5499 = vmatprep.subr.bf16.mxu0 0
      %5500 = vmatpush2.bf16.msra.mxu0 0
      %5501 = vmatprep.subr.bf16.mxu0 0
      %5502 = vmatpush2.bf16.msra.mxu0 0
      %5503 = vmatprep.subr.bf16.mxu0 0
      %5504 = vmatpush2.bf16.msra.mxu0 0
      %5505 = vmatprep.subr.bf16.mxu0 0
      %5506 = vmatpush2.bf16.msra.mxu0 0
      %5507 = vmatprep.subr.bf16.mxu0 0
      %5508 = vmatpush2.bf16.msra.mxu0 0
      %5509 = vmatprep.subr.bf16.mxu0 0
      %5510 = vmatpush2.bf16.msra.mxu0 0
      %5511 = vmatprep.mubr.bf16.mxu0 0
      %5512 = vmatmul.mubr.bf16.gmra.mxu0 %v5474
      %v5513 = vpop.f32.mrf.mxu0
      %v5514 = vadd.f32 %v5426, %v5513
      %v5515 = vpop.f32.mrf.mxu0
      %v5516 = vadd.f32 %v5430, %v5515
      %v5517 = vpop.f32.mrf.mxu0
      %v5518 = vadd.f32 %v5426, %v5517
      %v5519 = vpop.f32.mrf.mxu0
      %v5520 = vadd.f32 %v5430, %v5519
      %5521 = vmatprep.mubr.bf16.mxu0 0
      %5522 = vmatmul.mubr.bf16.gmra.mxu0 %v5477
      %v5523 = vpop.f32.mrf.mxu0
      %v5524 = vadd.f32 %v5426, %v5523
      %v5525 = vpop.f32.mrf.mxu0
      %v5526 = vadd.f32 %v5430, %v5525
      %v5527 = vpop.f32.mrf.mxu0
      %v5528 = vadd.f32 %v5426, %v5527
      %v5529 = vpop.f32.mrf.mxu0
      %v5530 = vadd.f32 %v5430, %v5529
      %5531 = vdwg.mxu0
      %v5532 = vmul.f32 %v5514, 1.702
      %v5533 = vmul.f32 %v5516, 1.702
      %v5534 = vmul.f32 %v5518, 1.702
      %v5535 = vmul.f32 %v5520, 1.702
      %v5536 = vmul.f32 %v5524, 1.702
      %v5537 = vmul.f32 %v5526, 1.702
      %v5538 = vmul.f32 %v5528, 1.702
      %v5539 = vmul.f32 %v5530, 1.702
      %v5540 = vxor.u32 %v5532, 2147483648
      %v5541 = vxor.u32 %v5533, 2147483648
      %v5542 = vxor.u32 %v5534, 2147483648
      %v5543 = vxor.u32 %v5535, 2147483648
      %v5544 = vxor.u32 %v5536, 2147483648
      %v5545 = vxor.u32 %v5537, 2147483648
      %v5546 = vxor.u32 %v5538, 2147483648
      %v5547 = vxor.u32 %v5539, 2147483648
      %v5548 = vmul.f32 %v5540, 1.442695
      %v5549 = vpow.pop %v5548
      %v5550 = vmul.f32 %v5541, 1.442695
      %v5551 = vpow.pop %v5550
      %v5552 = vmul.f32 %v5542, 1.442695
      %v5553 = vpow.pop %v5552
      %v5554 = vmul.f32 %v5543, 1.442695
      %v5555 = vpow.pop %v5554
      %v5556 = vmul.f32 %v5544, 1.442695
      %v5557 = vpow.pop %v5556
      %v5558 = vmul.f32 %v5545, 1.442695
      %v5559 = vpow.pop %v5558
      %v5560 = vmul.f32 %v5546, 1.442695
      %v5561 = vpow.pop %v5560
      %v5562 = vmul.f32 %v5547, 1.442695
      %v5563 = vpow.pop %v5562
      %v5564 = vadd.f32 %v5549, 1.0
      %v5565 = vadd.f32 %v5551, 1.0
      %v5566 = vadd.f32 %v5553, 1.0
      %v5567 = vadd.f32 %v5555, 1.0
      %v5568 = vadd.f32 %v5557, 1.0
      %v5569 = vadd.f32 %v5559, 1.0
      %v5570 = vadd.f32 %v5561, 1.0
      %v5571 = vadd.f32 %v5563, 1.0
      %v5572 = vrcp.pop %v5564
      %v5573 = vmul.f32 1.0, %v5572
      %v5574 = vrcp.pop %v5565
      %v5575 = vmul.f32 1.0, %v5574
      %v5576 = vrcp.pop %v5566
      %v5577 = vmul.f32 1.0, %v5576
      %v5578 = vrcp.pop %v5567
      %v5579 = vmul.f32 1.0, %v5578
      %v5580 = vrcp.pop %v5568
      %v5581 = vmul.f32 1.0, %v5580
      %v5582 = vrcp.pop %v5569
      %v5583 = vmul.f32 1.0, %v5582
      %v5584 = vrcp.pop %v5570
      %v5585 = vmul.f32 1.0, %v5584
      %v5586 = vrcp.pop %v5571
      %v5587 = vmul.f32 1.0, %v5586
      %v5588 = vmul.f32 %v5514, %v5573
      %v5589 = vmul.f32 %v5516, %v5575
      %v5590 = vmul.f32 %v5518, %v5577
      %v5591 = vmul.f32 %v5520, %v5579
      %v5592 = vmul.f32 %v5524, %v5581
      %v5593 = vmul.f32 %v5526, %v5583
      %v5594 = vmul.f32 %v5528, %v5585
      %v5595 = vmul.f32 %v5530, %v5587
      %s5596 = scalar_lea.vmem %s17, 128
      %v5597 = vld [vmem:[%s5596] sm:$0xf]
      %v5598 = vld [vmem:[%s5596 + $0x4] sm:$0xf]
      %v5599 = vld [vmem:[%s5596 + $0x8] sm:$0xf]
      %v5600 = vld [vmem:[%s5596 + $0xc] sm:$0xf]
      %v5601 = vld [vmem:[%s5596 + $0x10] sm:$0xf]
      %v5602 = vld [vmem:[%s5596 + $0x14] sm:$0xf]
      %v5603 = vld [vmem:[%s5596 + $0x18] sm:$0xf]
      %v5604 = vld [vmem:[%s5596 + $0x1c] sm:$0xf]
      %v5605 = vld [vmem:[%s5596 + $0x20] sm:$0xf]
      %v5606 = vld [vmem:[%s5596 + $0x24] sm:$0xf]
      %v5607 = vld [vmem:[%s5596 + $0x28] sm:$0xf]
      %v5608 = vld [vmem:[%s5596 + $0x2c] sm:$0xf]
      %v5609 = vld [vmem:[%s5596 + $0x30] sm:$0xf]
      %v5610 = vld [vmem:[%s5596 + $0x34] sm:$0xf]
      %v5611 = vld [vmem:[%s5596 + $0x38] sm:$0xf]
      %v5612 = vld [vmem:[%s5596 + $0x3c] sm:$0xf]
      %v5613 = vld [vmem:[%s5596 + $0x40] sm:$0xf]
      %v5614 = vld [vmem:[%s5596 + $0x44] sm:$0xf]
      %v5615 = vld [vmem:[%s5596 + $0x48] sm:$0xf]
      %v5616 = vld [vmem:[%s5596 + $0x4c] sm:$0xf]
      %v5617 = vld [vmem:[%s5596 + $0x50] sm:$0xf]
      %v5618 = vld [vmem:[%s5596 + $0x54] sm:$0xf]
      %v5619 = vld [vmem:[%s5596 + $0x58] sm:$0xf]
      %v5620 = vld [vmem:[%s5596 + $0x5c] sm:$0xf]
      %v5621 = vld [vmem:[%s5596 + $0x60] sm:$0xf]
      %v5622 = vld [vmem:[%s5596 + $0x64] sm:$0xf]
      %v5623 = vld [vmem:[%s5596 + $0x68] sm:$0xf]
      %v5624 = vld [vmem:[%s5596 + $0x6c] sm:$0xf]
      %v5625 = vld [vmem:[%s5596 + $0x70] sm:$0xf]
      %v5626 = vld [vmem:[%s5596 + $0x74] sm:$0xf]
      %v5627 = vld [vmem:[%s5596 + $0x78] sm:$0xf]
      %v5628 = vld [vmem:[%s5596 + $0x7c] sm:$0xf]
      %v5629 = vpack.c.bf16 %v5590, %v5588
      %v5630 = vpack.c.bf16 %v5591, %v5589
      %v5631 = vpack.c.bf16 %v5594, %v5592
      %v5632 = vpack.c.bf16 %v5595, %v5593
      %v5665 = vunpack.c.l.b16 %v5597
      %v5666 = vunpack.c.l.b16 %v5598
      %v5667 = vunpack.c.l.b16 %v5599
      %v5668 = vunpack.c.l.b16 %v5600
      %v5669 = vunpack.c.l.b16 %v5601
      %v5670 = vunpack.c.l.b16 %v5602
      %v5671 = vunpack.c.l.b16 %v5603
      %v5672 = vunpack.c.l.b16 %v5604
      %v5673 = vunpack.c.l.b16 %v5605
      %v5674 = vunpack.c.l.b16 %v5606
      %v5675 = vunpack.c.l.b16 %v5607
      %v5676 = vunpack.c.l.b16 %v5608
      %v5677 = vunpack.c.l.b16 %v5609
      %v5678 = vunpack.c.l.b16 %v5610
      %v5679 = vunpack.c.l.b16 %v5611
      %v5680 = vunpack.c.l.b16 %v5612
      %v5681 = vunpack.c.l.b16 %v5613
      %v5682 = vunpack.c.l.b16 %v5614
      %v5683 = vunpack.c.l.b16 %v5615
      %v5684 = vunpack.c.l.b16 %v5616
      %v5685 = vunpack.c.l.b16 %v5617
      %v5686 = vunpack.c.l.b16 %v5618
      %v5687 = vunpack.c.l.b16 %v5619
      %v5688 = vunpack.c.l.b16 %v5620
      %v5689 = vunpack.c.l.b16 %v5621
      %v5690 = vunpack.c.l.b16 %v5622
      %v5691 = vunpack.c.l.b16 %v5623
      %v5692 = vunpack.c.l.b16 %v5624
      %v5693 = vunpack.c.l.b16 %v5625
      %v5694 = vunpack.c.l.b16 %v5626
      %v5695 = vunpack.c.l.b16 %v5627
      %v5696 = vunpack.c.l.b16 %v5628
      %v5697 = vpack.c.b16 %v5666, %v5665
      %v5698 = vpack.c.b16 %v5668, %v5667
      %v5699 = vpack.c.b16 %v5670, %v5669
      %v5700 = vpack.c.b16 %v5672, %v5671
      %v5701 = vpack.c.b16 %v5674, %v5673
      %v5702 = vpack.c.b16 %v5676, %v5675
      %v5703 = vpack.c.b16 %v5678, %v5677
      %v5704 = vpack.c.b16 %v5680, %v5679
      %v5705 = vpack.c.b16 %v5682, %v5681
      %v5706 = vpack.c.b16 %v5684, %v5683
      %v5707 = vpack.c.b16 %v5686, %v5685
      %v5708 = vpack.c.b16 %v5688, %v5687
      %v5709 = vpack.c.b16 %v5690, %v5689
      %v5710 = vpack.c.b16 %v5692, %v5691
      %v5711 = vpack.c.b16 %v5694, %v5693
      %v5712 = vpack.c.b16 %v5696, %v5695
      %5729 = vmatprep.subr.bf16.mxu0 0
      %5730 = vmatpush1.bf16.msra.mxu0 %v5704
      %5731 = vmatprep.subr.bf16.mxu0 0
      %5732 = vmatpush1.bf16.msra.mxu0 %v5703
      %5733 = vmatprep.subr.bf16.mxu0 0
      %5734 = vmatpush1.bf16.msra.mxu0 %v5702
      %5735 = vmatprep.subr.bf16.mxu0 0
      %5736 = vmatpush1.bf16.msra.mxu0 %v5701
      %5737 = vmatprep.subr.bf16.mxu0 0
      %5738 = vmatpush1.bf16.msra.mxu0 %v5700
      %5739 = vmatprep.subr.bf16.mxu0 0
      %5740 = vmatpush1.bf16.msra.mxu0 %v5699
      %5741 = vmatprep.subr.bf16.mxu0 0
      %5742 = vmatpush1.bf16.msra.mxu0 %v5698
      %5743 = vmatprep.subr.bf16.mxu0 0
      %5744 = vmatpush1.bf16.msra.mxu0 %v5697
      %5745 = vmatprep.subr.bf16.mxu0 0
      %5746 = vmatpush2.bf16.msra.mxu0 %v5712
      %5747 = vmatprep.subr.bf16.mxu0 0
      %5748 = vmatpush2.bf16.msra.mxu0 %v5711
      %5749 = vmatprep.subr.bf16.mxu0 0
      %5750 = vmatpush2.bf16.msra.mxu0 %v5710
      %5751 = vmatprep.subr.bf16.mxu0 0
      %5752 = vmatpush2.bf16.msra.mxu0 %v5709
      %5753 = vmatprep.subr.bf16.mxu0 0
      %5754 = vmatpush2.bf16.msra.mxu0 %v5708
      %5755 = vmatprep.subr.bf16.mxu0 0
      %5756 = vmatpush2.bf16.msra.mxu0 %v5707
      %5757 = vmatprep.subr.bf16.mxu0 0
      %5758 = vmatpush2.bf16.msra.mxu0 %v5706
      %5759 = vmatprep.subr.bf16.mxu0 0
      %5760 = vmatpush2.bf16.msra.mxu0 %v5705
      %5761 = vmatprep.mubr.bf16.mxu0 %v5630
      %5762 = vmatmul.mubr.bf16.gmra.mxu0 %v5629
      %v5763 = vpop.f32.mrf.mxu0
      %v5764 = vadd.f32 0.0, %v5763
      %v5765 = vpop.f32.mrf.mxu0
      %v5766 = vpop.f32.mrf.mxu0
      %v5767 = vadd.f32 0.0, %v5766
      %v5768 = vpop.f32.mrf.mxu0
      %5769 = vmatprep.mubr.bf16.mxu0 %v5632
      %5770 = vmatmul.mubr.bf16.gmra.mxu0 %v5631
      %v5771 = vpop.f32.mrf.mxu0
      %v5772 = vadd.f32 0.0, %v5771
      %v5773 = vpop.f32.mrf.mxu0
      %v5774 = vpop.f32.mrf.mxu0
      %v5775 = vadd.f32 0.0, %v5774
      %v5776 = vpop.f32.mrf.mxu0
      %5777 = vdwg.mxu0
      %v5778 = vadd.f32 %v5329, %v5764
      %v5779 = vadd.f32 %v5330, %v5767
      %v5780 = vadd.f32 %v5331, %v5772
      %v5781 = vadd.f32 %v5332, %v5775
      %s5782 = scalar_lea.vmem %s18, 1
      %v5783 = vld [vmem:[%s5782] sm:$0x1]
      %v5785 = vlaneseq
      %v5786 = vshrl.u32 %v5785, 7
      %v5787 = vsub.s32 0, %v5786
      %v5788 = vrot.slane %v5783, %v5787
      %v5790 = vadd.f32 %v5778, %v5788
      %v5791 = vadd.f32 %v5779, %v5788
      %v5792 = vadd.f32 %v5780, %v5788
      %v5793 = vadd.f32 %v5781, %v5788
      %v5798 = vrot.slane %v5791, 7
      %vm5799 = vcmask 1042434
      %v5800 = vsel %vm5799, %v5798, %v5790
      %v5801 = vrot.slane %v5792, 6
      %vm5802 = vcmask 1043459
      %v5803 = vsel %vm5802, %v5801, %v5800
      %v5804 = vrot.slane %v5793, 5
      %vm5805 = vcmask 1044484
      %v5806 = vsel %vm5805, %v5804, %v5803
      %v5808 = vrot.slane %v5790, 1
      %v5809 = vsel %vm5799, %v5791, %v5808
      %v5810 = vrot.slane %v5792, 7
      %v5811 = vsel %vm5802, %v5810, %v5809
      %v5812 = vrot.slane %v5793, 6
      %v5813 = vsel %vm5805, %v5812, %v5811
      %5814 = vrot.lane.b32.xlu0 %v5813, 64
      %v5815 = vpop.permute.xlu0 %5814
      %v5817 = vrot.slane %v5790, 2
      %v5818 = vrot.slane %v5791, 1
      %v5819 = vsel %vm5799, %v5818, %v5817
      %v5820 = vsel %vm5802, %v5792, %v5819
      %v5821 = vrot.slane %v5793, 7
      %v5822 = vsel %vm5805, %v5821, %v5820
      %v5824 = vrot.slane %v5790, 3
      %v5825 = vrot.slane %v5791, 2
      %v5826 = vsel %vm5799, %v5825, %v5824
      %v5827 = vrot.slane %v5792, 1
      %v5828 = vsel %vm5802, %v5827, %v5826
      %v5829 = vsel %vm5805, %v5793, %v5828
      %5830 = vrot.lane.b32.xlu0 %v5829, 64
      %v5831 = vpop.permute.xlu0 %5830
      %v5833 = vsel %vm731, %v5806, %v5815
      %v5834 = vsel %vm731, %v5822, %v5831
      %v5837 = vcombine.low %v5833, %v5834
      %v5838 = vcombine.high %v5833, %v5834
      %vm5839 = vcmask 1042432
      %vm5840 = vcmask 1046532
      %vm5841 = vmor %vm5839, %vm5840
      %v5842 = vrot.slane %v5837, 5
      %v5843 = vrot.slane %v5842, 4
      %v5844 = vrot.slane %v5838, 5
      %v5845 = vsel %vm5841, %v5843, %v5844
      %5847 = vst [vmem:[%s607] sm:$0xff] %v5845
      %p5848 = scmp.lt.s32.totalorder %s30, 1
      %s5849 = scalar_select %p5848, %s30, 1
      %s5850 = smul.addr %s5849, 2
      %s5851 = smul.addr %s5850, 4
      %s5852 = scalar_lea.vmem %s19, %s5851
      // Predicated region
      $region97: #{clip_vision_tower_forward.1} parent=95 // pred_check
        %p5853 = pneg %p452
      $region98: #{clip_vision_tower_forward.1} parent=95 // pred_check_branch
        %5855 = sbr.rel (%p5853) target = $region100
      $region99: #{clip_vision_tower_forward.1} parent=95 // pred_region
        _
      $region100: #{clip_vision_tower_forward.1} parent=95 // pred_fallthru
        _
    $region96: #{clip_vision_tower_forward.1} parent=5 // pred_fallthru
      _
    %p5856 = scmp.le.s32.totalorder 2, %s25
    // Predicated region
    $region101: #{clip_vision_tower_forward.1} parent=5 // pred_check
      %p5857 = pneg %p5856
    $region102: #{clip_vision_tower_forward.1} parent=5 // pred_check_branch
      %5859 = sbr.rel (%p5857) target = $region104
    $region103: #{clip_vision_tower_forward.1} parent=5 // pred_region
      %s5860 = ssub.s32 %s25, 2
      // Predicated region
      $region105: #{clip_vision_tower_forward.1} parent=103 // pred_check
        %p5861 = pneg %p458
      $region106: #{clip_vision_tower_forward.1} parent=103 // pred_check_branch
        %5863 = sbr.rel (%p5861) target = $region108
      $region107: #{clip_vision_tower_forward.1} parent=103 // pred_region
        %p5864 = scmp.lt.s32.totalorder %s31, 1
        %s5865 = scalar_select %p5864, %s31, 1
        %s5866 = smul.addr %s5865, 2
        %s5867 = smul.addr %s5866, 4
        %s5868 = scalar_lea.vmem %s19, %s5867
      $region108: #{clip_vision_tower_forward.1} parent=103 // pred_fallthru
        _
    $region104: #{clip_vision_tower_forward.1} parent=5 // pred_fallthru
      _
  $region6: #{clip_vision_tower_forward.1} parent=0 // loop_footer
    %s29 = sadd.s32 1, %s25
  $region7: #{clip_vision_tower_forward.1} parent=0 // loop_footer_branch
    %24 = sbr.rel target = $region3
  $region8: #{clip_vision_tower_forward.1} parent=0 // loop_exit
    _

</llo_original>
